<compile_context>
chip_gen: v5e
topology: v5e:2x2
jax: 0.10.0
libtpu: 0.0.40
codegen_flags: <defaults>
</compile_context>

<pallas_src>
import functools

import numpy as np
import jax
import jax.numpy as jnp
from jax.experimental import pallas as pl
from jax.experimental.pallas import tpu as pltpu

BINS = (3, 6, 9, 12)


# ----------------------------------------------------------------------------
# GELU: tanh form (jax.nn.gelu(approximate=True)).  tanh lowers to the EUP
# slot, which is otherwise idle in this elementwise-heavy / tiny-matmul
# workload, so GELU becomes near-free filler.  Deviation from the exact erf
# GELU of torch.nn.GELU() is <~1e-3 absolute.
# ----------------------------------------------------------------------------
_SQRT_2_OVER_PI = 0.7978845608028654


def _gelu(x):
    x3 = x * x * x
    return 0.5 * x * (1.0 + jnp.tanh(_SQRT_2_OVER_PI * (x + 0.044715 * x3)))


# ----------------------------------------------------------------------------
# row-tile selection for the flattened (B*H*W, C) matmul kernels.
# Large tiles amortize per-grid-step overhead (128 -> ~29% of HBM roofline,
# 512 -> ~85%), but keep >=2 blocks when possible so both v7x TensorCores get
# work.  At realistic sizes the candidates below stay far under the 32 MiB
# default scoped-VMEM budget (and v7x's 64 MiB physical VMEM) for these narrow
# channel widths.
# ----------------------------------------------------------------------------
def _row_block(n):
    for bm in (1024, 512, 256, 128):
        if n % bm == 0 and n // bm >= 2:
            return bm
    for bm in (1024, 512, 256, 128):
        if n % bm == 0:
            return bm
    return n  # single full block (legal: equals full array dim)


# ----------------------------------------------------------------------------
# Pallas kernels
# ----------------------------------------------------------------------------
def _down_slab_kernel(x_ref, dw_ref, db_ref, sw_ref, down_ref, slab_ref):
    # down = GELU(x @ down_w + down_b); slab = down @ [w1_bin3|w1_bin6|...]
    # (bin 1x1 convs hoisted above pooling; their biases are added after
    # pooling in the bin-branch kernel).
    d = jnp.dot(x_ref[...], dw_ref[...], preferred_element_type=jnp.float32)
    d = _gelu(d + db_ref[...])
    down_ref[...] = d.astype(down_ref.dtype)
    slab_ref[...] = jnp.dot(
        d, sw_ref[...], preferred_element_type=jnp.float32
    ).astype(slab_ref.dtype)


def _dc_up_res_kernel(cat_ref, dcw_ref, dcb_ref, upw_ref, upb_ref, res_ref, o_ref):
    # h = GELU(cat @ dc_w + dc_b); out = res + h @ up_w + up_b   (fully fused:
    # the (bm, hid) intermediate never touches HBM).
    h = jnp.dot(cat_ref[...], dcw_ref[...], preferred_element_type=jnp.float32)
    h = _gelu(h + dcb_ref[...])
    y = jnp.dot(h, upw_ref[...], preferred_element_type=jnp.float32) + upb_ref[...]
    o_ref[...] = (res_ref[...].astype(jnp.float32) + y).astype(o_ref.dtype)


def _local_dwconv_kernel(x_ref, w_ref, o_ref, pad_ref):
    # depthwise 3x3, zero pad=1, no bias, + GELU.  All batches in one grid
    # step; the zero padding is materialized in a VMEM scratch instead of a
    # separate XLA pad op.
    # TODO(synk): taps use 9 static slices of the padded scratch; a
    # pltpu.roll-based sublane shift could cut vld pressure but is skipped for
    # lowering robustness at these tiny W/C sizes.
    b, h, w, c = x_ref.shape
    pad_ref[...] = jnp.zeros_like(pad_ref)
    pad_ref[:, 1:h + 1, 1:w + 1, :] = x_ref[...].astype(jnp.float32)
    acc = jnp.zeros(o_ref.shape, jnp.float32)
    for dy in range(3):
        for dx in range(3):
            k = 3 * dy + dx
            acc = acc + pad_ref[:, dy:dy + h, dx:dx + w, :] * w_ref[k:k + 1, :]
    o_ref[...] = _gelu(acc).astype(o_ref.dtype)


def _bin_branch_kernel(p_ref, b_ref, w_ref, o_ref, c1_ref):
    # c1 = GELU(pooled + bias); then valid (no-pad) depthwise 3x3 + GELU.
    # p_ref: (B, s, s, red), b_ref: (1, red), w_ref: (9, red),
    # o_ref: (B, s-2, s-2, red).
    c1_ref[...] = _gelu(p_ref[...].astype(jnp.float32) + b_ref[...])
    _, ho, wo, _ = o_ref.shape
    acc = jnp.zeros(o_ref.shape, jnp.float32)
    for dy in range(3):
        for dx in range(3):
            k = 3 * dy + dx
            acc = acc + c1_ref[:, dy:dy + ho, dx:dx + wo, :] * w_ref[k:k + 1, :]
    o_ref[...] = _gelu(acc).astype(o_ref.dtype)


# ----------------------------------------------------------------------------
# Pallas wrappers
# ----------------------------------------------------------------------------
def pallas_down_slab(x2d, down_w, down_b, slab_w):
    n, cin = x2d.shape
    hid = down_w.shape[1]
    cs = slab_w.shape[1]
    bm = _row_block(n)
    return pl.pallas_call(
        _down_slab_kernel,
        out_shape=(jax.ShapeDtypeStruct((n, hid), x2d.dtype),
                   jax.ShapeDtypeStruct((n, cs), x2d.dtype)),
        grid_spec=pltpu.PrefetchScalarGridSpec(
            num_scalar_prefetch=0,
            grid=(n // bm,),
            in_specs=[
                pl.BlockSpec((bm, cin), lambda i: (i, 0)),
                pl.BlockSpec((cin, hid), lambda i: (0, 0)),
                pl.BlockSpec((1, hid), lambda i: (0, 0)),
                pl.BlockSpec((hid, cs), lambda i: (0, 0)),
            ],
            out_specs=(pl.BlockSpec((bm, hid), lambda i: (i, 0)),
                       pl.BlockSpec((bm, cs), lambda i: (i, 0))),
        ),
        compiler_params=pltpu.CompilerParams(dimension_semantics=("parallel",)),
    )(x2d, down_w, down_b.reshape(1, hid), slab_w)


def pallas_dc_up_residual(cat2d, dc_w, dc_b, up_w, up_b, res2d):
    n, c2h = cat2d.shape
    hid = dc_w.shape[1]
    cout = up_w.shape[1]
    bm = _row_block(n)
    # TODO(synk): with hid=16 / in_dim=32 the output lane dim uses only 32/128
    # lanes (masked vst); lane-dense packing would require changing the
    # external channel layout, so it is left as-is.
    return pl.pallas_call(
        _dc_up_res_kernel,
        out_shape=jax.ShapeDtypeStruct((n, cout), res2d.dtype),
        grid_spec=pltpu.PrefetchScalarGridSpec(
            num_scalar_prefetch=0,
            grid=(n // bm,),
            in_specs=[
                pl.BlockSpec((bm, c2h), lambda i: (i, 0)),
                pl.BlockSpec((c2h, hid), lambda i: (0, 0)),
                pl.BlockSpec((1, hid), lambda i: (0, 0)),
                pl.BlockSpec((hid, cout), lambda i: (0, 0)),
                pl.BlockSpec((1, cout), lambda i: (0, 0)),
                pl.BlockSpec((bm, cout), lambda i: (i, 0)),
            ],
            out_specs=pl.BlockSpec((bm, cout), lambda i: (i, 0)),
        ),
        compiler_params=pltpu.CompilerParams(dimension_semantics=("parallel",)),
    )(cat2d, dc_w, dc_b.reshape(1, hid), up_w, up_b.reshape(1, cout), res2d)


def pallas_local_dwconv(x, w33):
    # x: (B, H, W, C) -> depthwise 3x3 (zero pad=1, no bias) + GELU -> same shape.
    # All batches in one grid step (B is tiny); padding handled in-kernel.
    # TODO(synk): at realistic H/W this whole-image block must be re-tiled
    # along H with a 2-row halo to fit v7x's 64 MiB VMEM.
    bsz, h, w, c = x.shape
    w9 = w33.reshape(9, c)
    return pl.pallas_call(
        _local_dwconv_kernel,
        out_shape=jax.ShapeDtypeStruct((bsz, h, w, c), x.dtype),
        grid_spec=pltpu.PrefetchScalarGridSpec(
            num_scalar_prefetch=0,
            grid=(1,),
            in_specs=[
                pl.BlockSpec((bsz, h, w, c), lambda i: (0, 0, 0, 0)),
                pl.BlockSpec((9, c), lambda i: (0, 0)),
            ],
            out_specs=pl.BlockSpec((bsz, h, w, c), lambda i: (0, 0, 0, 0)),
            scratch_shapes=[pltpu.VMEM((bsz, h + 2, w + 2, c), jnp.float32)],
        ),
        compiler_params=pltpu.CompilerParams(dimension_semantics=("arbitrary",)),
    )(x, w9)


def pallas_bin_branch(pooled, b1, w33):
    # pooled: (B, s, s, red) -> bias + GELU -> valid dw3x3 + GELU -> (B, s-2, s-2, red)
    bsz, s, _, red = pooled.shape
    so = s - 2
    w9 = w33.reshape(9, red)
    return pl.pallas_call(
        _bin_branch_kernel,
        out_shape=jax.ShapeDtypeStruct((bsz, so, so, red), pooled.dtype),
        grid_spec=pltpu.PrefetchScalarGridSpec(
            num_scalar_prefetch=0,
            grid=(1,),
            in_specs=[
                pl.BlockSpec((bsz, s, s, red), lambda i: (0, 0, 0, 0)),
                pl.BlockSpec((1, red), lambda i: (0, 0)),
                pl.BlockSpec((9, red), lambda i: (0, 0)),
            ],
            out_specs=pl.BlockSpec((bsz, so, so, red), lambda i: (0, 0, 0, 0)),
            scratch_shapes=[pltpu.VMEM((bsz, s, s, red), jnp.float32)],
        ),
        compiler_params=pltpu.CompilerParams(dimension_semantics=("arbitrary",)),
    )(pooled, b1.reshape(1, red), w9)


# ----------------------------------------------------------------------------
# plain-JAX glue: AdaptiveAvgPool2d / bilinear interpolate as separable matrices
# TODO(synk): adaptive avg-pool and the bilinear resize stay in plain JAX as
# precomputed separable (out,in) matrices applied by tiny einsums (irregular,
# sub-vreg sized windows); all matmul/conv/GELU compute is in Pallas.
# ----------------------------------------------------------------------------
def _adaptive_pool_matrix(in_size, out_size):
    m = np.zeros((out_size, in_size), np.float32)
    for i in range(out_size):
        s = (i * in_size) // out_size
        e = -((-(i + 1) * in_size) // out_size)  # ceil
        m[i, s:e] = 1.0 / (e - s)
    return jnp.asarray(m)


def _bilinear_matrix(in_size, out_size):
    # F.interpolate(mode='bilinear', align_corners=True), 1-D separable factor.
    m = np.zeros((out_size, in_size), np.float32)
    if in_size == 1:
        m[:, 0] = 1.0
        return jnp.asarray(m)
    scale = (in_size - 1) / (out_size - 1)
    for i in range(out_size):
        src = i * scale
        i0 = min(int(np.floor(src)), in_size - 1)
        i1 = min(i0 + 1, in_size - 1)
        w1 = src - i0
        m[i, i0] += 1.0 - w1
        m[i, i1] += w1
    return jnp.asarray(m)


# ----------------------------------------------------------------------------
# parameters (deterministic synthetic init; PyTorch shape conventions mapped
# to channels-last:  Linear/1x1-Conv W -> (in, out);  depthwise Conv2d W -> (3,3,C))
# ----------------------------------------------------------------------------
def init_params(key, in_dim, hidden_dim):
    red = hidden_dim // 4
    keys = iter(jax.random.split(key, 7 + 3 * len(BINS)))

    def nrm(shape, scale=0.1):
        return scale * jax.random.normal(next(keys), shape, jnp.float32)

    p = {
        "down_w": nrm((in_dim, hidden_dim)),
        "down_b": nrm((hidden_dim,)),
        "local_w": nrm((3, 3, hidden_dim)),          # depthwise, groups=hidden
        "dc_w": nrm((2 * hidden_dim, hidden_dim)),   # 1x1 conv
        "dc_b": nrm((hidden_dim,)),
        "up_w": nrm((hidden_dim, in_dim)),
        "up_b": nrm((in_dim,)),
    }
    for b in BINS:
        p[f"b{b}_w1"] = nrm((hidden_dim, red))       # 1x1 conv (with bias)
        p[f"b{b}_b1"] = nrm((red,))
        p[f"b{b}_w2"] = nrm((3, 3, red))             # depthwise, no bias, no pad
    return p


# ----------------------------------------------------------------------------
# forward pass
# ----------------------------------------------------------------------------
def lmsa_forward(x, params):
    B, H, W, in_dim = x.shape
    hid = params["down_w"].shape[1]
    red = hid // 4

    x2d = x.reshape(B * H * W, in_dim)

    # Fused: down_project + GELU, plus the hoisted per-bin 1x1 convs (no bias)
    # as one (hid, 4*red) matmul on `down` — all in a single Pallas kernel.
    slab_w = jnp.concatenate([params[f"b{b}_w1"] for b in BINS], axis=1)  # (hid, 4*red)
    down2d, slab2d = pallas_down_slab(x2d, params["down_w"], params["down_b"], slab_w)
    down = down2d.reshape(B, H, W, hid)
    slab = slab2d.reshape(B, H, W, 4 * red)

    # ---- ModifyPPM ----
    # local_conv: depthwise 3x3, pad=1, no bias, + GELU (pad fused into kernel)
    outs = [pallas_local_dwconv(down, params["local_w"])]            # (B,H,W,hid)

    for i, bsz in enumerate(BINS):
        # AdaptiveAvgPool2d(bsz) on the hoisted 1x1-conv output slice.
        # (pool ∘ linear == linear ∘ pool; bias + GELU applied AFTER pooling)
        Ph = _adaptive_pool_matrix(H, bsz)
        Pw = _adaptive_pool_matrix(W, bsz)
        sl = slab[..., i * red:(i + 1) * red]                        # (B,H,W,red)
        pooled = jnp.einsum("ph,bhwc,qw->bpqc", Ph, sl, Pw)          # (B,bsz,bsz,red)

        # bias + GELU + depthwise 3x3 (no pad, no bias) + GELU — one kernel
        c2 = pallas_bin_branch(pooled, params[f"b{bsz}_b1"], params[f"b{bsz}_w2"])

        # bilinear upsample to (H, W), align_corners=True (separable glue)
        Rh = _bilinear_matrix(bsz - 2, H)
        Rw = _bilinear_matrix(bsz - 2, W)
        outs.append(jnp.einsum("hp,bpqc,wq->bhwc", Rh, c2, Rw))      # (B,H,W,red)

    cat = jnp.concatenate(outs, axis=-1)                             # (B,H,W,2*hid)

    # Fused: down_conv (1x1 + GELU) + up_project + bias + residual add.
    out2d = pallas_dc_up_residual(cat.reshape(B * H * W, 2 * hid),
                                  params["dc_w"], params["dc_b"],
                                  params["up_w"], params["up_b"], x2d)
    return out2d.reshape(B, H, W, in_dim)


if __name__ == "__main__":
    B, H, W = 2, 16, 16
    in_dim, hidden_dim, patch_num = 32, 16, 16   # patch_num unused in forward

    key = jax.random.PRNGKey(0)
    kx, kp = jax.random.split(key)
    x = jax.random.normal(kx, (B, H, W, in_dim), jnp.float32)
    params = init_params(kp, in_dim, hidden_dim)

    out = jax.jit(lmsa_forward)(x, params)
    out = jax.block_until_ready(out)

    assert out.shape == (B, H, W, in_dim) and out.dtype == jnp.float32
    assert bool(jnp.all(jnp.isfinite(out)))
    print("KERNEL_OK")
</pallas_src>

<mosaic_0001>
module attributes {stable_mosaic.version = 11 : i64} {
  func.func @_down_slab_kernel(%arg0: i32, %arg1: memref<256x32xf32, #tpu.memory_space<vmem>>, %arg2: memref<32x16xf32, #tpu.memory_space<vmem>>, %arg3: memref<1x16xf32, #tpu.memory_space<vmem>>, %arg4: memref<16x16xf32, #tpu.memory_space<vmem>>, %arg5: memref<256x16xf32, #tpu.memory_space<vmem>>, %arg6: memref<256x16xf32, #tpu.memory_space<vmem>>) attributes {dimension_semantics = [#tpu.dimension_semantics<parallel>], iteration_bounds = array<i64: 2>, scalar_prefetch = 0 : i64, scratch_operands = 0 : i64, tpu.core_type = #tpu.core_type<tc>, window_params = [{transform_indices = @transform_0, window_bounds = array<i64: 256, 32>}, {pipeline_mode = #tpu.pipeline_mode<synchronous>, transform_indices = @transform_1, window_bounds = array<i64: 32, 16>}, {pipeline_mode = #tpu.pipeline_mode<synchronous>, transform_indices = @transform_2, window_bounds = array<i64: 1, 16>}, {pipeline_mode = #tpu.pipeline_mode<synchronous>, transform_indices = @transform_3, window_bounds = array<i64: 16, 16>}, {transform_indices = @transform_4, window_bounds = array<i64: 256, 16>}, {transform_indices = @transform_5, window_bounds = array<i64: 256, 16>}]} {
    %c0 = arith.constant 0 : index
    %c0_0 = arith.constant 0 : index
    %0 = vector.load %arg1[%c0, %c0_0] : memref<256x32xf32, #tpu.memory_space<vmem>>, vector<256x32xf32>
    %c0_1 = arith.constant 0 : index
    %c0_2 = arith.constant 0 : index
    %1 = vector.load %arg2[%c0_1, %c0_2] : memref<32x16xf32, #tpu.memory_space<vmem>>, vector<32x16xf32>
    %cst = arith.constant dense<0.000000e+00> : vector<256x16xf32>
    %2 = tpu.matmul %0, %1, %cst {dimension_numbers = #tpu.dot_dimension_numbers<[1], [0], [0], [1], [0, 0, 1, 1], [], []>} : vector<256x32xf32>, vector<32x16xf32>, vector<256x16xf32> -> vector<256x16xf32>
    %c0_3 = arith.constant 0 : index
    %c0_4 = arith.constant 0 : index
    %3 = vector.load %arg3[%c0_3, %c0_4] : memref<1x16xf32, #tpu.memory_space<vmem>>, vector<1x16xf32>
    %4 = vector.broadcast %3 : vector<1x16xf32> to vector<256x16xf32>
    %5 = arith.addf %2, %4 : vector<256x16xf32>
    %6 = arith.mulf %5, %5 : vector<256x16xf32>
    %7 = arith.mulf %6, %5 : vector<256x16xf32>
    %cst_5 = arith.constant 5.000000e-01 : f32
    %8 = vector.broadcast %cst_5 : f32 to vector<256x16xf32>
    %9 = arith.mulf %8, %5 : vector<256x16xf32>
    %cst_6 = arith.constant 4.471500e-02 : f32
    %10 = vector.broadcast %cst_6 : f32 to vector<256x16xf32>
    %11 = arith.mulf %10, %7 : vector<256x16xf32>
    %12 = arith.addf %5, %11 : vector<256x16xf32>
    %cst_7 = arith.constant 0.797884583 : f32
    %13 = vector.broadcast %cst_7 : f32 to vector<256x16xf32>
    %14 = arith.mulf %13, %12 : vector<256x16xf32>
    %15 = math.tanh %14 : vector<256x16xf32>
    %cst_8 = arith.constant 1.000000e+00 : f32
    %16 = vector.broadcast %cst_8 : f32 to vector<256x16xf32>
    %17 = arith.addf %16, %15 : vector<256x16xf32>
    %18 = arith.mulf %9, %17 : vector<256x16xf32>
    %c0_9 = arith.constant 0 : index
    %c0_10 = arith.constant 0 : index
    %19 = vector.load %arg5[%c0_9, %c0_10] : memref<256x16xf32, #tpu.memory_space<vmem>>, vector<256x16xf32>
    tpu.vector_store %arg5[%c0_9, %c0_10], %18 {strides = array<i32>} : memref<256x16xf32, #tpu.memory_space<vmem>>, vector<256x16xf32>,
    %c0_11 = arith.constant 0 : index
    %c0_12 = arith.constant 0 : index
    %20 = vector.load %arg4[%c0_11, %c0_12] : memref<16x16xf32, #tpu.memory_space<vmem>>, vector<16x16xf32>
    %cst_13 = arith.constant dense<0.000000e+00> : vector<256x16xf32>
    %21 = tpu.matmul %18, %20, %cst_13 {dimension_numbers = #tpu.dot_dimension_numbers<[1], [0], [0], [1], [0, 0, 1, 1], [], []>} : vector<256x16xf32>, vector<16x16xf32>, vector<256x16xf32> -> vector<256x16xf32>
    %c0_14 = arith.constant 0 : index
    %c0_15 = arith.constant 0 : index
    %22 = vector.load %arg6[%c0_14, %c0_15] : memref<256x16xf32, #tpu.memory_space<vmem>>, vector<256x16xf32>
    tpu.vector_store %arg6[%c0_14, %c0_15], %21 {strides = array<i32>} : memref<256x16xf32, #tpu.memory_space<vmem>>, vector<256x16xf32>,
    return
  }
  func.func @transform_0(%arg0: i32) -> (i32, i32) {
    %c0_i32 = arith.constant 0 : i32
    %c0_i32_0 = arith.constant 0 : i32
    return %arg0, %c0_i32 : i32, i32
  }
  func.func @transform_1(%arg0: i32) -> (i32, i32) {
    %c0_i32 = arith.constant 0 : i32
    %c0_i32_0 = arith.constant 0 : i32
    %c0_i32_1 = arith.constant 0 : i32
    return %c0_i32, %c0_i32_0 : i32, i32
  }
  func.func @transform_2(%arg0: i32) -> (i32, i32) {
    %c0_i32 = arith.constant 0 : i32
    %c0_i32_0 = arith.constant 0 : i32
    %c0_i32_1 = arith.constant 0 : i32
    return %c0_i32, %c0_i32_0 : i32, i32
  }
  func.func @transform_3(%arg0: i32) -> (i32, i32) {
    %c0_i32 = arith.constant 0 : i32
    %c0_i32_0 = arith.constant 0 : i32
    %c0_i32_1 = arith.constant 0 : i32
    return %c0_i32, %c0_i32_0 : i32, i32
  }
  func.func @transform_4(%arg0: i32) -> (i32, i32) {
    %c0_i32 = arith.constant 0 : i32
    %c0_i32_0 = arith.constant 0 : i32
    return %arg0, %c0_i32 : i32, i32
  }
  func.func @transform_5(%arg0: i32) -> (i32, i32) {
    %c0_i32 = arith.constant 0 : i32
    %c0_i32_0 = arith.constant 0 : i32
    return %arg0, %c0_i32 : i32, i32
  }
}

module attributes {stable_mosaic.version = 11 : i64} {
  func.func @_local_dwconv_kernel(%arg0: i32, %arg1: memref<2x16x16x16xf32, #tpu.memory_space<vmem>>, %arg2: memref<9x16xf32, #tpu.memory_space<vmem>>, %arg3: memref<2x16x16x16xf32, #tpu.memory_space<vmem>>, %arg4: memref<2x18x18x16xf32, #tpu.memory_space<vmem>>) attributes {dimension_semantics = [#tpu.dimension_semantics<arbitrary>], iteration_bounds = array<i64: 1>, scalar_prefetch = 0 : i64, scratch_operands = 1 : i64, tpu.core_type = #tpu.core_type<tc>, window_params = [{pipeline_mode = #tpu.pipeline_mode<synchronous>, transform_indices = @transform_0, window_bounds = array<i64: 2, 16, 16, 16>}, {pipeline_mode = #tpu.pipeline_mode<synchronous>, transform_indices = @transform_1, window_bounds = array<i64: 9, 16>}, {pipeline_mode = #tpu.pipeline_mode<synchronous>, transform_indices = @transform_2, window_bounds = array<i64: 2, 16, 16, 16>}]} {
    %cst = arith.constant 0.000000e+00 : f32
    %0 = vector.broadcast %cst : f32 to vector<2x18x18x16xf32>
    %c0 = arith.constant 0 : index
    %c0_0 = arith.constant 0 : index
    %c0_1 = arith.constant 0 : index
    %c0_2 = arith.constant 0 : index
    %1 = vector.load %arg4[%c0, %c0_0, %c0_1, %c0_2] : memref<2x18x18x16xf32, #tpu.memory_space<vmem>>, vector<2x18x18x16xf32>
    tpu.vector_store %arg4[%c0, %c0_0, %c0_1, %c0_2], %0 {strides = array<i32>} : memref<2x18x18x16xf32, #tpu.memory_space<vmem>>, vector<2x18x18x16xf32>,
    %c0_3 = arith.constant 0 : index
    %c0_4 = arith.constant 0 : index
    %c0_5 = arith.constant 0 : index
    %c0_6 = arith.constant 0 : index
    %2 = vector.load %arg1[%c0_3, %c0_4, %c0_5, %c0_6] : memref<2x16x16x16xf32, #tpu.memory_space<vmem>>, vector<2x16x16x16xf32>
    %c0_7 = arith.constant 0 : index
    %c1 = arith.constant 1 : index
    %c1_8 = arith.constant 1 : index
    %c0_9 = arith.constant 0 : index
    %3 = vector.load %arg4[%c0_7, %c1, %c1_8, %c0_9] : memref<2x18x18x16xf32, #tpu.memory_space<vmem>>, vector<2x16x16x16xf32>
    tpu.vector_store %arg4[%c0_7, %c1, %c1_8, %c0_9], %2 {strides = array<i32>} : memref<2x18x18x16xf32, #tpu.memory_space<vmem>>, vector<2x16x16x16xf32>,
    %cst_10 = arith.constant 0.000000e+00 : f32
    %4 = vector.broadcast %cst_10 : f32 to vector<2x16x16x16xf32>
    %c0_11 = arith.constant 0 : index
    %c0_12 = arith.constant 0 : index
    %c0_13 = arith.constant 0 : index
    %c0_14 = arith.constant 0 : index
    %5 = vector.load %arg4[%c0_11, %c0_12, %c0_13, %c0_14] : memref<2x18x18x16xf32, #tpu.memory_space<vmem>>, vector<2x16x16x16xf32>
    %c0_15 = arith.constant 0 : index
    %c0_16 = arith.constant 0 : index
    %6 = vector.load %arg2[%c0_15, %c0_16] : memref<9x16xf32, #tpu.memory_space<vmem>>, vector<1x16xf32>
    %7 = vector.shape_cast %6 : vector<1x16xf32> to vector<1x1x1x16xf32>
    %8 = vector.broadcast %7 : vector<1x1x1x16xf32> to vector<2x16x16x16xf32>
    %9 = arith.mulf %5, %8 : vector<2x16x16x16xf32>
    %10 = arith.addf %4, %9 : vector<2x16x16x16xf32>
    %c0_17 = arith.constant 0 : index
    %c0_18 = arith.constant 0 : index
    %c1_19 = arith.constant 1 : index
    %c0_20 = arith.constant 0 : index
    %11 = vector.load %arg4[%c0_17, %c0_18, %c1_19, %c0_20] : memref<2x18x18x16xf32, #tpu.memory_space<vmem>>, vector<2x16x16x16xf32>
    %c1_21 = arith.constant 1 : index
    %c0_22 = arith.constant 0 : index
    %12 = vector.load %arg2[%c1_21, %c0_22] : memref<9x16xf32, #tpu.memory_space<vmem>>, vector<1x16xf32>
    %13 = vector.shape_cast %12 : vector<1x16xf32> to vector<1x1x1x16xf32>
    %14 = vector.broadcast %13 : vector<1x1x1x16xf32> to vector<2x16x16x16xf32>
    %15 = arith.mulf %11, %14 : vector<2x16x16x16xf32>
    %16 = arith.addf %10, %15 : vector<2x16x16x16xf32>
    %c0_23 = arith.constant 0 : index
    %c0_24 = arith.constant 0 : index
    %c2 = arith.constant 2 : index
    %c0_25 = arith.constant 0 : index
    %17 = vector.load %arg4[%c0_23, %c0_24, %c2, %c0_25] : memref<2x18x18x16xf32, #tpu.memory_space<vmem>>, vector<2x16x16x16xf32>
    %c2_26 = arith.constant 2 : index
    %c0_27 = arith.constant 0 : index
    %18 = vector.load %arg2[%c2_26, %c0_27] : memref<9x16xf32, #tpu.memory_space<vmem>>, vector<1x16xf32>
    %19 = vector.shape_cast %18 : vector<1x16xf32> to vector<1x1x1x16xf32>
    %20 = vector.broadcast %19 : vector<1x1x1x16xf32> to vector<2x16x16x16xf32>
    %21 = arith.mulf %17, %20 : vector<2x16x16x16xf32>
    %22 = arith.addf %16, %21 : vector<2x16x16x16xf32>
    %c0_28 = arith.constant 0 : index
    %c1_29 = arith.constant 1 : index
    %c0_30 = arith.constant 0 : index
    %c0_31 = arith.constant 0 : index
    %23 = vector.load %arg4[%c0_28, %c1_29, %c0_30, %c0_31] : memref<2x18x18x16xf32, #tpu.memory_space<vmem>>, vector<2x16x16x16xf32>
    %c3 = arith.constant 3 : index
    %c0_32 = arith.constant 0 : index
    %24 = vector.load %arg2[%c3, %c0_32] : memref<9x16xf32, #tpu.memory_space<vmem>>, vector<1x16xf32>
    %25 = vector.shape_cast %24 : vector<1x16xf32> to vector<1x1x1x16xf32>
    %26 = vector.broadcast %25 : vector<1x1x1x16xf32> to vector<2x16x16x16xf32>
    %27 = arith.mulf %23, %26 : vector<2x16x16x16xf32>
    %28 = arith.addf %22, %27 : vector<2x16x16x16xf32>
    %c0_33 = arith.constant 0 : index
    %c1_34 = arith.constant 1 : index
    %c1_35 = arith.constant 1 : index
    %c0_36 = arith.constant 0 : index
    %29 = vector.load %arg4[%c0_33, %c1_34, %c1_35, %c0_36] : memref<2x18x18x16xf32, #tpu.memory_space<vmem>>, vector<2x16x16x16xf32>
    %c4 = arith.constant 4 : index
    %c0_37 = arith.constant 0 : index
    %30 = vector.load %arg2[%c4, %c0_37] : memref<9x16xf32, #tpu.memory_space<vmem>>, vector<1x16xf32>
    %31 = vector.shape_cast %30 : vector<1x16xf32> to vector<1x1x1x16xf32>
    %32 = vector.broadcast %31 : vector<1x1x1x16xf32> to vector<2x16x16x16xf32>
    %33 = arith.mulf %29, %32 : vector<2x16x16x16xf32>
    %34 = arith.addf %28, %33 : vector<2x16x16x16xf32>
    %c0_38 = arith.constant 0 : index
    %c1_39 = arith.constant 1 : index
    %c2_40 = arith.constant 2 : index
    %c0_41 = arith.constant 0 : index
    %35 = vector.load %arg4[%c0_38, %c1_39, %c2_40, %c0_41] : memref<2x18x18x16xf32, #tpu.memory_space<vmem>>, vector<2x16x16x16xf32>
    %c5 = arith.constant 5 : index
    %c0_42 = arith.constant 0 : index
    %36 = vector.load %arg2[%c5, %c0_42] : memref<9x16xf32, #tpu.memory_space<vmem>>, vector<1x16xf32>
    %37 = vector.shape_cast %36 : vector<1x16xf32> to vector<1x1x1x16xf32>
    %38 = vector.broadcast %37 : vector<1x1x1x16xf32> to vector<2x16x16x16xf32>
    %39 = arith.mulf %35, %38 : vector<2x16x16x16xf32>
    %40 = arith.addf %34, %39 : vector<2x16x16x16xf32>
    %c0_43 = arith.constant 0 : index
    %c2_44 = arith.constant 2 : index
    %c0_45 = arith.constant 0 : index
    %c0_46 = arith.constant 0 : index
    %41 = vector.load %arg4[%c0_43, %c2_44, %c0_45, %c0_46] : memref<2x18x18x16xf32, #tpu.memory_space<vmem>>, vector<2x16x16x16xf32>
    %c6 = arith.constant 6 : index
    %c0_47 = arith.constant 0 : index
    %42 = vector.load %arg2[%c6, %c0_47] : memref<9x16xf32, #tpu.memory_space<vmem>>, vector<1x16xf32>
    %43 = vector.shape_cast %42 : vector<1x16xf32> to vector<1x1x1x16xf32>
    %44 = vector.broadcast %43 : vector<1x1x1x16xf32> to vector<2x16x16x16xf32>
    %45 = arith.mulf %41, %44 : vector<2x16x16x16xf32>
    %46 = arith.addf %40, %45 : vector<2x16x16x16xf32>
    %c0_48 = arith.constant 0 : index
    %c2_49 = arith.constant 2 : index
    %c1_50 = arith.constant 1 : index
    %c0_51 = arith.constant 0 : index
    %47 = vector.load %arg4[%c0_48, %c2_49, %c1_50, %c0_51] : memref<2x18x18x16xf32, #tpu.memory_space<vmem>>, vector<2x16x16x16xf32>
    %c7 = arith.constant 7 : index
    %c0_52 = arith.constant 0 : index
    %48 = vector.load %arg2[%c7, %c0_52] : memref<9x16xf32, #tpu.memory_space<vmem>>, vector<1x16xf32>
    %49 = vector.shape_cast %48 : vector<1x16xf32> to vector<1x1x1x16xf32>
    %50 = vector.broadcast %49 : vector<1x1x1x16xf32> to vector<2x16x16x16xf32>
    %51 = arith.mulf %47, %50 : vector<2x16x16x16xf32>
    %52 = arith.addf %46, %51 : vector<2x16x16x16xf32>
    %c0_53 = arith.constant 0 : index
    %c2_54 = arith.constant 2 : index
    %c2_55 = arith.constant 2 : index
    %c0_56 = arith.constant 0 : index
    %53 = vector.load %arg4[%c0_53, %c2_54, %c2_55, %c0_56] : memref<2x18x18x16xf32, #tpu.memory_space<vmem>>, vector<2x16x16x16xf32>
    %c8 = arith.constant 8 : index
    %c0_57 = arith.constant 0 : index
    %54 = vector.load %arg2[%c8, %c0_57] : memref<9x16xf32, #tpu.memory_space<vmem>>, vector<1x16xf32>
    %55 = vector.shape_cast %54 : vector<1x16xf32> to vector<1x1x1x16xf32>
    %56 = vector.broadcast %55 : vector<1x1x1x16xf32> to vector<2x16x16x16xf32>
    %57 = arith.mulf %53, %56 : vector<2x16x16x16xf32>
    %58 = arith.addf %52, %57 : vector<2x16x16x16xf32>
    %59 = arith.mulf %58, %58 : vector<2x16x16x16xf32>
    %60 = arith.mulf %59, %58 : vector<2x16x16x16xf32>
    %cst_58 = arith.constant 5.000000e-01 : f32
    %61 = vector.broadcast %cst_58 : f32 to vector<2x16x16x16xf32>
    %62 = arith.mulf %61, %58 : vector<2x16x16x16xf32>
    %cst_59 = arith.constant 4.471500e-02 : f32
    %63 = vector.broadcast %cst_59 : f32 to vector<2x16x16x16xf32>
    %64 = arith.mulf %63, %60 : vector<2x16x16x16xf32>
    %65 = arith.addf %58, %64 : vector<2x16x16x16xf32>
    %cst_60 = arith.constant 0.797884583 : f32
    %66 = vector.broadcast %cst_60 : f32 to vector<2x16x16x16xf32>
    %67 = arith.mulf %66, %65 : vector<2x16x16x16xf32>
    %68 = math.tanh %67 : vector<2x16x16x16xf32>
    %cst_61 = arith.constant 1.000000e+00 : f32
    %69 = vector.broadcast %cst_61 : f32 to vector<2x16x16x16xf32>
    %70 = arith.addf %69, %68 : vector<2x16x16x16xf32>
    %71 = arith.mulf %62, %70 : vector<2x16x16x16xf32>
    %c0_62 = arith.constant 0 : index
    %c0_63 = arith.constant 0 : index
    %c0_64 = arith.constant 0 : index
    %c0_65 = arith.constant 0 : index
    %72 = vector.load %arg3[%c0_62, %c0_63, %c0_64, %c0_65] : memref<2x16x16x16xf32, #tpu.memory_space<vmem>>, vector<2x16x16x16xf32>
    tpu.vector_store %arg3[%c0_62, %c0_63, %c0_64, %c0_65], %71 {strides = array<i32>} : memref<2x16x16x16xf32, #tpu.memory_space<vmem>>, vector<2x16x16x16xf32>,
    return
  }
  func.func @transform_0(%arg0: i32) -> (i32, i32, i32, i32) {
    %c0_i32 = arith.constant 0 : i32
    %c0_i32_0 = arith.constant 0 : i32
    %c0_i32_1 = arith.constant 0 : i32
    %c0_i32_2 = arith.constant 0 : i32
    %c0_i32_3 = arith.constant 0 : i32
    return %c0_i32, %c0_i32_0, %c0_i32_1, %c0_i32_2 : i32, i32, i32, i32
  }
  func.func @transform_1(%arg0: i32) -> (i32, i32) {
    %c0_i32 = arith.constant 0 : i32
    %c0_i32_0 = arith.constant 0 : i32
    %c0_i32_1 = arith.constant 0 : i32
    return %c0_i32, %c0_i32_0 : i32, i32
  }
  func.func @transform_2(%arg0: i32) -> (i32, i32, i32, i32) {
    %c0_i32 = arith.constant 0 : i32
    %c0_i32_0 = arith.constant 0 : i32
    %c0_i32_1 = arith.constant 0 : i32
    %c0_i32_2 = arith.constant 0 : i32
    %c0_i32_3 = arith.constant 0 : i32
    return %c0_i32, %c0_i32_0, %c0_i32_1, %c0_i32_2 : i32, i32, i32, i32
  }
}

module attributes {stable_mosaic.version = 11 : i64} {
  func.func @_bin_branch_kernel(%arg0: i32, %arg1: memref<2x3x3x4xf32, #tpu.memory_space<vmem>>, %arg2: memref<1x4xf32, #tpu.memory_space<vmem>>, %arg3: memref<9x4xf32, #tpu.memory_space<vmem>>, %arg4: memref<2x1x1x4xf32, #tpu.memory_space<vmem>>, %arg5: memref<2x3x3x4xf32, #tpu.memory_space<vmem>>) attributes {dimension_semantics = [#tpu.dimension_semantics<arbitrary>], iteration_bounds = array<i64: 1>, scalar_prefetch = 0 : i64, scratch_operands = 1 : i64, tpu.core_type = #tpu.core_type<tc>, window_params = [{pipeline_mode = #tpu.pipeline_mode<synchronous>, transform_indices = @transform_0, window_bounds = array<i64: 2, 3, 3, 4>}, {pipeline_mode = #tpu.pipeline_mode<synchronous>, transform_indices = @transform_1, window_bounds = array<i64: 1, 4>}, {pipeline_mode = #tpu.pipeline_mode<synchronous>, transform_indices = @transform_2, window_bounds = array<i64: 9, 4>}, {pipeline_mode = #tpu.pipeline_mode<synchronous>, transform_indices = @transform_3, window_bounds = array<i64: 2, 1, 1, 4>}]} {
    %c0 = arith.constant 0 : index
    %c0_0 = arith.constant 0 : index
    %c0_1 = arith.constant 0 : index
    %c0_2 = arith.constant 0 : index
    %0 = vector.load %arg1[%c0, %c0_0, %c0_1, %c0_2] : memref<2x3x3x4xf32, #tpu.memory_space<vmem>>, vector<2x3x3x4xf32>
    %c0_3 = arith.constant 0 : index
    %c0_4 = arith.constant 0 : index
    %1 = vector.load %arg2[%c0_3, %c0_4] : memref<1x4xf32, #tpu.memory_space<vmem>>, vector<1x4xf32>
    %2 = vector.shape_cast %1 : vector<1x4xf32> to vector<1x1x1x4xf32>
    %3 = vector.broadcast %2 : vector<1x1x1x4xf32> to vector<2x3x3x4xf32>
    %4 = arith.addf %0, %3 : vector<2x3x3x4xf32>
    %5 = arith.mulf %4, %4 : vector<2x3x3x4xf32>
    %6 = arith.mulf %5, %4 : vector<2x3x3x4xf32>
    %cst = arith.constant 5.000000e-01 : f32
    %7 = vector.broadcast %cst : f32 to vector<2x3x3x4xf32>
    %8 = arith.mulf %7, %4 : vector<2x3x3x4xf32>
    %cst_5 = arith.constant 4.471500e-02 : f32
    %9 = vector.broadcast %cst_5 : f32 to vector<2x3x3x4xf32>
    %10 = arith.mulf %9, %6 : vector<2x3x3x4xf32>
    %11 = arith.addf %4, %10 : vector<2x3x3x4xf32>
    %cst_6 = arith.constant 0.797884583 : f32
    %12 = vector.broadcast %cst_6 : f32 to vector<2x3x3x4xf32>
    %13 = arith.mulf %12, %11 : vector<2x3x3x4xf32>
    %14 = math.tanh %13 : vector<2x3x3x4xf32>
    %cst_7 = arith.constant 1.000000e+00 : f32
    %15 = vector.broadcast %cst_7 : f32 to vector<2x3x3x4xf32>
    %16 = arith.addf %15, %14 : vector<2x3x3x4xf32>
    %17 = arith.mulf %8, %16 : vector<2x3x3x4xf32>
    %c0_8 = arith.constant 0 : index
    %c0_9 = arith.constant 0 : index
    %c0_10 = arith.constant 0 : index
    %c0_11 = arith.constant 0 : index
    %18 = vector.load %arg5[%c0_8, %c0_9, %c0_10, %c0_11] : memref<2x3x3x4xf32, #tpu.memory_space<vmem>>, vector<2x3x3x4xf32>
    tpu.vector_store %arg5[%c0_8, %c0_9, %c0_10, %c0_11], %17 {strides = array<i32>} : memref<2x3x3x4xf32, #tpu.memory_space<vmem>>, vector<2x3x3x4xf32>,
    %cst_12 = arith.constant 0.000000e+00 : f32
    %19 = vector.broadcast %cst_12 : f32 to vector<2x1x1x4xf32>
    %c0_13 = arith.constant 0 : index
    %c0_14 = arith.constant 0 : index
    %c0_15 = arith.constant 0 : index
    %c0_16 = arith.constant 0 : index
    %20 = vector.load %arg5[%c0_13, %c0_14, %c0_15, %c0_16] : memref<2x3x3x4xf32, #tpu.memory_space<vmem>>, vector<2x1x1x4xf32>
    %c0_17 = arith.constant 0 : index
    %c0_18 = arith.constant 0 : index
    %21 = vector.load %arg3[%c0_17, %c0_18] : memref<9x4xf32, #tpu.memory_space<vmem>>, vector<1x4xf32>
    %22 = vector.shape_cast %21 : vector<1x4xf32> to vector<1x1x1x4xf32>
    %23 = vector.broadcast %22 : vector<1x1x1x4xf32> to vector<2x1x1x4xf32>
    %24 = arith.mulf %20, %23 : vector<2x1x1x4xf32>
    %25 = arith.addf %19, %24 : vector<2x1x1x4xf32>
    %c0_19 = arith.constant 0 : index
    %c0_20 = arith.constant 0 : index
    %c1 = arith.constant 1 : index
    %c0_21 = arith.constant 0 : index
    %26 = vector.load %arg5[%c0_19, %c0_20, %c1, %c0_21] : memref<2x3x3x4xf32, #tpu.memory_space<vmem>>, vector<2x1x1x4xf32>
    %c1_22 = arith.constant 1 : index
    %c0_23 = arith.constant 0 : index
    %27 = vector.load %arg3[%c1_22, %c0_23] : memref<9x4xf32, #tpu.memory_space<vmem>>, vector<1x4xf32>
    %28 = vector.shape_cast %27 : vector<1x4xf32> to vector<1x1x1x4xf32>
    %29 = vector.broadcast %28 : vector<1x1x1x4xf32> to vector<2x1x1x4xf32>
    %30 = arith.mulf %26, %29 : vector<2x1x1x4xf32>
    %31 = arith.addf %25, %30 : vector<2x1x1x4xf32>
    %c0_24 = arith.constant 0 : index
    %c0_25 = arith.constant 0 : index
    %c2 = arith.constant 2 : index
    %c0_26 = arith.constant 0 : index
    %32 = vector.load %arg5[%c0_24, %c0_25, %c2, %c0_26] : memref<2x3x3x4xf32, #tpu.memory_space<vmem>>, vector<2x1x1x4xf32>
    %c2_27 = arith.constant 2 : index
    %c0_28 = arith.constant 0 : index
    %33 = vector.load %arg3[%c2_27, %c0_28] : memref<9x4xf32, #tpu.memory_space<vmem>>, vector<1x4xf32>
    %34 = vector.shape_cast %33 : vector<1x4xf32> to vector<1x1x1x4xf32>
    %35 = vector.broadcast %34 : vector<1x1x1x4xf32> to vector<2x1x1x4xf32>
    %36 = arith.mulf %32, %35 : vector<2x1x1x4xf32>
    %37 = arith.addf %31, %36 : vector<2x1x1x4xf32>
    %c0_29 = arith.constant 0 : index
    %c1_30 = arith.constant 1 : index
    %c0_31 = arith.constant 0 : index
    %c0_32 = arith.constant 0 : index
    %38 = vector.load %arg5[%c0_29, %c1_30, %c0_31, %c0_32] : memref<2x3x3x4xf32, #tpu.memory_space<vmem>>, vector<2x1x1x4xf32>
    %c3 = arith.constant 3 : index
    %c0_33 = arith.constant 0 : index
    %39 = vector.load %arg3[%c3, %c0_33] : memref<9x4xf32, #tpu.memory_space<vmem>>, vector<1x4xf32>
    %40 = vector.shape_cast %39 : vector<1x4xf32> to vector<1x1x1x4xf32>
    %41 = vector.broadcast %40 : vector<1x1x1x4xf32> to vector<2x1x1x4xf32>
    %42 = arith.mulf %38, %41 : vector<2x1x1x4xf32>
    %43 = arith.addf %37, %42 : vector<2x1x1x4xf32>
    %c0_34 = arith.constant 0 : index
    %c1_35 = arith.constant 1 : index
    %c1_36 = arith.constant 1 : index
    %c0_37 = arith.constant 0 : index
    %44 = vector.load %arg5[%c0_34, %c1_35, %c1_36, %c0_37] : memref<2x3x3x4xf32, #tpu.memory_space<vmem>>, vector<2x1x1x4xf32>
    %c4 = arith.constant 4 : index
    %c0_38 = arith.constant 0 : index
    %45 = vector.load %arg3[%c4, %c0_38] : memref<9x4xf32, #tpu.memory_space<vmem>>, vector<1x4xf32>
    %46 = vector.shape_cast %45 : vector<1x4xf32> to vector<1x1x1x4xf32>
    %47 = vector.broadcast %46 : vector<1x1x1x4xf32> to vector<2x1x1x4xf32>
    %48 = arith.mulf %44, %47 : vector<2x1x1x4xf32>
    %49 = arith.addf %43, %48 : vector<2x1x1x4xf32>
    %c0_39 = arith.constant 0 : index
    %c1_40 = arith.constant 1 : index
    %c2_41 = arith.constant 2 : index
    %c0_42 = arith.constant 0 : index
    %50 = vector.load %arg5[%c0_39, %c1_40, %c2_41, %c0_42] : memref<2x3x3x4xf32, #tpu.memory_space<vmem>>, vector<2x1x1x4xf32>
    %c5 = arith.constant 5 : index
    %c0_43 = arith.constant 0 : index
    %51 = vector.load %arg3[%c5, %c0_43] : memref<9x4xf32, #tpu.memory_space<vmem>>, vector<1x4xf32>
    %52 = vector.shape_cast %51 : vector<1x4xf32> to vector<1x1x1x4xf32>
    %53 = vector.broadcast %52 : vector<1x1x1x4xf32> to vector<2x1x1x4xf32>
    %54 = arith.mulf %50, %53 : vector<2x1x1x4xf32>
    %55 = arith.addf %49, %54 : vector<2x1x1x4xf32>
    %c0_44 = arith.constant 0 : index
    %c2_45 = arith.constant 2 : index
    %c0_46 = arith.constant 0 : index
    %c0_47 = arith.constant 0 : index
    %56 = vector.load %arg5[%c0_44, %c2_45, %c0_46, %c0_47] : memref<2x3x3x4xf32, #tpu.memory_space<vmem>>, vector<2x1x1x4xf32>
    %c6 = arith.constant 6 : index
    %c0_48 = arith.constant 0 : index
    %57 = vector.load %arg3[%c6, %c0_48] : memref<9x4xf32, #tpu.memory_space<vmem>>, vector<1x4xf32>
    %58 = vector.shape_cast %57 : vector<1x4xf32> to vector<1x1x1x4xf32>
    %59 = vector.broadcast %58 : vector<1x1x1x4xf32> to vector<2x1x1x4xf32>
    %60 = arith.mulf %56, %59 : vector<2x1x1x4xf32>
    %61 = arith.addf %55, %60 : vector<2x1x1x4xf32>
    %c0_49 = arith.constant 0 : index
    %c2_50 = arith.constant 2 : index
    %c1_51 = arith.constant 1 : index
    %c0_52 = arith.constant 0 : index
    %62 = vector.load %arg5[%c0_49, %c2_50, %c1_51, %c0_52] : memref<2x3x3x4xf32, #tpu.memory_space<vmem>>, vector<2x1x1x4xf32>
    %c7 = arith.constant 7 : index
    %c0_53 = arith.constant 0 : index
    %63 = vector.load %arg3[%c7, %c0_53] : memref<9x4xf32, #tpu.memory_space<vmem>>, vector<1x4xf32>
    %64 = vector.shape_cast %63 : vector<1x4xf32> to vector<1x1x1x4xf32>
    %65 = vector.broadcast %64 : vector<1x1x1x4xf32> to vector<2x1x1x4xf32>
    %66 = arith.mulf %62, %65 : vector<2x1x1x4xf32>
    %67 = arith.addf %61, %66 : vector<2x1x1x4xf32>
    %c0_54 = arith.constant 0 : index
    %c2_55 = arith.constant 2 : index
    %c2_56 = arith.constant 2 : index
    %c0_57 = arith.constant 0 : index
    %68 = vector.load %arg5[%c0_54, %c2_55, %c2_56, %c0_57] : memref<2x3x3x4xf32, #tpu.memory_space<vmem>>, vector<2x1x1x4xf32>
    %c8 = arith.constant 8 : index
    %c0_58 = arith.constant 0 : index
    %69 = vector.load %arg3[%c8, %c0_58] : memref<9x4xf32, #tpu.memory_space<vmem>>, vector<1x4xf32>
    %70 = vector.shape_cast %69 : vector<1x4xf32> to vector<1x1x1x4xf32>
    %71 = vector.broadcast %70 : vector<1x1x1x4xf32> to vector<2x1x1x4xf32>
    %72 = arith.mulf %68, %71 : vector<2x1x1x4xf32>
    %73 = arith.addf %67, %72 : vector<2x1x1x4xf32>
    %74 = arith.mulf %73, %73 : vector<2x1x1x4xf32>
    %75 = arith.mulf %74, %73 : vector<2x1x1x4xf32>
    %cst_59 = arith.constant 5.000000e-01 : f32
    %76 = vector.broadcast %cst_59 : f32 to vector<2x1x1x4xf32>
    %77 = arith.mulf %76, %73 : vector<2x1x1x4xf32>
    %cst_60 = arith.constant 4.471500e-02 : f32
    %78 = vector.broadcast %cst_60 : f32 to vector<2x1x1x4xf32>
    %79 = arith.mulf %78, %75 : vector<2x1x1x4xf32>
    %80 = arith.addf %73, %79 : vector<2x1x1x4xf32>
    %cst_61 = arith.constant 0.797884583 : f32
    %81 = vector.broadcast %cst_61 : f32 to vector<2x1x1x4xf32>
    %82 = arith.mulf %81, %80 : vector<2x1x1x4xf32>
    %83 = math.tanh %82 : vector<2x1x1x4xf32>
    %cst_62 = arith.constant 1.000000e+00 : f32
    %84 = vector.broadcast %cst_62 : f32 to vector<2x1x1x4xf32>
    %85 = arith.addf %84, %83 : vector<2x1x1x4xf32>
    %86 = arith.mulf %77, %85 : vector<2x1x1x4xf32>
    %c0_63 = arith.constant 0 : index
    %c0_64 = arith.constant 0 : index
    %c0_65 = arith.constant 0 : index
    %c0_66 = arith.constant 0 : index
    %87 = vector.load %arg4[%c0_63, %c0_64, %c0_65, %c0_66] : memref<2x1x1x4xf32, #tpu.memory_space<vmem>>, vector<2x1x1x4xf32>
    tpu.vector_store %arg4[%c0_63, %c0_64, %c0_65, %c0_66], %86 {strides = array<i32>} : memref<2x1x1x4xf32, #tpu.memory_space<vmem>>, vector<2x1x1x4xf32>,
    return
  }
  func.func @transform_0(%arg0: i32) -> (i32, i32, i32, i32) {
    %c0_i32 = arith.constant 0 : i32
    %c0_i32_0 = arith.constant 0 : i32
    %c0_i32_1 = arith.constant 0 : i32
    %c0_i32_2 = arith.constant 0 : i32
    %c0_i32_3 = arith.constant 0 : i32
    return %c0_i32, %c0_i32_0, %c0_i32_1, %c0_i32_2 : i32, i32, i32, i32
  }
  func.func @transform_1(%arg0: i32) -> (i32, i32) {
    %c0_i32 = arith.constant 0 : i32
    %c0_i32_0 = arith.constant 0 : i32
    %c0_i32_1 = arith.constant 0 : i32
    return %c0_i32, %c0_i32_0 : i32, i32
  }
  func.func @transform_2(%arg0: i32) -> (i32, i32) {
    %c0_i32 = arith.constant 0 : i32
    %c0_i32_0 = arith.constant 0 : i32
    %c0_i32_1 = arith.constant 0 : i32
    return %c0_i32, %c0_i32_0 : i32, i32
  }
  func.func @transform_3(%arg0: i32) -> (i32, i32, i32, i32) {
    %c0_i32 = arith.constant 0 : i32
    %c0_i32_0 = arith.constant 0 : i32
    %c0_i32_1 = arith.constant 0 : i32
    %c0_i32_2 = arith.constant 0 : i32
    %c0_i32_3 = arith.constant 0 : i32
    return %c0_i32, %c0_i32_0, %c0_i32_1, %c0_i32_2 : i32, i32, i32, i32
  }
}

module attributes {stable_mosaic.version = 11 : i64} {
  func.func @_bin_branch_kernel(%arg0: i32, %arg1: memref<2x6x6x4xf32, #tpu.memory_space<vmem>>, %arg2: memref<1x4xf32, #tpu.memory_space<vmem>>, %arg3: memref<9x4xf32, #tpu.memory_space<vmem>>, %arg4: memref<2x4x4x4xf32, #tpu.memory_space<vmem>>, %arg5: memref<2x6x6x4xf32, #tpu.memory_space<vmem>>) attributes {dimension_semantics = [#tpu.dimension_semantics<arbitrary>], iteration_bounds = array<i64: 1>, scalar_prefetch = 0 : i64, scratch_operands = 1 : i64, tpu.core_type = #tpu.core_type<tc>, window_params = [{pipeline_mode = #tpu.pipeline_mode<synchronous>, transform_indices = @transform_0, window_bounds = array<i64: 2, 6, 6, 4>}, {pipeline_mode = #tpu.pipeline_mode<synchronous>, transform_indices = @transform_1, window_bounds = array<i64: 1, 4>}, {pipeline_mode = #tpu.pipeline_mode<synchronous>, transform_indices = @transform_2, window_bounds = array<i64: 9, 4>}, {pipeline_mode = #tpu.pipeline_mode<synchronous>, transform_indices = @transform_3, window_bounds = array<i64: 2, 4, 4, 4>}]} {
    %c0 = arith.constant 0 : index
    %c0_0 = arith.constant 0 : index
    %c0_1 = arith.constant 0 : index
    %c0_2 = arith.constant 0 : index
    %0 = vector.load %arg1[%c0, %c0_0, %c0_1, %c0_2] : memref<2x6x6x4xf32, #tpu.memory_space<vmem>>, vector<2x6x6x4xf32>
    %c0_3 = arith.constant 0 : index
    %c0_4 = arith.constant 0 : index
    %1 = vector.load %arg2[%c0_3, %c0_4] : memref<1x4xf32, #tpu.memory_space<vmem>>, vector<1x4xf32>
    %2 = vector.shape_cast %1 : vector<1x4xf32> to vector<1x1x1x4xf32>
    %3 = vector.broadcast %2 : vector<1x1x1x4xf32> to vector<2x6x6x4xf32>
    %4 = arith.addf %0, %3 : vector<2x6x6x4xf32>
    %5 = arith.mulf %4, %4 : vector<2x6x6x4xf32>
    %6 = arith.mulf %5, %4 : vector<2x6x6x4xf32>
    %cst = arith.constant 5.000000e-01 : f32
    %7 = vector.broadcast %cst : f32 to vector<2x6x6x4xf32>
    %8 = arith.mulf %7, %4 : vector<2x6x6x4xf32>
    %cst_5 = arith.constant 4.471500e-02 : f32
    %9 = vector.broadcast %cst_5 : f32 to vector<2x6x6x4xf32>
    %10 = arith.mulf %9, %6 : vector<2x6x6x4xf32>
    %11 = arith.addf %4, %10 : vector<2x6x6x4xf32>
    %cst_6 = arith.constant 0.797884583 : f32
    %12 = vector.broadcast %cst_6 : f32 to vector<2x6x6x4xf32>
    %13 = arith.mulf %12, %11 : vector<2x6x6x4xf32>
    %14 = math.tanh %13 : vector<2x6x6x4xf32>
    %cst_7 = arith.constant 1.000000e+00 : f32
    %15 = vector.broadcast %cst_7 : f32 to vector<2x6x6x4xf32>
    %16 = arith.addf %15, %14 : vector<2x6x6x4xf32>
    %17 = arith.mulf %8, %16 : vector<2x6x6x4xf32>
    %c0_8 = arith.constant 0 : index
    %c0_9 = arith.constant 0 : index
    %c0_10 = arith.constant 0 : index
    %c0_11 = arith.constant 0 : index
    %18 = vector.load %arg5[%c0_8, %c0_9, %c0_10, %c0_11] : memref<2x6x6x4xf32, #tpu.memory_space<vmem>>, vector<2x6x6x4xf32>
    tpu.vector_store %arg5[%c0_8, %c0_9, %c0_10, %c0_11], %17 {strides = array<i32>} : memref<2x6x6x4xf32, #tpu.memory_space<vmem>>, vector<2x6x6x4xf32>,
    %cst_12 = arith.constant 0.000000e+00 : f32
    %19 = vector.broadcast %cst_12 : f32 to vector<2x4x4x4xf32>
    %c0_13 = arith.constant 0 : index
    %c0_14 = arith.constant 0 : index
    %c0_15 = arith.constant 0 : index
    %c0_16 = arith.constant 0 : index
    %20 = vector.load %arg5[%c0_13, %c0_14, %c0_15, %c0_16] : memref<2x6x6x4xf32, #tpu.memory_space<vmem>>, vector<2x4x4x4xf32>
    %c0_17 = arith.constant 0 : index
    %c0_18 = arith.constant 0 : index
    %21 = vector.load %arg3[%c0_17, %c0_18] : memref<9x4xf32, #tpu.memory_space<vmem>>, vector<1x4xf32>
    %22 = vector.shape_cast %21 : vector<1x4xf32> to vector<1x1x1x4xf32>
    %23 = vector.broadcast %22 : vector<1x1x1x4xf32> to vector<2x4x4x4xf32>
    %24 = arith.mulf %20, %23 : vector<2x4x4x4xf32>
    %25 = arith.addf %19, %24 : vector<2x4x4x4xf32>
    %c0_19 = arith.constant 0 : index
    %c0_20 = arith.constant 0 : index
    %c1 = arith.constant 1 : index
    %c0_21 = arith.constant 0 : index
    %26 = vector.load %arg5[%c0_19, %c0_20, %c1, %c0_21] : memref<2x6x6x4xf32, #tpu.memory_space<vmem>>, vector<2x4x4x4xf32>
    %c1_22 = arith.constant 1 : index
    %c0_23 = arith.constant 0 : index
    %27 = vector.load %arg3[%c1_22, %c0_23] : memref<9x4xf32, #tpu.memory_space<vmem>>, vector<1x4xf32>
    %28 = vector.shape_cast %27 : vector<1x4xf32> to vector<1x1x1x4xf32>
    %29 = vector.broadcast %28 : vector<1x1x1x4xf32> to vector<2x4x4x4xf32>
    %30 = arith.mulf %26, %29 : vector<2x4x4x4xf32>
    %31 = arith.addf %25, %30 : vector<2x4x4x4xf32>
    %c0_24 = arith.constant 0 : index
    %c0_25 = arith.constant 0 : index
    %c2 = arith.constant 2 : index
    %c0_26 = arith.constant 0 : index
    %32 = vector.load %arg5[%c0_24, %c0_25, %c2, %c0_26] : memref<2x6x6x4xf32, #tpu.memory_space<vmem>>, vector<2x4x4x4xf32>
    %c2_27 = arith.constant 2 : index
    %c0_28 = arith.constant 0 : index
    %33 = vector.load %arg3[%c2_27, %c0_28] : memref<9x4xf32, #tpu.memory_space<vmem>>, vector<1x4xf32>
    %34 = vector.shape_cast %33 : vector<1x4xf32> to vector<1x1x1x4xf32>
    %35 = vector.broadcast %34 : vector<1x1x1x4xf32> to vector<2x4x4x4xf32>
    %36 = arith.mulf %32, %35 : vector<2x4x4x4xf32>
    %37 = arith.addf %31, %36 : vector<2x4x4x4xf32>
    %c0_29 = arith.constant 0 : index
    %c1_30 = arith.constant 1 : index
    %c0_31 = arith.constant 0 : index
    %c0_32 = arith.constant 0 : index
    %38 = vector.load %arg5[%c0_29, %c1_30, %c0_31, %c0_32] : memref<2x6x6x4xf32, #tpu.memory_space<vmem>>, vector<2x4x4x4xf32>
    %c3 = arith.constant 3 : index
    %c0_33 = arith.constant 0 : index
    %39 = vector.load %arg3[%c3, %c0_33] : memref<9x4xf32, #tpu.memory_space<vmem>>, vector<1x4xf32>
    %40 = vector.shape_cast %39 : vector<1x4xf32> to vector<1x1x1x4xf32>
    %41 = vector.broadcast %40 : vector<1x1x1x4xf32> to vector<2x4x4x4xf32>
    %42 = arith.mulf %38, %41 : vector<2x4x4x4xf32>
    %43 = arith.addf %37, %42 : vector<2x4x4x4xf32>
    %c0_34 = arith.constant 0 : index
    %c1_35 = arith.constant 1 : index
    %c1_36 = arith.constant 1 : index
    %c0_37 = arith.constant 0 : index
    %44 = vector.load %arg5[%c0_34, %c1_35, %c1_36, %c0_37] : memref<2x6x6x4xf32, #tpu.memory_space<vmem>>, vector<2x4x4x4xf32>
    %c4 = arith.constant 4 : index
    %c0_38 = arith.constant 0 : index
    %45 = vector.load %arg3[%c4, %c0_38] : memref<9x4xf32, #tpu.memory_space<vmem>>, vector<1x4xf32>
    %46 = vector.shape_cast %45 : vector<1x4xf32> to vector<1x1x1x4xf32>
    %47 = vector.broadcast %46 : vector<1x1x1x4xf32> to vector<2x4x4x4xf32>
    %48 = arith.mulf %44, %47 : vector<2x4x4x4xf32>
    %49 = arith.addf %43, %48 : vector<2x4x4x4xf32>
    %c0_39 = arith.constant 0 : index
    %c1_40 = arith.constant 1 : index
    %c2_41 = arith.constant 2 : index
    %c0_42 = arith.constant 0 : index
    %50 = vector.load %arg5[%c0_39, %c1_40, %c2_41, %c0_42] : memref<2x6x6x4xf32, #tpu.memory_space<vmem>>, vector<2x4x4x4xf32>
    %c5 = arith.constant 5 : index
    %c0_43 = arith.constant 0 : index
    %51 = vector.load %arg3[%c5, %c0_43] : memref<9x4xf32, #tpu.memory_space<vmem>>, vector<1x4xf32>
    %52 = vector.shape_cast %51 : vector<1x4xf32> to vector<1x1x1x4xf32>
    %53 = vector.broadcast %52 : vector<1x1x1x4xf32> to vector<2x4x4x4xf32>
    %54 = arith.mulf %50, %53 : vector<2x4x4x4xf32>
    %55 = arith.addf %49, %54 : vector<2x4x4x4xf32>
    %c0_44 = arith.constant 0 : index
    %c2_45 = arith.constant 2 : index
    %c0_46 = arith.constant 0 : index
    %c0_47 = arith.constant 0 : index
    %56 = vector.load %arg5[%c0_44, %c2_45, %c0_46, %c0_47] : memref<2x6x6x4xf32, #tpu.memory_space<vmem>>, vector<2x4x4x4xf32>
    %c6 = arith.constant 6 : index
    %c0_48 = arith.constant 0 : index
    %57 = vector.load %arg3[%c6, %c0_48] : memref<9x4xf32, #tpu.memory_space<vmem>>, vector<1x4xf32>
    %58 = vector.shape_cast %57 : vector<1x4xf32> to vector<1x1x1x4xf32>
    %59 = vector.broadcast %58 : vector<1x1x1x4xf32> to vector<2x4x4x4xf32>
    %60 = arith.mulf %56, %59 : vector<2x4x4x4xf32>
    %61 = arith.addf %55, %60 : vector<2x4x4x4xf32>
    %c0_49 = arith.constant 0 : index
    %c2_50 = arith.constant 2 : index
    %c1_51 = arith.constant 1 : index
    %c0_52 = arith.constant 0 : index
    %62 = vector.load %arg5[%c0_49, %c2_50, %c1_51, %c0_52] : memref<2x6x6x4xf32, #tpu.memory_space<vmem>>, vector<2x4x4x4xf32>
    %c7 = arith.constant 7 : index
    %c0_53 = arith.constant 0 : index
    %63 = vector.load %arg3[%c7, %c0_53] : memref<9x4xf32, #tpu.memory_space<vmem>>, vector<1x4xf32>
    %64 = vector.shape_cast %63 : vector<1x4xf32> to vector<1x1x1x4xf32>
    %65 = vector.broadcast %64 : vector<1x1x1x4xf32> to vector<2x4x4x4xf32>
    %66 = arith.mulf %62, %65 : vector<2x4x4x4xf32>
    %67 = arith.addf %61, %66 : vector<2x4x4x4xf32>
    %c0_54 = arith.constant 0 : index
    %c2_55 = arith.constant 2 : index
    %c2_56 = arith.constant 2 : index
    %c0_57 = arith.constant 0 : index
    %68 = vector.load %arg5[%c0_54, %c2_55, %c2_56, %c0_57] : memref<2x6x6x4xf32, #tpu.memory_space<vmem>>, vector<2x4x4x4xf32>
    %c8 = arith.constant 8 : index
    %c0_58 = arith.constant 0 : index
    %69 = vector.load %arg3[%c8, %c0_58] : memref<9x4xf32, #tpu.memory_space<vmem>>, vector<1x4xf32>
    %70 = vector.shape_cast %69 : vector<1x4xf32> to vector<1x1x1x4xf32>
    %71 = vector.broadcast %70 : vector<1x1x1x4xf32> to vector<2x4x4x4xf32>
    %72 = arith.mulf %68, %71 : vector<2x4x4x4xf32>
    %73 = arith.addf %67, %72 : vector<2x4x4x4xf32>
    %74 = arith.mulf %73, %73 : vector<2x4x4x4xf32>
    %75 = arith.mulf %74, %73 : vector<2x4x4x4xf32>
    %cst_59 = arith.constant 5.000000e-01 : f32
    %76 = vector.broadcast %cst_59 : f32 to vector<2x4x4x4xf32>
    %77 = arith.mulf %76, %73 : vector<2x4x4x4xf32>
    %cst_60 = arith.constant 4.471500e-02 : f32
    %78 = vector.broadcast %cst_60 : f32 to vector<2x4x4x4xf32>
    %79 = arith.mulf %78, %75 : vector<2x4x4x4xf32>
    %80 = arith.addf %73, %79 : vector<2x4x4x4xf32>
    %cst_61 = arith.constant 0.797884583 : f32
    %81 = vector.broadcast %cst_61 : f32 to vector<2x4x4x4xf32>
    %82 = arith.mulf %81, %80 : vector<2x4x4x4xf32>
    %83 = math.tanh %82 : vector<2x4x4x4xf32>
    %cst_62 = arith.constant 1.000000e+00 : f32
    %84 = vector.broadcast %cst_62 : f32 to vector<2x4x4x4xf32>
    %85 = arith.addf %84, %83 : vector<2x4x4x4xf32>
    %86 = arith.mulf %77, %85 : vector<2x4x4x4xf32>
    %c0_63 = arith.constant 0 : index
    %c0_64 = arith.constant 0 : index
    %c0_65 = arith.constant 0 : index
    %c0_66 = arith.constant 0 : index
    %87 = vector.load %arg4[%c0_63, %c0_64, %c0_65, %c0_66] : memref<2x4x4x4xf32, #tpu.memory_space<vmem>>, vector<2x4x4x4xf32>
    tpu.vector_store %arg4[%c0_63, %c0_64, %c0_65, %c0_66], %86 {strides = array<i32>} : memref<2x4x4x4xf32, #tpu.memory_space<vmem>>, vector<2x4x4x4xf32>,
    return
  }
  func.func @transform_0(%arg0: i32) -> (i32, i32, i32, i32) {
    %c0_i32 = arith.constant 0 : i32
    %c0_i32_0 = arith.constant 0 : i32
    %c0_i32_1 = arith.constant 0 : i32
    %c0_i32_2 = arith.constant 0 : i32
    %c0_i32_3 = arith.constant 0 : i32
    return %c0_i32, %c0_i32_0, %c0_i32_1, %c0_i32_2 : i32, i32, i32, i32
  }
  func.func @transform_1(%arg0: i32) -> (i32, i32) {
    %c0_i32 = arith.constant 0 : i32
    %c0_i32_0 = arith.constant 0 : i32
    %c0_i32_1 = arith.constant 0 : i32
    return %c0_i32, %c0_i32_0 : i32, i32
  }
  func.func @transform_2(%arg0: i32) -> (i32, i32) {
    %c0_i32 = arith.constant 0 : i32
    %c0_i32_0 = arith.constant 0 : i32
    %c0_i32_1 = arith.constant 0 : i32
    return %c0_i32, %c0_i32_0 : i32, i32
  }
  func.func @transform_3(%arg0: i32) -> (i32, i32, i32, i32) {
    %c0_i32 = arith.constant 0 : i32
    %c0_i32_0 = arith.constant 0 : i32
    %c0_i32_1 = arith.constant 0 : i32
    %c0_i32_2 = arith.constant 0 : i32
    %c0_i32_3 = arith.constant 0 : i32
    return %c0_i32, %c0_i32_0, %c0_i32_1, %c0_i32_2 : i32, i32, i32, i32
  }
}

module attributes {stable_mosaic.version = 11 : i64} {
  func.func @_bin_branch_kernel(%arg0: i32, %arg1: memref<2x9x9x4xf32, #tpu.memory_space<vmem>>, %arg2: memref<1x4xf32, #tpu.memory_space<vmem>>, %arg3: memref<9x4xf32, #tpu.memory_space<vmem>>, %arg4: memref<2x7x7x4xf32, #tpu.memory_space<vmem>>, %arg5: memref<2x9x9x4xf32, #tpu.memory_space<vmem>>) attributes {dimension_semantics = [#tpu.dimension_semantics<arbitrary>], iteration_bounds = array<i64: 1>, scalar_prefetch = 0 : i64, scratch_operands = 1 : i64, tpu.core_type = #tpu.core_type<tc>, window_params = [{pipeline_mode = #tpu.pipeline_mode<synchronous>, transform_indices = @transform_0, window_bounds = array<i64: 2, 9, 9, 4>}, {pipeline_mode = #tpu.pipeline_mode<synchronous>, transform_indices = @transform_1, window_bounds = array<i64: 1, 4>}, {pipeline_mode = #tpu.pipeline_mode<synchronous>, transform_indices = @transform_2, window_bounds = array<i64: 9, 4>}, {pipeline_mode = #tpu.pipeline_mode<synchronous>, transform_indices = @transform_3, window_bounds = array<i64: 2, 7, 7, 4>}]} {
    %c0 = arith.constant 0 : index
    %c0_0 = arith.constant 0 : index
    %c0_1 = arith.constant 0 : index
    %c0_2 = arith.constant 0 : index
    %0 = vector.load %arg1[%c0, %c0_0, %c0_1, %c0_2] : memref<2x9x9x4xf32, #tpu.memory_space<vmem>>, vector<2x9x9x4xf32>
    %c0_3 = arith.constant 0 : index
    %c0_4 = arith.constant 0 : index
    %1 = vector.load %arg2[%c0_3, %c0_4] : memref<1x4xf32, #tpu.memory_space<vmem>>, vector<1x4xf32>
    %2 = vector.shape_cast %1 : vector<1x4xf32> to vector<1x1x1x4xf32>
    %3 = vector.broadcast %2 : vector<1x1x1x4xf32> to vector<2x9x9x4xf32>
    %4 = arith.addf %0, %3 : vector<2x9x9x4xf32>
    %5 = arith.mulf %4, %4 : vector<2x9x9x4xf32>
    %6 = arith.mulf %5, %4 : vector<2x9x9x4xf32>
    %cst = arith.constant 5.000000e-01 : f32
    %7 = vector.broadcast %cst : f32 to vector<2x9x9x4xf32>
    %8 = arith.mulf %7, %4 : vector<2x9x9x4xf32>
    %cst_5 = arith.constant 4.471500e-02 : f32
    %9 = vector.broadcast %cst_5 : f32 to vector<2x9x9x4xf32>
    %10 = arith.mulf %9, %6 : vector<2x9x9x4xf32>
    %11 = arith.addf %4, %10 : vector<2x9x9x4xf32>
    %cst_6 = arith.constant 0.797884583 : f32
    %12 = vector.broadcast %cst_6 : f32 to vector<2x9x9x4xf32>
    %13 = arith.mulf %12, %11 : vector<2x9x9x4xf32>
    %14 = math.tanh %13 : vector<2x9x9x4xf32>
    %cst_7 = arith.constant 1.000000e+00 : f32
    %15 = vector.broadcast %cst_7 : f32 to vector<2x9x9x4xf32>
    %16 = arith.addf %15, %14 : vector<2x9x9x4xf32>
    %17 = arith.mulf %8, %16 : vector<2x9x9x4xf32>
    %c0_8 = arith.constant 0 : index
    %c0_9 = arith.constant 0 : index
    %c0_10 = arith.constant 0 : index
    %c0_11 = arith.constant 0 : index
    %18 = vector.load %arg5[%c0_8, %c0_9, %c0_10, %c0_11] : memref<2x9x9x4xf32, #tpu.memory_space<vmem>>, vector<2x9x9x4xf32>
    tpu.vector_store %arg5[%c0_8, %c0_9, %c0_10, %c0_11], %17 {strides = array<i32>} : memref<2x9x9x4xf32, #tpu.memory_space<vmem>>, vector<2x9x9x4xf32>,
    %cst_12 = arith.constant 0.000000e+00 : f32
    %19 = vector.broadcast %cst_12 : f32 to vector<2x7x7x4xf32>
    %c0_13 = arith.constant 0 : index
    %c0_14 = arith.constant 0 : index
    %c0_15 = arith.constant 0 : index
    %c0_16 = arith.constant 0 : index
    %20 = vector.load %arg5[%c0_13, %c0_14, %c0_15, %c0_16] : memref<2x9x9x4xf32, #tpu.memory_space<vmem>>, vector<2x7x7x4xf32>
    %c0_17 = arith.constant 0 : index
    %c0_18 = arith.constant 0 : index
    %21 = vector.load %arg3[%c0_17, %c0_18] : memref<9x4xf32, #tpu.memory_space<vmem>>, vector<1x4xf32>
    %22 = vector.shape_cast %21 : vector<1x4xf32> to vector<1x1x1x4xf32>
    %23 = vector.broadcast %22 : vector<1x1x1x4xf32> to vector<2x7x7x4xf32>
    %24 = arith.mulf %20, %23 : vector<2x7x7x4xf32>
    %25 = arith.addf %19, %24 : vector<2x7x7x4xf32>
    %c0_19 = arith.constant 0 : index
    %c0_20 = arith.constant 0 : index
    %c1 = arith.constant 1 : index
    %c0_21 = arith.constant 0 : index
    %26 = vector.load %arg5[%c0_19, %c0_20, %c1, %c0_21] : memref<2x9x9x4xf32, #tpu.memory_space<vmem>>, vector<2x7x7x4xf32>
    %c1_22 = arith.constant 1 : index
    %c0_23 = arith.constant 0 : index
    %27 = vector.load %arg3[%c1_22, %c0_23] : memref<9x4xf32, #tpu.memory_space<vmem>>, vector<1x4xf32>
    %28 = vector.shape_cast %27 : vector<1x4xf32> to vector<1x1x1x4xf32>
    %29 = vector.broadcast %28 : vector<1x1x1x4xf32> to vector<2x7x7x4xf32>
    %30 = arith.mulf %26, %29 : vector<2x7x7x4xf32>
    %31 = arith.addf %25, %30 : vector<2x7x7x4xf32>
    %c0_24 = arith.constant 0 : index
    %c0_25 = arith.constant 0 : index
    %c2 = arith.constant 2 : index
    %c0_26 = arith.constant 0 : index
    %32 = vector.load %arg5[%c0_24, %c0_25, %c2, %c0_26] : memref<2x9x9x4xf32, #tpu.memory_space<vmem>>, vector<2x7x7x4xf32>
    %c2_27 = arith.constant 2 : index
    %c0_28 = arith.constant 0 : index
    %33 = vector.load %arg3[%c2_27, %c0_28] : memref<9x4xf32, #tpu.memory_space<vmem>>, vector<1x4xf32>
    %34 = vector.shape_cast %33 : vector<1x4xf32> to vector<1x1x1x4xf32>
    %35 = vector.broadcast %34 : vector<1x1x1x4xf32> to vector<2x7x7x4xf32>
    %36 = arith.mulf %32, %35 : vector<2x7x7x4xf32>
    %37 = arith.addf %31, %36 : vector<2x7x7x4xf32>
    %c0_29 = arith.constant 0 : index
    %c1_30 = arith.constant 1 : index
    %c0_31 = arith.constant 0 : index
    %c0_32 = arith.constant 0 : index
    %38 = vector.load %arg5[%c0_29, %c1_30, %c0_31, %c0_32] : memref<2x9x9x4xf32, #tpu.memory_space<vmem>>, vector<2x7x7x4xf32>
    %c3 = arith.constant 3 : index
    %c0_33 = arith.constant 0 : index
    %39 = vector.load %arg3[%c3, %c0_33] : memref<9x4xf32, #tpu.memory_space<vmem>>, vector<1x4xf32>
    %40 = vector.shape_cast %39 : vector<1x4xf32> to vector<1x1x1x4xf32>
    %41 = vector.broadcast %40 : vector<1x1x1x4xf32> to vector<2x7x7x4xf32>
    %42 = arith.mulf %38, %41 : vector<2x7x7x4xf32>
    %43 = arith.addf %37, %42 : vector<2x7x7x4xf32>
    %c0_34 = arith.constant 0 : index
    %c1_35 = arith.constant 1 : index
    %c1_36 = arith.constant 1 : index
    %c0_37 = arith.constant 0 : index
    %44 = vector.load %arg5[%c0_34, %c1_35, %c1_36, %c0_37] : memref<2x9x9x4xf32, #tpu.memory_space<vmem>>, vector<2x7x7x4xf32>
    %c4 = arith.constant 4 : index
    %c0_38 = arith.constant 0 : index
    %45 = vector.load %arg3[%c4, %c0_38] : memref<9x4xf32, #tpu.memory_space<vmem>>, vector<1x4xf32>
    %46 = vector.shape_cast %45 : vector<1x4xf32> to vector<1x1x1x4xf32>
    %47 = vector.broadcast %46 : vector<1x1x1x4xf32> to vector<2x7x7x4xf32>
    %48 = arith.mulf %44, %47 : vector<2x7x7x4xf32>
    %49 = arith.addf %43, %48 : vector<2x7x7x4xf32>
    %c0_39 = arith.constant 0 : index
    %c1_40 = arith.constant 1 : index
    %c2_41 = arith.constant 2 : index
    %c0_42 = arith.constant 0 : index
    %50 = vector.load %arg5[%c0_39, %c1_40, %c2_41, %c0_42] : memref<2x9x9x4xf32, #tpu.memory_space<vmem>>, vector<2x7x7x4xf32>
    %c5 = arith.constant 5 : index
    %c0_43 = arith.constant 0 : index
    %51 = vector.load %arg3[%c5, %c0_43] : memref<9x4xf32, #tpu.memory_space<vmem>>, vector<1x4xf32>
    %52 = vector.shape_cast %51 : vector<1x4xf32> to vector<1x1x1x4xf32>
    %53 = vector.broadcast %52 : vector<1x1x1x4xf32> to vector<2x7x7x4xf32>
    %54 = arith.mulf %50, %53 : vector<2x7x7x4xf32>
    %55 = arith.addf %49, %54 : vector<2x7x7x4xf32>
    %c0_44 = arith.constant 0 : index
    %c2_45 = arith.constant 2 : index
    %c0_46 = arith.constant 0 : index
    %c0_47 = arith.constant 0 : index
    %56 = vector.load %arg5[%c0_44, %c2_45, %c0_46, %c0_47] : memref<2x9x9x4xf32, #tpu.memory_space<vmem>>, vector<2x7x7x4xf32>
    %c6 = arith.constant 6 : index
    %c0_48 = arith.constant 0 : index
    %57 = vector.load %arg3[%c6, %c0_48] : memref<9x4xf32, #tpu.memory_space<vmem>>, vector<1x4xf32>
    %58 = vector.shape_cast %57 : vector<1x4xf32> to vector<1x1x1x4xf32>
    %59 = vector.broadcast %58 : vector<1x1x1x4xf32> to vector<2x7x7x4xf32>
    %60 = arith.mulf %56, %59 : vector<2x7x7x4xf32>
    %61 = arith.addf %55, %60 : vector<2x7x7x4xf32>
    %c0_49 = arith.constant 0 : index
    %c2_50 = arith.constant 2 : index
    %c1_51 = arith.constant 1 : index
    %c0_52 = arith.constant 0 : index
    %62 = vector.load %arg5[%c0_49, %c2_50, %c1_51, %c0_52] : memref<2x9x9x4xf32, #tpu.memory_space<vmem>>, vector<2x7x7x4xf32>
    %c7 = arith.constant 7 : index
    %c0_53 = arith.constant 0 : index
    %63 = vector.load %arg3[%c7, %c0_53] : memref<9x4xf32, #tpu.memory_space<vmem>>, vector<1x4xf32>
    %64 = vector.shape_cast %63 : vector<1x4xf32> to vector<1x1x1x4xf32>
    %65 = vector.broadcast %64 : vector<1x1x1x4xf32> to vector<2x7x7x4xf32>
    %66 = arith.mulf %62, %65 : vector<2x7x7x4xf32>
    %67 = arith.addf %61, %66 : vector<2x7x7x4xf32>
    %c0_54 = arith.constant 0 : index
    %c2_55 = arith.constant 2 : index
    %c2_56 = arith.constant 2 : index
    %c0_57 = arith.constant 0 : index
    %68 = vector.load %arg5[%c0_54, %c2_55, %c2_56, %c0_57] : memref<2x9x9x4xf32, #tpu.memory_space<vmem>>, vector<2x7x7x4xf32>
    %c8 = arith.constant 8 : index
    %c0_58 = arith.constant 0 : index
    %69 = vector.load %arg3[%c8, %c0_58] : memref<9x4xf32, #tpu.memory_space<vmem>>, vector<1x4xf32>
    %70 = vector.shape_cast %69 : vector<1x4xf32> to vector<1x1x1x4xf32>
    %71 = vector.broadcast %70 : vector<1x1x1x4xf32> to vector<2x7x7x4xf32>
    %72 = arith.mulf %68, %71 : vector<2x7x7x4xf32>
    %73 = arith.addf %67, %72 : vector<2x7x7x4xf32>
    %74 = arith.mulf %73, %73 : vector<2x7x7x4xf32>
    %75 = arith.mulf %74, %73 : vector<2x7x7x4xf32>
    %cst_59 = arith.constant 5.000000e-01 : f32
    %76 = vector.broadcast %cst_59 : f32 to vector<2x7x7x4xf32>
    %77 = arith.mulf %76, %73 : vector<2x7x7x4xf32>
    %cst_60 = arith.constant 4.471500e-02 : f32
    %78 = vector.broadcast %cst_60 : f32 to vector<2x7x7x4xf32>
    %79 = arith.mulf %78, %75 : vector<2x7x7x4xf32>
    %80 = arith.addf %73, %79 : vector<2x7x7x4xf32>
    %cst_61 = arith.constant 0.797884583 : f32
    %81 = vector.broadcast %cst_61 : f32 to vector<2x7x7x4xf32>
    %82 = arith.mulf %81, %80 : vector<2x7x7x4xf32>
    %83 = math.tanh %82 : vector<2x7x7x4xf32>
    %cst_62 = arith.constant 1.000000e+00 : f32
    %84 = vector.broadcast %cst_62 : f32 to vector<2x7x7x4xf32>
    %85 = arith.addf %84, %83 : vector<2x7x7x4xf32>
    %86 = arith.mulf %77, %85 : vector<2x7x7x4xf32>
    %c0_63 = arith.constant 0 : index
    %c0_64 = arith.constant 0 : index
    %c0_65 = arith.constant 0 : index
    %c0_66 = arith.constant 0 : index
    %87 = vector.load %arg4[%c0_63, %c0_64, %c0_65, %c0_66] : memref<2x7x7x4xf32, #tpu.memory_space<vmem>>, vector<2x7x7x4xf32>
    tpu.vector_store %arg4[%c0_63, %c0_64, %c0_65, %c0_66], %86 {strides = array<i32>} : memref<2x7x7x4xf32, #tpu.memory_space<vmem>>, vector<2x7x7x4xf32>,
    return
  }
  func.func @transform_0(%arg0: i32) -> (i32, i32, i32, i32) {
    %c0_i32 = arith.constant 0 : i32
    %c0_i32_0 = arith.constant 0 : i32
    %c0_i32_1 = arith.constant 0 : i32
    %c0_i32_2 = arith.constant 0 : i32
    %c0_i32_3 = arith.constant 0 : i32
    return %c0_i32, %c0_i32_0, %c0_i32_1, %c0_i32_2 : i32, i32, i32, i32
  }
  func.func @transform_1(%arg0: i32) -> (i32, i32) {
    %c0_i32 = arith.constant 0 : i32
    %c0_i32_0 = arith.constant 0 : i32
    %c0_i32_1 = arith.constant 0 : i32
    return %c0_i32, %c0_i32_0 : i32, i32
  }
  func.func @transform_2(%arg0: i32) -> (i32, i32) {
    %c0_i32 = arith.constant 0 : i32
    %c0_i32_0 = arith.constant 0 : i32
    %c0_i32_1 = arith.constant 0 : i32
    return %c0_i32, %c0_i32_0 : i32, i32
  }
  func.func @transform_3(%arg0: i32) -> (i32, i32, i32, i32) {
    %c0_i32 = arith.constant 0 : i32
    %c0_i32_0 = arith.constant 0 : i32
    %c0_i32_1 = arith.constant 0 : i32
    %c0_i32_2 = arith.constant 0 : i32
    %c0_i32_3 = arith.constant 0 : i32
    return %c0_i32, %c0_i32_0, %c0_i32_1, %c0_i32_2 : i32, i32, i32, i32
  }
}

module attributes {stable_mosaic.version = 11 : i64} {
  func.func @_bin_branch_kernel(%arg0: i32, %arg1: memref<2x12x12x4xf32, #tpu.memory_space<vmem>>, %arg2: memref<1x4xf32, #tpu.memory_space<vmem>>, %arg3: memref<9x4xf32, #tpu.memory_space<vmem>>, %arg4: memref<2x10x10x4xf32, #tpu.memory_space<vmem>>, %arg5: memref<2x12x12x4xf32, #tpu.memory_space<vmem>>) attributes {dimension_semantics = [#tpu.dimension_semantics<arbitrary>], iteration_bounds = array<i64: 1>, scalar_prefetch = 0 : i64, scratch_operands = 1 : i64, tpu.core_type = #tpu.core_type<tc>, window_params = [{pipeline_mode = #tpu.pipeline_mode<synchronous>, transform_indices = @transform_0, window_bounds = array<i64: 2, 12, 12, 4>}, {pipeline_mode = #tpu.pipeline_mode<synchronous>, transform_indices = @transform_1, window_bounds = array<i64: 1, 4>}, {pipeline_mode = #tpu.pipeline_mode<synchronous>, transform_indices = @transform_2, window_bounds = array<i64: 9, 4>}, {pipeline_mode = #tpu.pipeline_mode<synchronous>, transform_indices = @transform_3, window_bounds = array<i64: 2, 10, 10, 4>}]} {
    %c0 = arith.constant 0 : index
    %c0_0 = arith.constant 0 : index
    %c0_1 = arith.constant 0 : index
    %c0_2 = arith.constant 0 : index
    %0 = vector.load %arg1[%c0, %c0_0, %c0_1, %c0_2] : memref<2x12x12x4xf32, #tpu.memory_space<vmem>>, vector<2x12x12x4xf32>
    %c0_3 = arith.constant 0 : index
    %c0_4 = arith.constant 0 : index
    %1 = vector.load %arg2[%c0_3, %c0_4] : memref<1x4xf32, #tpu.memory_space<vmem>>, vector<1x4xf32>
    %2 = vector.shape_cast %1 : vector<1x4xf32> to vector<1x1x1x4xf32>
    %3 = vector.broadcast %2 : vector<1x1x1x4xf32> to vector<2x12x12x4xf32>
    %4 = arith.addf %0, %3 : vector<2x12x12x4xf32>
    %5 = arith.mulf %4, %4 : vector<2x12x12x4xf32>
    %6 = arith.mulf %5, %4 : vector<2x12x12x4xf32>
    %cst = arith.constant 5.000000e-01 : f32
    %7 = vector.broadcast %cst : f32 to vector<2x12x12x4xf32>
    %8 = arith.mulf %7, %4 : vector<2x12x12x4xf32>
    %cst_5 = arith.constant 4.471500e-02 : f32
    %9 = vector.broadcast %cst_5 : f32 to vector<2x12x12x4xf32>
    %10 = arith.mulf %9, %6 : vector<2x12x12x4xf32>
    %11 = arith.addf %4, %10 : vector<2x12x12x4xf32>
    %cst_6 = arith.constant 0.797884583 : f32
    %12 = vector.broadcast %cst_6 : f32 to vector<2x12x12x4xf32>
    %13 = arith.mulf %12, %11 : vector<2x12x12x4xf32>
    %14 = math.tanh %13 : vector<2x12x12x4xf32>
    %cst_7 = arith.constant 1.000000e+00 : f32
    %15 = vector.broadcast %cst_7 : f32 to vector<2x12x12x4xf32>
    %16 = arith.addf %15, %14 : vector<2x12x12x4xf32>
    %17 = arith.mulf %8, %16 : vector<2x12x12x4xf32>
    %c0_8 = arith.constant 0 : index
    %c0_9 = arith.constant 0 : index
    %c0_10 = arith.constant 0 : index
    %c0_11 = arith.constant 0 : index
    %18 = vector.load %arg5[%c0_8, %c0_9, %c0_10, %c0_11] : memref<2x12x12x4xf32, #tpu.memory_space<vmem>>, vector<2x12x12x4xf32>
    tpu.vector_store %arg5[%c0_8, %c0_9, %c0_10, %c0_11], %17 {strides = array<i32>} : memref<2x12x12x4xf32, #tpu.memory_space<vmem>>, vector<2x12x12x4xf32>,
    %cst_12 = arith.constant 0.000000e+00 : f32
    %19 = vector.broadcast %cst_12 : f32 to vector<2x10x10x4xf32>
    %c0_13 = arith.constant 0 : index
    %c0_14 = arith.constant 0 : index
    %c0_15 = arith.constant 0 : index
    %c0_16 = arith.constant 0 : index
    %20 = vector.load %arg5[%c0_13, %c0_14, %c0_15, %c0_16] : memref<2x12x12x4xf32, #tpu.memory_space<vmem>>, vector<2x10x10x4xf32>
    %c0_17 = arith.constant 0 : index
    %c0_18 = arith.constant 0 : index
    %21 = vector.load %arg3[%c0_17, %c0_18] : memref<9x4xf32, #tpu.memory_space<vmem>>, vector<1x4xf32>
    %22 = vector.shape_cast %21 : vector<1x4xf32> to vector<1x1x1x4xf32>
    %23 = vector.broadcast %22 : vector<1x1x1x4xf32> to vector<2x10x10x4xf32>
    %24 = arith.mulf %20, %23 : vector<2x10x10x4xf32>
    %25 = arith.addf %19, %24 : vector<2x10x10x4xf32>
    %c0_19 = arith.constant 0 : index
    %c0_20 = arith.constant 0 : index
    %c1 = arith.constant 1 : index
    %c0_21 = arith.constant 0 : index
    %26 = vector.load %arg5[%c0_19, %c0_20, %c1, %c0_21] : memref<2x12x12x4xf32, #tpu.memory_space<vmem>>, vector<2x10x10x4xf32>
    %c1_22 = arith.constant 1 : index
    %c0_23 = arith.constant 0 : index
    %27 = vector.load %arg3[%c1_22, %c0_23] : memref<9x4xf32, #tpu.memory_space<vmem>>, vector<1x4xf32>
    %28 = vector.shape_cast %27 : vector<1x4xf32> to vector<1x1x1x4xf32>
    %29 = vector.broadcast %28 : vector<1x1x1x4xf32> to vector<2x10x10x4xf32>
    %30 = arith.mulf %26, %29 : vector<2x10x10x4xf32>
    %31 = arith.addf %25, %30 : vector<2x10x10x4xf32>
    %c0_24 = arith.constant 0 : index
    %c0_25 = arith.constant 0 : index
    %c2 = arith.constant 2 : index
    %c0_26 = arith.constant 0 : index
    %32 = vector.load %arg5[%c0_24, %c0_25, %c2, %c0_26] : memref<2x12x12x4xf32, #tpu.memory_space<vmem>>, vector<2x10x10x4xf32>
    %c2_27 = arith.constant 2 : index
    %c0_28 = arith.constant 0 : index
    %33 = vector.load %arg3[%c2_27, %c0_28] : memref<9x4xf32, #tpu.memory_space<vmem>>, vector<1x4xf32>
    %34 = vector.shape_cast %33 : vector<1x4xf32> to vector<1x1x1x4xf32>
    %35 = vector.broadcast %34 : vector<1x1x1x4xf32> to vector<2x10x10x4xf32>
    %36 = arith.mulf %32, %35 : vector<2x10x10x4xf32>
    %37 = arith.addf %31, %36 : vector<2x10x10x4xf32>
    %c0_29 = arith.constant 0 : index
    %c1_30 = arith.constant 1 : index
    %c0_31 = arith.constant 0 : index
    %c0_32 = arith.constant 0 : index
    %38 = vector.load %arg5[%c0_29, %c1_30, %c0_31, %c0_32] : memref<2x12x12x4xf32, #tpu.memory_space<vmem>>, vector<2x10x10x4xf32>
    %c3 = arith.constant 3 : index
    %c0_33 = arith.constant 0 : index
    %39 = vector.load %arg3[%c3, %c0_33] : memref<9x4xf32, #tpu.memory_space<vmem>>, vector<1x4xf32>
    %40 = vector.shape_cast %39 : vector<1x4xf32> to vector<1x1x1x4xf32>
    %41 = vector.broadcast %40 : vector<1x1x1x4xf32> to vector<2x10x10x4xf32>
    %42 = arith.mulf %38, %41 : vector<2x10x10x4xf32>
    %43 = arith.addf %37, %42 : vector<2x10x10x4xf32>
    %c0_34 = arith.constant 0 : index
    %c1_35 = arith.constant 1 : index
    %c1_36 = arith.constant 1 : index
    %c0_37 = arith.constant 0 : index
    %44 = vector.load %arg5[%c0_34, %c1_35, %c1_36, %c0_37] : memref<2x12x12x4xf32, #tpu.memory_space<vmem>>, vector<2x10x10x4xf32>
    %c4 = arith.constant 4 : index
    %c0_38 = arith.constant 0 : index
    %45 = vector.load %arg3[%c4, %c0_38] : memref<9x4xf32, #tpu.memory_space<vmem>>, vector<1x4xf32>
    %46 = vector.shape_cast %45 : vector<1x4xf32> to vector<1x1x1x4xf32>
    %47 = vector.broadcast %46 : vector<1x1x1x4xf32> to vector<2x10x10x4xf32>
    %48 = arith.mulf %44, %47 : vector<2x10x10x4xf32>
    %49 = arith.addf %43, %48 : vector<2x10x10x4xf32>
    %c0_39 = arith.constant 0 : index
    %c1_40 = arith.constant 1 : index
    %c2_41 = arith.constant 2 : index
    %c0_42 = arith.constant 0 : index
    %50 = vector.load %arg5[%c0_39, %c1_40, %c2_41, %c0_42] : memref<2x12x12x4xf32, #tpu.memory_space<vmem>>, vector<2x10x10x4xf32>
    %c5 = arith.constant 5 : index
    %c0_43 = arith.constant 0 : index
    %51 = vector.load %arg3[%c5, %c0_43] : memref<9x4xf32, #tpu.memory_space<vmem>>, vector<1x4xf32>
    %52 = vector.shape_cast %51 : vector<1x4xf32> to vector<1x1x1x4xf32>
    %53 = vector.broadcast %52 : vector<1x1x1x4xf32> to vector<2x10x10x4xf32>
    %54 = arith.mulf %50, %53 : vector<2x10x10x4xf32>
    %55 = arith.addf %49, %54 : vector<2x10x10x4xf32>
    %c0_44 = arith.constant 0 : index
    %c2_45 = arith.constant 2 : index
    %c0_46 = arith.constant 0 : index
    %c0_47 = arith.constant 0 : index
    %56 = vector.load %arg5[%c0_44, %c2_45, %c0_46, %c0_47] : memref<2x12x12x4xf32, #tpu.memory_space<vmem>>, vector<2x10x10x4xf32>
    %c6 = arith.constant 6 : index
    %c0_48 = arith.constant 0 : index
    %57 = vector.load %arg3[%c6, %c0_48] : memref<9x4xf32, #tpu.memory_space<vmem>>, vector<1x4xf32>
    %58 = vector.shape_cast %57 : vector<1x4xf32> to vector<1x1x1x4xf32>
    %59 = vector.broadcast %58 : vector<1x1x1x4xf32> to vector<2x10x10x4xf32>
    %60 = arith.mulf %56, %59 : vector<2x10x10x4xf32>
    %61 = arith.addf %55, %60 : vector<2x10x10x4xf32>
    %c0_49 = arith.constant 0 : index
    %c2_50 = arith.constant 2 : index
    %c1_51 = arith.constant 1 : index
    %c0_52 = arith.constant 0 : index
    %62 = vector.load %arg5[%c0_49, %c2_50, %c1_51, %c0_52] : memref<2x12x12x4xf32, #tpu.memory_space<vmem>>, vector<2x10x10x4xf32>
    %c7 = arith.constant 7 : index
    %c0_53 = arith.constant 0 : index
    %63 = vector.load %arg3[%c7, %c0_53] : memref<9x4xf32, #tpu.memory_space<vmem>>, vector<1x4xf32>
    %64 = vector.shape_cast %63 : vector<1x4xf32> to vector<1x1x1x4xf32>
    %65 = vector.broadcast %64 : vector<1x1x1x4xf32> to vector<2x10x10x4xf32>
    %66 = arith.mulf %62, %65 : vector<2x10x10x4xf32>
    %67 = arith.addf %61, %66 : vector<2x10x10x4xf32>
    %c0_54 = arith.constant 0 : index
    %c2_55 = arith.constant 2 : index
    %c2_56 = arith.constant 2 : index
    %c0_57 = arith.constant 0 : index
    %68 = vector.load %arg5[%c0_54, %c2_55, %c2_56, %c0_57] : memref<2x12x12x4xf32, #tpu.memory_space<vmem>>, vector<2x10x10x4xf32>
    %c8 = arith.constant 8 : index
    %c0_58 = arith.constant 0 : index
    %69 = vector.load %arg3[%c8, %c0_58] : memref<9x4xf32, #tpu.memory_space<vmem>>, vector<1x4xf32>
    %70 = vector.shape_cast %69 : vector<1x4xf32> to vector<1x1x1x4xf32>
    %71 = vector.broadcast %70 : vector<1x1x1x4xf32> to vector<2x10x10x4xf32>
    %72 = arith.mulf %68, %71 : vector<2x10x10x4xf32>
    %73 = arith.addf %67, %72 : vector<2x10x10x4xf32>
    %74 = arith.mulf %73, %73 : vector<2x10x10x4xf32>
    %75 = arith.mulf %74, %73 : vector<2x10x10x4xf32>
    %cst_59 = arith.constant 5.000000e-01 : f32
    %76 = vector.broadcast %cst_59 : f32 to vector<2x10x10x4xf32>
    %77 = arith.mulf %76, %73 : vector<2x10x10x4xf32>
    %cst_60 = arith.constant 4.471500e-02 : f32
    %78 = vector.broadcast %cst_60 : f32 to vector<2x10x10x4xf32>
    %79 = arith.mulf %78, %75 : vector<2x10x10x4xf32>
    %80 = arith.addf %73, %79 : vector<2x10x10x4xf32>
    %cst_61 = arith.constant 0.797884583 : f32
    %81 = vector.broadcast %cst_61 : f32 to vector<2x10x10x4xf32>
    %82 = arith.mulf %81, %80 : vector<2x10x10x4xf32>
    %83 = math.tanh %82 : vector<2x10x10x4xf32>
    %cst_62 = arith.constant 1.000000e+00 : f32
    %84 = vector.broadcast %cst_62 : f32 to vector<2x10x10x4xf32>
    %85 = arith.addf %84, %83 : vector<2x10x10x4xf32>
    %86 = arith.mulf %77, %85 : vector<2x10x10x4xf32>
    %c0_63 = arith.constant 0 : index
    %c0_64 = arith.constant 0 : index
    %c0_65 = arith.constant 0 : index
    %c0_66 = arith.constant 0 : index
    %87 = vector.load %arg4[%c0_63, %c0_64, %c0_65, %c0_66] : memref<2x10x10x4xf32, #tpu.memory_space<vmem>>, vector<2x10x10x4xf32>
    tpu.vector_store %arg4[%c0_63, %c0_64, %c0_65, %c0_66], %86 {strides = array<i32>} : memref<2x10x10x4xf32, #tpu.memory_space<vmem>>, vector<2x10x10x4xf32>,
    return
  }
  func.func @transform_0(%arg0: i32) -> (i32, i32, i32, i32) {
    %c0_i32 = arith.constant 0 : i32
    %c0_i32_0 = arith.constant 0 : i32
    %c0_i32_1 = arith.constant 0 : i32
    %c0_i32_2 = arith.constant 0 : i32
    %c0_i32_3 = arith.constant 0 : i32
    return %c0_i32, %c0_i32_0, %c0_i32_1, %c0_i32_2 : i32, i32, i32, i32
  }
  func.func @transform_1(%arg0: i32) -> (i32, i32) {
    %c0_i32 = arith.constant 0 : i32
    %c0_i32_0 = arith.constant 0 : i32
    %c0_i32_1 = arith.constant 0 : i32
    return %c0_i32, %c0_i32_0 : i32, i32
  }
  func.func @transform_2(%arg0: i32) -> (i32, i32) {
    %c0_i32 = arith.constant 0 : i32
    %c0_i32_0 = arith.constant 0 : i32
    %c0_i32_1 = arith.constant 0 : i32
    return %c0_i32, %c0_i32_0 : i32, i32
  }
  func.func @transform_3(%arg0: i32) -> (i32, i32, i32, i32) {
    %c0_i32 = arith.constant 0 : i32
    %c0_i32_0 = arith.constant 0 : i32
    %c0_i32_1 = arith.constant 0 : i32
    %c0_i32_2 = arith.constant 0 : i32
    %c0_i32_3 = arith.constant 0 : i32
    return %c0_i32, %c0_i32_0, %c0_i32_1, %c0_i32_2 : i32, i32, i32, i32
  }
}

module attributes {stable_mosaic.version = 11 : i64} {
  func.func @_dc_up_res_kernel(%arg0: i32, %arg1: memref<256x32xf32, #tpu.memory_space<vmem>>, %arg2: memref<32x16xf32, #tpu.memory_space<vmem>>, %arg3: memref<1x16xf32, #tpu.memory_space<vmem>>, %arg4: memref<16x32xf32, #tpu.memory_space<vmem>>, %arg5: memref<1x32xf32, #tpu.memory_space<vmem>>, %arg6: memref<256x32xf32, #tpu.memory_space<vmem>>, %arg7: memref<256x32xf32, #tpu.memory_space<vmem>>) attributes {dimension_semantics = [#tpu.dimension_semantics<parallel>], iteration_bounds = array<i64: 2>, scalar_prefetch = 0 : i64, scratch_operands = 0 : i64, tpu.core_type = #tpu.core_type<tc>, window_params = [{transform_indices = @transform_0, window_bounds = array<i64: 256, 32>}, {pipeline_mode = #tpu.pipeline_mode<synchronous>, transform_indices = @transform_1, window_bounds = array<i64: 32, 16>}, {pipeline_mode = #tpu.pipeline_mode<synchronous>, transform_indices = @transform_2, window_bounds = array<i64: 1, 16>}, {pipeline_mode = #tpu.pipeline_mode<synchronous>, transform_indices = @transform_3, window_bounds = array<i64: 16, 32>}, {pipeline_mode = #tpu.pipeline_mode<synchronous>, transform_indices = @transform_4, window_bounds = array<i64: 1, 32>}, {transform_indices = @transform_5, window_bounds = array<i64: 256, 32>}, {transform_indices = @transform_6, window_bounds = array<i64: 256, 32>}]} {
    %c0 = arith.constant 0 : index
    %c0_0 = arith.constant 0 : index
    %0 = vector.load %arg1[%c0, %c0_0] : memref<256x32xf32, #tpu.memory_space<vmem>>, vector<256x32xf32>
    %c0_1 = arith.constant 0 : index
    %c0_2 = arith.constant 0 : index
    %1 = vector.load %arg2[%c0_1, %c0_2] : memref<32x16xf32, #tpu.memory_space<vmem>>, vector<32x16xf32>
    %cst = arith.constant dense<0.000000e+00> : vector<256x16xf32>
    %2 = tpu.matmul %0, %1, %cst {dimension_numbers = #tpu.dot_dimension_numbers<[1], [0], [0], [1], [0, 0, 1, 1], [], []>} : vector<256x32xf32>, vector<32x16xf32>, vector<256x16xf32> -> vector<256x16xf32>
    %c0_3 = arith.constant 0 : index
    %c0_4 = arith.constant 0 : index
    %3 = vector.load %arg3[%c0_3, %c0_4] : memref<1x16xf32, #tpu.memory_space<vmem>>, vector<1x16xf32>
    %4 = vector.broadcast %3 : vector<1x16xf32> to vector<256x16xf32>
    %5 = arith.addf %2, %4 : vector<256x16xf32>
    %6 = arith.mulf %5, %5 : vector<256x16xf32>
    %7 = arith.mulf %6, %5 : vector<256x16xf32>
    %cst_5 = arith.constant 5.000000e-01 : f32
    %8 = vector.broadcast %cst_5 : f32 to vector<256x16xf32>
    %9 = arith.mulf %8, %5 : vector<256x16xf32>
    %cst_6 = arith.constant 4.471500e-02 : f32
    %10 = vector.broadcast %cst_6 : f32 to vector<256x16xf32>
    %11 = arith.mulf %10, %7 : vector<256x16xf32>
    %12 = arith.addf %5, %11 : vector<256x16xf32>
    %cst_7 = arith.constant 0.797884583 : f32
    %13 = vector.broadcast %cst_7 : f32 to vector<256x16xf32>
    %14 = arith.mulf %13, %12 : vector<256x16xf32>
    %15 = math.tanh %14 : vector<256x16xf32>
    %cst_8 = arith.constant 1.000000e+00 : f32
    %16 = vector.broadcast %cst_8 : f32 to vector<256x16xf32>
    %17 = arith.addf %16, %15 : vector<256x16xf32>
    %18 = arith.mulf %9, %17 : vector<256x16xf32>
    %c0_9 = arith.constant 0 : index
    %c0_10 = arith.constant 0 : index
    %19 = vector.load %arg4[%c0_9, %c0_10] : memref<16x32xf32, #tpu.memory_space<vmem>>, vector<16x32xf32>
    %cst_11 = arith.constant dense<0.000000e+00> : vector<256x32xf32>
    %20 = tpu.matmul %18, %19, %cst_11 {dimension_numbers = #tpu.dot_dimension_numbers<[1], [0], [0], [1], [0, 0, 1, 1], [], []>} : vector<256x16xf32>, vector<16x32xf32>, vector<256x32xf32> -> vector<256x32xf32>
    %c0_12 = arith.constant 0 : index
    %c0_13 = arith.constant 0 : index
    %21 = vector.load %arg5[%c0_12, %c0_13] : memref<1x32xf32, #tpu.memory_space<vmem>>, vector<1x32xf32>
    %22 = vector.broadcast %21 : vector<1x32xf32> to vector<256x32xf32>
    %23 = arith.addf %20, %22 : vector<256x32xf32>
    %c0_14 = arith.constant 0 : index
    %c0_15 = arith.constant 0 : index
    %24 = vector.load %arg6[%c0_14, %c0_15] : memref<256x32xf32, #tpu.memory_space<vmem>>, vector<256x32xf32>
    %25 = arith.addf %24, %23 : vector<256x32xf32>
    %c0_16 = arith.constant 0 : index
    %c0_17 = arith.constant 0 : index
    %26 = vector.load %arg7[%c0_16, %c0_17] : memref<256x32xf32, #tpu.memory_space<vmem>>, vector<256x32xf32>
    tpu.vector_store %arg7[%c0_16, %c0_17], %25 {strides = array<i32>} : memref<256x32xf32, #tpu.memory_space<vmem>>, vector<256x32xf32>,
    return
  }
  func.func @transform_0(%arg0: i32) -> (i32, i32) {
    %c0_i32 = arith.constant 0 : i32
    %c0_i32_0 = arith.constant 0 : i32
    return %arg0, %c0_i32 : i32, i32
  }
  func.func @transform_1(%arg0: i32) -> (i32, i32) {
    %c0_i32 = arith.constant 0 : i32
    %c0_i32_0 = arith.constant 0 : i32
    %c0_i32_1 = arith.constant 0 : i32
    return %c0_i32, %c0_i32_0 : i32, i32
  }
  func.func @transform_2(%arg0: i32) -> (i32, i32) {
    %c0_i32 = arith.constant 0 : i32
    %c0_i32_0 = arith.constant 0 : i32
    %c0_i32_1 = arith.constant 0 : i32
    return %c0_i32, %c0_i32_0 : i32, i32
  }
  func.func @transform_3(%arg0: i32) -> (i32, i32) {
    %c0_i32 = arith.constant 0 : i32
    %c0_i32_0 = arith.constant 0 : i32
    %c0_i32_1 = arith.constant 0 : i32
    return %c0_i32, %c0_i32_0 : i32, i32
  }
  func.func @transform_4(%arg0: i32) -> (i32, i32) {
    %c0_i32 = arith.constant 0 : i32
    %c0_i32_0 = arith.constant 0 : i32
    %c0_i32_1 = arith.constant 0 : i32
    return %c0_i32, %c0_i32_0 : i32, i32
  }
  func.func @transform_5(%arg0: i32) -> (i32, i32) {
    %c0_i32 = arith.constant 0 : i32
    %c0_i32_0 = arith.constant 0 : i32
    return %arg0, %c0_i32 : i32, i32
  }
  func.func @transform_6(%arg0: i32) -> (i32, i32) {
    %c0_i32 = arith.constant 0 : i32
    %c0_i32_0 = arith.constant 0 : i32
    return %arg0, %c0_i32 : i32, i32
  }
}

</mosaic_0001>

<llo_original>
// kernel: lmsa_forward.7
$region0: #{lmsa_forward.7}
  #allocation0 [shape = 'u32[]', space=smem, size = 0x4, offset = 0x4, fixed_abs, tag = 'smem constant byte address 0x4 - core index']
  #allocation1 [shape = 'u32[72,128]{1,0:T(1,128)}', space=vmem, size = 0x9000, scoped, tag = 'internal scratch']
  %s0 = inlined_call_operand.hbm [shape: f32[512,32], index: 0, kind: input, shape index: {}]
  %s1 = inlined_call_operand.vmem [shape: f32[32,16], index: 1, kind: input, shape index: {}]
  %s2 = inlined_call_operand.vmem [shape: f32[1,16], index: 2, kind: input, shape index: {}]
  %s3 = inlined_call_operand.vmem [shape: f32[16,16], index: 3, kind: input, shape index: {}]
  %s4 = inlined_call_operand.vmem [shape: f32[512,16], index: 4, kind: output, shape index: {0}]
  %s5 = inlined_call_operand.vmem [shape: f32[512,16], index: 5, kind: output, shape index: {1}]
  %6 = xla_tuple %s4, %s5
  %s7 = sld [smem:[#allocation0]]
  $region61: #{lmsa_forward.7} parent=0
    _
  %s9 = ssub.s32 1, %s7
  %s10 = scalar_select 0, %s9, %s7
  $region1: #{lmsa_forward.7} parent=0
    #allocation2 [shape = 'u8[262144]{0}', space=vmem, size = 0x40000, scoped, tag = 'input window, operand 0']
    #allocation3 [shape = 's32[2]{0}', space=sflag, size = 0x8, scoped, tag = 'scoped memory for lmsa_forward.7']
    %11 = vsyncpa [#allocation3], 0
    %s12 = scalar_lea.sflag [#allocation3], 1
    %13 = vsyncpa %s12, 0
    loop: start=0, step=1, limit=4
    $region2: #{lmsa_forward.7} parent=1 // loop_pre_header
      _
    $region3: #{lmsa_forward.7} parent=1 // loop_header
      %s15 = sphi 0, %s19
      %p16 = scmp.ge.s32.totalorder %s15, 4
      %s25 = sphi 0, %s27
      %s28 = sphi 0, %s25
      %s29 = sphi 0, %s28
      %s45 = sphi 0, %s29
      %s49 = sphi 0, %s49
      %s51 = sphi 0, %s49
      %s52 = sphi 0, %s51
      %s66 = sphi 0, %s52
      %s70 = sphi 0, %s70
      %s72 = sphi 0, %s70
      %s73 = sphi 0, %s72
      %s87 = sphi 0, %s73
      %s91 = sphi 0, %s91
      %s93 = sphi 0, %s91
      %s94 = sphi 0, %s93
      %s108 = sphi 0, %s94
      %s114 = sphi 0, %s116
      %s117 = sphi 0, %s114
      %s118 = sphi 0, %s117
      %s134 = sphi 0, %s118
      %s140 = sphi 0, %s142
      %s143 = sphi 0, %s140
      %s144 = sphi 0, %s143
      %s160 = sphi 0, %s144
    $region4: #{lmsa_forward.7} parent=1 // loop_header_branch
      %18 = sbr.rel (%p16) target = $region8
    $region5: #{lmsa_forward.7} parent=1 // loop_body
      %s20 = ssub.s32 %s15, 1
      %s21 = ssub.s32 %s15, 2
      %s22 = sadd.s32 %s15, 1
      %s23 = ssub.s32 %s15, %s22
      %p24 = scmp.eq.s32.totalorder %s23, 0
      %s26 = sadd.s32 %s25, 1
      %s27 = scalar_select %p24, %s25, %s26
      %p30 = pneg %p24
      %p31 = scmp.eq.s32.totalorder %s15, 1
      %p32 = por %p30, %p31
      %p33 = scmp.ne.s32.totalorder %s25, %s28
      %p34 = scmp.eq.s32.totalorder %s15, 0
      %p35 = por %p33, %p34
      %p36 = scmp.ne.s32.totalorder %s25, %s28
      %p37 = scmp.eq.s32.totalorder %s20, 1
      %p38 = por %p36, %p37
      %p39 = scmp.ne.s32.totalorder %s28, %s29
      %p40 = scmp.eq.s32.totalorder %s20, 0
      %p41 = por %p39, %p40
      %p42 = scmp.ne.s32.totalorder %s28, %s29
      %p43 = scmp.eq.s32.totalorder %s21, 1
      %p44 = por %p42, %p43
      %p46 = scmp.ne.s32.totalorder %s29, %s45
      %p47 = scmp.eq.s32.totalorder %s21, 0
      %p48 = por %p46, %p47
      %s50 = sadd.s32 %s49, 1
      %p53 = scmp.eq.s32.totalorder %s15, 1
      %p54 = scmp.ne.s32.totalorder %s49, %s51
      %p55 = scmp.eq.s32.totalorder %s15, 0
      %p56 = por %p54, %p55
      %p57 = scmp.ne.s32.totalorder %s49, %s51
      %p58 = scmp.eq.s32.totalorder %s20, 1
      %p59 = por %p57, %p58
      %p60 = scmp.ne.s32.totalorder %s51, %s52
      %p61 = scmp.eq.s32.totalorder %s20, 0
      %p62 = por %p60, %p61
      %p63 = scmp.ne.s32.totalorder %s51, %s52
      %p64 = scmp.eq.s32.totalorder %s21, 1
      %p65 = por %p63, %p64
      %p67 = scmp.ne.s32.totalorder %s52, %s66
      %p68 = scmp.eq.s32.totalorder %s21, 0
      %p69 = por %p67, %p68
      %s71 = sadd.s32 %s70, 1
      %p74 = scmp.eq.s32.totalorder %s15, 1
      %p75 = scmp.ne.s32.totalorder %s70, %s72
      %p76 = scmp.eq.s32.totalorder %s15, 0
      %p77 = por %p75, %p76
      %p78 = scmp.ne.s32.totalorder %s70, %s72
      %p79 = scmp.eq.s32.totalorder %s20, 1
      %p80 = por %p78, %p79
      %p81 = scmp.ne.s32.totalorder %s72, %s73
      %p82 = scmp.eq.s32.totalorder %s20, 0
      %p83 = por %p81, %p82
      %p84 = scmp.ne.s32.totalorder %s72, %s73
      %p85 = scmp.eq.s32.totalorder %s21, 1
      %p86 = por %p84, %p85
      %p88 = scmp.ne.s32.totalorder %s73, %s87
      %p89 = scmp.eq.s32.totalorder %s21, 0
      %p90 = por %p88, %p89
      %s92 = sadd.s32 %s91, 1
      %p95 = scmp.eq.s32.totalorder %s15, 1
      %p96 = scmp.ne.s32.totalorder %s91, %s93
      %p97 = scmp.eq.s32.totalorder %s15, 0
      %p98 = por %p96, %p97
      %p99 = scmp.ne.s32.totalorder %s91, %s93
      %p100 = scmp.eq.s32.totalorder %s20, 1
      %p101 = por %p99, %p100
      %p102 = scmp.ne.s32.totalorder %s93, %s94
      %p103 = scmp.eq.s32.totalorder %s20, 0
      %p104 = por %p102, %p103
      %p105 = scmp.ne.s32.totalorder %s93, %s94
      %p106 = scmp.eq.s32.totalorder %s21, 1
      %p107 = por %p105, %p106
      %p109 = scmp.ne.s32.totalorder %s94, %s108
      %p110 = scmp.eq.s32.totalorder %s21, 0
      %p111 = por %p109, %p110
      %s112 = ssub.s32 %s15, %s22
      %p113 = scmp.eq.s32.totalorder %s112, 0
      %s115 = sadd.s32 %s114, 1
      %s116 = scalar_select %p113, %s114, %s115
      %p119 = pneg %p113
      %p120 = scmp.eq.s32.totalorder %s15, 1
      %p121 = por %p119, %p120
      %p122 = scmp.ne.s32.totalorder %s114, %s117
      %p123 = scmp.eq.s32.totalorder %s15, 0
      %p124 = por %p122, %p123
      %p125 = scmp.ne.s32.totalorder %s114, %s117
      %p126 = scmp.eq.s32.totalorder %s20, 1
      %p127 = por %p125, %p126
      %p128 = scmp.ne.s32.totalorder %s117, %s118
      %p129 = scmp.eq.s32.totalorder %s20, 0
      %p130 = por %p128, %p129
      %p131 = scmp.ne.s32.totalorder %s117, %s118
      %p132 = scmp.eq.s32.totalorder %s21, 1
      %p133 = por %p131, %p132
      %p135 = scmp.ne.s32.totalorder %s118, %s134
      %p136 = scmp.eq.s32.totalorder %s21, 0
      %p137 = por %p135, %p136
      %s138 = ssub.s32 %s15, %s22
      %p139 = scmp.eq.s32.totalorder %s138, 0
      %s141 = sadd.s32 %s140, 1
      %s142 = scalar_select %p139, %s140, %s141
      %p145 = pneg %p139
      %p146 = scmp.eq.s32.totalorder %s15, 1
      %p147 = por %p145, %p146
      %p148 = scmp.ne.s32.totalorder %s140, %s143
      %p149 = scmp.eq.s32.totalorder %s15, 0
      %p150 = por %p148, %p149
      %p151 = scmp.ne.s32.totalorder %s140, %s143
      %p152 = scmp.eq.s32.totalorder %s20, 1
      %p153 = por %p151, %p152
      %p154 = scmp.ne.s32.totalorder %s143, %s144
      %p155 = scmp.eq.s32.totalorder %s20, 0
      %p156 = por %p154, %p155
      %p157 = scmp.ne.s32.totalorder %s143, %s144
      %p158 = scmp.eq.s32.totalorder %s21, 1
      %p159 = por %p157, %p158
      %p161 = scmp.ne.s32.totalorder %s144, %s160
      %p162 = scmp.eq.s32.totalorder %s21, 0
      %p163 = por %p161, %p162
      %p164 = scmp.le.s32.totalorder 1, %s15
      %p165 = scmp.lt.s32.totalorder %s15, 3
      %p166 = pnand %p164, %p165
      %p167 = pneg %p166
      // Predicated region
      $region9: #{lmsa_forward.7} parent=5 // pred_check
        _
      $region10: #{lmsa_forward.7} parent=5 // pred_check_branch
        %169 = sbr.rel (%p166) target = $region12
      $region11: #{lmsa_forward.7} parent=5 // pred_region
        %s170 = ssub.s32 %s15, 1
        // Predicated region
        $region13: #{lmsa_forward.7} parent=11 // pred_check
          %p171 = pneg %p62
        $region14: #{lmsa_forward.7} parent=11 // pred_check_branch
          %173 = sbr.rel (%p171) target = $region16
        $region15: #{lmsa_forward.7} parent=11 // pred_region
          _
        $region16: #{lmsa_forward.7} parent=11 // pred_fallthru
          _
        // Predicated region
        $region17: #{lmsa_forward.7} parent=11 // pred_check
          %p174 = pneg %p83
        $region18: #{lmsa_forward.7} parent=11 // pred_check_branch
          %176 = sbr.rel (%p174) target = $region20
        $region19: #{lmsa_forward.7} parent=11 // pred_region
          _
        $region20: #{lmsa_forward.7} parent=11 // pred_fallthru
          _
        // Predicated region
        $region21: #{lmsa_forward.7} parent=11 // pred_check
          %p177 = pneg %p104
        $region22: #{lmsa_forward.7} parent=11 // pred_check_branch
          %179 = sbr.rel (%p177) target = $region24
        $region23: #{lmsa_forward.7} parent=11 // pred_region
          _
        $region24: #{lmsa_forward.7} parent=11 // pred_fallthru
          _
      $region12: #{lmsa_forward.7} parent=5 // pred_fallthru
        _
      %p180 = scmp.lt.s32.totalorder %s15, 2
      // Predicated region
      $region25: #{lmsa_forward.7} parent=5 // pred_check
        %p181 = pneg %p180
      $region26: #{lmsa_forward.7} parent=5 // pred_check_branch
        %183 = sbr.rel (%p181) target = $region28
      $region27: #{lmsa_forward.7} parent=5 // pred_region
        // Predicated region
        $region29: #{lmsa_forward.7} parent=27 // pred_check
          %p184 = pneg %p35
        $region30: #{lmsa_forward.7} parent=27 // pred_check_branch
          %186 = sbr.rel (%p184) target = $region32
        $region31: #{lmsa_forward.7} parent=27 // pred_region
          %s187 = sand.u32 %s25, 1
          %s188 = scalar_lea.sflag [#allocation3], %s187
          %s189 = sand.u32 %s25, 1
          %s190 = smul.addr %s189, 256
          %s191 = scalar_lea.vmem [#allocation2], %s190
          %s192 = smul.u32 32, %s15
          %194 = vsyncadd %s188, 0
          %s195 = smul.addr %s192, 8
          %s196 = scalar_lea.hbm %s0, %s195
          %s197 = sshll.u32 %s196, 4
          %s198 = int_to_ptr.hbm [resolvable:$true] %s197
          %s199 = sshll.u32 %s191, 4
          %s200 = int_to_ptr.vmem [resolvable:$true] %s199
          %205 = dma.hbm_to_vmem [thread:$0]  %s198, 4096, %s200, %s188, 128, 128, 8
        $region32: #{lmsa_forward.7} parent=27 // pred_fallthru
          _
      $region28: #{lmsa_forward.7} parent=5 // pred_fallthru
        _
      %p206 = scmp.le.s32.totalorder 1, %s15
      %p207 = scmp.lt.s32.totalorder %s15, 3
      %p208 = pnand %p206, %p207
      %p209 = pneg %p208
      // Predicated region
      $region33: #{lmsa_forward.7} parent=5 // pred_check
        _
      $region34: #{lmsa_forward.7} parent=5 // pred_check_branch
        %211 = sbr.rel (%p208) target = $region36
      $region35: #{lmsa_forward.7} parent=5 // pred_region
        %s212 = ssub.s32 %s15, 1
        %s213 = sand.u32 %s28, 1
        %s214 = scalar_lea.sflag [#allocation3], %s213
        %s215 = sand.u32 %s28, 1
        %s216 = smul.addr %s215, 256
        %s217 = scalar_lea.vmem [#allocation2], %s216
        // Predicated region
        $region37: #{lmsa_forward.7} parent=35 // pred_check
          %p218 = pneg %p41
        $region38: #{lmsa_forward.7} parent=35 // pred_check_branch
          %220 = sbr.rel (%p218) target = $region40
        $region39: #{lmsa_forward.7} parent=35 // pred_region
          %222 = dma.done %s214, 4096
        $region40: #{lmsa_forward.7} parent=35 // pred_fallthru
          _
        %s223 = sand.u32 %s28, 1
        %s224 = scalar_lea.sflag [#allocation3], %s223
        %s225 = sand.u32 %s28, 1
        %s226 = smul.addr %s225, 256
        %s227 = scalar_lea.vmem [#allocation2], %s226
        %p228 = pneg %p41
        %p229 = pneg %p38
        %p230 = pneg %p62
        %p231 = pneg %p59
        %p232 = pneg %p83
        %p233 = pneg %p80
        %p234 = pneg %p104
        %p235 = pneg %p101
        %p236 = pneg %p130
        %p237 = pneg %p127
        %s238 = smul.u32 32, %s20
        %p239 = scmp.lt.s32.totalorder %s238, 63
        %s240 = scalar_select %p239, %s238, 63
        %s241 = smul.addr %s240, 8
        %s242 = scalar_lea.vmem %s4, %s241
        %p243 = pneg %p156
        %p244 = pneg %p153
        %s245 = smul.u32 32, %s20
        %p246 = scmp.lt.s32.totalorder %s245, 63
        %s247 = scalar_select %p246, %s245, 63
        %s248 = smul.addr %s247, 8
        %s249 = scalar_lea.vmem %s5, %s248
        %s250 = smul.u32 32, %s20
        %s251 = smul.u32 32, %s20
        %p252 = scmp.lt.s32.totalorder %s251, 63
        %s253 = scalar_select %p252, %s251, 63
        %s254 = smul.addr %s253, 8
        %s255 = scalar_lea.vmem %s4, %s254
        %s256 = smul.u32 32, %s20
        %s257 = smul.u32 32, %s20
        %p258 = scmp.lt.s32.totalorder %s257, 63
        %s259 = scalar_select %p258, %s257, 63
        %s260 = smul.addr %s259, 8
        %s261 = scalar_lea.vmem %s5, %s260
        %s262 = smul.u32 32, %s20
        %v263 = vld [vmem:[%s217] sm:$0xff]
        %v264 = vld [vmem:[%s217 + $0x8] sm:$0xff]
        %v265 = vld [vmem:[%s217 + $0x10] sm:$0xff]
        %v266 = vld [vmem:[%s217 + $0x18] sm:$0xff]
        %v267 = vld [vmem:[%s217 + $0x20] sm:$0xff]
        %v268 = vld [vmem:[%s217 + $0x28] sm:$0xff]
        %v269 = vld [vmem:[%s217 + $0x30] sm:$0xff]
        %v270 = vld [vmem:[%s217 + $0x38] sm:$0xff]
        %v271 = vld [vmem:[%s217 + $0x40] sm:$0xff]
        %v272 = vld [vmem:[%s217 + $0x48] sm:$0xff]
        %v273 = vld [vmem:[%s217 + $0x50] sm:$0xff]
        %v274 = vld [vmem:[%s217 + $0x58] sm:$0xff]
        %v275 = vld [vmem:[%s217 + $0x60] sm:$0xff]
        %v276 = vld [vmem:[%s217 + $0x68] sm:$0xff]
        %v277 = vld [vmem:[%s217 + $0x70] sm:$0xff]
        %v278 = vld [vmem:[%s217 + $0x78] sm:$0xff]
        %v279 = vld [vmem:[%s217 + $0x80] sm:$0xff]
        %v280 = vld [vmem:[%s217 + $0x88] sm:$0xff]
        %v281 = vld [vmem:[%s217 + $0x90] sm:$0xff]
        %v282 = vld [vmem:[%s217 + $0x98] sm:$0xff]
        %v283 = vld [vmem:[%s217 + $0xa0] sm:$0xff]
        %v284 = vld [vmem:[%s217 + $0xa8] sm:$0xff]
        %v285 = vld [vmem:[%s217 + $0xb0] sm:$0xff]
        %v286 = vld [vmem:[%s217 + $0xb8] sm:$0xff]
        %v287 = vld [vmem:[%s217 + $0xc0] sm:$0xff]
        %v288 = vld [vmem:[%s217 + $0xc8] sm:$0xff]
        %v289 = vld [vmem:[%s217 + $0xd0] sm:$0xff]
        %v290 = vld [vmem:[%s217 + $0xd8] sm:$0xff]
        %v291 = vld [vmem:[%s217 + $0xe0] sm:$0xff]
        %v292 = vld [vmem:[%s217 + $0xe8] sm:$0xff]
        %v293 = vld [vmem:[%s217 + $0xf0] sm:$0xff]
        %v294 = vld [vmem:[%s217 + $0xf8] sm:$0xff]
        %v295 = vld [vmem:[%s1] sm:$0xff]
        %v296 = vld [vmem:[%s1 + $0x8] sm:$0xff]
        %v297 = vld [vmem:[%s1 + $0x10] sm:$0xff]
        %v298 = vld [vmem:[%s1 + $0x18] sm:$0xff]
        %v299 = vld [vmem:[%s2] sm:$0x1]
        %v301 = vperm.slane %v299, 0
        %vm303 = vcmask 261120
        %v305 = vsel %vm303, %v263, 0
        %v308 = vsel %vm303, %v264, 0
        %v311 = vsel %vm303, %v265, 0
        %v314 = vsel %vm303, %v266, 0
        %v317 = vsel %vm303, %v267, 0
        %v320 = vsel %vm303, %v268, 0
        %v323 = vsel %vm303, %v269, 0
        %v326 = vsel %vm303, %v270, 0
        %v329 = vsel %vm303, %v271, 0
        %v332 = vsel %vm303, %v272, 0
        %v335 = vsel %vm303, %v273, 0
        %v338 = vsel %vm303, %v274, 0
        %v341 = vsel %vm303, %v275, 0
        %v344 = vsel %vm303, %v276, 0
        %v347 = vsel %vm303, %v277, 0
        %v350 = vsel %vm303, %v278, 0
        %v353 = vsel %vm303, %v279, 0
        %v356 = vsel %vm303, %v280, 0
        %v359 = vsel %vm303, %v281, 0
        %v362 = vsel %vm303, %v282, 0
        %v365 = vsel %vm303, %v283, 0
        %v368 = vsel %vm303, %v284, 0
        %v371 = vsel %vm303, %v285, 0
        %v374 = vsel %vm303, %v286, 0
        %v377 = vsel %vm303, %v287, 0
        %v380 = vsel %vm303, %v288, 0
        %v383 = vsel %vm303, %v289, 0
        %v386 = vsel %vm303, %v290, 0
        %v389 = vsel %vm303, %v291, 0
        %v392 = vsel %vm303, %v292, 0
        %v395 = vsel %vm303, %v293, 0
        %v398 = vsel %vm303, %v294, 0
        %400 = vmatpush.msra.mxu0 0.0
        %401 = vmatpush.msra.mxu0 0.0
        %402 = vmatpush.msra.mxu0 0.0
        %403 = vmatpush.msra.mxu0 0.0
        %404 = vmatpush.msra.mxu0 0.0
        %405 = vmatpush.msra.mxu0 0.0
        %406 = vmatpush.msra.mxu0 0.0
        %407 = vmatpush.msra.mxu0 0.0
        %408 = vmatpush.msra.mxu0 0.0
        %409 = vmatpush.msra.mxu0 0.0
        %410 = vmatpush.msra.mxu0 0.0
        %411 = vmatpush.msra.mxu0 0.0
        %412 = vmatpush.msra.mxu0 %v298
        %413 = vmatpush.msra.mxu0 %v297
        %414 = vmatpush.msra.mxu0 %v296
        %415 = vmatpush.msra.mxu0 %v295
        %416 = vmatmul.f32.gmra.mxu0 %v305
        %v417 = vpop.f32.mrf.mxu0
        %v418 = vadd.f32 %v301, %v417
        %419 = vmatmul.f32.gmra.mxu0 %v308
        %v420 = vpop.f32.mrf.mxu0
        %v421 = vadd.f32 %v301, %v420
        %422 = vmatmul.f32.gmra.mxu0 %v311
        %v423 = vpop.f32.mrf.mxu0
        %v424 = vadd.f32 %v301, %v423
        %425 = vmatmul.f32.gmra.mxu0 %v314
        %v426 = vpop.f32.mrf.mxu0
        %v427 = vadd.f32 %v301, %v426
        %428 = vmatmul.f32.gmra.mxu0 %v317
        %v429 = vpop.f32.mrf.mxu0
        %v430 = vadd.f32 %v301, %v429
        %431 = vmatmul.f32.gmra.mxu0 %v320
        %v432 = vpop.f32.mrf.mxu0
        %v433 = vadd.f32 %v301, %v432
        %434 = vmatmul.f32.gmra.mxu0 %v323
        %v435 = vpop.f32.mrf.mxu0
        %v436 = vadd.f32 %v301, %v435
        %437 = vmatmul.f32.gmra.mxu0 %v326
        %v438 = vpop.f32.mrf.mxu0
        %v439 = vadd.f32 %v301, %v438
        %440 = vmatmul.f32.gmra.mxu0 %v329
        %v441 = vpop.f32.mrf.mxu0
        %v442 = vadd.f32 %v301, %v441
        %443 = vmatmul.f32.gmra.mxu0 %v332
        %v444 = vpop.f32.mrf.mxu0
        %v445 = vadd.f32 %v301, %v444
        %446 = vmatmul.f32.gmra.mxu0 %v335
        %v447 = vpop.f32.mrf.mxu0
        %v448 = vadd.f32 %v301, %v447
        %449 = vmatmul.f32.gmra.mxu0 %v338
        %v450 = vpop.f32.mrf.mxu0
        %v451 = vadd.f32 %v301, %v450
        %452 = vmatmul.f32.gmra.mxu0 %v341
        %v453 = vpop.f32.mrf.mxu0
        %v454 = vadd.f32 %v301, %v453
        %455 = vmatmul.f32.gmra.mxu0 %v344
        %v456 = vpop.f32.mrf.mxu0
        %v457 = vadd.f32 %v301, %v456
        %458 = vmatmul.f32.gmra.mxu0 %v347
        %v459 = vpop.f32.mrf.mxu0
        %v460 = vadd.f32 %v301, %v459
        %461 = vmatmul.f32.gmra.mxu0 %v350
        %v462 = vpop.f32.mrf.mxu0
        %v463 = vadd.f32 %v301, %v462
        %464 = vmatmul.f32.gmra.mxu0 %v353
        %v465 = vpop.f32.mrf.mxu0
        %v466 = vadd.f32 %v301, %v465
        %467 = vmatmul.f32.gmra.mxu0 %v356
        %v468 = vpop.f32.mrf.mxu0
        %v469 = vadd.f32 %v301, %v468
        %470 = vmatmul.f32.gmra.mxu0 %v359
        %v471 = vpop.f32.mrf.mxu0
        %v472 = vadd.f32 %v301, %v471
        %473 = vmatmul.f32.gmra.mxu0 %v362
        %v474 = vpop.f32.mrf.mxu0
        %v475 = vadd.f32 %v301, %v474
        %476 = vmatmul.f32.gmra.mxu0 %v365
        %v477 = vpop.f32.mrf.mxu0
        %v478 = vadd.f32 %v301, %v477
        %479 = vmatmul.f32.gmra.mxu0 %v368
        %v480 = vpop.f32.mrf.mxu0
        %v481 = vadd.f32 %v301, %v480
        %482 = vmatmul.f32.gmra.mxu0 %v371
        %v483 = vpop.f32.mrf.mxu0
        %v484 = vadd.f32 %v301, %v483
        %485 = vmatmul.f32.gmra.mxu0 %v374
        %v486 = vpop.f32.mrf.mxu0
        %v487 = vadd.f32 %v301, %v486
        %488 = vmatmul.f32.gmra.mxu0 %v377
        %v489 = vpop.f32.mrf.mxu0
        %v490 = vadd.f32 %v301, %v489
        %491 = vmatmul.f32.gmra.mxu0 %v380
        %v492 = vpop.f32.mrf.mxu0
        %v493 = vadd.f32 %v301, %v492
        %494 = vmatmul.f32.gmra.mxu0 %v383
        %v495 = vpop.f32.mrf.mxu0
        %v496 = vadd.f32 %v301, %v495
        %497 = vmatmul.f32.gmra.mxu0 %v386
        %v498 = vpop.f32.mrf.mxu0
        %v499 = vadd.f32 %v301, %v498
        %500 = vmatmul.f32.gmra.mxu0 %v389
        %v501 = vpop.f32.mrf.mxu0
        %v502 = vadd.f32 %v301, %v501
        %503 = vmatmul.f32.gmra.mxu0 %v392
        %v504 = vpop.f32.mrf.mxu0
        %v505 = vadd.f32 %v301, %v504
        %506 = vmatmul.f32.gmra.mxu0 %v395
        %v507 = vpop.f32.mrf.mxu0
        %v508 = vadd.f32 %v301, %v507
        %509 = vmatmul.f32.gmra.mxu0 %v398
        %v510 = vpop.f32.mrf.mxu0
        %v511 = vadd.f32 %v301, %v510
        %512 = vdwg.mxu0
        %v513 = vmul.f32 %v418, %v418
        %v514 = vmul.f32 %v421, %v421
        %v515 = vmul.f32 %v424, %v424
        %v516 = vmul.f32 %v427, %v427
        %v517 = vmul.f32 %v430, %v430
        %v518 = vmul.f32 %v433, %v433
        %v519 = vmul.f32 %v436, %v436
        %v520 = vmul.f32 %v439, %v439
        %v521 = vmul.f32 %v442, %v442
        %v522 = vmul.f32 %v445, %v445
        %v523 = vmul.f32 %v448, %v448
        %v524 = vmul.f32 %v451, %v451
        %v525 = vmul.f32 %v454, %v454
        %v526 = vmul.f32 %v457, %v457
        %v527 = vmul.f32 %v460, %v460
        %v528 = vmul.f32 %v463, %v463
        %v529 = vmul.f32 %v466, %v466
        %v530 = vmul.f32 %v469, %v469
        %v531 = vmul.f32 %v472, %v472
        %v532 = vmul.f32 %v475, %v475
        %v533 = vmul.f32 %v478, %v478
        %v534 = vmul.f32 %v481, %v481
        %v535 = vmul.f32 %v484, %v484
        %v536 = vmul.f32 %v487, %v487
        %v537 = vmul.f32 %v490, %v490
        %v538 = vmul.f32 %v493, %v493
        %v539 = vmul.f32 %v496, %v496
        %v540 = vmul.f32 %v499, %v499
        %v541 = vmul.f32 %v502, %v502
        %v542 = vmul.f32 %v505, %v505
        %v543 = vmul.f32 %v508, %v508
        %v544 = vmul.f32 %v511, %v511
        %v545 = vmul.f32 %v513, %v418
        %v546 = vmul.f32 %v514, %v421
        %v547 = vmul.f32 %v515, %v424
        %v548 = vmul.f32 %v516, %v427
        %v549 = vmul.f32 %v517, %v430
        %v550 = vmul.f32 %v518, %v433
        %v551 = vmul.f32 %v519, %v436
        %v552 = vmul.f32 %v520, %v439
        %v553 = vmul.f32 %v521, %v442
        %v554 = vmul.f32 %v522, %v445
        %v555 = vmul.f32 %v523, %v448
        %v556 = vmul.f32 %v524, %v451
        %v557 = vmul.f32 %v525, %v454
        %v558 = vmul.f32 %v526, %v457
        %v559 = vmul.f32 %v527, %v460
        %v560 = vmul.f32 %v528, %v463
        %v561 = vmul.f32 %v529, %v466
        %v562 = vmul.f32 %v530, %v469
        %v563 = vmul.f32 %v531, %v472
        %v564 = vmul.f32 %v532, %v475
        %v565 = vmul.f32 %v533, %v478
        %v566 = vmul.f32 %v534, %v481
        %v567 = vmul.f32 %v535, %v484
        %v568 = vmul.f32 %v536, %v487
        %v569 = vmul.f32 %v537, %v490
        %v570 = vmul.f32 %v538, %v493
        %v571 = vmul.f32 %v539, %v496
        %v572 = vmul.f32 %v540, %v499
        %v573 = vmul.f32 %v541, %v502
        %v574 = vmul.f32 %v542, %v505
        %v575 = vmul.f32 %v543, %v508
        %v576 = vmul.f32 %v544, %v511
        %v577 = vmul.f32 %v418, 0.5
        %v578 = vmul.f32 %v421, 0.5
        %v579 = vmul.f32 %v424, 0.5
        %v580 = vmul.f32 %v427, 0.5
        %v581 = vmul.f32 %v430, 0.5
        %v582 = vmul.f32 %v433, 0.5
        %v583 = vmul.f32 %v436, 0.5
        %v584 = vmul.f32 %v439, 0.5
        %v585 = vmul.f32 %v442, 0.5
        %v586 = vmul.f32 %v445, 0.5
        %v587 = vmul.f32 %v448, 0.5
        %v588 = vmul.f32 %v451, 0.5
        %v589 = vmul.f32 %v454, 0.5
        %v590 = vmul.f32 %v457, 0.5
        %v591 = vmul.f32 %v460, 0.5
        %v592 = vmul.f32 %v463, 0.5
        %v593 = vmul.f32 %v466, 0.5
        %v594 = vmul.f32 %v469, 0.5
        %v595 = vmul.f32 %v472, 0.5
        %v596 = vmul.f32 %v475, 0.5
        %v597 = vmul.f32 %v478, 0.5
        %v598 = vmul.f32 %v481, 0.5
        %v599 = vmul.f32 %v484, 0.5
        %v600 = vmul.f32 %v487, 0.5
        %v601 = vmul.f32 %v490, 0.5
        %v602 = vmul.f32 %v493, 0.5
        %v603 = vmul.f32 %v496, 0.5
        %v604 = vmul.f32 %v499, 0.5
        %v605 = vmul.f32 %v502, 0.5
        %v606 = vmul.f32 %v505, 0.5
        %v607 = vmul.f32 %v508, 0.5
        %v608 = vmul.f32 %v511, 0.5
        %v609 = vmul.f32 %v545, 0.044715
        %v610 = vmul.f32 %v546, 0.044715
        %v611 = vmul.f32 %v547, 0.044715
        %v612 = vmul.f32 %v548, 0.044715
        %v613 = vmul.f32 %v549, 0.044715
        %v614 = vmul.f32 %v550, 0.044715
        %v615 = vmul.f32 %v551, 0.044715
        %v616 = vmul.f32 %v552, 0.044715
        %v617 = vmul.f32 %v553, 0.044715
        %v618 = vmul.f32 %v554, 0.044715
        %v619 = vmul.f32 %v555, 0.044715
        %v620 = vmul.f32 %v556, 0.044715
        %v621 = vmul.f32 %v557, 0.044715
        %v622 = vmul.f32 %v558, 0.044715
        %v623 = vmul.f32 %v559, 0.044715
        %v624 = vmul.f32 %v560, 0.044715
        %v625 = vmul.f32 %v561, 0.044715
        %v626 = vmul.f32 %v562, 0.044715
        %v627 = vmul.f32 %v563, 0.044715
        %v628 = vmul.f32 %v564, 0.044715
        %v629 = vmul.f32 %v565, 0.044715
        %v630 = vmul.f32 %v566, 0.044715
        %v631 = vmul.f32 %v567, 0.044715
        %v632 = vmul.f32 %v568, 0.044715
        %v633 = vmul.f32 %v569, 0.044715
        %v634 = vmul.f32 %v570, 0.044715
        %v635 = vmul.f32 %v571, 0.044715
        %v636 = vmul.f32 %v572, 0.044715
        %v637 = vmul.f32 %v573, 0.044715
        %v638 = vmul.f32 %v574, 0.044715
        %v639 = vmul.f32 %v575, 0.044715
        %v640 = vmul.f32 %v576, 0.044715
        %v641 = vadd.f32 %v418, %v609
        %v642 = vadd.f32 %v421, %v610
        %v643 = vadd.f32 %v424, %v611
        %v644 = vadd.f32 %v427, %v612
        %v645 = vadd.f32 %v430, %v613
        %v646 = vadd.f32 %v433, %v614
        %v647 = vadd.f32 %v436, %v615
        %v648 = vadd.f32 %v439, %v616
        %v649 = vadd.f32 %v442, %v617
        %v650 = vadd.f32 %v445, %v618
        %v651 = vadd.f32 %v448, %v619
        %v652 = vadd.f32 %v451, %v620
        %v653 = vadd.f32 %v454, %v621
        %v654 = vadd.f32 %v457, %v622
        %v655 = vadd.f32 %v460, %v623
        %v656 = vadd.f32 %v463, %v624
        %v657 = vadd.f32 %v466, %v625
        %v658 = vadd.f32 %v469, %v626
        %v659 = vadd.f32 %v472, %v627
        %v660 = vadd.f32 %v475, %v628
        %v661 = vadd.f32 %v478, %v629
        %v662 = vadd.f32 %v481, %v630
        %v663 = vadd.f32 %v484, %v631
        %v664 = vadd.f32 %v487, %v632
        %v665 = vadd.f32 %v490, %v633
        %v666 = vadd.f32 %v493, %v634
        %v667 = vadd.f32 %v496, %v635
        %v668 = vadd.f32 %v499, %v636
        %v669 = vadd.f32 %v502, %v637
        %v670 = vadd.f32 %v505, %v638
        %v671 = vadd.f32 %v508, %v639
        %v672 = vadd.f32 %v511, %v640
        %v673 = vmul.f32 %v641, 0.7978846
        %v674 = vmul.f32 %v642, 0.7978846
        %v675 = vmul.f32 %v643, 0.7978846
        %v676 = vmul.f32 %v644, 0.7978846
        %v677 = vmul.f32 %v645, 0.7978846
        %v678 = vmul.f32 %v646, 0.7978846
        %v679 = vmul.f32 %v647, 0.7978846
        %v680 = vmul.f32 %v648, 0.7978846
        %v681 = vmul.f32 %v649, 0.7978846
        %v682 = vmul.f32 %v650, 0.7978846
        %v683 = vmul.f32 %v651, 0.7978846
        %v684 = vmul.f32 %v652, 0.7978846
        %v685 = vmul.f32 %v653, 0.7978846
        %v686 = vmul.f32 %v654, 0.7978846
        %v687 = vmul.f32 %v655, 0.7978846
        %v688 = vmul.f32 %v656, 0.7978846
        %v689 = vmul.f32 %v657, 0.7978846
        %v690 = vmul.f32 %v658, 0.7978846
        %v691 = vmul.f32 %v659, 0.7978846
        %v692 = vmul.f32 %v660, 0.7978846
        %v693 = vmul.f32 %v661, 0.7978846
        %v694 = vmul.f32 %v662, 0.7978846
        %v695 = vmul.f32 %v663, 0.7978846
        %v696 = vmul.f32 %v664, 0.7978846
        %v697 = vmul.f32 %v665, 0.7978846
        %v698 = vmul.f32 %v666, 0.7978846
        %v699 = vmul.f32 %v667, 0.7978846
        %v700 = vmul.f32 %v668, 0.7978846
        %v701 = vmul.f32 %v669, 0.7978846
        %v702 = vmul.f32 %v670, 0.7978846
        %v703 = vmul.f32 %v671, 0.7978846
        %v704 = vmul.f32 %v672, 0.7978846
        %v705 = vtanh.pop %v673
        %v706 = vtanh.pop %v674
        %v707 = vtanh.pop %v675
        %v708 = vtanh.pop %v676
        %v709 = vtanh.pop %v677
        %v710 = vtanh.pop %v678
        %v711 = vtanh.pop %v679
        %v712 = vtanh.pop %v680
        %v713 = vtanh.pop %v681
        %v714 = vtanh.pop %v682
        %v715 = vtanh.pop %v683
        %v716 = vtanh.pop %v684
        %v717 = vtanh.pop %v685
        %v718 = vtanh.pop %v686
        %v719 = vtanh.pop %v687
        %v720 = vtanh.pop %v688
        %v721 = vtanh.pop %v689
        %v722 = vtanh.pop %v690
        %v723 = vtanh.pop %v691
        %v724 = vtanh.pop %v692
        %v725 = vtanh.pop %v693
        %v726 = vtanh.pop %v694
        %v727 = vtanh.pop %v695
        %v728 = vtanh.pop %v696
        %v729 = vtanh.pop %v697
        %v730 = vtanh.pop %v698
        %v731 = vtanh.pop %v699
        %v732 = vtanh.pop %v700
        %v733 = vtanh.pop %v701
        %v734 = vtanh.pop %v702
        %v735 = vtanh.pop %v703
        %v736 = vtanh.pop %v704
        %v737 = vadd.f32 %v705, 1.0
        %v738 = vadd.f32 %v706, 1.0
        %v739 = vadd.f32 %v707, 1.0
        %v740 = vadd.f32 %v708, 1.0
        %v741 = vadd.f32 %v709, 1.0
        %v742 = vadd.f32 %v710, 1.0
        %v743 = vadd.f32 %v711, 1.0
        %v744 = vadd.f32 %v712, 1.0
        %v745 = vadd.f32 %v713, 1.0
        %v746 = vadd.f32 %v714, 1.0
        %v747 = vadd.f32 %v715, 1.0
        %v748 = vadd.f32 %v716, 1.0
        %v749 = vadd.f32 %v717, 1.0
        %v750 = vadd.f32 %v718, 1.0
        %v751 = vadd.f32 %v719, 1.0
        %v752 = vadd.f32 %v720, 1.0
        %v753 = vadd.f32 %v721, 1.0
        %v754 = vadd.f32 %v722, 1.0
        %v755 = vadd.f32 %v723, 1.0
        %v756 = vadd.f32 %v724, 1.0
        %v757 = vadd.f32 %v725, 1.0
        %v758 = vadd.f32 %v726, 1.0
        %v759 = vadd.f32 %v727, 1.0
        %v760 = vadd.f32 %v728, 1.0
        %v761 = vadd.f32 %v729, 1.0
        %v762 = vadd.f32 %v730, 1.0
        %v763 = vadd.f32 %v731, 1.0
        %v764 = vadd.f32 %v732, 1.0
        %v765 = vadd.f32 %v733, 1.0
        %v766 = vadd.f32 %v734, 1.0
        %v767 = vadd.f32 %v735, 1.0
        %v768 = vadd.f32 %v736, 1.0
        %v769 = vmul.f32 %v577, %v737
        %v770 = vmul.f32 %v578, %v738
        %v771 = vmul.f32 %v579, %v739
        %v772 = vmul.f32 %v580, %v740
        %v773 = vmul.f32 %v581, %v741
        %v774 = vmul.f32 %v582, %v742
        %v775 = vmul.f32 %v583, %v743
        %v776 = vmul.f32 %v584, %v744
        %v777 = vmul.f32 %v585, %v745
        %v778 = vmul.f32 %v586, %v746
        %v779 = vmul.f32 %v587, %v747
        %v780 = vmul.f32 %v588, %v748
        %v781 = vmul.f32 %v589, %v749
        %v782 = vmul.f32 %v590, %v750
        %v783 = vmul.f32 %v591, %v751
        %v784 = vmul.f32 %v592, %v752
        %v785 = vmul.f32 %v593, %v753
        %v786 = vmul.f32 %v594, %v754
        %v787 = vmul.f32 %v595, %v755
        %v788 = vmul.f32 %v596, %v756
        %v789 = vmul.f32 %v597, %v757
        %v790 = vmul.f32 %v598, %v758
        %v791 = vmul.f32 %v599, %v759
        %v792 = vmul.f32 %v600, %v760
        %v793 = vmul.f32 %v601, %v761
        %v794 = vmul.f32 %v602, %v762
        %v795 = vmul.f32 %v603, %v763
        %v796 = vmul.f32 %v604, %v764
        %v797 = vmul.f32 %v605, %v765
        %v798 = vmul.f32 %v606, %v766
        %v799 = vmul.f32 %v607, %v767
        %v800 = vmul.f32 %v608, %v768
        %vm801 = vcmask 130048
        %802 = vst.msk [vmem:[%s255] sm:$0xff] %vm801, %v769
        %803 = vst.msk [vmem:[%s255 + $0x8] sm:$0xff] %vm801, %v770
        %804 = vst.msk [vmem:[%s255 + $0x10] sm:$0xff] %vm801, %v771
        %805 = vst.msk [vmem:[%s255 + $0x18] sm:$0xff] %vm801, %v772
        %806 = vst.msk [vmem:[%s255 + $0x20] sm:$0xff] %vm801, %v773
        %807 = vst.msk [vmem:[%s255 + $0x28] sm:$0xff] %vm801, %v774
        %808 = vst.msk [vmem:[%s255 + $0x30] sm:$0xff] %vm801, %v775
        %809 = vst.msk [vmem:[%s255 + $0x38] sm:$0xff] %vm801, %v776
        %810 = vst.msk [vmem:[%s255 + $0x40] sm:$0xff] %vm801, %v777
        %811 = vst.msk [vmem:[%s255 + $0x48] sm:$0xff] %vm801, %v778
        %812 = vst.msk [vmem:[%s255 + $0x50] sm:$0xff] %vm801, %v779
        %813 = vst.msk [vmem:[%s255 + $0x58] sm:$0xff] %vm801, %v780
        %814 = vst.msk [vmem:[%s255 + $0x60] sm:$0xff] %vm801, %v781
        %815 = vst.msk [vmem:[%s255 + $0x68] sm:$0xff] %vm801, %v782
        %816 = vst.msk [vmem:[%s255 + $0x70] sm:$0xff] %vm801, %v783
        %817 = vst.msk [vmem:[%s255 + $0x78] sm:$0xff] %vm801, %v784
        %818 = vst.msk [vmem:[%s255 + $0x80] sm:$0xff] %vm801, %v785
        %819 = vst.msk [vmem:[%s255 + $0x88] sm:$0xff] %vm801, %v786
        %820 = vst.msk [vmem:[%s255 + $0x90] sm:$0xff] %vm801, %v787
        %821 = vst.msk [vmem:[%s255 + $0x98] sm:$0xff] %vm801, %v788
        %822 = vst.msk [vmem:[%s255 + $0xa0] sm:$0xff] %vm801, %v789
        %823 = vst.msk [vmem:[%s255 + $0xa8] sm:$0xff] %vm801, %v790
        %824 = vst.msk [vmem:[%s255 + $0xb0] sm:$0xff] %vm801, %v791
        %825 = vst.msk [vmem:[%s255 + $0xb8] sm:$0xff] %vm801, %v792
        %826 = vst.msk [vmem:[%s255 + $0xc0] sm:$0xff] %vm801, %v793
        %827 = vst.msk [vmem:[%s255 + $0xc8] sm:$0xff] %vm801, %v794
        %828 = vst.msk [vmem:[%s255 + $0xd0] sm:$0xff] %vm801, %v795
        %829 = vst.msk [vmem:[%s255 + $0xd8] sm:$0xff] %vm801, %v796
        %830 = vst.msk [vmem:[%s255 + $0xe0] sm:$0xff] %vm801, %v797
        %831 = vst.msk [vmem:[%s255 + $0xe8] sm:$0xff] %vm801, %v798
        %832 = vst.msk [vmem:[%s255 + $0xf0] sm:$0xff] %vm801, %v799
        %833 = vst.msk [vmem:[%s255 + $0xf8] sm:$0xff] %vm801, %v800
        %v834 = vld [vmem:[%s3] sm:$0xff]
        %v835 = vld [vmem:[%s3 + $0x8] sm:$0xff]
        %v837 = vsel %vm801, %v769, 0
        %v840 = vsel %vm801, %v770, 0
        %v843 = vsel %vm801, %v771, 0
        %v846 = vsel %vm801, %v772, 0
        %v849 = vsel %vm801, %v773, 0
        %v852 = vsel %vm801, %v774, 0
        %v855 = vsel %vm801, %v775, 0
        %v858 = vsel %vm801, %v776, 0
        %v861 = vsel %vm801, %v777, 0
        %v864 = vsel %vm801, %v778, 0
        %v867 = vsel %vm801, %v779, 0
        %v870 = vsel %vm801, %v780, 0
        %v873 = vsel %vm801, %v781, 0
        %v876 = vsel %vm801, %v782, 0
        %v879 = vsel %vm801, %v783, 0
        %v882 = vsel %vm801, %v784, 0
        %v885 = vsel %vm801, %v785, 0
        %v888 = vsel %vm801, %v786, 0
        %v891 = vsel %vm801, %v787, 0
        %v894 = vsel %vm801, %v788, 0
        %v897 = vsel %vm801, %v789, 0
        %v900 = vsel %vm801, %v790, 0
        %v903 = vsel %vm801, %v791, 0
        %v906 = vsel %vm801, %v792, 0
        %v909 = vsel %vm801, %v793, 0
        %v912 = vsel %vm801, %v794, 0
        %v915 = vsel %vm801, %v795, 0
        %v918 = vsel %vm801, %v796, 0
        %v921 = vsel %vm801, %v797, 0
        %v924 = vsel %vm801, %v798, 0
        %v927 = vsel %vm801, %v799, 0
        %v930 = vsel %vm801, %v800, 0
        %932 = vmatpush.msra.mxu0 0.0
        %933 = vmatpush.msra.mxu0 0.0
        %934 = vmatpush.msra.mxu0 0.0
        %935 = vmatpush.msra.mxu0 0.0
        %936 = vmatpush.msra.mxu0 0.0
        %937 = vmatpush.msra.mxu0 0.0
        %938 = vmatpush.msra.mxu0 0.0
        %939 = vmatpush.msra.mxu0 0.0
        %940 = vmatpush.msra.mxu0 0.0
        %941 = vmatpush.msra.mxu0 0.0
        %942 = vmatpush.msra.mxu0 0.0
        %943 = vmatpush.msra.mxu0 0.0
        %944 = vmatpush.msra.mxu0 0.0
        %945 = vmatpush.msra.mxu0 0.0
        %946 = vmatpush.msra.mxu0 %v835
        %947 = vmatpush.msra.mxu0 %v834
        %948 = vmatmul.f32.gmra.mxu0 %v837
        %v949 = vpop.f32.mrf.mxu0
        %v950 = vadd.f32 0.0, %v949
        %951 = vmatmul.f32.gmra.mxu0 %v840
        %v952 = vpop.f32.mrf.mxu0
        %v953 = vadd.f32 0.0, %v952
        %954 = vmatmul.f32.gmra.mxu0 %v843
        %v955 = vpop.f32.mrf.mxu0
        %v956 = vadd.f32 0.0, %v955
        %957 = vmatmul.f32.gmra.mxu0 %v846
        %v958 = vpop.f32.mrf.mxu0
        %v959 = vadd.f32 0.0, %v958
        %960 = vmatmul.f32.gmra.mxu0 %v849
        %v961 = vpop.f32.mrf.mxu0
        %v962 = vadd.f32 0.0, %v961
        %963 = vmatmul.f32.gmra.mxu0 %v852
        %v964 = vpop.f32.mrf.mxu0
        %v965 = vadd.f32 0.0, %v964
        %966 = vmatmul.f32.gmra.mxu0 %v855
        %v967 = vpop.f32.mrf.mxu0
        %v968 = vadd.f32 0.0, %v967
        %969 = vmatmul.f32.gmra.mxu0 %v858
        %v970 = vpop.f32.mrf.mxu0
        %v971 = vadd.f32 0.0, %v970
        %972 = vmatmul.f32.gmra.mxu0 %v861
        %v973 = vpop.f32.mrf.mxu0
        %v974 = vadd.f32 0.0, %v973
        %975 = vmatmul.f32.gmra.mxu0 %v864
        %v976 = vpop.f32.mrf.mxu0
        %v977 = vadd.f32 0.0, %v976
        %978 = vmatmul.f32.gmra.mxu0 %v867
        %v979 = vpop.f32.mrf.mxu0
        %v980 = vadd.f32 0.0, %v979
        %981 = vmatmul.f32.gmra.mxu0 %v870
        %v982 = vpop.f32.mrf.mxu0
        %v983 = vadd.f32 0.0, %v982
        %984 = vmatmul.f32.gmra.mxu0 %v873
        %v985 = vpop.f32.mrf.mxu0
        %v986 = vadd.f32 0.0, %v985
        %987 = vmatmul.f32.gmra.mxu0 %v876
        %v988 = vpop.f32.mrf.mxu0
        %v989 = vadd.f32 0.0, %v988
        %990 = vmatmul.f32.gmra.mxu0 %v879
        %v991 = vpop.f32.mrf.mxu0
        %v992 = vadd.f32 0.0, %v991
        %993 = vmatmul.f32.gmra.mxu0 %v882
        %v994 = vpop.f32.mrf.mxu0
        %v995 = vadd.f32 0.0, %v994
        %996 = vmatmul.f32.gmra.mxu0 %v885
        %v997 = vpop.f32.mrf.mxu0
        %v998 = vadd.f32 0.0, %v997
        %999 = vmatmul.f32.gmra.mxu0 %v888
        %v1000 = vpop.f32.mrf.mxu0
        %v1001 = vadd.f32 0.0, %v1000
        %1002 = vmatmul.f32.gmra.mxu0 %v891
        %v1003 = vpop.f32.mrf.mxu0
        %v1004 = vadd.f32 0.0, %v1003
        %1005 = vmatmul.f32.gmra.mxu0 %v894
        %v1006 = vpop.f32.mrf.mxu0
        %v1007 = vadd.f32 0.0, %v1006
        %1008 = vmatmul.f32.gmra.mxu0 %v897
        %v1009 = vpop.f32.mrf.mxu0
        %v1010 = vadd.f32 0.0, %v1009
        %1011 = vmatmul.f32.gmra.mxu0 %v900
        %v1012 = vpop.f32.mrf.mxu0
        %v1013 = vadd.f32 0.0, %v1012
        %1014 = vmatmul.f32.gmra.mxu0 %v903
        %v1015 = vpop.f32.mrf.mxu0
        %v1016 = vadd.f32 0.0, %v1015
        %1017 = vmatmul.f32.gmra.mxu0 %v906
        %v1018 = vpop.f32.mrf.mxu0
        %v1019 = vadd.f32 0.0, %v1018
        %1020 = vmatmul.f32.gmra.mxu0 %v909
        %v1021 = vpop.f32.mrf.mxu0
        %v1022 = vadd.f32 0.0, %v1021
        %1023 = vmatmul.f32.gmra.mxu0 %v912
        %v1024 = vpop.f32.mrf.mxu0
        %v1025 = vadd.f32 0.0, %v1024
        %1026 = vmatmul.f32.gmra.mxu0 %v915
        %v1027 = vpop.f32.mrf.mxu0
        %v1028 = vadd.f32 0.0, %v1027
        %1029 = vmatmul.f32.gmra.mxu0 %v918
        %v1030 = vpop.f32.mrf.mxu0
        %v1031 = vadd.f32 0.0, %v1030
        %1032 = vmatmul.f32.gmra.mxu0 %v921
        %v1033 = vpop.f32.mrf.mxu0
        %v1034 = vadd.f32 0.0, %v1033
        %1035 = vmatmul.f32.gmra.mxu0 %v924
        %v1036 = vpop.f32.mrf.mxu0
        %v1037 = vadd.f32 0.0, %v1036
        %1038 = vmatmul.f32.gmra.mxu0 %v927
        %v1039 = vpop.f32.mrf.mxu0
        %v1040 = vadd.f32 0.0, %v1039
        %1041 = vmatmul.f32.gmra.mxu0 %v930
        %v1042 = vpop.f32.mrf.mxu0
        %v1043 = vadd.f32 0.0, %v1042
        %1044 = vdwg.mxu0
        %1045 = vst.msk [vmem:[%s261] sm:$0xff] %vm801, %v950
        %1046 = vst.msk [vmem:[%s261 + $0x8] sm:$0xff] %vm801, %v953
        %1047 = vst.msk [vmem:[%s261 + $0x10] sm:$0xff] %vm801, %v956
        %1048 = vst.msk [vmem:[%s261 + $0x18] sm:$0xff] %vm801, %v959
        %1049 = vst.msk [vmem:[%s261 + $0x20] sm:$0xff] %vm801, %v962
        %1050 = vst.msk [vmem:[%s261 + $0x28] sm:$0xff] %vm801, %v965
        %1051 = vst.msk [vmem:[%s261 + $0x30] sm:$0xff] %vm801, %v968
        %1052 = vst.msk [vmem:[%s261 + $0x38] sm:$0xff] %vm801, %v971
        %1053 = vst.msk [vmem:[%s261 + $0x40] sm:$0xff] %vm801, %v974
        %1054 = vst.msk [vmem:[%s261 + $0x48] sm:$0xff] %vm801, %v977
        %1055 = vst.msk [vmem:[%s261 + $0x50] sm:$0xff] %vm801, %v980
        %1056 = vst.msk [vmem:[%s261 + $0x58] sm:$0xff] %vm801, %v983
        %1057 = vst.msk [vmem:[%s261 + $0x60] sm:$0xff] %vm801, %v986
        %1058 = vst.msk [vmem:[%s261 + $0x68] sm:$0xff] %vm801, %v989
        %1059 = vst.msk [vmem:[%s261 + $0x70] sm:$0xff] %vm801, %v992
        %1060 = vst.msk [vmem:[%s261 + $0x78] sm:$0xff] %vm801, %v995
        %1061 = vst.msk [vmem:[%s261 + $0x80] sm:$0xff] %vm801, %v998
        %1062 = vst.msk [vmem:[%s261 + $0x88] sm:$0xff] %vm801, %v1001
        %1063 = vst.msk [vmem:[%s261 + $0x90] sm:$0xff] %vm801, %v1004
        %1064 = vst.msk [vmem:[%s261 + $0x98] sm:$0xff] %vm801, %v1007
        %1065 = vst.msk [vmem:[%s261 + $0xa0] sm:$0xff] %vm801, %v1010
        %1066 = vst.msk [vmem:[%s261 + $0xa8] sm:$0xff] %vm801, %v1013
        %1067 = vst.msk [vmem:[%s261 + $0xb0] sm:$0xff] %vm801, %v1016
        %1068 = vst.msk [vmem:[%s261 + $0xb8] sm:$0xff] %vm801, %v1019
        %1069 = vst.msk [vmem:[%s261 + $0xc0] sm:$0xff] %vm801, %v1022
        %1070 = vst.msk [vmem:[%s261 + $0xc8] sm:$0xff] %vm801, %v1025
        %1071 = vst.msk [vmem:[%s261 + $0xd0] sm:$0xff] %vm801, %v1028
        %1072 = vst.msk [vmem:[%s261 + $0xd8] sm:$0xff] %vm801, %v1031
        %1073 = vst.msk [vmem:[%s261 + $0xe0] sm:$0xff] %vm801, %v1034
        %1074 = vst.msk [vmem:[%s261 + $0xe8] sm:$0xff] %vm801, %v1037
        %1075 = vst.msk [vmem:[%s261 + $0xf0] sm:$0xff] %vm801, %v1040
        %1076 = vst.msk [vmem:[%s261 + $0xf8] sm:$0xff] %vm801, %v1043
        %s1077 = smul.u32 32, %s20
        %p1078 = scmp.lt.s32.totalorder %s1077, 63
        %s1079 = scalar_select %p1078, %s1077, 63
        %s1080 = smul.addr %s1079, 8
        %s1081 = scalar_lea.vmem %s4, %s1080
        %s1082 = smul.u32 32, %s20
        %p1083 = scmp.lt.s32.totalorder %s1082, 63
        %s1084 = scalar_select %p1083, %s1082, 63
        %s1085 = smul.addr %s1084, 8
        %s1086 = scalar_lea.vmem %s5, %s1085
        // Predicated region
        $region41: #{lmsa_forward.7} parent=35 // pred_check
          %p1087 = pneg %p127
        $region42: #{lmsa_forward.7} parent=35 // pred_check_branch
          %1089 = sbr.rel (%p1087) target = $region44
        $region43: #{lmsa_forward.7} parent=35 // pred_region
          %s1090 = smul.u32 32, %s20
        $region44: #{lmsa_forward.7} parent=35 // pred_fallthru
          _
        // Predicated region
        $region45: #{lmsa_forward.7} parent=35 // pred_check
          %p1091 = pneg %p153
        $region46: #{lmsa_forward.7} parent=35 // pred_check_branch
          %1093 = sbr.rel (%p1091) target = $region48
        $region47: #{lmsa_forward.7} parent=35 // pred_region
          %s1094 = smul.u32 32, %s20
        $region48: #{lmsa_forward.7} parent=35 // pred_fallthru
          _
      $region36: #{lmsa_forward.7} parent=5 // pred_fallthru
        _
      %p1095 = scmp.le.s32.totalorder 2, %s15
      // Predicated region
      $region49: #{lmsa_forward.7} parent=5 // pred_check
        %p1096 = pneg %p1095
      $region50: #{lmsa_forward.7} parent=5 // pred_check_branch
        %1098 = sbr.rel (%p1096) target = $region52
      $region51: #{lmsa_forward.7} parent=5 // pred_region
        %s1099 = ssub.s32 %s15, 2
        // Predicated region
        $region53: #{lmsa_forward.7} parent=51 // pred_check
          %p1100 = pneg %p133
        $region54: #{lmsa_forward.7} parent=51 // pred_check_branch
          %1102 = sbr.rel (%p1100) target = $region56
        $region55: #{lmsa_forward.7} parent=51 // pred_region
          %s1103 = smul.u32 32, %s21
          %p1104 = scmp.lt.s32.totalorder %s1103, 63
          %s1105 = scalar_select %p1104, %s1103, 63
          %s1106 = smul.addr %s1105, 8
          %s1107 = scalar_lea.vmem %s4, %s1106
        $region56: #{lmsa_forward.7} parent=51 // pred_fallthru
          _
        // Predicated region
        $region57: #{lmsa_forward.7} parent=51 // pred_check
          %p1108 = pneg %p159
        $region58: #{lmsa_forward.7} parent=51 // pred_check_branch
          %1110 = sbr.rel (%p1108) target = $region60
        $region59: #{lmsa_forward.7} parent=51 // pred_region
          %s1111 = smul.u32 32, %s21
          %p1112 = scmp.lt.s32.totalorder %s1111, 63
          %s1113 = scalar_select %p1112, %s1111, 63
          %s1114 = smul.addr %s1113, 8
          %s1115 = scalar_lea.vmem %s5, %s1114
        $region60: #{lmsa_forward.7} parent=51 // pred_fallthru
          _
      $region52: #{lmsa_forward.7} parent=5 // pred_fallthru
        _
    $region6: #{lmsa_forward.7} parent=1 // loop_footer
      %s19 = sadd.s32 1, %s15
    $region7: #{lmsa_forward.7} parent=1 // loop_footer_branch
      %14 = sbr.rel target = $region3
    $region8: #{lmsa_forward.7} parent=1 // loop_exit
      _
    %1116 = vsyncpa [#allocation3], 1
    %s1117 = scalar_lea.sflag [#allocation3], 1
    %1118 = vsyncpa %s1117, 1

// kernel: lmsa_forward.9
$region0: #{lmsa_forward.9}
  #allocation0 [shape = 'u32[]', space=smem, size = 0x4, offset = 0x4, fixed_abs, tag = 'smem constant byte address 0x4 - core index']
  #allocation1 [shape = 'u32[72,128]{1,0:T(1,128)}', space=vmem, size = 0x9000, scoped, tag = 'internal scratch']
  #allocation2 [shape = 'f32[2,3,3,4]{3,2,1,0:T(4,128)}', space=vmem, size = 0x3000, scoped, tag = 'scratch operand']
  %s0 = inlined_call_operand.vmem [shape: f32[2,3,3,4], index: 0, kind: input, shape index: {}]
  %s1 = inlined_call_operand.vmem [shape: f32[1,4], index: 1, kind: input, shape index: {}]
  %s2 = inlined_call_operand.vmem [shape: f32[9,4], index: 2, kind: input, shape index: {}]
  %s3 = inlined_call_operand.vmem [shape: f32[2,1,1,4], index: 3, kind: output, shape index: {}]
  %s4 = sld [smem:[#allocation0]]
  $region22: #{lmsa_forward.9} parent=0
    _
  %s6 = ssub.s32 1, %s4
  %s7 = scalar_select 0, %s6, %s4
  // Predicated region
  $region2: #{lmsa_forward.9} parent=0 // pred_check
    _
  $region3: #{lmsa_forward.9} parent=0 // pred_check_branch
    %9 = sbr.rel (0) target = $region5
  $region4: #{lmsa_forward.9} parent=0 // pred_region
    _
  $region5: #{lmsa_forward.9} parent=0 // pred_fallthru
    _
  // Predicated region
  $region6: #{lmsa_forward.9} parent=0 // pred_check
    _
  $region7: #{lmsa_forward.9} parent=0 // pred_check_branch
    %11 = sbr.rel (0) target = $region9
  $region8: #{lmsa_forward.9} parent=0 // pred_region
    _
  $region9: #{lmsa_forward.9} parent=0 // pred_fallthru
    _
  // Predicated region
  $region10: #{lmsa_forward.9} parent=0 // pred_check
    _
  $region11: #{lmsa_forward.9} parent=0 // pred_check_branch
    %13 = sbr.rel (0) target = $region13
  $region12: #{lmsa_forward.9} parent=0 // pred_region
    _
  $region13: #{lmsa_forward.9} parent=0 // pred_fallthru
    _
  %v14 = vld [vmem:[%s0] sm:$0x7]
  %v15 = vld [vmem:[%s0 + $0x4] sm:$0x7]
  %v16 = vld [vmem:[%s0 + $0x8] sm:$0x7]
  %v17 = vld [vmem:[%s0 + $0xc] sm:$0x7]
  %v18 = vld [vmem:[%s0 + $0x10] sm:$0x7]
  %v19 = vld [vmem:[%s0 + $0x14] sm:$0x7]
  %v20 = vld [vmem:[%s1] sm:$0x1]
  %v22 = vperm.slane %v20, 0
  %v24 = vadd.f32 %v14, %v22
  %v25 = vadd.f32 %v15, %v22
  %v26 = vadd.f32 %v16, %v22
  %v27 = vadd.f32 %v17, %v22
  %v28 = vadd.f32 %v18, %v22
  %v29 = vadd.f32 %v19, %v22
  %v30 = vmul.f32 %v24, %v24
  %v31 = vmul.f32 %v25, %v25
  %v32 = vmul.f32 %v26, %v26
  %v33 = vmul.f32 %v27, %v27
  %v34 = vmul.f32 %v28, %v28
  %v35 = vmul.f32 %v29, %v29
  %v36 = vmul.f32 %v30, %v24
  %v37 = vmul.f32 %v31, %v25
  %v38 = vmul.f32 %v32, %v26
  %v39 = vmul.f32 %v33, %v27
  %v40 = vmul.f32 %v34, %v28
  %v41 = vmul.f32 %v35, %v29
  %v42 = vmul.f32 %v24, 0.5
  %v43 = vmul.f32 %v25, 0.5
  %v44 = vmul.f32 %v26, 0.5
  %v45 = vmul.f32 %v27, 0.5
  %v46 = vmul.f32 %v28, 0.5
  %v47 = vmul.f32 %v29, 0.5
  %v48 = vmul.f32 %v36, 0.044715
  %v49 = vmul.f32 %v37, 0.044715
  %v50 = vmul.f32 %v38, 0.044715
  %v51 = vmul.f32 %v39, 0.044715
  %v52 = vmul.f32 %v40, 0.044715
  %v53 = vmul.f32 %v41, 0.044715
  %v54 = vadd.f32 %v24, %v48
  %v55 = vadd.f32 %v25, %v49
  %v56 = vadd.f32 %v26, %v50
  %v57 = vadd.f32 %v27, %v51
  %v58 = vadd.f32 %v28, %v52
  %v59 = vadd.f32 %v29, %v53
  %v60 = vmul.f32 %v54, 0.7978846
  %v61 = vmul.f32 %v55, 0.7978846
  %v62 = vmul.f32 %v56, 0.7978846
  %v63 = vmul.f32 %v57, 0.7978846
  %v64 = vmul.f32 %v58, 0.7978846
  %v65 = vmul.f32 %v59, 0.7978846
  %v66 = vtanh.pop %v60
  %v67 = vtanh.pop %v61
  %v68 = vtanh.pop %v62
  %v69 = vtanh.pop %v63
  %v70 = vtanh.pop %v64
  %v71 = vtanh.pop %v65
  %v72 = vadd.f32 %v66, 1.0
  %v73 = vadd.f32 %v67, 1.0
  %v74 = vadd.f32 %v68, 1.0
  %v75 = vadd.f32 %v69, 1.0
  %v76 = vadd.f32 %v70, 1.0
  %v77 = vadd.f32 %v71, 1.0
  %v78 = vmul.f32 %v42, %v72
  %v79 = vmul.f32 %v43, %v73
  %v80 = vmul.f32 %v44, %v74
  %v81 = vmul.f32 %v45, %v75
  %v82 = vmul.f32 %v46, %v76
  %v83 = vmul.f32 %v47, %v77
  %vm84 = vcmask 26624
  %85 = vst.msk [vmem:[#allocation2] sm:$0x7] %vm84, %v78
  %86 = vst.msk [vmem:[#allocation2 + $0x4] sm:$0x7] %vm84, %v79
  %87 = vst.msk [vmem:[#allocation2 + $0x8] sm:$0x7] %vm84, %v80
  %88 = vst.msk [vmem:[#allocation2 + $0xc] sm:$0x7] %vm84, %v81
  %89 = vst.msk [vmem:[#allocation2 + $0x10] sm:$0x7] %vm84, %v82
  %90 = vst.msk [vmem:[#allocation2 + $0x14] sm:$0x7] %vm84, %v83
  %v91 = vld [vmem:[#allocation2] sm:$0x1]
  %v92 = vld [vmem:[#allocation2 + $0xc] sm:$0x1]
  %v93 = vld [vmem:[%s2] sm:$0x1]
  %v94 = vmul.f32 %v91, %v93
  %v95 = vmul.f32 %v92, %v93
  %v96 = vadd.f32 %v94, 0.0
  %v97 = vadd.f32 %v95, 0.0
  %v98 = vld [vmem:[#allocation2 + $0x1] sm:$0x1]
  %v99 = vld [vmem:[#allocation2 + $0xd] sm:$0x1]
  %v100 = vld [vmem:[%s2 + $0x1] sm:$0x1]
  %v101 = vmul.f32 %v98, %v100
  %v102 = vmul.f32 %v99, %v100
  %v103 = vadd.f32 %v96, %v101
  %v104 = vadd.f32 %v97, %v102
  %v105 = vld [vmem:[#allocation2 + $0x2] sm:$0x1]
  %v106 = vld [vmem:[#allocation2 + $0xe] sm:$0x1]
  %v107 = vld [vmem:[%s2 + $0x2] sm:$0x1]
  %v108 = vmul.f32 %v105, %v107
  %v109 = vmul.f32 %v106, %v107
  %v110 = vadd.f32 %v103, %v108
  %v111 = vadd.f32 %v104, %v109
  %s112 = scalar_lea.vmem [#allocation2], 4
  %v113 = vld [vmem:[%s112] sm:$0x1]
  %v114 = vld [vmem:[%s112 + $0xc] sm:$0x1]
  %v115 = vld [vmem:[%s2 + $0x3] sm:$0x1]
  %v116 = vmul.f32 %v113, %v115
  %v117 = vmul.f32 %v114, %v115
  %v118 = vadd.f32 %v110, %v116
  %v119 = vadd.f32 %v111, %v117
  %v120 = vld [vmem:[%s112 + $0x1] sm:$0x1]
  %v121 = vld [vmem:[%s112 + $0xd] sm:$0x1]
  %v122 = vld [vmem:[%s2 + $0x4] sm:$0x1]
  %v123 = vmul.f32 %v120, %v122
  %v124 = vmul.f32 %v121, %v122
  %v125 = vadd.f32 %v118, %v123
  %v126 = vadd.f32 %v119, %v124
  %v127 = vld [vmem:[%s112 + $0x2] sm:$0x1]
  %v128 = vld [vmem:[%s112 + $0xe] sm:$0x1]
  %v129 = vld [vmem:[%s2 + $0x5] sm:$0x1]
  %v130 = vmul.f32 %v127, %v129
  %v131 = vmul.f32 %v128, %v129
  %v132 = vadd.f32 %v125, %v130
  %v133 = vadd.f32 %v126, %v131
  %s134 = scalar_lea.vmem [#allocation2], 8
  %v135 = vld [vmem:[%s134] sm:$0x1]
  %v136 = vld [vmem:[%s134 + $0xc] sm:$0x1]
  %v137 = vld [vmem:[%s2 + $0x6] sm:$0x1]
  %v138 = vmul.f32 %v135, %v137
  %v139 = vmul.f32 %v136, %v137
  %v140 = vadd.f32 %v132, %v138
  %v141 = vadd.f32 %v133, %v139
  %v142 = vld [vmem:[%s134 + $0x1] sm:$0x1]
  %v143 = vld [vmem:[%s134 + $0xd] sm:$0x1]
  %v144 = vld [vmem:[%s2 + $0x7] sm:$0x1]
  %v145 = vmul.f32 %v142, %v144
  %v146 = vmul.f32 %v143, %v144
  %v147 = vadd.f32 %v140, %v145
  %v148 = vadd.f32 %v141, %v146
  %v149 = vld [vmem:[%s134 + $0x2] sm:$0x1]
  %v150 = vld [vmem:[%s134 + $0xe] sm:$0x1]
  %v151 = vld [vmem:[%s2 + $0x8] sm:$0x1]
  %v152 = vmul.f32 %v149, %v151
  %v153 = vmul.f32 %v150, %v151
  %v154 = vadd.f32 %v147, %v152
  %v155 = vadd.f32 %v148, %v153
  %v156 = vmul.f32 %v154, %v154
  %v157 = vmul.f32 %v155, %v155
  %v158 = vmul.f32 %v156, %v154
  %v159 = vmul.f32 %v157, %v155
  %v160 = vmul.f32 %v154, 0.5
  %v161 = vmul.f32 %v155, 0.5
  %v162 = vmul.f32 %v158, 0.044715
  %v163 = vmul.f32 %v159, 0.044715
  %v164 = vadd.f32 %v154, %v162
  %v165 = vadd.f32 %v155, %v163
  %v166 = vmul.f32 %v164, 0.7978846
  %v167 = vmul.f32 %v165, 0.7978846
  %v168 = vtanh.pop %v166
  %v169 = vtanh.pop %v167
  %v170 = vadd.f32 %v168, 1.0
  %v171 = vadd.f32 %v169, 1.0
  %v172 = vmul.f32 %v160, %v170
  %v173 = vmul.f32 %v161, %v171
  %vm174 = vcmask 24576
  %175 = vst.msk [vmem:[%s3] sm:$0x1] %vm174, %v172
  %176 = vst.msk [vmem:[%s3 + $0x1] sm:$0x1] %vm174, %v173
  // Predicated region
  $region14: #{lmsa_forward.9} parent=0 // pred_check
    _
  $region15: #{lmsa_forward.9} parent=0 // pred_check_branch
    %178 = sbr.rel (0) target = $region17
  $region16: #{lmsa_forward.9} parent=0 // pred_region
    _
  $region17: #{lmsa_forward.9} parent=0 // pred_fallthru
    _
  // Predicated region
  $region18: #{lmsa_forward.9} parent=0 // pred_check
    _
  $region19: #{lmsa_forward.9} parent=0 // pred_check_branch
    %180 = sbr.rel (0) target = $region21
  $region20: #{lmsa_forward.9} parent=0 // pred_region
    _
  $region21: #{lmsa_forward.9} parent=0 // pred_fallthru
    _

// kernel: lmsa_forward.10
$region0: #{lmsa_forward.10}
  #allocation0 [shape = 'u32[]', space=smem, size = 0x4, offset = 0x4, fixed_abs, tag = 'smem constant byte address 0x4 - core index']
  #allocation1 [shape = 'u32[72,128]{1,0:T(1,128)}', space=vmem, size = 0x9000, scoped, tag = 'internal scratch']
  #allocation2 [shape = 'f32[2,6,6,4]{3,2,1,0:T(8,128)}', space=vmem, size = 0xc000, scoped, tag = 'scratch operand']
  %s0 = inlined_call_operand.vmem [shape: f32[2,6,6,4], index: 0, kind: input, shape index: {}]
  %s1 = inlined_call_operand.vmem [shape: f32[1,4], index: 1, kind: input, shape index: {}]
  %s2 = inlined_call_operand.vmem [shape: f32[9,4], index: 2, kind: input, shape index: {}]
  %s3 = inlined_call_operand.vmem [shape: f32[2,4,4,4], index: 3, kind: output, shape index: {}]
  %s4 = sld [smem:[#allocation0]]
  $region22: #{lmsa_forward.10} parent=0
    _
  %s6 = ssub.s32 1, %s4
  %s7 = scalar_select 0, %s6, %s4
  // Predicated region
  $region2: #{lmsa_forward.10} parent=0 // pred_check
    _
  $region3: #{lmsa_forward.10} parent=0 // pred_check_branch
    %9 = sbr.rel (0) target = $region5
  $region4: #{lmsa_forward.10} parent=0 // pred_region
    _
  $region5: #{lmsa_forward.10} parent=0 // pred_fallthru
    _
  // Predicated region
  $region6: #{lmsa_forward.10} parent=0 // pred_check
    _
  $region7: #{lmsa_forward.10} parent=0 // pred_check_branch
    %11 = sbr.rel (0) target = $region9
  $region8: #{lmsa_forward.10} parent=0 // pred_region
    _
  $region9: #{lmsa_forward.10} parent=0 // pred_fallthru
    _
  // Predicated region
  $region10: #{lmsa_forward.10} parent=0 // pred_check
    _
  $region11: #{lmsa_forward.10} parent=0 // pred_check_branch
    %13 = sbr.rel (0) target = $region13
  $region12: #{lmsa_forward.10} parent=0 // pred_region
    _
  $region13: #{lmsa_forward.10} parent=0 // pred_fallthru
    _
  %v14 = vld [vmem:[%s0] sm:$0x3f]
  %v15 = vld [vmem:[%s0 + $0x8] sm:$0x3f]
  %v16 = vld [vmem:[%s0 + $0x10] sm:$0x3f]
  %v17 = vld [vmem:[%s0 + $0x18] sm:$0x3f]
  %v18 = vld [vmem:[%s0 + $0x20] sm:$0x3f]
  %v19 = vld [vmem:[%s0 + $0x28] sm:$0x3f]
  %v20 = vld [vmem:[%s0 + $0x30] sm:$0x3f]
  %v21 = vld [vmem:[%s0 + $0x38] sm:$0x3f]
  %v22 = vld [vmem:[%s0 + $0x40] sm:$0x3f]
  %v23 = vld [vmem:[%s0 + $0x48] sm:$0x3f]
  %v24 = vld [vmem:[%s0 + $0x50] sm:$0x3f]
  %v25 = vld [vmem:[%s0 + $0x58] sm:$0x3f]
  %v26 = vld [vmem:[%s1] sm:$0x1]
  %v28 = vperm.slane %v26, 0
  %v30 = vadd.f32 %v14, %v28
  %v31 = vadd.f32 %v15, %v28
  %v32 = vadd.f32 %v16, %v28
  %v33 = vadd.f32 %v17, %v28
  %v34 = vadd.f32 %v18, %v28
  %v35 = vadd.f32 %v19, %v28
  %v36 = vadd.f32 %v20, %v28
  %v37 = vadd.f32 %v21, %v28
  %v38 = vadd.f32 %v22, %v28
  %v39 = vadd.f32 %v23, %v28
  %v40 = vadd.f32 %v24, %v28
  %v41 = vadd.f32 %v25, %v28
  %v42 = vmul.f32 %v30, %v30
  %v43 = vmul.f32 %v31, %v31
  %v44 = vmul.f32 %v32, %v32
  %v45 = vmul.f32 %v33, %v33
  %v46 = vmul.f32 %v34, %v34
  %v47 = vmul.f32 %v35, %v35
  %v48 = vmul.f32 %v36, %v36
  %v49 = vmul.f32 %v37, %v37
  %v50 = vmul.f32 %v38, %v38
  %v51 = vmul.f32 %v39, %v39
  %v52 = vmul.f32 %v40, %v40
  %v53 = vmul.f32 %v41, %v41
  %v54 = vmul.f32 %v42, %v30
  %v55 = vmul.f32 %v43, %v31
  %v56 = vmul.f32 %v44, %v32
  %v57 = vmul.f32 %v45, %v33
  %v58 = vmul.f32 %v46, %v34
  %v59 = vmul.f32 %v47, %v35
  %v60 = vmul.f32 %v48, %v36
  %v61 = vmul.f32 %v49, %v37
  %v62 = vmul.f32 %v50, %v38
  %v63 = vmul.f32 %v51, %v39
  %v64 = vmul.f32 %v52, %v40
  %v65 = vmul.f32 %v53, %v41
  %v66 = vmul.f32 %v30, 0.5
  %v67 = vmul.f32 %v31, 0.5
  %v68 = vmul.f32 %v32, 0.5
  %v69 = vmul.f32 %v33, 0.5
  %v70 = vmul.f32 %v34, 0.5
  %v71 = vmul.f32 %v35, 0.5
  %v72 = vmul.f32 %v36, 0.5
  %v73 = vmul.f32 %v37, 0.5
  %v74 = vmul.f32 %v38, 0.5
  %v75 = vmul.f32 %v39, 0.5
  %v76 = vmul.f32 %v40, 0.5
  %v77 = vmul.f32 %v41, 0.5
  %v78 = vmul.f32 %v54, 0.044715
  %v79 = vmul.f32 %v55, 0.044715
  %v80 = vmul.f32 %v56, 0.044715
  %v81 = vmul.f32 %v57, 0.044715
  %v82 = vmul.f32 %v58, 0.044715
  %v83 = vmul.f32 %v59, 0.044715
  %v84 = vmul.f32 %v60, 0.044715
  %v85 = vmul.f32 %v61, 0.044715
  %v86 = vmul.f32 %v62, 0.044715
  %v87 = vmul.f32 %v63, 0.044715
  %v88 = vmul.f32 %v64, 0.044715
  %v89 = vmul.f32 %v65, 0.044715
  %v90 = vadd.f32 %v30, %v78
  %v91 = vadd.f32 %v31, %v79
  %v92 = vadd.f32 %v32, %v80
  %v93 = vadd.f32 %v33, %v81
  %v94 = vadd.f32 %v34, %v82
  %v95 = vadd.f32 %v35, %v83
  %v96 = vadd.f32 %v36, %v84
  %v97 = vadd.f32 %v37, %v85
  %v98 = vadd.f32 %v38, %v86
  %v99 = vadd.f32 %v39, %v87
  %v100 = vadd.f32 %v40, %v88
  %v101 = vadd.f32 %v41, %v89
  %v102 = vmul.f32 %v90, 0.7978846
  %v103 = vmul.f32 %v91, 0.7978846
  %v104 = vmul.f32 %v92, 0.7978846
  %v105 = vmul.f32 %v93, 0.7978846
  %v106 = vmul.f32 %v94, 0.7978846
  %v107 = vmul.f32 %v95, 0.7978846
  %v108 = vmul.f32 %v96, 0.7978846
  %v109 = vmul.f32 %v97, 0.7978846
  %v110 = vmul.f32 %v98, 0.7978846
  %v111 = vmul.f32 %v99, 0.7978846
  %v112 = vmul.f32 %v100, 0.7978846
  %v113 = vmul.f32 %v101, 0.7978846
  %v114 = vtanh.pop %v102
  %v115 = vtanh.pop %v103
  %v116 = vtanh.pop %v104
  %v117 = vtanh.pop %v105
  %v118 = vtanh.pop %v106
  %v119 = vtanh.pop %v107
  %v120 = vtanh.pop %v108
  %v121 = vtanh.pop %v109
  %v122 = vtanh.pop %v110
  %v123 = vtanh.pop %v111
  %v124 = vtanh.pop %v112
  %v125 = vtanh.pop %v113
  %v126 = vadd.f32 %v114, 1.0
  %v127 = vadd.f32 %v115, 1.0
  %v128 = vadd.f32 %v116, 1.0
  %v129 = vadd.f32 %v117, 1.0
  %v130 = vadd.f32 %v118, 1.0
  %v131 = vadd.f32 %v119, 1.0
  %v132 = vadd.f32 %v120, 1.0
  %v133 = vadd.f32 %v121, 1.0
  %v134 = vadd.f32 %v122, 1.0
  %v135 = vadd.f32 %v123, 1.0
  %v136 = vadd.f32 %v124, 1.0
  %v137 = vadd.f32 %v125, 1.0
  %v138 = vmul.f32 %v66, %v126
  %v139 = vmul.f32 %v67, %v127
  %v140 = vmul.f32 %v68, %v128
  %v141 = vmul.f32 %v69, %v129
  %v142 = vmul.f32 %v70, %v130
  %v143 = vmul.f32 %v71, %v131
  %v144 = vmul.f32 %v72, %v132
  %v145 = vmul.f32 %v73, %v133
  %v146 = vmul.f32 %v74, %v134
  %v147 = vmul.f32 %v75, %v135
  %v148 = vmul.f32 %v76, %v136
  %v149 = vmul.f32 %v77, %v137
  %vm150 = vcmask 29696
  %151 = vst.msk [vmem:[#allocation2] sm:$0x3f] %vm150, %v138
  %152 = vst.msk [vmem:[#allocation2 + $0x8] sm:$0x3f] %vm150, %v139
  %153 = vst.msk [vmem:[#allocation2 + $0x10] sm:$0x3f] %vm150, %v140
  %154 = vst.msk [vmem:[#allocation2 + $0x18] sm:$0x3f] %vm150, %v141
  %155 = vst.msk [vmem:[#allocation2 + $0x20] sm:$0x3f] %vm150, %v142
  %156 = vst.msk [vmem:[#allocation2 + $0x28] sm:$0x3f] %vm150, %v143
  %157 = vst.msk [vmem:[#allocation2 + $0x30] sm:$0x3f] %vm150, %v144
  %158 = vst.msk [vmem:[#allocation2 + $0x38] sm:$0x3f] %vm150, %v145
  %159 = vst.msk [vmem:[#allocation2 + $0x40] sm:$0x3f] %vm150, %v146
  %160 = vst.msk [vmem:[#allocation2 + $0x48] sm:$0x3f] %vm150, %v147
  %161 = vst.msk [vmem:[#allocation2 + $0x50] sm:$0x3f] %vm150, %v148
  %162 = vst.msk [vmem:[#allocation2 + $0x58] sm:$0x3f] %vm150, %v149
  %v163 = vld [vmem:[#allocation2] sm:$0xf]
  %v164 = vld [vmem:[#allocation2 + $0x8] sm:$0xf]
  %v165 = vld [vmem:[#allocation2 + $0x10] sm:$0xf]
  %v166 = vld [vmem:[#allocation2 + $0x18] sm:$0xf]
  %v167 = vld [vmem:[#allocation2 + $0x30] sm:$0xf]
  %v168 = vld [vmem:[#allocation2 + $0x38] sm:$0xf]
  %v169 = vld [vmem:[#allocation2 + $0x40] sm:$0xf]
  %v170 = vld [vmem:[#allocation2 + $0x48] sm:$0xf]
  %v171 = vld [vmem:[%s2] sm:$0x1]
  %v172 = vperm.slane %v171, 0
  %v173 = vmul.f32 %v163, %v172
  %v174 = vmul.f32 %v164, %v172
  %v175 = vmul.f32 %v165, %v172
  %v176 = vmul.f32 %v166, %v172
  %v177 = vmul.f32 %v167, %v172
  %v178 = vmul.f32 %v168, %v172
  %v179 = vmul.f32 %v169, %v172
  %v180 = vmul.f32 %v170, %v172
  %v181 = vadd.f32 %v173, 0.0
  %v182 = vadd.f32 %v174, 0.0
  %v183 = vadd.f32 %v175, 0.0
  %v184 = vadd.f32 %v176, 0.0
  %v185 = vadd.f32 %v177, 0.0
  %v186 = vadd.f32 %v178, 0.0
  %v187 = vadd.f32 %v179, 0.0
  %v188 = vadd.f32 %v180, 0.0
  %v189 = vld [vmem:[#allocation2 + $0x1] sm:$0xf]
  %v190 = vld [vmem:[#allocation2 + $0x9] sm:$0xf]
  %v191 = vld [vmem:[#allocation2 + $0x11] sm:$0xf]
  %v192 = vld [vmem:[#allocation2 + $0x19] sm:$0xf]
  %v193 = vld [vmem:[#allocation2 + $0x31] sm:$0xf]
  %v194 = vld [vmem:[#allocation2 + $0x39] sm:$0xf]
  %v195 = vld [vmem:[#allocation2 + $0x41] sm:$0xf]
  %v196 = vld [vmem:[#allocation2 + $0x49] sm:$0xf]
  %v197 = vld [vmem:[%s2 + $0x1] sm:$0x1]
  %v198 = vperm.slane %v197, 0
  %v199 = vmul.f32 %v189, %v198
  %v200 = vmul.f32 %v190, %v198
  %v201 = vmul.f32 %v191, %v198
  %v202 = vmul.f32 %v192, %v198
  %v203 = vmul.f32 %v193, %v198
  %v204 = vmul.f32 %v194, %v198
  %v205 = vmul.f32 %v195, %v198
  %v206 = vmul.f32 %v196, %v198
  %v207 = vadd.f32 %v181, %v199
  %v208 = vadd.f32 %v182, %v200
  %v209 = vadd.f32 %v183, %v201
  %v210 = vadd.f32 %v184, %v202
  %v211 = vadd.f32 %v185, %v203
  %v212 = vadd.f32 %v186, %v204
  %v213 = vadd.f32 %v187, %v205
  %v214 = vadd.f32 %v188, %v206
  %v215 = vld [vmem:[#allocation2 + $0x2] sm:$0xf]
  %v216 = vld [vmem:[#allocation2 + $0xa] sm:$0xf]
  %v217 = vld [vmem:[#allocation2 + $0x12] sm:$0xf]
  %v218 = vld [vmem:[#allocation2 + $0x1a] sm:$0xf]
  %v219 = vld [vmem:[#allocation2 + $0x32] sm:$0xf]
  %v220 = vld [vmem:[#allocation2 + $0x3a] sm:$0xf]
  %v221 = vld [vmem:[#allocation2 + $0x42] sm:$0xf]
  %v222 = vld [vmem:[#allocation2 + $0x4a] sm:$0xf]
  %v223 = vld [vmem:[%s2 + $0x2] sm:$0x1]
  %v224 = vperm.slane %v223, 0
  %v225 = vmul.f32 %v215, %v224
  %v226 = vmul.f32 %v216, %v224
  %v227 = vmul.f32 %v217, %v224
  %v228 = vmul.f32 %v218, %v224
  %v229 = vmul.f32 %v219, %v224
  %v230 = vmul.f32 %v220, %v224
  %v231 = vmul.f32 %v221, %v224
  %v232 = vmul.f32 %v222, %v224
  %v233 = vadd.f32 %v207, %v225
  %v234 = vadd.f32 %v208, %v226
  %v235 = vadd.f32 %v209, %v227
  %v236 = vadd.f32 %v210, %v228
  %v237 = vadd.f32 %v211, %v229
  %v238 = vadd.f32 %v212, %v230
  %v239 = vadd.f32 %v213, %v231
  %v240 = vadd.f32 %v214, %v232
  %s241 = scalar_lea.vmem [#allocation2], 8
  %v242 = vld [vmem:[%s241] sm:$0xf]
  %v243 = vld [vmem:[%s241 + $0x8] sm:$0xf]
  %v244 = vld [vmem:[%s241 + $0x10] sm:$0xf]
  %v245 = vld [vmem:[%s241 + $0x18] sm:$0xf]
  %v246 = vld [vmem:[%s241 + $0x30] sm:$0xf]
  %v247 = vld [vmem:[%s241 + $0x38] sm:$0xf]
  %v248 = vld [vmem:[%s241 + $0x40] sm:$0xf]
  %v249 = vld [vmem:[%s241 + $0x48] sm:$0xf]
  %v250 = vld [vmem:[%s2 + $0x3] sm:$0x1]
  %v251 = vperm.slane %v250, 0
  %v252 = vmul.f32 %v242, %v251
  %v253 = vmul.f32 %v243, %v251
  %v254 = vmul.f32 %v244, %v251
  %v255 = vmul.f32 %v245, %v251
  %v256 = vmul.f32 %v246, %v251
  %v257 = vmul.f32 %v247, %v251
  %v258 = vmul.f32 %v248, %v251
  %v259 = vmul.f32 %v249, %v251
  %v260 = vadd.f32 %v233, %v252
  %v261 = vadd.f32 %v234, %v253
  %v262 = vadd.f32 %v235, %v254
  %v263 = vadd.f32 %v236, %v255
  %v264 = vadd.f32 %v237, %v256
  %v265 = vadd.f32 %v238, %v257
  %v266 = vadd.f32 %v239, %v258
  %v267 = vadd.f32 %v240, %v259
  %v268 = vld [vmem:[%s241 + $0x1] sm:$0xf]
  %v269 = vld [vmem:[%s241 + $0x9] sm:$0xf]
  %v270 = vld [vmem:[%s241 + $0x11] sm:$0xf]
  %v271 = vld [vmem:[%s241 + $0x19] sm:$0xf]
  %v272 = vld [vmem:[%s241 + $0x31] sm:$0xf]
  %v273 = vld [vmem:[%s241 + $0x39] sm:$0xf]
  %v274 = vld [vmem:[%s241 + $0x41] sm:$0xf]
  %v275 = vld [vmem:[%s241 + $0x49] sm:$0xf]
  %v276 = vld [vmem:[%s2 + $0x4] sm:$0x1]
  %v277 = vperm.slane %v276, 0
  %v278 = vmul.f32 %v268, %v277
  %v279 = vmul.f32 %v269, %v277
  %v280 = vmul.f32 %v270, %v277
  %v281 = vmul.f32 %v271, %v277
  %v282 = vmul.f32 %v272, %v277
  %v283 = vmul.f32 %v273, %v277
  %v284 = vmul.f32 %v274, %v277
  %v285 = vmul.f32 %v275, %v277
  %v286 = vadd.f32 %v260, %v278
  %v287 = vadd.f32 %v261, %v279
  %v288 = vadd.f32 %v262, %v280
  %v289 = vadd.f32 %v263, %v281
  %v290 = vadd.f32 %v264, %v282
  %v291 = vadd.f32 %v265, %v283
  %v292 = vadd.f32 %v266, %v284
  %v293 = vadd.f32 %v267, %v285
  %v294 = vld [vmem:[%s241 + $0x2] sm:$0xf]
  %v295 = vld [vmem:[%s241 + $0xa] sm:$0xf]
  %v296 = vld [vmem:[%s241 + $0x12] sm:$0xf]
  %v297 = vld [vmem:[%s241 + $0x1a] sm:$0xf]
  %v298 = vld [vmem:[%s241 + $0x32] sm:$0xf]
  %v299 = vld [vmem:[%s241 + $0x3a] sm:$0xf]
  %v300 = vld [vmem:[%s241 + $0x42] sm:$0xf]
  %v301 = vld [vmem:[%s241 + $0x4a] sm:$0xf]
  %v302 = vld [vmem:[%s2 + $0x5] sm:$0x1]
  %v303 = vperm.slane %v302, 0
  %v304 = vmul.f32 %v294, %v303
  %v305 = vmul.f32 %v295, %v303
  %v306 = vmul.f32 %v296, %v303
  %v307 = vmul.f32 %v297, %v303
  %v308 = vmul.f32 %v298, %v303
  %v309 = vmul.f32 %v299, %v303
  %v310 = vmul.f32 %v300, %v303
  %v311 = vmul.f32 %v301, %v303
  %v312 = vadd.f32 %v286, %v304
  %v313 = vadd.f32 %v287, %v305
  %v314 = vadd.f32 %v288, %v306
  %v315 = vadd.f32 %v289, %v307
  %v316 = vadd.f32 %v290, %v308
  %v317 = vadd.f32 %v291, %v309
  %v318 = vadd.f32 %v292, %v310
  %v319 = vadd.f32 %v293, %v311
  %s320 = scalar_lea.vmem [#allocation2], 16
  %v321 = vld [vmem:[%s320] sm:$0xf]
  %v322 = vld [vmem:[%s320 + $0x8] sm:$0xf]
  %v323 = vld [vmem:[%s320 + $0x10] sm:$0xf]
  %v324 = vld [vmem:[%s320 + $0x18] sm:$0xf]
  %v325 = vld [vmem:[%s320 + $0x30] sm:$0xf]
  %v326 = vld [vmem:[%s320 + $0x38] sm:$0xf]
  %v327 = vld [vmem:[%s320 + $0x40] sm:$0xf]
  %v328 = vld [vmem:[%s320 + $0x48] sm:$0xf]
  %v329 = vld [vmem:[%s2 + $0x6] sm:$0x1]
  %v330 = vperm.slane %v329, 0
  %v331 = vmul.f32 %v321, %v330
  %v332 = vmul.f32 %v322, %v330
  %v333 = vmul.f32 %v323, %v330
  %v334 = vmul.f32 %v324, %v330
  %v335 = vmul.f32 %v325, %v330
  %v336 = vmul.f32 %v326, %v330
  %v337 = vmul.f32 %v327, %v330
  %v338 = vmul.f32 %v328, %v330
  %v339 = vadd.f32 %v312, %v331
  %v340 = vadd.f32 %v313, %v332
  %v341 = vadd.f32 %v314, %v333
  %v342 = vadd.f32 %v315, %v334
  %v343 = vadd.f32 %v316, %v335
  %v344 = vadd.f32 %v317, %v336
  %v345 = vadd.f32 %v318, %v337
  %v346 = vadd.f32 %v319, %v338
  %v347 = vld [vmem:[%s320 + $0x1] sm:$0xf]
  %v348 = vld [vmem:[%s320 + $0x9] sm:$0xf]
  %v349 = vld [vmem:[%s320 + $0x11] sm:$0xf]
  %v350 = vld [vmem:[%s320 + $0x19] sm:$0xf]
  %v351 = vld [vmem:[%s320 + $0x31] sm:$0xf]
  %v352 = vld [vmem:[%s320 + $0x39] sm:$0xf]
  %v353 = vld [vmem:[%s320 + $0x41] sm:$0xf]
  %v354 = vld [vmem:[%s320 + $0x49] sm:$0xf]
  %v355 = vld [vmem:[%s2 + $0x7] sm:$0x1]
  %v356 = vperm.slane %v355, 0
  %v357 = vmul.f32 %v347, %v356
  %v358 = vmul.f32 %v348, %v356
  %v359 = vmul.f32 %v349, %v356
  %v360 = vmul.f32 %v350, %v356
  %v361 = vmul.f32 %v351, %v356
  %v362 = vmul.f32 %v352, %v356
  %v363 = vmul.f32 %v353, %v356
  %v364 = vmul.f32 %v354, %v356
  %v365 = vadd.f32 %v339, %v357
  %v366 = vadd.f32 %v340, %v358
  %v367 = vadd.f32 %v341, %v359
  %v368 = vadd.f32 %v342, %v360
  %v369 = vadd.f32 %v343, %v361
  %v370 = vadd.f32 %v344, %v362
  %v371 = vadd.f32 %v345, %v363
  %v372 = vadd.f32 %v346, %v364
  %v373 = vld [vmem:[%s320 + $0x2] sm:$0xf]
  %v374 = vld [vmem:[%s320 + $0xa] sm:$0xf]
  %v375 = vld [vmem:[%s320 + $0x12] sm:$0xf]
  %v376 = vld [vmem:[%s320 + $0x1a] sm:$0xf]
  %v377 = vld [vmem:[%s320 + $0x32] sm:$0xf]
  %v378 = vld [vmem:[%s320 + $0x3a] sm:$0xf]
  %v379 = vld [vmem:[%s320 + $0x42] sm:$0xf]
  %v380 = vld [vmem:[%s320 + $0x4a] sm:$0xf]
  %v381 = vld [vmem:[%s2 + $0x8] sm:$0x1]
  %v382 = vperm.slane %v381, 0
  %v383 = vmul.f32 %v373, %v382
  %v384 = vmul.f32 %v374, %v382
  %v385 = vmul.f32 %v375, %v382
  %v386 = vmul.f32 %v376, %v382
  %v387 = vmul.f32 %v377, %v382
  %v388 = vmul.f32 %v378, %v382
  %v389 = vmul.f32 %v379, %v382
  %v390 = vmul.f32 %v380, %v382
  %v391 = vadd.f32 %v365, %v383
  %v392 = vadd.f32 %v366, %v384
  %v393 = vadd.f32 %v367, %v385
  %v394 = vadd.f32 %v368, %v386
  %v395 = vadd.f32 %v369, %v387
  %v396 = vadd.f32 %v370, %v388
  %v397 = vadd.f32 %v371, %v389
  %v398 = vadd.f32 %v372, %v390
  %v399 = vmul.f32 %v391, %v391
  %v400 = vmul.f32 %v392, %v392
  %v401 = vmul.f32 %v393, %v393
  %v402 = vmul.f32 %v394, %v394
  %v403 = vmul.f32 %v395, %v395
  %v404 = vmul.f32 %v396, %v396
  %v405 = vmul.f32 %v397, %v397
  %v406 = vmul.f32 %v398, %v398
  %v407 = vmul.f32 %v399, %v391
  %v408 = vmul.f32 %v400, %v392
  %v409 = vmul.f32 %v401, %v393
  %v410 = vmul.f32 %v402, %v394
  %v411 = vmul.f32 %v403, %v395
  %v412 = vmul.f32 %v404, %v396
  %v413 = vmul.f32 %v405, %v397
  %v414 = vmul.f32 %v406, %v398
  %v415 = vmul.f32 %v391, 0.5
  %v416 = vmul.f32 %v392, 0.5
  %v417 = vmul.f32 %v393, 0.5
  %v418 = vmul.f32 %v394, 0.5
  %v419 = vmul.f32 %v395, 0.5
  %v420 = vmul.f32 %v396, 0.5
  %v421 = vmul.f32 %v397, 0.5
  %v422 = vmul.f32 %v398, 0.5
  %v423 = vmul.f32 %v407, 0.044715
  %v424 = vmul.f32 %v408, 0.044715
  %v425 = vmul.f32 %v409, 0.044715
  %v426 = vmul.f32 %v410, 0.044715
  %v427 = vmul.f32 %v411, 0.044715
  %v428 = vmul.f32 %v412, 0.044715
  %v429 = vmul.f32 %v413, 0.044715
  %v430 = vmul.f32 %v414, 0.044715
  %v431 = vadd.f32 %v391, %v423
  %v432 = vadd.f32 %v392, %v424
  %v433 = vadd.f32 %v393, %v425
  %v434 = vadd.f32 %v394, %v426
  %v435 = vadd.f32 %v395, %v427
  %v436 = vadd.f32 %v396, %v428
  %v437 = vadd.f32 %v397, %v429
  %v438 = vadd.f32 %v398, %v430
  %v439 = vmul.f32 %v431, 0.7978846
  %v440 = vmul.f32 %v432, 0.7978846
  %v441 = vmul.f32 %v433, 0.7978846
  %v442 = vmul.f32 %v434, 0.7978846
  %v443 = vmul.f32 %v435, 0.7978846
  %v444 = vmul.f32 %v436, 0.7978846
  %v445 = vmul.f32 %v437, 0.7978846
  %v446 = vmul.f32 %v438, 0.7978846
  %v447 = vtanh.pop %v439
  %v448 = vtanh.pop %v440
  %v449 = vtanh.pop %v441
  %v450 = vtanh.pop %v442
  %v451 = vtanh.pop %v443
  %v452 = vtanh.pop %v444
  %v453 = vtanh.pop %v445
  %v454 = vtanh.pop %v446
  %v455 = vadd.f32 %v447, 1.0
  %v456 = vadd.f32 %v448, 1.0
  %v457 = vadd.f32 %v449, 1.0
  %v458 = vadd.f32 %v450, 1.0
  %v459 = vadd.f32 %v451, 1.0
  %v460 = vadd.f32 %v452, 1.0
  %v461 = vadd.f32 %v453, 1.0
  %v462 = vadd.f32 %v454, 1.0
  %v463 = vmul.f32 %v415, %v455
  %v464 = vmul.f32 %v416, %v456
  %v465 = vmul.f32 %v417, %v457
  %v466 = vmul.f32 %v418, %v458
  %v467 = vmul.f32 %v419, %v459
  %v468 = vmul.f32 %v420, %v460
  %v469 = vmul.f32 %v421, %v461
  %v470 = vmul.f32 %v422, %v462
  %vm471 = vcmask 27648
  %472 = vst.msk [vmem:[%s3] sm:$0xf] %vm471, %v463
  %473 = vst.msk [vmem:[%s3 + $0x4] sm:$0xf] %vm471, %v464
  %474 = vst.msk [vmem:[%s3 + $0x8] sm:$0xf] %vm471, %v465
  %475 = vst.msk [vmem:[%s3 + $0xc] sm:$0xf] %vm471, %v466
  %476 = vst.msk [vmem:[%s3 + $0x10] sm:$0xf] %vm471, %v467
  %477 = vst.msk [vmem:[%s3 + $0x14] sm:$0xf] %vm471, %v468
  %478 = vst.msk [vmem:[%s3 + $0x18] sm:$0xf] %vm471, %v469
  %479 = vst.msk [vmem:[%s3 + $0x1c] sm:$0xf] %vm471, %v470
  // Predicated region
  $region14: #{lmsa_forward.10} parent=0 // pred_check
    _
  $region15: #{lmsa_forward.10} parent=0 // pred_check_branch
    %481 = sbr.rel (0) target = $region17
  $region16: #{lmsa_forward.10} parent=0 // pred_region
    _
  $region17: #{lmsa_forward.10} parent=0 // pred_fallthru
    _
  // Predicated region
  $region18: #{lmsa_forward.10} parent=0 // pred_check
    _
  $region19: #{lmsa_forward.10} parent=0 // pred_check_branch
    %483 = sbr.rel (0) target = $region21
  $region20: #{lmsa_forward.10} parent=0 // pred_region
    _
  $region21: #{lmsa_forward.10} parent=0 // pred_fallthru
    _

// kernel: lmsa_forward.8
$region0: #{lmsa_forward.8}
  #allocation0 [shape = 'u32[]', space=smem, size = 0x4, offset = 0x4, fixed_abs, tag = 'smem constant byte address 0x4 - core index']
  #allocation1 [shape = 'u32[72,128]{1,0:T(1,128)}', space=vmem, size = 0x9000, scoped, tag = 'internal scratch']
  #allocation2 [shape = 'f32[2,18,18,16]{3,2,1,0:T(8,128)}', space=vmem, size = 0x6c000, scoped, tag = 'scratch operand']
  %s0 = inlined_call_operand.vmem [shape: f32[2,16,16,16], index: 0, kind: input, shape index: {}]
  %s1 = inlined_call_operand.vmem [shape: f32[9,16], index: 1, kind: input, shape index: {}]
  %s2 = inlined_call_operand.vmem [shape: f32[2,16,16,16], index: 2, kind: output, shape index: {}]
  %s3 = sld [smem:[#allocation0]]
  $region18: #{lmsa_forward.8} parent=0
    _
  %s5 = ssub.s32 1, %s3
  %s6 = scalar_select 0, %s5, %s3
  // Predicated region
  $region2: #{lmsa_forward.8} parent=0 // pred_check
    _
  $region3: #{lmsa_forward.8} parent=0 // pred_check_branch
    %8 = sbr.rel (0) target = $region5
  $region4: #{lmsa_forward.8} parent=0 // pred_region
    _
  $region5: #{lmsa_forward.8} parent=0 // pred_fallthru
    _
  // Predicated region
  $region6: #{lmsa_forward.8} parent=0 // pred_check
    _
  $region7: #{lmsa_forward.8} parent=0 // pred_check_branch
    %10 = sbr.rel (0) target = $region9
  $region8: #{lmsa_forward.8} parent=0 // pred_region
    _
  $region9: #{lmsa_forward.8} parent=0 // pred_fallthru
    _
  %vm11 = vcmask 130048
  %12 = vst.msk [vmem:[#allocation2] sm:$0xff] %vm11, 0.0
  %13 = vst.msk [vmem:[#allocation2 + $0x8] sm:$0xff] %vm11, 0.0
  %vm14 = vcmask 123904
  %15 = vst.msk [vmem:[#allocation2 + $0x10] sm:$0x3] %vm14, 0.0
  %16 = vst.msk [vmem:[#allocation2 + $0x18] sm:$0xff] %vm11, 0.0
  %17 = vst.msk [vmem:[#allocation2 + $0x20] sm:$0xff] %vm11, 0.0
  %18 = vst.msk [vmem:[#allocation2 + $0x28] sm:$0x3] %vm14, 0.0
  %19 = vst.msk [vmem:[#allocation2 + $0x30] sm:$0xff] %vm11, 0.0
  %20 = vst.msk [vmem:[#allocation2 + $0x38] sm:$0xff] %vm11, 0.0
  %21 = vst.msk [vmem:[#allocation2 + $0x40] sm:$0x3] %vm14, 0.0
  %22 = vst.msk [vmem:[#allocation2 + $0x48] sm:$0xff] %vm11, 0.0
  %23 = vst.msk [vmem:[#allocation2 + $0x50] sm:$0xff] %vm11, 0.0
  %24 = vst.msk [vmem:[#allocation2 + $0x58] sm:$0x3] %vm14, 0.0
  %25 = vst.msk [vmem:[#allocation2 + $0x60] sm:$0xff] %vm11, 0.0
  %26 = vst.msk [vmem:[#allocation2 + $0x68] sm:$0xff] %vm11, 0.0
  %27 = vst.msk [vmem:[#allocation2 + $0x70] sm:$0x3] %vm14, 0.0
  %28 = vst.msk [vmem:[#allocation2 + $0x78] sm:$0xff] %vm11, 0.0
  %29 = vst.msk [vmem:[#allocation2 + $0x80] sm:$0xff] %vm11, 0.0
  %30 = vst.msk [vmem:[#allocation2 + $0x88] sm:$0x3] %vm14, 0.0
  %31 = vst.msk [vmem:[#allocation2 + $0x90] sm:$0xff] %vm11, 0.0
  %32 = vst.msk [vmem:[#allocation2 + $0x98] sm:$0xff] %vm11, 0.0
  %33 = vst.msk [vmem:[#allocation2 + $0xa0] sm:$0x3] %vm14, 0.0
  %34 = vst.msk [vmem:[#allocation2 + $0xa8] sm:$0xff] %vm11, 0.0
  %35 = vst.msk [vmem:[#allocation2 + $0xb0] sm:$0xff] %vm11, 0.0
  %36 = vst.msk [vmem:[#allocation2 + $0xb8] sm:$0x3] %vm14, 0.0
  %37 = vst.msk [vmem:[#allocation2 + $0xc0] sm:$0xff] %vm11, 0.0
  %38 = vst.msk [vmem:[#allocation2 + $0xc8] sm:$0xff] %vm11, 0.0
  %39 = vst.msk [vmem:[#allocation2 + $0xd0] sm:$0x3] %vm14, 0.0
  %40 = vst.msk [vmem:[#allocation2 + $0xd8] sm:$0xff] %vm11, 0.0
  %41 = vst.msk [vmem:[#allocation2 + $0xe0] sm:$0xff] %vm11, 0.0
  %42 = vst.msk [vmem:[#allocation2 + $0xe8] sm:$0x3] %vm14, 0.0
  %43 = vst.msk [vmem:[#allocation2 + $0xf0] sm:$0xff] %vm11, 0.0
  %44 = vst.msk [vmem:[#allocation2 + $0xf8] sm:$0xff] %vm11, 0.0
  %45 = vst.msk [vmem:[#allocation2 + $0x100] sm:$0x3] %vm14, 0.0
  %46 = vst.msk [vmem:[#allocation2 + $0x108] sm:$0xff] %vm11, 0.0
  %47 = vst.msk [vmem:[#allocation2 + $0x110] sm:$0xff] %vm11, 0.0
  %48 = vst.msk [vmem:[#allocation2 + $0x118] sm:$0x3] %vm14, 0.0
  %49 = vst.msk [vmem:[#allocation2 + $0x120] sm:$0xff] %vm11, 0.0
  %50 = vst.msk [vmem:[#allocation2 + $0x128] sm:$0xff] %vm11, 0.0
  %51 = vst.msk [vmem:[#allocation2 + $0x130] sm:$0x3] %vm14, 0.0
  %52 = vst.msk [vmem:[#allocation2 + $0x138] sm:$0xff] %vm11, 0.0
  %53 = vst.msk [vmem:[#allocation2 + $0x140] sm:$0xff] %vm11, 0.0
  %54 = vst.msk [vmem:[#allocation2 + $0x148] sm:$0x3] %vm14, 0.0
  %55 = vst.msk [vmem:[#allocation2 + $0x150] sm:$0xff] %vm11, 0.0
  %56 = vst.msk [vmem:[#allocation2 + $0x158] sm:$0xff] %vm11, 0.0
  %57 = vst.msk [vmem:[#allocation2 + $0x160] sm:$0x3] %vm14, 0.0
  %58 = vst.msk [vmem:[#allocation2 + $0x168] sm:$0xff] %vm11, 0.0
  %59 = vst.msk [vmem:[#allocation2 + $0x170] sm:$0xff] %vm11, 0.0
  %60 = vst.msk [vmem:[#allocation2 + $0x178] sm:$0x3] %vm14, 0.0
  %61 = vst.msk [vmem:[#allocation2 + $0x180] sm:$0xff] %vm11, 0.0
  %62 = vst.msk [vmem:[#allocation2 + $0x188] sm:$0xff] %vm11, 0.0
  %63 = vst.msk [vmem:[#allocation2 + $0x190] sm:$0x3] %vm14, 0.0
  %64 = vst.msk [vmem:[#allocation2 + $0x198] sm:$0xff] %vm11, 0.0
  %65 = vst.msk [vmem:[#allocation2 + $0x1a0] sm:$0xff] %vm11, 0.0
  %66 = vst.msk [vmem:[#allocation2 + $0x1a8] sm:$0x3] %vm14, 0.0
  %67 = vst.msk [vmem:[#allocation2 + $0x1b0] sm:$0xff] %vm11, 0.0
  %68 = vst.msk [vmem:[#allocation2 + $0x1b8] sm:$0xff] %vm11, 0.0
  %69 = vst.msk [vmem:[#allocation2 + $0x1c0] sm:$0x3] %vm14, 0.0
  %70 = vst.msk [vmem:[#allocation2 + $0x1c8] sm:$0xff] %vm11, 0.0
  %71 = vst.msk [vmem:[#allocation2 + $0x1d0] sm:$0xff] %vm11, 0.0
  %72 = vst.msk [vmem:[#allocation2 + $0x1d8] sm:$0x3] %vm14, 0.0
  %73 = vst.msk [vmem:[#allocation2 + $0x1e0] sm:$0xff] %vm11, 0.0
  %74 = vst.msk [vmem:[#allocation2 + $0x1e8] sm:$0xff] %vm11, 0.0
  %75 = vst.msk [vmem:[#allocation2 + $0x1f0] sm:$0x3] %vm14, 0.0
  %76 = vst.msk [vmem:[#allocation2 + $0x1f8] sm:$0xff] %vm11, 0.0
  %77 = vst.msk [vmem:[#allocation2 + $0x200] sm:$0xff] %vm11, 0.0
  %78 = vst.msk [vmem:[#allocation2 + $0x208] sm:$0x3] %vm14, 0.0
  %79 = vst.msk [vmem:[#allocation2 + $0x210] sm:$0xff] %vm11, 0.0
  %80 = vst.msk [vmem:[#allocation2 + $0x218] sm:$0xff] %vm11, 0.0
  %81 = vst.msk [vmem:[#allocation2 + $0x220] sm:$0x3] %vm14, 0.0
  %82 = vst.msk [vmem:[#allocation2 + $0x228] sm:$0xff] %vm11, 0.0
  %83 = vst.msk [vmem:[#allocation2 + $0x230] sm:$0xff] %vm11, 0.0
  %84 = vst.msk [vmem:[#allocation2 + $0x238] sm:$0x3] %vm14, 0.0
  %85 = vst.msk [vmem:[#allocation2 + $0x240] sm:$0xff] %vm11, 0.0
  %86 = vst.msk [vmem:[#allocation2 + $0x248] sm:$0xff] %vm11, 0.0
  %87 = vst.msk [vmem:[#allocation2 + $0x250] sm:$0x3] %vm14, 0.0
  %88 = vst.msk [vmem:[#allocation2 + $0x258] sm:$0xff] %vm11, 0.0
  %89 = vst.msk [vmem:[#allocation2 + $0x260] sm:$0xff] %vm11, 0.0
  %90 = vst.msk [vmem:[#allocation2 + $0x268] sm:$0x3] %vm14, 0.0
  %91 = vst.msk [vmem:[#allocation2 + $0x270] sm:$0xff] %vm11, 0.0
  %92 = vst.msk [vmem:[#allocation2 + $0x278] sm:$0xff] %vm11, 0.0
  %93 = vst.msk [vmem:[#allocation2 + $0x280] sm:$0x3] %vm14, 0.0
  %94 = vst.msk [vmem:[#allocation2 + $0x288] sm:$0xff] %vm11, 0.0
  %95 = vst.msk [vmem:[#allocation2 + $0x290] sm:$0xff] %vm11, 0.0
  %96 = vst.msk [vmem:[#allocation2 + $0x298] sm:$0x3] %vm14, 0.0
  %97 = vst.msk [vmem:[#allocation2 + $0x2a0] sm:$0xff] %vm11, 0.0
  %98 = vst.msk [vmem:[#allocation2 + $0x2a8] sm:$0xff] %vm11, 0.0
  %99 = vst.msk [vmem:[#allocation2 + $0x2b0] sm:$0x3] %vm14, 0.0
  %100 = vst.msk [vmem:[#allocation2 + $0x2b8] sm:$0xff] %vm11, 0.0
  %101 = vst.msk [vmem:[#allocation2 + $0x2c0] sm:$0xff] %vm11, 0.0
  %102 = vst.msk [vmem:[#allocation2 + $0x2c8] sm:$0x3] %vm14, 0.0
  %103 = vst.msk [vmem:[#allocation2 + $0x2d0] sm:$0xff] %vm11, 0.0
  %104 = vst.msk [vmem:[#allocation2 + $0x2d8] sm:$0xff] %vm11, 0.0
  %105 = vst.msk [vmem:[#allocation2 + $0x2e0] sm:$0x3] %vm14, 0.0
  %106 = vst.msk [vmem:[#allocation2 + $0x2e8] sm:$0xff] %vm11, 0.0
  %107 = vst.msk [vmem:[#allocation2 + $0x2f0] sm:$0xff] %vm11, 0.0
  %108 = vst.msk [vmem:[#allocation2 + $0x2f8] sm:$0x3] %vm14, 0.0
  %109 = vst.msk [vmem:[#allocation2 + $0x300] sm:$0xff] %vm11, 0.0
  %110 = vst.msk [vmem:[#allocation2 + $0x308] sm:$0xff] %vm11, 0.0
  %111 = vst.msk [vmem:[#allocation2 + $0x310] sm:$0x3] %vm14, 0.0
  %112 = vst.msk [vmem:[#allocation2 + $0x318] sm:$0xff] %vm11, 0.0
  %113 = vst.msk [vmem:[#allocation2 + $0x320] sm:$0xff] %vm11, 0.0
  %114 = vst.msk [vmem:[#allocation2 + $0x328] sm:$0x3] %vm14, 0.0
  %115 = vst.msk [vmem:[#allocation2 + $0x330] sm:$0xff] %vm11, 0.0
  %116 = vst.msk [vmem:[#allocation2 + $0x338] sm:$0xff] %vm11, 0.0
  %117 = vst.msk [vmem:[#allocation2 + $0x340] sm:$0x3] %vm14, 0.0
  %118 = vst.msk [vmem:[#allocation2 + $0x348] sm:$0xff] %vm11, 0.0
  %119 = vst.msk [vmem:[#allocation2 + $0x350] sm:$0xff] %vm11, 0.0
  %120 = vst.msk [vmem:[#allocation2 + $0x358] sm:$0x3] %vm14, 0.0
  %v121 = vld [vmem:[%s0] sm:$0xff]
  %v122 = vld [vmem:[%s0 + $0x8] sm:$0xff]
  %v123 = vld [vmem:[%s0 + $0x10] sm:$0xff]
  %v124 = vld [vmem:[%s0 + $0x18] sm:$0xff]
  %v125 = vld [vmem:[%s0 + $0x20] sm:$0xff]
  %v126 = vld [vmem:[%s0 + $0x28] sm:$0xff]
  %v127 = vld [vmem:[%s0 + $0x30] sm:$0xff]
  %v128 = vld [vmem:[%s0 + $0x38] sm:$0xff]
  %v129 = vld [vmem:[%s0 + $0x40] sm:$0xff]
  %v130 = vld [vmem:[%s0 + $0x48] sm:$0xff]
  %v131 = vld [vmem:[%s0 + $0x50] sm:$0xff]
  %v132 = vld [vmem:[%s0 + $0x58] sm:$0xff]
  %v133 = vld [vmem:[%s0 + $0x60] sm:$0xff]
  %v134 = vld [vmem:[%s0 + $0x68] sm:$0xff]
  %v135 = vld [vmem:[%s0 + $0x70] sm:$0xff]
  %v136 = vld [vmem:[%s0 + $0x78] sm:$0xff]
  %v137 = vld [vmem:[%s0 + $0x80] sm:$0xff]
  %v138 = vld [vmem:[%s0 + $0x88] sm:$0xff]
  %v139 = vld [vmem:[%s0 + $0x90] sm:$0xff]
  %v140 = vld [vmem:[%s0 + $0x98] sm:$0xff]
  %v141 = vld [vmem:[%s0 + $0xa0] sm:$0xff]
  %v142 = vld [vmem:[%s0 + $0xa8] sm:$0xff]
  %v143 = vld [vmem:[%s0 + $0xb0] sm:$0xff]
  %v144 = vld [vmem:[%s0 + $0xb8] sm:$0xff]
  %v145 = vld [vmem:[%s0 + $0xc0] sm:$0xff]
  %v146 = vld [vmem:[%s0 + $0xc8] sm:$0xff]
  %v147 = vld [vmem:[%s0 + $0xd0] sm:$0xff]
  %v148 = vld [vmem:[%s0 + $0xd8] sm:$0xff]
  %v149 = vld [vmem:[%s0 + $0xe0] sm:$0xff]
  %v150 = vld [vmem:[%s0 + $0xe8] sm:$0xff]
  %v151 = vld [vmem:[%s0 + $0xf0] sm:$0xff]
  %v152 = vld [vmem:[%s0 + $0xf8] sm:$0xff]
  %v153 = vld [vmem:[%s0 + $0x100] sm:$0xff]
  %v154 = vld [vmem:[%s0 + $0x108] sm:$0xff]
  %v155 = vld [vmem:[%s0 + $0x110] sm:$0xff]
  %v156 = vld [vmem:[%s0 + $0x118] sm:$0xff]
  %v157 = vld [vmem:[%s0 + $0x120] sm:$0xff]
  %v158 = vld [vmem:[%s0 + $0x128] sm:$0xff]
  %v159 = vld [vmem:[%s0 + $0x130] sm:$0xff]
  %v160 = vld [vmem:[%s0 + $0x138] sm:$0xff]
  %v161 = vld [vmem:[%s0 + $0x140] sm:$0xff]
  %v162 = vld [vmem:[%s0 + $0x148] sm:$0xff]
  %v163 = vld [vmem:[%s0 + $0x150] sm:$0xff]
  %v164 = vld [vmem:[%s0 + $0x158] sm:$0xff]
  %v165 = vld [vmem:[%s0 + $0x160] sm:$0xff]
  %v166 = vld [vmem:[%s0 + $0x168] sm:$0xff]
  %v167 = vld [vmem:[%s0 + $0x170] sm:$0xff]
  %v168 = vld [vmem:[%s0 + $0x178] sm:$0xff]
  %v169 = vld [vmem:[%s0 + $0x180] sm:$0xff]
  %v170 = vld [vmem:[%s0 + $0x188] sm:$0xff]
  %v171 = vld [vmem:[%s0 + $0x190] sm:$0xff]
  %v172 = vld [vmem:[%s0 + $0x198] sm:$0xff]
  %v173 = vld [vmem:[%s0 + $0x1a0] sm:$0xff]
  %v174 = vld [vmem:[%s0 + $0x1a8] sm:$0xff]
  %v175 = vld [vmem:[%s0 + $0x1b0] sm:$0xff]
  %v176 = vld [vmem:[%s0 + $0x1b8] sm:$0xff]
  %v177 = vld [vmem:[%s0 + $0x1c0] sm:$0xff]
  %v178 = vld [vmem:[%s0 + $0x1c8] sm:$0xff]
  %v179 = vld [vmem:[%s0 + $0x1d0] sm:$0xff]
  %v180 = vld [vmem:[%s0 + $0x1d8] sm:$0xff]
  %v181 = vld [vmem:[%s0 + $0x1e0] sm:$0xff]
  %v182 = vld [vmem:[%s0 + $0x1e8] sm:$0xff]
  %v183 = vld [vmem:[%s0 + $0x1f0] sm:$0xff]
  %v184 = vld [vmem:[%s0 + $0x1f8] sm:$0xff]
  %s185 = scalar_lea.vmem [#allocation2], 24
  %186 = vst.msk [vmem:[%s185 + $0x1] sm:$0xff] %vm11, %v121
  %187 = vst.msk [vmem:[%s185 + $0x9] sm:$0xff] %vm11, %v122
  %188 = vst.msk [vmem:[%s185 + $0x19] sm:$0xff] %vm11, %v123
  %189 = vst.msk [vmem:[%s185 + $0x21] sm:$0xff] %vm11, %v124
  %190 = vst.msk [vmem:[%s185 + $0x31] sm:$0xff] %vm11, %v125
  %191 = vst.msk [vmem:[%s185 + $0x39] sm:$0xff] %vm11, %v126
  %192 = vst.msk [vmem:[%s185 + $0x49] sm:$0xff] %vm11, %v127
  %193 = vst.msk [vmem:[%s185 + $0x51] sm:$0xff] %vm11, %v128
  %194 = vst.msk [vmem:[%s185 + $0x61] sm:$0xff] %vm11, %v129
  %195 = vst.msk [vmem:[%s185 + $0x69] sm:$0xff] %vm11, %v130
  %196 = vst.msk [vmem:[%s185 + $0x79] sm:$0xff] %vm11, %v131
  %197 = vst.msk [vmem:[%s185 + $0x81] sm:$0xff] %vm11, %v132
  %198 = vst.msk [vmem:[%s185 + $0x91] sm:$0xff] %vm11, %v133
  %199 = vst.msk [vmem:[%s185 + $0x99] sm:$0xff] %vm11, %v134
  %200 = vst.msk [vmem:[%s185 + $0xa9] sm:$0xff] %vm11, %v135
  %201 = vst.msk [vmem:[%s185 + $0xb1] sm:$0xff] %vm11, %v136
  %202 = vst.msk [vmem:[%s185 + $0xc1] sm:$0xff] %vm11, %v137
  %203 = vst.msk [vmem:[%s185 + $0xc9] sm:$0xff] %vm11, %v138
  %204 = vst.msk [vmem:[%s185 + $0xd9] sm:$0xff] %vm11, %v139
  %205 = vst.msk [vmem:[%s185 + $0xe1] sm:$0xff] %vm11, %v140
  %206 = vst.msk [vmem:[%s185 + $0xf1] sm:$0xff] %vm11, %v141
  %207 = vst.msk [vmem:[%s185 + $0xf9] sm:$0xff] %vm11, %v142
  %208 = vst.msk [vmem:[%s185 + $0x109] sm:$0xff] %vm11, %v143
  %209 = vst.msk [vmem:[%s185 + $0x111] sm:$0xff] %vm11, %v144
  %210 = vst.msk [vmem:[%s185 + $0x121] sm:$0xff] %vm11, %v145
  %211 = vst.msk [vmem:[%s185 + $0x129] sm:$0xff] %vm11, %v146
  %212 = vst.msk [vmem:[%s185 + $0x139] sm:$0xff] %vm11, %v147
  %213 = vst.msk [vmem:[%s185 + $0x141] sm:$0xff] %vm11, %v148
  %214 = vst.msk [vmem:[%s185 + $0x151] sm:$0xff] %vm11, %v149
  %215 = vst.msk [vmem:[%s185 + $0x159] sm:$0xff] %vm11, %v150
  %216 = vst.msk [vmem:[%s185 + $0x169] sm:$0xff] %vm11, %v151
  %217 = vst.msk [vmem:[%s185 + $0x171] sm:$0xff] %vm11, %v152
  %218 = vst.msk [vmem:[%s185 + $0x1b1] sm:$0xff] %vm11, %v153
  %219 = vst.msk [vmem:[%s185 + $0x1b9] sm:$0xff] %vm11, %v154
  %220 = vst.msk [vmem:[%s185 + $0x1c9] sm:$0xff] %vm11, %v155
  %221 = vst.msk [vmem:[%s185 + $0x1d1] sm:$0xff] %vm11, %v156
  %222 = vst.msk [vmem:[%s185 + $0x1e1] sm:$0xff] %vm11, %v157
  %223 = vst.msk [vmem:[%s185 + $0x1e9] sm:$0xff] %vm11, %v158
  %224 = vst.msk [vmem:[%s185 + $0x1f9] sm:$0xff] %vm11, %v159
  %225 = vst.msk [vmem:[%s185 + $0x201] sm:$0xff] %vm11, %v160
  %226 = vst.msk [vmem:[%s185 + $0x211] sm:$0xff] %vm11, %v161
  %227 = vst.msk [vmem:[%s185 + $0x219] sm:$0xff] %vm11, %v162
  %228 = vst.msk [vmem:[%s185 + $0x229] sm:$0xff] %vm11, %v163
  %229 = vst.msk [vmem:[%s185 + $0x231] sm:$0xff] %vm11, %v164
  %230 = vst.msk [vmem:[%s185 + $0x241] sm:$0xff] %vm11, %v165
  %231 = vst.msk [vmem:[%s185 + $0x249] sm:$0xff] %vm11, %v166
  %232 = vst.msk [vmem:[%s185 + $0x259] sm:$0xff] %vm11, %v167
  %233 = vst.msk [vmem:[%s185 + $0x261] sm:$0xff] %vm11, %v168
  %234 = vst.msk [vmem:[%s185 + $0x271] sm:$0xff] %vm11, %v169
  %235 = vst.msk [vmem:[%s185 + $0x279] sm:$0xff] %vm11, %v170
  %236 = vst.msk [vmem:[%s185 + $0x289] sm:$0xff] %vm11, %v171
  %237 = vst.msk [vmem:[%s185 + $0x291] sm:$0xff] %vm11, %v172
  %238 = vst.msk [vmem:[%s185 + $0x2a1] sm:$0xff] %vm11, %v173
  %239 = vst.msk [vmem:[%s185 + $0x2a9] sm:$0xff] %vm11, %v174
  %240 = vst.msk [vmem:[%s185 + $0x2b9] sm:$0xff] %vm11, %v175
  %241 = vst.msk [vmem:[%s185 + $0x2c1] sm:$0xff] %vm11, %v176
  %242 = vst.msk [vmem:[%s185 + $0x2d1] sm:$0xff] %vm11, %v177
  %243 = vst.msk [vmem:[%s185 + $0x2d9] sm:$0xff] %vm11, %v178
  %244 = vst.msk [vmem:[%s185 + $0x2e9] sm:$0xff] %vm11, %v179
  %245 = vst.msk [vmem:[%s185 + $0x2f1] sm:$0xff] %vm11, %v180
  %246 = vst.msk [vmem:[%s185 + $0x301] sm:$0xff] %vm11, %v181
  %247 = vst.msk [vmem:[%s185 + $0x309] sm:$0xff] %vm11, %v182
  %248 = vst.msk [vmem:[%s185 + $0x319] sm:$0xff] %vm11, %v183
  %249 = vst.msk [vmem:[%s185 + $0x321] sm:$0xff] %vm11, %v184
  %v250 = vld [vmem:[#allocation2] sm:$0xff]
  %v251 = vld [vmem:[#allocation2 + $0x8] sm:$0xff]
  %v252 = vld [vmem:[#allocation2 + $0x18] sm:$0xff]
  %v253 = vld [vmem:[#allocation2 + $0x20] sm:$0xff]
  %v254 = vld [vmem:[#allocation2 + $0x30] sm:$0xff]
  %v255 = vld [vmem:[#allocation2 + $0x38] sm:$0xff]
  %v256 = vld [vmem:[#allocation2 + $0x48] sm:$0xff]
  %v257 = vld [vmem:[#allocation2 + $0x50] sm:$0xff]
  %v258 = vld [vmem:[#allocation2 + $0x60] sm:$0xff]
  %v259 = vld [vmem:[#allocation2 + $0x68] sm:$0xff]
  %v260 = vld [vmem:[#allocation2 + $0x78] sm:$0xff]
  %v261 = vld [vmem:[#allocation2 + $0x80] sm:$0xff]
  %v262 = vld [vmem:[#allocation2 + $0x90] sm:$0xff]
  %v263 = vld [vmem:[#allocation2 + $0x98] sm:$0xff]
  %v264 = vld [vmem:[#allocation2 + $0xa8] sm:$0xff]
  %v265 = vld [vmem:[#allocation2 + $0xb0] sm:$0xff]
  %v266 = vld [vmem:[#allocation2 + $0xc0] sm:$0xff]
  %v267 = vld [vmem:[#allocation2 + $0xc8] sm:$0xff]
  %v268 = vld [vmem:[#allocation2 + $0xd8] sm:$0xff]
  %v269 = vld [vmem:[#allocation2 + $0xe0] sm:$0xff]
  %v270 = vld [vmem:[#allocation2 + $0xf0] sm:$0xff]
  %v271 = vld [vmem:[#allocation2 + $0xf8] sm:$0xff]
  %v272 = vld [vmem:[#allocation2 + $0x108] sm:$0xff]
  %v273 = vld [vmem:[#allocation2 + $0x110] sm:$0xff]
  %v274 = vld [vmem:[#allocation2 + $0x120] sm:$0xff]
  %v275 = vld [vmem:[#allocation2 + $0x128] sm:$0xff]
  %v276 = vld [vmem:[#allocation2 + $0x138] sm:$0xff]
  %v277 = vld [vmem:[#allocation2 + $0x140] sm:$0xff]
  %v278 = vld [vmem:[#allocation2 + $0x150] sm:$0xff]
  %v279 = vld [vmem:[#allocation2 + $0x158] sm:$0xff]
  %v280 = vld [vmem:[#allocation2 + $0x168] sm:$0xff]
  %v281 = vld [vmem:[#allocation2 + $0x170] sm:$0xff]
  %v282 = vld [vmem:[#allocation2 + $0x1b0] sm:$0xff]
  %v283 = vld [vmem:[#allocation2 + $0x1b8] sm:$0xff]
  %v284 = vld [vmem:[#allocation2 + $0x1c8] sm:$0xff]
  %v285 = vld [vmem:[#allocation2 + $0x1d0] sm:$0xff]
  %v286 = vld [vmem:[#allocation2 + $0x1e0] sm:$0xff]
  %v287 = vld [vmem:[#allocation2 + $0x1e8] sm:$0xff]
  %v288 = vld [vmem:[#allocation2 + $0x1f8] sm:$0xff]
  %v289 = vld [vmem:[#allocation2 + $0x200] sm:$0xff]
  %v290 = vld [vmem:[#allocation2 + $0x210] sm:$0xff]
  %v291 = vld [vmem:[#allocation2 + $0x218] sm:$0xff]
  %v292 = vld [vmem:[#allocation2 + $0x228] sm:$0xff]
  %v293 = vld [vmem:[#allocation2 + $0x230] sm:$0xff]
  %v294 = vld [vmem:[#allocation2 + $0x240] sm:$0xff]
  %v295 = vld [vmem:[#allocation2 + $0x248] sm:$0xff]
  %v296 = vld [vmem:[#allocation2 + $0x258] sm:$0xff]
  %v297 = vld [vmem:[#allocation2 + $0x260] sm:$0xff]
  %v298 = vld [vmem:[#allocation2 + $0x270] sm:$0xff]
  %v299 = vld [vmem:[#allocation2 + $0x278] sm:$0xff]
  %v300 = vld [vmem:[#allocation2 + $0x288] sm:$0xff]
  %v301 = vld [vmem:[#allocation2 + $0x290] sm:$0xff]
  %v302 = vld [vmem:[#allocation2 + $0x2a0] sm:$0xff]
  %v303 = vld [vmem:[#allocation2 + $0x2a8] sm:$0xff]
  %v304 = vld [vmem:[#allocation2 + $0x2b8] sm:$0xff]
  %v305 = vld [vmem:[#allocation2 + $0x2c0] sm:$0xff]
  %v306 = vld [vmem:[#allocation2 + $0x2d0] sm:$0xff]
  %v307 = vld [vmem:[#allocation2 + $0x2d8] sm:$0xff]
  %v308 = vld [vmem:[#allocation2 + $0x2e8] sm:$0xff]
  %v309 = vld [vmem:[#allocation2 + $0x2f0] sm:$0xff]
  %v310 = vld [vmem:[#allocation2 + $0x300] sm:$0xff]
  %v311 = vld [vmem:[#allocation2 + $0x308] sm:$0xff]
  %v312 = vld [vmem:[#allocation2 + $0x318] sm:$0xff]
  %v313 = vld [vmem:[#allocation2 + $0x320] sm:$0xff]
  %v314 = vld [vmem:[%s1] sm:$0x1]
  %v315 = vperm.slane %v314, 0
  %v316 = vmul.f32 %v250, %v315
  %v317 = vmul.f32 %v251, %v315
  %v318 = vmul.f32 %v252, %v315
  %v319 = vmul.f32 %v253, %v315
  %v320 = vmul.f32 %v254, %v315
  %v321 = vmul.f32 %v255, %v315
  %v322 = vmul.f32 %v256, %v315
  %v323 = vmul.f32 %v257, %v315
  %v324 = vmul.f32 %v258, %v315
  %v325 = vmul.f32 %v259, %v315
  %v326 = vmul.f32 %v260, %v315
  %v327 = vmul.f32 %v261, %v315
  %v328 = vmul.f32 %v262, %v315
  %v329 = vmul.f32 %v263, %v315
  %v330 = vmul.f32 %v264, %v315
  %v331 = vmul.f32 %v265, %v315
  %v332 = vmul.f32 %v266, %v315
  %v333 = vmul.f32 %v267, %v315
  %v334 = vmul.f32 %v268, %v315
  %v335 = vmul.f32 %v269, %v315
  %v336 = vmul.f32 %v270, %v315
  %v337 = vmul.f32 %v271, %v315
  %v338 = vmul.f32 %v272, %v315
  %v339 = vmul.f32 %v273, %v315
  %v340 = vmul.f32 %v274, %v315
  %v341 = vmul.f32 %v275, %v315
  %v342 = vmul.f32 %v276, %v315
  %v343 = vmul.f32 %v277, %v315
  %v344 = vmul.f32 %v278, %v315
  %v345 = vmul.f32 %v279, %v315
  %v346 = vmul.f32 %v280, %v315
  %v347 = vmul.f32 %v281, %v315
  %v348 = vmul.f32 %v282, %v315
  %v349 = vmul.f32 %v283, %v315
  %v350 = vmul.f32 %v284, %v315
  %v351 = vmul.f32 %v285, %v315
  %v352 = vmul.f32 %v286, %v315
  %v353 = vmul.f32 %v287, %v315
  %v354 = vmul.f32 %v288, %v315
  %v355 = vmul.f32 %v289, %v315
  %v356 = vmul.f32 %v290, %v315
  %v357 = vmul.f32 %v291, %v315
  %v358 = vmul.f32 %v292, %v315
  %v359 = vmul.f32 %v293, %v315
  %v360 = vmul.f32 %v294, %v315
  %v361 = vmul.f32 %v295, %v315
  %v362 = vmul.f32 %v296, %v315
  %v363 = vmul.f32 %v297, %v315
  %v364 = vmul.f32 %v298, %v315
  %v365 = vmul.f32 %v299, %v315
  %v366 = vmul.f32 %v300, %v315
  %v367 = vmul.f32 %v301, %v315
  %v368 = vmul.f32 %v302, %v315
  %v369 = vmul.f32 %v303, %v315
  %v370 = vmul.f32 %v304, %v315
  %v371 = vmul.f32 %v305, %v315
  %v372 = vmul.f32 %v306, %v315
  %v373 = vmul.f32 %v307, %v315
  %v374 = vmul.f32 %v308, %v315
  %v375 = vmul.f32 %v309, %v315
  %v376 = vmul.f32 %v310, %v315
  %v377 = vmul.f32 %v311, %v315
  %v378 = vmul.f32 %v312, %v315
  %v379 = vmul.f32 %v313, %v315
  %v380 = vadd.f32 %v316, 0.0
  %v381 = vadd.f32 %v317, 0.0
  %v382 = vadd.f32 %v318, 0.0
  %v383 = vadd.f32 %v319, 0.0
  %v384 = vadd.f32 %v320, 0.0
  %v385 = vadd.f32 %v321, 0.0
  %v386 = vadd.f32 %v322, 0.0
  %v387 = vadd.f32 %v323, 0.0
  %v388 = vadd.f32 %v324, 0.0
  %v389 = vadd.f32 %v325, 0.0
  %v390 = vadd.f32 %v326, 0.0
  %v391 = vadd.f32 %v327, 0.0
  %v392 = vadd.f32 %v328, 0.0
  %v393 = vadd.f32 %v329, 0.0
  %v394 = vadd.f32 %v330, 0.0
  %v395 = vadd.f32 %v331, 0.0
  %v396 = vadd.f32 %v332, 0.0
  %v397 = vadd.f32 %v333, 0.0
  %v398 = vadd.f32 %v334, 0.0
  %v399 = vadd.f32 %v335, 0.0
  %v400 = vadd.f32 %v336, 0.0
  %v401 = vadd.f32 %v337, 0.0
  %v402 = vadd.f32 %v338, 0.0
  %v403 = vadd.f32 %v339, 0.0
  %v404 = vadd.f32 %v340, 0.0
  %v405 = vadd.f32 %v341, 0.0
  %v406 = vadd.f32 %v342, 0.0
  %v407 = vadd.f32 %v343, 0.0
  %v408 = vadd.f32 %v344, 0.0
  %v409 = vadd.f32 %v345, 0.0
  %v410 = vadd.f32 %v346, 0.0
  %v411 = vadd.f32 %v347, 0.0
  %v412 = vadd.f32 %v348, 0.0
  %v413 = vadd.f32 %v349, 0.0
  %v414 = vadd.f32 %v350, 0.0
  %v415 = vadd.f32 %v351, 0.0
  %v416 = vadd.f32 %v352, 0.0
  %v417 = vadd.f32 %v353, 0.0
  %v418 = vadd.f32 %v354, 0.0
  %v419 = vadd.f32 %v355, 0.0
  %v420 = vadd.f32 %v356, 0.0
  %v421 = vadd.f32 %v357, 0.0
  %v422 = vadd.f32 %v358, 0.0
  %v423 = vadd.f32 %v359, 0.0
  %v424 = vadd.f32 %v360, 0.0
  %v425 = vadd.f32 %v361, 0.0
  %v426 = vadd.f32 %v362, 0.0
  %v427 = vadd.f32 %v363, 0.0
  %v428 = vadd.f32 %v364, 0.0
  %v429 = vadd.f32 %v365, 0.0
  %v430 = vadd.f32 %v366, 0.0
  %v431 = vadd.f32 %v367, 0.0
  %v432 = vadd.f32 %v368, 0.0
  %v433 = vadd.f32 %v369, 0.0
  %v434 = vadd.f32 %v370, 0.0
  %v435 = vadd.f32 %v371, 0.0
  %v436 = vadd.f32 %v372, 0.0
  %v437 = vadd.f32 %v373, 0.0
  %v438 = vadd.f32 %v374, 0.0
  %v439 = vadd.f32 %v375, 0.0
  %v440 = vadd.f32 %v376, 0.0
  %v441 = vadd.f32 %v377, 0.0
  %v442 = vadd.f32 %v378, 0.0
  %v443 = vadd.f32 %v379, 0.0
  %v444 = vld [vmem:[#allocation2 + $0x1] sm:$0xff]
  %v445 = vld [vmem:[#allocation2 + $0x9] sm:$0xff]
  %v446 = vld [vmem:[#allocation2 + $0x19] sm:$0xff]
  %v447 = vld [vmem:[#allocation2 + $0x21] sm:$0xff]
  %v448 = vld [vmem:[#allocation2 + $0x31] sm:$0xff]
  %v449 = vld [vmem:[#allocation2 + $0x39] sm:$0xff]
  %v450 = vld [vmem:[#allocation2 + $0x49] sm:$0xff]
  %v451 = vld [vmem:[#allocation2 + $0x51] sm:$0xff]
  %v452 = vld [vmem:[#allocation2 + $0x61] sm:$0xff]
  %v453 = vld [vmem:[#allocation2 + $0x69] sm:$0xff]
  %v454 = vld [vmem:[#allocation2 + $0x79] sm:$0xff]
  %v455 = vld [vmem:[#allocation2 + $0x81] sm:$0xff]
  %v456 = vld [vmem:[#allocation2 + $0x91] sm:$0xff]
  %v457 = vld [vmem:[#allocation2 + $0x99] sm:$0xff]
  %v458 = vld [vmem:[#allocation2 + $0xa9] sm:$0xff]
  %v459 = vld [vmem:[#allocation2 + $0xb1] sm:$0xff]
  %v460 = vld [vmem:[#allocation2 + $0xc1] sm:$0xff]
  %v461 = vld [vmem:[#allocation2 + $0xc9] sm:$0xff]
  %v462 = vld [vmem:[#allocation2 + $0xd9] sm:$0xff]
  %v463 = vld [vmem:[#allocation2 + $0xe1] sm:$0xff]
  %v464 = vld [vmem:[#allocation2 + $0xf1] sm:$0xff]
  %v465 = vld [vmem:[#allocation2 + $0xf9] sm:$0xff]
  %v466 = vld [vmem:[#allocation2 + $0x109] sm:$0xff]
  %v467 = vld [vmem:[#allocation2 + $0x111] sm:$0xff]
  %v468 = vld [vmem:[#allocation2 + $0x121] sm:$0xff]
  %v469 = vld [vmem:[#allocation2 + $0x129] sm:$0xff]
  %v470 = vld [vmem:[#allocation2 + $0x139] sm:$0xff]
  %v471 = vld [vmem:[#allocation2 + $0x141] sm:$0xff]
  %v472 = vld [vmem:[#allocation2 + $0x151] sm:$0xff]
  %v473 = vld [vmem:[#allocation2 + $0x159] sm:$0xff]
  %v474 = vld [vmem:[#allocation2 + $0x169] sm:$0xff]
  %v475 = vld [vmem:[#allocation2 + $0x171] sm:$0xff]
  %v476 = vld [vmem:[#allocation2 + $0x1b1] sm:$0xff]
  %v477 = vld [vmem:[#allocation2 + $0x1b9] sm:$0xff]
  %v478 = vld [vmem:[#allocation2 + $0x1c9] sm:$0xff]
  %v479 = vld [vmem:[#allocation2 + $0x1d1] sm:$0xff]
  %v480 = vld [vmem:[#allocation2 + $0x1e1] sm:$0xff]
  %v481 = vld [vmem:[#allocation2 + $0x1e9] sm:$0xff]
  %v482 = vld [vmem:[#allocation2 + $0x1f9] sm:$0xff]
  %v483 = vld [vmem:[#allocation2 + $0x201] sm:$0xff]
  %v484 = vld [vmem:[#allocation2 + $0x211] sm:$0xff]
  %v485 = vld [vmem:[#allocation2 + $0x219] sm:$0xff]
  %v486 = vld [vmem:[#allocation2 + $0x229] sm:$0xff]
  %v487 = vld [vmem:[#allocation2 + $0x231] sm:$0xff]
  %v488 = vld [vmem:[#allocation2 + $0x241] sm:$0xff]
  %v489 = vld [vmem:[#allocation2 + $0x249] sm:$0xff]
  %v490 = vld [vmem:[#allocation2 + $0x259] sm:$0xff]
  %v491 = vld [vmem:[#allocation2 + $0x261] sm:$0xff]
  %v492 = vld [vmem:[#allocation2 + $0x271] sm:$0xff]
  %v493 = vld [vmem:[#allocation2 + $0x279] sm:$0xff]
  %v494 = vld [vmem:[#allocation2 + $0x289] sm:$0xff]
  %v495 = vld [vmem:[#allocation2 + $0x291] sm:$0xff]
  %v496 = vld [vmem:[#allocation2 + $0x2a1] sm:$0xff]
  %v497 = vld [vmem:[#allocation2 + $0x2a9] sm:$0xff]
  %v498 = vld [vmem:[#allocation2 + $0x2b9] sm:$0xff]
  %v499 = vld [vmem:[#allocation2 + $0x2c1] sm:$0xff]
  %v500 = vld [vmem:[#allocation2 + $0x2d1] sm:$0xff]
  %v501 = vld [vmem:[#allocation2 + $0x2d9] sm:$0xff]
  %v502 = vld [vmem:[#allocation2 + $0x2e9] sm:$0xff]
  %v503 = vld [vmem:[#allocation2 + $0x2f1] sm:$0xff]
  %v504 = vld [vmem:[#allocation2 + $0x301] sm:$0xff]
  %v505 = vld [vmem:[#allocation2 + $0x309] sm:$0xff]
  %v506 = vld [vmem:[#allocation2 + $0x319] sm:$0xff]
  %v507 = vld [vmem:[#allocation2 + $0x321] sm:$0xff]
  %v508 = vld [vmem:[%s1 + $0x1] sm:$0x1]
  %v509 = vperm.slane %v508, 0
  %v510 = vmul.f32 %v444, %v509
  %v511 = vmul.f32 %v445, %v509
  %v512 = vmul.f32 %v446, %v509
  %v513 = vmul.f32 %v447, %v509
  %v514 = vmul.f32 %v448, %v509
  %v515 = vmul.f32 %v449, %v509
  %v516 = vmul.f32 %v450, %v509
  %v517 = vmul.f32 %v451, %v509
  %v518 = vmul.f32 %v452, %v509
  %v519 = vmul.f32 %v453, %v509
  %v520 = vmul.f32 %v454, %v509
  %v521 = vmul.f32 %v455, %v509
  %v522 = vmul.f32 %v456, %v509
  %v523 = vmul.f32 %v457, %v509
  %v524 = vmul.f32 %v458, %v509
  %v525 = vmul.f32 %v459, %v509
  %v526 = vmul.f32 %v460, %v509
  %v527 = vmul.f32 %v461, %v509
  %v528 = vmul.f32 %v462, %v509
  %v529 = vmul.f32 %v463, %v509
  %v530 = vmul.f32 %v464, %v509
  %v531 = vmul.f32 %v465, %v509
  %v532 = vmul.f32 %v466, %v509
  %v533 = vmul.f32 %v467, %v509
  %v534 = vmul.f32 %v468, %v509
  %v535 = vmul.f32 %v469, %v509
  %v536 = vmul.f32 %v470, %v509
  %v537 = vmul.f32 %v471, %v509
  %v538 = vmul.f32 %v472, %v509
  %v539 = vmul.f32 %v473, %v509
  %v540 = vmul.f32 %v474, %v509
  %v541 = vmul.f32 %v475, %v509
  %v542 = vmul.f32 %v476, %v509
  %v543 = vmul.f32 %v477, %v509
  %v544 = vmul.f32 %v478, %v509
  %v545 = vmul.f32 %v479, %v509
  %v546 = vmul.f32 %v480, %v509
  %v547 = vmul.f32 %v481, %v509
  %v548 = vmul.f32 %v482, %v509
  %v549 = vmul.f32 %v483, %v509
  %v550 = vmul.f32 %v484, %v509
  %v551 = vmul.f32 %v485, %v509
  %v552 = vmul.f32 %v486, %v509
  %v553 = vmul.f32 %v487, %v509
  %v554 = vmul.f32 %v488, %v509
  %v555 = vmul.f32 %v489, %v509
  %v556 = vmul.f32 %v490, %v509
  %v557 = vmul.f32 %v491, %v509
  %v558 = vmul.f32 %v492, %v509
  %v559 = vmul.f32 %v493, %v509
  %v560 = vmul.f32 %v494, %v509
  %v561 = vmul.f32 %v495, %v509
  %v562 = vmul.f32 %v496, %v509
  %v563 = vmul.f32 %v497, %v509
  %v564 = vmul.f32 %v498, %v509
  %v565 = vmul.f32 %v499, %v509
  %v566 = vmul.f32 %v500, %v509
  %v567 = vmul.f32 %v501, %v509
  %v568 = vmul.f32 %v502, %v509
  %v569 = vmul.f32 %v503, %v509
  %v570 = vmul.f32 %v504, %v509
  %v571 = vmul.f32 %v505, %v509
  %v572 = vmul.f32 %v506, %v509
  %v573 = vmul.f32 %v507, %v509
  %v574 = vadd.f32 %v380, %v510
  %v575 = vadd.f32 %v381, %v511
  %v576 = vadd.f32 %v382, %v512
  %v577 = vadd.f32 %v383, %v513
  %v578 = vadd.f32 %v384, %v514
  %v579 = vadd.f32 %v385, %v515
  %v580 = vadd.f32 %v386, %v516
  %v581 = vadd.f32 %v387, %v517
  %v582 = vadd.f32 %v388, %v518
  %v583 = vadd.f32 %v389, %v519
  %v584 = vadd.f32 %v390, %v520
  %v585 = vadd.f32 %v391, %v521
  %v586 = vadd.f32 %v392, %v522
  %v587 = vadd.f32 %v393, %v523
  %v588 = vadd.f32 %v394, %v524
  %v589 = vadd.f32 %v395, %v525
  %v590 = vadd.f32 %v396, %v526
  %v591 = vadd.f32 %v397, %v527
  %v592 = vadd.f32 %v398, %v528
  %v593 = vadd.f32 %v399, %v529
  %v594 = vadd.f32 %v400, %v530
  %v595 = vadd.f32 %v401, %v531
  %v596 = vadd.f32 %v402, %v532
  %v597 = vadd.f32 %v403, %v533
  %v598 = vadd.f32 %v404, %v534
  %v599 = vadd.f32 %v405, %v535
  %v600 = vadd.f32 %v406, %v536
  %v601 = vadd.f32 %v407, %v537
  %v602 = vadd.f32 %v408, %v538
  %v603 = vadd.f32 %v409, %v539
  %v604 = vadd.f32 %v410, %v540
  %v605 = vadd.f32 %v411, %v541
  %v606 = vadd.f32 %v412, %v542
  %v607 = vadd.f32 %v413, %v543
  %v608 = vadd.f32 %v414, %v544
  %v609 = vadd.f32 %v415, %v545
  %v610 = vadd.f32 %v416, %v546
  %v611 = vadd.f32 %v417, %v547
  %v612 = vadd.f32 %v418, %v548
  %v613 = vadd.f32 %v419, %v549
  %v614 = vadd.f32 %v420, %v550
  %v615 = vadd.f32 %v421, %v551
  %v616 = vadd.f32 %v422, %v552
  %v617 = vadd.f32 %v423, %v553
  %v618 = vadd.f32 %v424, %v554
  %v619 = vadd.f32 %v425, %v555
  %v620 = vadd.f32 %v426, %v556
  %v621 = vadd.f32 %v427, %v557
  %v622 = vadd.f32 %v428, %v558
  %v623 = vadd.f32 %v429, %v559
  %v624 = vadd.f32 %v430, %v560
  %v625 = vadd.f32 %v431, %v561
  %v626 = vadd.f32 %v432, %v562
  %v627 = vadd.f32 %v433, %v563
  %v628 = vadd.f32 %v434, %v564
  %v629 = vadd.f32 %v435, %v565
  %v630 = vadd.f32 %v436, %v566
  %v631 = vadd.f32 %v437, %v567
  %v632 = vadd.f32 %v438, %v568
  %v633 = vadd.f32 %v439, %v569
  %v634 = vadd.f32 %v440, %v570
  %v635 = vadd.f32 %v441, %v571
  %v636 = vadd.f32 %v442, %v572
  %v637 = vadd.f32 %v443, %v573
  %v638 = vld [vmem:[#allocation2 + $0x2] sm:$0xff]
  %v639 = vld [vmem:[#allocation2 + $0xa] sm:$0xff]
  %v640 = vld [vmem:[#allocation2 + $0x1a] sm:$0xff]
  %v641 = vld [vmem:[#allocation2 + $0x22] sm:$0xff]
  %v642 = vld [vmem:[#allocation2 + $0x32] sm:$0xff]
  %v643 = vld [vmem:[#allocation2 + $0x3a] sm:$0xff]
  %v644 = vld [vmem:[#allocation2 + $0x4a] sm:$0xff]
  %v645 = vld [vmem:[#allocation2 + $0x52] sm:$0xff]
  %v646 = vld [vmem:[#allocation2 + $0x62] sm:$0xff]
  %v647 = vld [vmem:[#allocation2 + $0x6a] sm:$0xff]
  %v648 = vld [vmem:[#allocation2 + $0x7a] sm:$0xff]
  %v649 = vld [vmem:[#allocation2 + $0x82] sm:$0xff]
  %v650 = vld [vmem:[#allocation2 + $0x92] sm:$0xff]
  %v651 = vld [vmem:[#allocation2 + $0x9a] sm:$0xff]
  %v652 = vld [vmem:[#allocation2 + $0xaa] sm:$0xff]
  %v653 = vld [vmem:[#allocation2 + $0xb2] sm:$0xff]
  %v654 = vld [vmem:[#allocation2 + $0xc2] sm:$0xff]
  %v655 = vld [vmem:[#allocation2 + $0xca] sm:$0xff]
  %v656 = vld [vmem:[#allocation2 + $0xda] sm:$0xff]
  %v657 = vld [vmem:[#allocation2 + $0xe2] sm:$0xff]
  %v658 = vld [vmem:[#allocation2 + $0xf2] sm:$0xff]
  %v659 = vld [vmem:[#allocation2 + $0xfa] sm:$0xff]
  %v660 = vld [vmem:[#allocation2 + $0x10a] sm:$0xff]
  %v661 = vld [vmem:[#allocation2 + $0x112] sm:$0xff]
  %v662 = vld [vmem:[#allocation2 + $0x122] sm:$0xff]
  %v663 = vld [vmem:[#allocation2 + $0x12a] sm:$0xff]
  %v664 = vld [vmem:[#allocation2 + $0x13a] sm:$0xff]
  %v665 = vld [vmem:[#allocation2 + $0x142] sm:$0xff]
  %v666 = vld [vmem:[#allocation2 + $0x152] sm:$0xff]
  %v667 = vld [vmem:[#allocation2 + $0x15a] sm:$0xff]
  %v668 = vld [vmem:[#allocation2 + $0x16a] sm:$0xff]
  %v669 = vld [vmem:[#allocation2 + $0x172] sm:$0xff]
  %v670 = vld [vmem:[#allocation2 + $0x1b2] sm:$0xff]
  %v671 = vld [vmem:[#allocation2 + $0x1ba] sm:$0xff]
  %v672 = vld [vmem:[#allocation2 + $0x1ca] sm:$0xff]
  %v673 = vld [vmem:[#allocation2 + $0x1d2] sm:$0xff]
  %v674 = vld [vmem:[#allocation2 + $0x1e2] sm:$0xff]
  %v675 = vld [vmem:[#allocation2 + $0x1ea] sm:$0xff]
  %v676 = vld [vmem:[#allocation2 + $0x1fa] sm:$0xff]
  %v677 = vld [vmem:[#allocation2 + $0x202] sm:$0xff]
  %v678 = vld [vmem:[#allocation2 + $0x212] sm:$0xff]
  %v679 = vld [vmem:[#allocation2 + $0x21a] sm:$0xff]
  %v680 = vld [vmem:[#allocation2 + $0x22a] sm:$0xff]
  %v681 = vld [vmem:[#allocation2 + $0x232] sm:$0xff]
  %v682 = vld [vmem:[#allocation2 + $0x242] sm:$0xff]
  %v683 = vld [vmem:[#allocation2 + $0x24a] sm:$0xff]
  %v684 = vld [vmem:[#allocation2 + $0x25a] sm:$0xff]
  %v685 = vld [vmem:[#allocation2 + $0x262] sm:$0xff]
  %v686 = vld [vmem:[#allocation2 + $0x272] sm:$0xff]
  %v687 = vld [vmem:[#allocation2 + $0x27a] sm:$0xff]
  %v688 = vld [vmem:[#allocation2 + $0x28a] sm:$0xff]
  %v689 = vld [vmem:[#allocation2 + $0x292] sm:$0xff]
  %v690 = vld [vmem:[#allocation2 + $0x2a2] sm:$0xff]
  %v691 = vld [vmem:[#allocation2 + $0x2aa] sm:$0xff]
  %v692 = vld [vmem:[#allocation2 + $0x2ba] sm:$0xff]
  %v693 = vld [vmem:[#allocation2 + $0x2c2] sm:$0xff]
  %v694 = vld [vmem:[#allocation2 + $0x2d2] sm:$0xff]
  %v695 = vld [vmem:[#allocation2 + $0x2da] sm:$0xff]
  %v696 = vld [vmem:[#allocation2 + $0x2ea] sm:$0xff]
  %v697 = vld [vmem:[#allocation2 + $0x2f2] sm:$0xff]
  %v698 = vld [vmem:[#allocation2 + $0x302] sm:$0xff]
  %v699 = vld [vmem:[#allocation2 + $0x30a] sm:$0xff]
  %v700 = vld [vmem:[#allocation2 + $0x31a] sm:$0xff]
  %v701 = vld [vmem:[#allocation2 + $0x322] sm:$0xff]
  %v702 = vld [vmem:[%s1 + $0x2] sm:$0x1]
  %v703 = vperm.slane %v702, 0
  %v704 = vmul.f32 %v638, %v703
  %v705 = vmul.f32 %v639, %v703
  %v706 = vmul.f32 %v640, %v703
  %v707 = vmul.f32 %v641, %v703
  %v708 = vmul.f32 %v642, %v703
  %v709 = vmul.f32 %v643, %v703
  %v710 = vmul.f32 %v644, %v703
  %v711 = vmul.f32 %v645, %v703
  %v712 = vmul.f32 %v646, %v703
  %v713 = vmul.f32 %v647, %v703
  %v714 = vmul.f32 %v648, %v703
  %v715 = vmul.f32 %v649, %v703
  %v716 = vmul.f32 %v650, %v703
  %v717 = vmul.f32 %v651, %v703
  %v718 = vmul.f32 %v652, %v703
  %v719 = vmul.f32 %v653, %v703
  %v720 = vmul.f32 %v654, %v703
  %v721 = vmul.f32 %v655, %v703
  %v722 = vmul.f32 %v656, %v703
  %v723 = vmul.f32 %v657, %v703
  %v724 = vmul.f32 %v658, %v703
  %v725 = vmul.f32 %v659, %v703
  %v726 = vmul.f32 %v660, %v703
  %v727 = vmul.f32 %v661, %v703
  %v728 = vmul.f32 %v662, %v703
  %v729 = vmul.f32 %v663, %v703
  %v730 = vmul.f32 %v664, %v703
  %v731 = vmul.f32 %v665, %v703
  %v732 = vmul.f32 %v666, %v703
  %v733 = vmul.f32 %v667, %v703
  %v734 = vmul.f32 %v668, %v703
  %v735 = vmul.f32 %v669, %v703
  %v736 = vmul.f32 %v670, %v703
  %v737 = vmul.f32 %v671, %v703
  %v738 = vmul.f32 %v672, %v703
  %v739 = vmul.f32 %v673, %v703
  %v740 = vmul.f32 %v674, %v703
  %v741 = vmul.f32 %v675, %v703
  %v742 = vmul.f32 %v676, %v703
  %v743 = vmul.f32 %v677, %v703
  %v744 = vmul.f32 %v678, %v703
  %v745 = vmul.f32 %v679, %v703
  %v746 = vmul.f32 %v680, %v703
  %v747 = vmul.f32 %v681, %v703
  %v748 = vmul.f32 %v682, %v703
  %v749 = vmul.f32 %v683, %v703
  %v750 = vmul.f32 %v684, %v703
  %v751 = vmul.f32 %v685, %v703
  %v752 = vmul.f32 %v686, %v703
  %v753 = vmul.f32 %v687, %v703
  %v754 = vmul.f32 %v688, %v703
  %v755 = vmul.f32 %v689, %v703
  %v756 = vmul.f32 %v690, %v703
  %v757 = vmul.f32 %v691, %v703
  %v758 = vmul.f32 %v692, %v703
  %v759 = vmul.f32 %v693, %v703
  %v760 = vmul.f32 %v694, %v703
  %v761 = vmul.f32 %v695, %v703
  %v762 = vmul.f32 %v696, %v703
  %v763 = vmul.f32 %v697, %v703
  %v764 = vmul.f32 %v698, %v703
  %v765 = vmul.f32 %v699, %v703
  %v766 = vmul.f32 %v700, %v703
  %v767 = vmul.f32 %v701, %v703
  %v768 = vadd.f32 %v574, %v704
  %v769 = vadd.f32 %v575, %v705
  %v770 = vadd.f32 %v576, %v706
  %v771 = vadd.f32 %v577, %v707
  %v772 = vadd.f32 %v578, %v708
  %v773 = vadd.f32 %v579, %v709
  %v774 = vadd.f32 %v580, %v710
  %v775 = vadd.f32 %v581, %v711
  %v776 = vadd.f32 %v582, %v712
  %v777 = vadd.f32 %v583, %v713
  %v778 = vadd.f32 %v584, %v714
  %v779 = vadd.f32 %v585, %v715
  %v780 = vadd.f32 %v586, %v716
  %v781 = vadd.f32 %v587, %v717
  %v782 = vadd.f32 %v588, %v718
  %v783 = vadd.f32 %v589, %v719
  %v784 = vadd.f32 %v590, %v720
  %v785 = vadd.f32 %v591, %v721
  %v786 = vadd.f32 %v592, %v722
  %v787 = vadd.f32 %v593, %v723
  %v788 = vadd.f32 %v594, %v724
  %v789 = vadd.f32 %v595, %v725
  %v790 = vadd.f32 %v596, %v726
  %v791 = vadd.f32 %v597, %v727
  %v792 = vadd.f32 %v598, %v728
  %v793 = vadd.f32 %v599, %v729
  %v794 = vadd.f32 %v600, %v730
  %v795 = vadd.f32 %v601, %v731
  %v796 = vadd.f32 %v602, %v732
  %v797 = vadd.f32 %v603, %v733
  %v798 = vadd.f32 %v604, %v734
  %v799 = vadd.f32 %v605, %v735
  %v800 = vadd.f32 %v606, %v736
  %v801 = vadd.f32 %v607, %v737
  %v802 = vadd.f32 %v608, %v738
  %v803 = vadd.f32 %v609, %v739
  %v804 = vadd.f32 %v610, %v740
  %v805 = vadd.f32 %v611, %v741
  %v806 = vadd.f32 %v612, %v742
  %v807 = vadd.f32 %v613, %v743
  %v808 = vadd.f32 %v614, %v744
  %v809 = vadd.f32 %v615, %v745
  %v810 = vadd.f32 %v616, %v746
  %v811 = vadd.f32 %v617, %v747
  %v812 = vadd.f32 %v618, %v748
  %v813 = vadd.f32 %v619, %v749
  %v814 = vadd.f32 %v620, %v750
  %v815 = vadd.f32 %v621, %v751
  %v816 = vadd.f32 %v622, %v752
  %v817 = vadd.f32 %v623, %v753
  %v818 = vadd.f32 %v624, %v754
  %v819 = vadd.f32 %v625, %v755
  %v820 = vadd.f32 %v626, %v756
  %v821 = vadd.f32 %v627, %v757
  %v822 = vadd.f32 %v628, %v758
  %v823 = vadd.f32 %v629, %v759
  %v824 = vadd.f32 %v630, %v760
  %v825 = vadd.f32 %v631, %v761
  %v826 = vadd.f32 %v632, %v762
  %v827 = vadd.f32 %v633, %v763
  %v828 = vadd.f32 %v634, %v764
  %v829 = vadd.f32 %v635, %v765
  %v830 = vadd.f32 %v636, %v766
  %v831 = vadd.f32 %v637, %v767
  %v832 = vld [vmem:[%s185] sm:$0xff]
  %v833 = vld [vmem:[%s185 + $0x8] sm:$0xff]
  %v834 = vld [vmem:[%s185 + $0x18] sm:$0xff]
  %v835 = vld [vmem:[%s185 + $0x20] sm:$0xff]
  %v836 = vld [vmem:[%s185 + $0x30] sm:$0xff]
  %v837 = vld [vmem:[%s185 + $0x38] sm:$0xff]
  %v838 = vld [vmem:[%s185 + $0x48] sm:$0xff]
  %v839 = vld [vmem:[%s185 + $0x50] sm:$0xff]
  %v840 = vld [vmem:[%s185 + $0x60] sm:$0xff]
  %v841 = vld [vmem:[%s185 + $0x68] sm:$0xff]
  %v842 = vld [vmem:[%s185 + $0x78] sm:$0xff]
  %v843 = vld [vmem:[%s185 + $0x80] sm:$0xff]
  %v844 = vld [vmem:[%s185 + $0x90] sm:$0xff]
  %v845 = vld [vmem:[%s185 + $0x98] sm:$0xff]
  %v846 = vld [vmem:[%s185 + $0xa8] sm:$0xff]
  %v847 = vld [vmem:[%s185 + $0xb0] sm:$0xff]
  %v848 = vld [vmem:[%s185 + $0xc0] sm:$0xff]
  %v849 = vld [vmem:[%s185 + $0xc8] sm:$0xff]
  %v850 = vld [vmem:[%s185 + $0xd8] sm:$0xff]
  %v851 = vld [vmem:[%s185 + $0xe0] sm:$0xff]
  %v852 = vld [vmem:[%s185 + $0xf0] sm:$0xff]
  %v853 = vld [vmem:[%s185 + $0xf8] sm:$0xff]
  %v854 = vld [vmem:[%s185 + $0x108] sm:$0xff]
  %v855 = vld [vmem:[%s185 + $0x110] sm:$0xff]
  %v856 = vld [vmem:[%s185 + $0x120] sm:$0xff]
  %v857 = vld [vmem:[%s185 + $0x128] sm:$0xff]
  %v858 = vld [vmem:[%s185 + $0x138] sm:$0xff]
  %v859 = vld [vmem:[%s185 + $0x140] sm:$0xff]
  %v860 = vld [vmem:[%s185 + $0x150] sm:$0xff]
  %v861 = vld [vmem:[%s185 + $0x158] sm:$0xff]
  %v862 = vld [vmem:[%s185 + $0x168] sm:$0xff]
  %v863 = vld [vmem:[%s185 + $0x170] sm:$0xff]
  %v864 = vld [vmem:[%s185 + $0x1b0] sm:$0xff]
  %v865 = vld [vmem:[%s185 + $0x1b8] sm:$0xff]
  %v866 = vld [vmem:[%s185 + $0x1c8] sm:$0xff]
  %v867 = vld [vmem:[%s185 + $0x1d0] sm:$0xff]
  %v868 = vld [vmem:[%s185 + $0x1e0] sm:$0xff]
  %v869 = vld [vmem:[%s185 + $0x1e8] sm:$0xff]
  %v870 = vld [vmem:[%s185 + $0x1f8] sm:$0xff]
  %v871 = vld [vmem:[%s185 + $0x200] sm:$0xff]
  %v872 = vld [vmem:[%s185 + $0x210] sm:$0xff]
  %v873 = vld [vmem:[%s185 + $0x218] sm:$0xff]
  %v874 = vld [vmem:[%s185 + $0x228] sm:$0xff]
  %v875 = vld [vmem:[%s185 + $0x230] sm:$0xff]
  %v876 = vld [vmem:[%s185 + $0x240] sm:$0xff]
  %v877 = vld [vmem:[%s185 + $0x248] sm:$0xff]
  %v878 = vld [vmem:[%s185 + $0x258] sm:$0xff]
  %v879 = vld [vmem:[%s185 + $0x260] sm:$0xff]
  %v880 = vld [vmem:[%s185 + $0x270] sm:$0xff]
  %v881 = vld [vmem:[%s185 + $0x278] sm:$0xff]
  %v882 = vld [vmem:[%s185 + $0x288] sm:$0xff]
  %v883 = vld [vmem:[%s185 + $0x290] sm:$0xff]
  %v884 = vld [vmem:[%s185 + $0x2a0] sm:$0xff]
  %v885 = vld [vmem:[%s185 + $0x2a8] sm:$0xff]
  %v886 = vld [vmem:[%s185 + $0x2b8] sm:$0xff]
  %v887 = vld [vmem:[%s185 + $0x2c0] sm:$0xff]
  %v888 = vld [vmem:[%s185 + $0x2d0] sm:$0xff]
  %v889 = vld [vmem:[%s185 + $0x2d8] sm:$0xff]
  %v890 = vld [vmem:[%s185 + $0x2e8] sm:$0xff]
  %v891 = vld [vmem:[%s185 + $0x2f0] sm:$0xff]
  %v892 = vld [vmem:[%s185 + $0x300] sm:$0xff]
  %v893 = vld [vmem:[%s185 + $0x308] sm:$0xff]
  %v894 = vld [vmem:[%s185 + $0x318] sm:$0xff]
  %v895 = vld [vmem:[%s185 + $0x320] sm:$0xff]
  %v896 = vld [vmem:[%s1 + $0x3] sm:$0x1]
  %v897 = vperm.slane %v896, 0
  %v898 = vmul.f32 %v832, %v897
  %v899 = vmul.f32 %v833, %v897
  %v900 = vmul.f32 %v834, %v897
  %v901 = vmul.f32 %v835, %v897
  %v902 = vmul.f32 %v836, %v897
  %v903 = vmul.f32 %v837, %v897
  %v904 = vmul.f32 %v838, %v897
  %v905 = vmul.f32 %v839, %v897
  %v906 = vmul.f32 %v840, %v897
  %v907 = vmul.f32 %v841, %v897
  %v908 = vmul.f32 %v842, %v897
  %v909 = vmul.f32 %v843, %v897
  %v910 = vmul.f32 %v844, %v897
  %v911 = vmul.f32 %v845, %v897
  %v912 = vmul.f32 %v846, %v897
  %v913 = vmul.f32 %v847, %v897
  %v914 = vmul.f32 %v848, %v897
  %v915 = vmul.f32 %v849, %v897
  %v916 = vmul.f32 %v850, %v897
  %v917 = vmul.f32 %v851, %v897
  %v918 = vmul.f32 %v852, %v897
  %v919 = vmul.f32 %v853, %v897
  %v920 = vmul.f32 %v854, %v897
  %v921 = vmul.f32 %v855, %v897
  %v922 = vmul.f32 %v856, %v897
  %v923 = vmul.f32 %v857, %v897
  %v924 = vmul.f32 %v858, %v897
  %v925 = vmul.f32 %v859, %v897
  %v926 = vmul.f32 %v860, %v897
  %v927 = vmul.f32 %v861, %v897
  %v928 = vmul.f32 %v862, %v897
  %v929 = vmul.f32 %v863, %v897
  %v930 = vmul.f32 %v864, %v897
  %v931 = vmul.f32 %v865, %v897
  %v932 = vmul.f32 %v866, %v897
  %v933 = vmul.f32 %v867, %v897
  %v934 = vmul.f32 %v868, %v897
  %v935 = vmul.f32 %v869, %v897
  %v936 = vmul.f32 %v870, %v897
  %v937 = vmul.f32 %v871, %v897
  %v938 = vmul.f32 %v872, %v897
  %v939 = vmul.f32 %v873, %v897
  %v940 = vmul.f32 %v874, %v897
  %v941 = vmul.f32 %v875, %v897
  %v942 = vmul.f32 %v876, %v897
  %v943 = vmul.f32 %v877, %v897
  %v944 = vmul.f32 %v878, %v897
  %v945 = vmul.f32 %v879, %v897
  %v946 = vmul.f32 %v880, %v897
  %v947 = vmul.f32 %v881, %v897
  %v948 = vmul.f32 %v882, %v897
  %v949 = vmul.f32 %v883, %v897
  %v950 = vmul.f32 %v884, %v897
  %v951 = vmul.f32 %v885, %v897
  %v952 = vmul.f32 %v886, %v897
  %v953 = vmul.f32 %v887, %v897
  %v954 = vmul.f32 %v888, %v897
  %v955 = vmul.f32 %v889, %v897
  %v956 = vmul.f32 %v890, %v897
  %v957 = vmul.f32 %v891, %v897
  %v958 = vmul.f32 %v892, %v897
  %v959 = vmul.f32 %v893, %v897
  %v960 = vmul.f32 %v894, %v897
  %v961 = vmul.f32 %v895, %v897
  %v962 = vadd.f32 %v768, %v898
  %v963 = vadd.f32 %v769, %v899
  %v964 = vadd.f32 %v770, %v900
  %v965 = vadd.f32 %v771, %v901
  %v966 = vadd.f32 %v772, %v902
  %v967 = vadd.f32 %v773, %v903
  %v968 = vadd.f32 %v774, %v904
  %v969 = vadd.f32 %v775, %v905
  %v970 = vadd.f32 %v776, %v906
  %v971 = vadd.f32 %v777, %v907
  %v972 = vadd.f32 %v778, %v908
  %v973 = vadd.f32 %v779, %v909
  %v974 = vadd.f32 %v780, %v910
  %v975 = vadd.f32 %v781, %v911
  %v976 = vadd.f32 %v782, %v912
  %v977 = vadd.f32 %v783, %v913
  %v978 = vadd.f32 %v784, %v914
  %v979 = vadd.f32 %v785, %v915
  %v980 = vadd.f32 %v786, %v916
  %v981 = vadd.f32 %v787, %v917
  %v982 = vadd.f32 %v788, %v918
  %v983 = vadd.f32 %v789, %v919
  %v984 = vadd.f32 %v790, %v920
  %v985 = vadd.f32 %v791, %v921
  %v986 = vadd.f32 %v792, %v922
  %v987 = vadd.f32 %v793, %v923
  %v988 = vadd.f32 %v794, %v924
  %v989 = vadd.f32 %v795, %v925
  %v990 = vadd.f32 %v796, %v926
  %v991 = vadd.f32 %v797, %v927
  %v992 = vadd.f32 %v798, %v928
  %v993 = vadd.f32 %v799, %v929
  %v994 = vadd.f32 %v800, %v930
  %v995 = vadd.f32 %v801, %v931
  %v996 = vadd.f32 %v802, %v932
  %v997 = vadd.f32 %v803, %v933
  %v998 = vadd.f32 %v804, %v934
  %v999 = vadd.f32 %v805, %v935
  %v1000 = vadd.f32 %v806, %v936
  %v1001 = vadd.f32 %v807, %v937
  %v1002 = vadd.f32 %v808, %v938
  %v1003 = vadd.f32 %v809, %v939
  %v1004 = vadd.f32 %v810, %v940
  %v1005 = vadd.f32 %v811, %v941
  %v1006 = vadd.f32 %v812, %v942
  %v1007 = vadd.f32 %v813, %v943
  %v1008 = vadd.f32 %v814, %v944
  %v1009 = vadd.f32 %v815, %v945
  %v1010 = vadd.f32 %v816, %v946
  %v1011 = vadd.f32 %v817, %v947
  %v1012 = vadd.f32 %v818, %v948
  %v1013 = vadd.f32 %v819, %v949
  %v1014 = vadd.f32 %v820, %v950
  %v1015 = vadd.f32 %v821, %v951
  %v1016 = vadd.f32 %v822, %v952
  %v1017 = vadd.f32 %v823, %v953
  %v1018 = vadd.f32 %v824, %v954
  %v1019 = vadd.f32 %v825, %v955
  %v1020 = vadd.f32 %v826, %v956
  %v1021 = vadd.f32 %v827, %v957
  %v1022 = vadd.f32 %v828, %v958
  %v1023 = vadd.f32 %v829, %v959
  %v1024 = vadd.f32 %v830, %v960
  %v1025 = vadd.f32 %v831, %v961
  %v1026 = vld [vmem:[%s185 + $0x1] sm:$0xff]
  %v1027 = vld [vmem:[%s185 + $0x9] sm:$0xff]
  %v1028 = vld [vmem:[%s185 + $0x19] sm:$0xff]
  %v1029 = vld [vmem:[%s185 + $0x21] sm:$0xff]
  %v1030 = vld [vmem:[%s185 + $0x31] sm:$0xff]
  %v1031 = vld [vmem:[%s185 + $0x39] sm:$0xff]
  %v1032 = vld [vmem:[%s185 + $0x49] sm:$0xff]
  %v1033 = vld [vmem:[%s185 + $0x51] sm:$0xff]
  %v1034 = vld [vmem:[%s185 + $0x61] sm:$0xff]
  %v1035 = vld [vmem:[%s185 + $0x69] sm:$0xff]
  %v1036 = vld [vmem:[%s185 + $0x79] sm:$0xff]
  %v1037 = vld [vmem:[%s185 + $0x81] sm:$0xff]
  %v1038 = vld [vmem:[%s185 + $0x91] sm:$0xff]
  %v1039 = vld [vmem:[%s185 + $0x99] sm:$0xff]
  %v1040 = vld [vmem:[%s185 + $0xa9] sm:$0xff]
  %v1041 = vld [vmem:[%s185 + $0xb1] sm:$0xff]
  %v1042 = vld [vmem:[%s185 + $0xc1] sm:$0xff]
  %v1043 = vld [vmem:[%s185 + $0xc9] sm:$0xff]
  %v1044 = vld [vmem:[%s185 + $0xd9] sm:$0xff]
  %v1045 = vld [vmem:[%s185 + $0xe1] sm:$0xff]
  %v1046 = vld [vmem:[%s185 + $0xf1] sm:$0xff]
  %v1047 = vld [vmem:[%s185 + $0xf9] sm:$0xff]
  %v1048 = vld [vmem:[%s185 + $0x109] sm:$0xff]
  %v1049 = vld [vmem:[%s185 + $0x111] sm:$0xff]
  %v1050 = vld [vmem:[%s185 + $0x121] sm:$0xff]
  %v1051 = vld [vmem:[%s185 + $0x129] sm:$0xff]
  %v1052 = vld [vmem:[%s185 + $0x139] sm:$0xff]
  %v1053 = vld [vmem:[%s185 + $0x141] sm:$0xff]
  %v1054 = vld [vmem:[%s185 + $0x151] sm:$0xff]
  %v1055 = vld [vmem:[%s185 + $0x159] sm:$0xff]
  %v1056 = vld [vmem:[%s185 + $0x169] sm:$0xff]
  %v1057 = vld [vmem:[%s185 + $0x171] sm:$0xff]
  %v1058 = vld [vmem:[%s185 + $0x1b1] sm:$0xff]
  %v1059 = vld [vmem:[%s185 + $0x1b9] sm:$0xff]
  %v1060 = vld [vmem:[%s185 + $0x1c9] sm:$0xff]
  %v1061 = vld [vmem:[%s185 + $0x1d1] sm:$0xff]
  %v1062 = vld [vmem:[%s185 + $0x1e1] sm:$0xff]
  %v1063 = vld [vmem:[%s185 + $0x1e9] sm:$0xff]
  %v1064 = vld [vmem:[%s185 + $0x1f9] sm:$0xff]
  %v1065 = vld [vmem:[%s185 + $0x201] sm:$0xff]
  %v1066 = vld [vmem:[%s185 + $0x211] sm:$0xff]
  %v1067 = vld [vmem:[%s185 + $0x219] sm:$0xff]
  %v1068 = vld [vmem:[%s185 + $0x229] sm:$0xff]
  %v1069 = vld [vmem:[%s185 + $0x231] sm:$0xff]
  %v1070 = vld [vmem:[%s185 + $0x241] sm:$0xff]
  %v1071 = vld [vmem:[%s185 + $0x249] sm:$0xff]
  %v1072 = vld [vmem:[%s185 + $0x259] sm:$0xff]
  %v1073 = vld [vmem:[%s185 + $0x261] sm:$0xff]
  %v1074 = vld [vmem:[%s185 + $0x271] sm:$0xff]
  %v1075 = vld [vmem:[%s185 + $0x279] sm:$0xff]
  %v1076 = vld [vmem:[%s185 + $0x289] sm:$0xff]
  %v1077 = vld [vmem:[%s185 + $0x291] sm:$0xff]
  %v1078 = vld [vmem:[%s185 + $0x2a1] sm:$0xff]
  %v1079 = vld [vmem:[%s185 + $0x2a9] sm:$0xff]
  %v1080 = vld [vmem:[%s185 + $0x2b9] sm:$0xff]
  %v1081 = vld [vmem:[%s185 + $0x2c1] sm:$0xff]
  %v1082 = vld [vmem:[%s185 + $0x2d1] sm:$0xff]
  %v1083 = vld [vmem:[%s185 + $0x2d9] sm:$0xff]
  %v1084 = vld [vmem:[%s185 + $0x2e9] sm:$0xff]
  %v1085 = vld [vmem:[%s185 + $0x2f1] sm:$0xff]
  %v1086 = vld [vmem:[%s185 + $0x301] sm:$0xff]
  %v1087 = vld [vmem:[%s185 + $0x309] sm:$0xff]
  %v1088 = vld [vmem:[%s185 + $0x319] sm:$0xff]
  %v1089 = vld [vmem:[%s185 + $0x321] sm:$0xff]
  %v1090 = vld [vmem:[%s1 + $0x4] sm:$0x1]
  %v1091 = vperm.slane %v1090, 0
  %v1092 = vmul.f32 %v1026, %v1091
  %v1093 = vmul.f32 %v1027, %v1091
  %v1094 = vmul.f32 %v1028, %v1091
  %v1095 = vmul.f32 %v1029, %v1091
  %v1096 = vmul.f32 %v1030, %v1091
  %v1097 = vmul.f32 %v1031, %v1091
  %v1098 = vmul.f32 %v1032, %v1091
  %v1099 = vmul.f32 %v1033, %v1091
  %v1100 = vmul.f32 %v1034, %v1091
  %v1101 = vmul.f32 %v1035, %v1091
  %v1102 = vmul.f32 %v1036, %v1091
  %v1103 = vmul.f32 %v1037, %v1091
  %v1104 = vmul.f32 %v1038, %v1091
  %v1105 = vmul.f32 %v1039, %v1091
  %v1106 = vmul.f32 %v1040, %v1091
  %v1107 = vmul.f32 %v1041, %v1091
  %v1108 = vmul.f32 %v1042, %v1091
  %v1109 = vmul.f32 %v1043, %v1091
  %v1110 = vmul.f32 %v1044, %v1091
  %v1111 = vmul.f32 %v1045, %v1091
  %v1112 = vmul.f32 %v1046, %v1091
  %v1113 = vmul.f32 %v1047, %v1091
  %v1114 = vmul.f32 %v1048, %v1091
  %v1115 = vmul.f32 %v1049, %v1091
  %v1116 = vmul.f32 %v1050, %v1091
  %v1117 = vmul.f32 %v1051, %v1091
  %v1118 = vmul.f32 %v1052, %v1091
  %v1119 = vmul.f32 %v1053, %v1091
  %v1120 = vmul.f32 %v1054, %v1091
  %v1121 = vmul.f32 %v1055, %v1091
  %v1122 = vmul.f32 %v1056, %v1091
  %v1123 = vmul.f32 %v1057, %v1091
  %v1124 = vmul.f32 %v1058, %v1091
  %v1125 = vmul.f32 %v1059, %v1091
  %v1126 = vmul.f32 %v1060, %v1091
  %v1127 = vmul.f32 %v1061, %v1091
  %v1128 = vmul.f32 %v1062, %v1091
  %v1129 = vmul.f32 %v1063, %v1091
  %v1130 = vmul.f32 %v1064, %v1091
  %v1131 = vmul.f32 %v1065, %v1091
  %v1132 = vmul.f32 %v1066, %v1091
  %v1133 = vmul.f32 %v1067, %v1091
  %v1134 = vmul.f32 %v1068, %v1091
  %v1135 = vmul.f32 %v1069, %v1091
  %v1136 = vmul.f32 %v1070, %v1091
  %v1137 = vmul.f32 %v1071, %v1091
  %v1138 = vmul.f32 %v1072, %v1091
  %v1139 = vmul.f32 %v1073, %v1091
  %v1140 = vmul.f32 %v1074, %v1091
  %v1141 = vmul.f32 %v1075, %v1091
  %v1142 = vmul.f32 %v1076, %v1091
  %v1143 = vmul.f32 %v1077, %v1091
  %v1144 = vmul.f32 %v1078, %v1091
  %v1145 = vmul.f32 %v1079, %v1091
  %v1146 = vmul.f32 %v1080, %v1091
  %v1147 = vmul.f32 %v1081, %v1091
  %v1148 = vmul.f32 %v1082, %v1091
  %v1149 = vmul.f32 %v1083, %v1091
  %v1150 = vmul.f32 %v1084, %v1091
  %v1151 = vmul.f32 %v1085, %v1091
  %v1152 = vmul.f32 %v1086, %v1091
  %v1153 = vmul.f32 %v1087, %v1091
  %v1154 = vmul.f32 %v1088, %v1091
  %v1155 = vmul.f32 %v1089, %v1091
  %v1156 = vadd.f32 %v962, %v1092
  %v1157 = vadd.f32 %v963, %v1093
  %v1158 = vadd.f32 %v964, %v1094
  %v1159 = vadd.f32 %v965, %v1095
  %v1160 = vadd.f32 %v966, %v1096
  %v1161 = vadd.f32 %v967, %v1097
  %v1162 = vadd.f32 %v968, %v1098
  %v1163 = vadd.f32 %v969, %v1099
  %v1164 = vadd.f32 %v970, %v1100
  %v1165 = vadd.f32 %v971, %v1101
  %v1166 = vadd.f32 %v972, %v1102
  %v1167 = vadd.f32 %v973, %v1103
  %v1168 = vadd.f32 %v974, %v1104
  %v1169 = vadd.f32 %v975, %v1105
  %v1170 = vadd.f32 %v976, %v1106
  %v1171 = vadd.f32 %v977, %v1107
  %v1172 = vadd.f32 %v978, %v1108
  %v1173 = vadd.f32 %v979, %v1109
  %v1174 = vadd.f32 %v980, %v1110
  %v1175 = vadd.f32 %v981, %v1111
  %v1176 = vadd.f32 %v982, %v1112
  %v1177 = vadd.f32 %v983, %v1113
  %v1178 = vadd.f32 %v984, %v1114
  %v1179 = vadd.f32 %v985, %v1115
  %v1180 = vadd.f32 %v986, %v1116
  %v1181 = vadd.f32 %v987, %v1117
  %v1182 = vadd.f32 %v988, %v1118
  %v1183 = vadd.f32 %v989, %v1119
  %v1184 = vadd.f32 %v990, %v1120
  %v1185 = vadd.f32 %v991, %v1121
  %v1186 = vadd.f32 %v992, %v1122
  %v1187 = vadd.f32 %v993, %v1123
  %v1188 = vadd.f32 %v994, %v1124
  %v1189 = vadd.f32 %v995, %v1125
  %v1190 = vadd.f32 %v996, %v1126
  %v1191 = vadd.f32 %v997, %v1127
  %v1192 = vadd.f32 %v998, %v1128
  %v1193 = vadd.f32 %v999, %v1129
  %v1194 = vadd.f32 %v1000, %v1130
  %v1195 = vadd.f32 %v1001, %v1131
  %v1196 = vadd.f32 %v1002, %v1132
  %v1197 = vadd.f32 %v1003, %v1133
  %v1198 = vadd.f32 %v1004, %v1134
  %v1199 = vadd.f32 %v1005, %v1135
  %v1200 = vadd.f32 %v1006, %v1136
  %v1201 = vadd.f32 %v1007, %v1137
  %v1202 = vadd.f32 %v1008, %v1138
  %v1203 = vadd.f32 %v1009, %v1139
  %v1204 = vadd.f32 %v1010, %v1140
  %v1205 = vadd.f32 %v1011, %v1141
  %v1206 = vadd.f32 %v1012, %v1142
  %v1207 = vadd.f32 %v1013, %v1143
  %v1208 = vadd.f32 %v1014, %v1144
  %v1209 = vadd.f32 %v1015, %v1145
  %v1210 = vadd.f32 %v1016, %v1146
  %v1211 = vadd.f32 %v1017, %v1147
  %v1212 = vadd.f32 %v1018, %v1148
  %v1213 = vadd.f32 %v1019, %v1149
  %v1214 = vadd.f32 %v1020, %v1150
  %v1215 = vadd.f32 %v1021, %v1151
  %v1216 = vadd.f32 %v1022, %v1152
  %v1217 = vadd.f32 %v1023, %v1153
  %v1218 = vadd.f32 %v1024, %v1154
  %v1219 = vadd.f32 %v1025, %v1155
  %v1220 = vld [vmem:[%s185 + $0x2] sm:$0xff]
  %v1221 = vld [vmem:[%s185 + $0xa] sm:$0xff]
  %v1222 = vld [vmem:[%s185 + $0x1a] sm:$0xff]
  %v1223 = vld [vmem:[%s185 + $0x22] sm:$0xff]
  %v1224 = vld [vmem:[%s185 + $0x32] sm:$0xff]
  %v1225 = vld [vmem:[%s185 + $0x3a] sm:$0xff]
  %v1226 = vld [vmem:[%s185 + $0x4a] sm:$0xff]
  %v1227 = vld [vmem:[%s185 + $0x52] sm:$0xff]
  %v1228 = vld [vmem:[%s185 + $0x62] sm:$0xff]
  %v1229 = vld [vmem:[%s185 + $0x6a] sm:$0xff]
  %v1230 = vld [vmem:[%s185 + $0x7a] sm:$0xff]
  %v1231 = vld [vmem:[%s185 + $0x82] sm:$0xff]
  %v1232 = vld [vmem:[%s185 + $0x92] sm:$0xff]
  %v1233 = vld [vmem:[%s185 + $0x9a] sm:$0xff]
  %v1234 = vld [vmem:[%s185 + $0xaa] sm:$0xff]
  %v1235 = vld [vmem:[%s185 + $0xb2] sm:$0xff]
  %v1236 = vld [vmem:[%s185 + $0xc2] sm:$0xff]
  %v1237 = vld [vmem:[%s185 + $0xca] sm:$0xff]
  %v1238 = vld [vmem:[%s185 + $0xda] sm:$0xff]
  %v1239 = vld [vmem:[%s185 + $0xe2] sm:$0xff]
  %v1240 = vld [vmem:[%s185 + $0xf2] sm:$0xff]
  %v1241 = vld [vmem:[%s185 + $0xfa] sm:$0xff]
  %v1242 = vld [vmem:[%s185 + $0x10a] sm:$0xff]
  %v1243 = vld [vmem:[%s185 + $0x112] sm:$0xff]
  %v1244 = vld [vmem:[%s185 + $0x122] sm:$0xff]
  %v1245 = vld [vmem:[%s185 + $0x12a] sm:$0xff]
  %v1246 = vld [vmem:[%s185 + $0x13a] sm:$0xff]
  %v1247 = vld [vmem:[%s185 + $0x142] sm:$0xff]
  %v1248 = vld [vmem:[%s185 + $0x152] sm:$0xff]
  %v1249 = vld [vmem:[%s185 + $0x15a] sm:$0xff]
  %v1250 = vld [vmem:[%s185 + $0x16a] sm:$0xff]
  %v1251 = vld [vmem:[%s185 + $0x172] sm:$0xff]
  %v1252 = vld [vmem:[%s185 + $0x1b2] sm:$0xff]
  %v1253 = vld [vmem:[%s185 + $0x1ba] sm:$0xff]
  %v1254 = vld [vmem:[%s185 + $0x1ca] sm:$0xff]
  %v1255 = vld [vmem:[%s185 + $0x1d2] sm:$0xff]
  %v1256 = vld [vmem:[%s185 + $0x1e2] sm:$0xff]
  %v1257 = vld [vmem:[%s185 + $0x1ea] sm:$0xff]
  %v1258 = vld [vmem:[%s185 + $0x1fa] sm:$0xff]
  %v1259 = vld [vmem:[%s185 + $0x202] sm:$0xff]
  %v1260 = vld [vmem:[%s185 + $0x212] sm:$0xff]
  %v1261 = vld [vmem:[%s185 + $0x21a] sm:$0xff]
  %v1262 = vld [vmem:[%s185 + $0x22a] sm:$0xff]
  %v1263 = vld [vmem:[%s185 + $0x232] sm:$0xff]
  %v1264 = vld [vmem:[%s185 + $0x242] sm:$0xff]
  %v1265 = vld [vmem:[%s185 + $0x24a] sm:$0xff]
  %v1266 = vld [vmem:[%s185 + $0x25a] sm:$0xff]
  %v1267 = vld [vmem:[%s185 + $0x262] sm:$0xff]
  %v1268 = vld [vmem:[%s185 + $0x272] sm:$0xff]
  %v1269 = vld [vmem:[%s185 + $0x27a] sm:$0xff]
  %v1270 = vld [vmem:[%s185 + $0x28a] sm:$0xff]
  %v1271 = vld [vmem:[%s185 + $0x292] sm:$0xff]
  %v1272 = vld [vmem:[%s185 + $0x2a2] sm:$0xff]
  %v1273 = vld [vmem:[%s185 + $0x2aa] sm:$0xff]
  %v1274 = vld [vmem:[%s185 + $0x2ba] sm:$0xff]
  %v1275 = vld [vmem:[%s185 + $0x2c2] sm:$0xff]
  %v1276 = vld [vmem:[%s185 + $0x2d2] sm:$0xff]
  %v1277 = vld [vmem:[%s185 + $0x2da] sm:$0xff]
  %v1278 = vld [vmem:[%s185 + $0x2ea] sm:$0xff]
  %v1279 = vld [vmem:[%s185 + $0x2f2] sm:$0xff]
  %v1280 = vld [vmem:[%s185 + $0x302] sm:$0xff]
  %v1281 = vld [vmem:[%s185 + $0x30a] sm:$0xff]
  %v1282 = vld [vmem:[%s185 + $0x31a] sm:$0xff]
  %v1283 = vld [vmem:[%s185 + $0x322] sm:$0xff]
  %v1284 = vld [vmem:[%s1 + $0x5] sm:$0x1]
  %v1285 = vperm.slane %v1284, 0
  %v1286 = vmul.f32 %v1220, %v1285
  %v1287 = vmul.f32 %v1221, %v1285
  %v1288 = vmul.f32 %v1222, %v1285
  %v1289 = vmul.f32 %v1223, %v1285
  %v1290 = vmul.f32 %v1224, %v1285
  %v1291 = vmul.f32 %v1225, %v1285
  %v1292 = vmul.f32 %v1226, %v1285
  %v1293 = vmul.f32 %v1227, %v1285
  %v1294 = vmul.f32 %v1228, %v1285
  %v1295 = vmul.f32 %v1229, %v1285
  %v1296 = vmul.f32 %v1230, %v1285
  %v1297 = vmul.f32 %v1231, %v1285
  %v1298 = vmul.f32 %v1232, %v1285
  %v1299 = vmul.f32 %v1233, %v1285
  %v1300 = vmul.f32 %v1234, %v1285
  %v1301 = vmul.f32 %v1235, %v1285
  %v1302 = vmul.f32 %v1236, %v1285
  %v1303 = vmul.f32 %v1237, %v1285
  %v1304 = vmul.f32 %v1238, %v1285
  %v1305 = vmul.f32 %v1239, %v1285
  %v1306 = vmul.f32 %v1240, %v1285
  %v1307 = vmul.f32 %v1241, %v1285
  %v1308 = vmul.f32 %v1242, %v1285
  %v1309 = vmul.f32 %v1243, %v1285
  %v1310 = vmul.f32 %v1244, %v1285
  %v1311 = vmul.f32 %v1245, %v1285
  %v1312 = vmul.f32 %v1246, %v1285
  %v1313 = vmul.f32 %v1247, %v1285
  %v1314 = vmul.f32 %v1248, %v1285
  %v1315 = vmul.f32 %v1249, %v1285
  %v1316 = vmul.f32 %v1250, %v1285
  %v1317 = vmul.f32 %v1251, %v1285
  %v1318 = vmul.f32 %v1252, %v1285
  %v1319 = vmul.f32 %v1253, %v1285
  %v1320 = vmul.f32 %v1254, %v1285
  %v1321 = vmul.f32 %v1255, %v1285
  %v1322 = vmul.f32 %v1256, %v1285
  %v1323 = vmul.f32 %v1257, %v1285
  %v1324 = vmul.f32 %v1258, %v1285
  %v1325 = vmul.f32 %v1259, %v1285
  %v1326 = vmul.f32 %v1260, %v1285
  %v1327 = vmul.f32 %v1261, %v1285
  %v1328 = vmul.f32 %v1262, %v1285
  %v1329 = vmul.f32 %v1263, %v1285
  %v1330 = vmul.f32 %v1264, %v1285
  %v1331 = vmul.f32 %v1265, %v1285
  %v1332 = vmul.f32 %v1266, %v1285
  %v1333 = vmul.f32 %v1267, %v1285
  %v1334 = vmul.f32 %v1268, %v1285
  %v1335 = vmul.f32 %v1269, %v1285
  %v1336 = vmul.f32 %v1270, %v1285
  %v1337 = vmul.f32 %v1271, %v1285
  %v1338 = vmul.f32 %v1272, %v1285
  %v1339 = vmul.f32 %v1273, %v1285
  %v1340 = vmul.f32 %v1274, %v1285
  %v1341 = vmul.f32 %v1275, %v1285
  %v1342 = vmul.f32 %v1276, %v1285
  %v1343 = vmul.f32 %v1277, %v1285
  %v1344 = vmul.f32 %v1278, %v1285
  %v1345 = vmul.f32 %v1279, %v1285
  %v1346 = vmul.f32 %v1280, %v1285
  %v1347 = vmul.f32 %v1281, %v1285
  %v1348 = vmul.f32 %v1282, %v1285
  %v1349 = vmul.f32 %v1283, %v1285
  %v1350 = vadd.f32 %v1156, %v1286
  %v1351 = vadd.f32 %v1157, %v1287
  %v1352 = vadd.f32 %v1158, %v1288
  %v1353 = vadd.f32 %v1159, %v1289
  %v1354 = vadd.f32 %v1160, %v1290
  %v1355 = vadd.f32 %v1161, %v1291
  %v1356 = vadd.f32 %v1162, %v1292
  %v1357 = vadd.f32 %v1163, %v1293
  %v1358 = vadd.f32 %v1164, %v1294
  %v1359 = vadd.f32 %v1165, %v1295
  %v1360 = vadd.f32 %v1166, %v1296
  %v1361 = vadd.f32 %v1167, %v1297
  %v1362 = vadd.f32 %v1168, %v1298
  %v1363 = vadd.f32 %v1169, %v1299
  %v1364 = vadd.f32 %v1170, %v1300
  %v1365 = vadd.f32 %v1171, %v1301
  %v1366 = vadd.f32 %v1172, %v1302
  %v1367 = vadd.f32 %v1173, %v1303
  %v1368 = vadd.f32 %v1174, %v1304
  %v1369 = vadd.f32 %v1175, %v1305
  %v1370 = vadd.f32 %v1176, %v1306
  %v1371 = vadd.f32 %v1177, %v1307
  %v1372 = vadd.f32 %v1178, %v1308
  %v1373 = vadd.f32 %v1179, %v1309
  %v1374 = vadd.f32 %v1180, %v1310
  %v1375 = vadd.f32 %v1181, %v1311
  %v1376 = vadd.f32 %v1182, %v1312
  %v1377 = vadd.f32 %v1183, %v1313
  %v1378 = vadd.f32 %v1184, %v1314
  %v1379 = vadd.f32 %v1185, %v1315
  %v1380 = vadd.f32 %v1186, %v1316
  %v1381 = vadd.f32 %v1187, %v1317
  %v1382 = vadd.f32 %v1188, %v1318
  %v1383 = vadd.f32 %v1189, %v1319
  %v1384 = vadd.f32 %v1190, %v1320
  %v1385 = vadd.f32 %v1191, %v1321
  %v1386 = vadd.f32 %v1192, %v1322
  %v1387 = vadd.f32 %v1193, %v1323
  %v1388 = vadd.f32 %v1194, %v1324
  %v1389 = vadd.f32 %v1195, %v1325
  %v1390 = vadd.f32 %v1196, %v1326
  %v1391 = vadd.f32 %v1197, %v1327
  %v1392 = vadd.f32 %v1198, %v1328
  %v1393 = vadd.f32 %v1199, %v1329
  %v1394 = vadd.f32 %v1200, %v1330
  %v1395 = vadd.f32 %v1201, %v1331
  %v1396 = vadd.f32 %v1202, %v1332
  %v1397 = vadd.f32 %v1203, %v1333
  %v1398 = vadd.f32 %v1204, %v1334
  %v1399 = vadd.f32 %v1205, %v1335
  %v1400 = vadd.f32 %v1206, %v1336
  %v1401 = vadd.f32 %v1207, %v1337
  %v1402 = vadd.f32 %v1208, %v1338
  %v1403 = vadd.f32 %v1209, %v1339
  %v1404 = vadd.f32 %v1210, %v1340
  %v1405 = vadd.f32 %v1211, %v1341
  %v1406 = vadd.f32 %v1212, %v1342
  %v1407 = vadd.f32 %v1213, %v1343
  %v1408 = vadd.f32 %v1214, %v1344
  %v1409 = vadd.f32 %v1215, %v1345
  %v1410 = vadd.f32 %v1216, %v1346
  %v1411 = vadd.f32 %v1217, %v1347
  %v1412 = vadd.f32 %v1218, %v1348
  %v1413 = vadd.f32 %v1219, %v1349
  %s1414 = scalar_lea.vmem [#allocation2], 48
  %v1415 = vld [vmem:[%s1414] sm:$0xff]
  %v1416 = vld [vmem:[%s1414 + $0x8] sm:$0xff]
  %v1417 = vld [vmem:[%s1414 + $0x18] sm:$0xff]
  %v1418 = vld [vmem:[%s1414 + $0x20] sm:$0xff]
  %v1419 = vld [vmem:[%s1414 + $0x30] sm:$0xff]
  %v1420 = vld [vmem:[%s1414 + $0x38] sm:$0xff]
  %v1421 = vld [vmem:[%s1414 + $0x48] sm:$0xff]
  %v1422 = vld [vmem:[%s1414 + $0x50] sm:$0xff]
  %v1423 = vld [vmem:[%s1414 + $0x60] sm:$0xff]
  %v1424 = vld [vmem:[%s1414 + $0x68] sm:$0xff]
  %v1425 = vld [vmem:[%s1414 + $0x78] sm:$0xff]
  %v1426 = vld [vmem:[%s1414 + $0x80] sm:$0xff]
  %v1427 = vld [vmem:[%s1414 + $0x90] sm:$0xff]
  %v1428 = vld [vmem:[%s1414 + $0x98] sm:$0xff]
  %v1429 = vld [vmem:[%s1414 + $0xa8] sm:$0xff]
  %v1430 = vld [vmem:[%s1414 + $0xb0] sm:$0xff]
  %v1431 = vld [vmem:[%s1414 + $0xc0] sm:$0xff]
  %v1432 = vld [vmem:[%s1414 + $0xc8] sm:$0xff]
  %v1433 = vld [vmem:[%s1414 + $0xd8] sm:$0xff]
  %v1434 = vld [vmem:[%s1414 + $0xe0] sm:$0xff]
  %v1435 = vld [vmem:[%s1414 + $0xf0] sm:$0xff]
  %v1436 = vld [vmem:[%s1414 + $0xf8] sm:$0xff]
  %v1437 = vld [vmem:[%s1414 + $0x108] sm:$0xff]
  %v1438 = vld [vmem:[%s1414 + $0x110] sm:$0xff]
  %v1439 = vld [vmem:[%s1414 + $0x120] sm:$0xff]
  %v1440 = vld [vmem:[%s1414 + $0x128] sm:$0xff]
  %v1441 = vld [vmem:[%s1414 + $0x138] sm:$0xff]
  %v1442 = vld [vmem:[%s1414 + $0x140] sm:$0xff]
  %v1443 = vld [vmem:[%s1414 + $0x150] sm:$0xff]
  %v1444 = vld [vmem:[%s1414 + $0x158] sm:$0xff]
  %v1445 = vld [vmem:[%s1414 + $0x168] sm:$0xff]
  %v1446 = vld [vmem:[%s1414 + $0x170] sm:$0xff]
  %v1447 = vld [vmem:[%s1414 + $0x1b0] sm:$0xff]
  %v1448 = vld [vmem:[%s1414 + $0x1b8] sm:$0xff]
  %v1449 = vld [vmem:[%s1414 + $0x1c8] sm:$0xff]
  %v1450 = vld [vmem:[%s1414 + $0x1d0] sm:$0xff]
  %v1451 = vld [vmem:[%s1414 + $0x1e0] sm:$0xff]
  %v1452 = vld [vmem:[%s1414 + $0x1e8] sm:$0xff]
  %v1453 = vld [vmem:[%s1414 + $0x1f8] sm:$0xff]
  %v1454 = vld [vmem:[%s1414 + $0x200] sm:$0xff]
  %v1455 = vld [vmem:[%s1414 + $0x210] sm:$0xff]
  %v1456 = vld [vmem:[%s1414 + $0x218] sm:$0xff]
  %v1457 = vld [vmem:[%s1414 + $0x228] sm:$0xff]
  %v1458 = vld [vmem:[%s1414 + $0x230] sm:$0xff]
  %v1459 = vld [vmem:[%s1414 + $0x240] sm:$0xff]
  %v1460 = vld [vmem:[%s1414 + $0x248] sm:$0xff]
  %v1461 = vld [vmem:[%s1414 + $0x258] sm:$0xff]
  %v1462 = vld [vmem:[%s1414 + $0x260] sm:$0xff]
  %v1463 = vld [vmem:[%s1414 + $0x270] sm:$0xff]
  %v1464 = vld [vmem:[%s1414 + $0x278] sm:$0xff]
  %v1465 = vld [vmem:[%s1414 + $0x288] sm:$0xff]
  %v1466 = vld [vmem:[%s1414 + $0x290] sm:$0xff]
  %v1467 = vld [vmem:[%s1414 + $0x2a0] sm:$0xff]
  %v1468 = vld [vmem:[%s1414 + $0x2a8] sm:$0xff]
  %v1469 = vld [vmem:[%s1414 + $0x2b8] sm:$0xff]
  %v1470 = vld [vmem:[%s1414 + $0x2c0] sm:$0xff]
  %v1471 = vld [vmem:[%s1414 + $0x2d0] sm:$0xff]
  %v1472 = vld [vmem:[%s1414 + $0x2d8] sm:$0xff]
  %v1473 = vld [vmem:[%s1414 + $0x2e8] sm:$0xff]
  %v1474 = vld [vmem:[%s1414 + $0x2f0] sm:$0xff]
  %v1475 = vld [vmem:[%s1414 + $0x300] sm:$0xff]
  %v1476 = vld [vmem:[%s1414 + $0x308] sm:$0xff]
  %v1477 = vld [vmem:[%s1414 + $0x318] sm:$0xff]
  %v1478 = vld [vmem:[%s1414 + $0x320] sm:$0xff]
  %v1479 = vld [vmem:[%s1 + $0x6] sm:$0x1]
  %v1480 = vperm.slane %v1479, 0
  %v1481 = vmul.f32 %v1415, %v1480
  %v1482 = vmul.f32 %v1416, %v1480
  %v1483 = vmul.f32 %v1417, %v1480
  %v1484 = vmul.f32 %v1418, %v1480
  %v1485 = vmul.f32 %v1419, %v1480
  %v1486 = vmul.f32 %v1420, %v1480
  %v1487 = vmul.f32 %v1421, %v1480
  %v1488 = vmul.f32 %v1422, %v1480
  %v1489 = vmul.f32 %v1423, %v1480
  %v1490 = vmul.f32 %v1424, %v1480
  %v1491 = vmul.f32 %v1425, %v1480
  %v1492 = vmul.f32 %v1426, %v1480
  %v1493 = vmul.f32 %v1427, %v1480
  %v1494 = vmul.f32 %v1428, %v1480
  %v1495 = vmul.f32 %v1429, %v1480
  %v1496 = vmul.f32 %v1430, %v1480
  %v1497 = vmul.f32 %v1431, %v1480
  %v1498 = vmul.f32 %v1432, %v1480
  %v1499 = vmul.f32 %v1433, %v1480
  %v1500 = vmul.f32 %v1434, %v1480
  %v1501 = vmul.f32 %v1435, %v1480
  %v1502 = vmul.f32 %v1436, %v1480
  %v1503 = vmul.f32 %v1437, %v1480
  %v1504 = vmul.f32 %v1438, %v1480
  %v1505 = vmul.f32 %v1439, %v1480
  %v1506 = vmul.f32 %v1440, %v1480
  %v1507 = vmul.f32 %v1441, %v1480
  %v1508 = vmul.f32 %v1442, %v1480
  %v1509 = vmul.f32 %v1443, %v1480
  %v1510 = vmul.f32 %v1444, %v1480
  %v1511 = vmul.f32 %v1445, %v1480
  %v1512 = vmul.f32 %v1446, %v1480
  %v1513 = vmul.f32 %v1447, %v1480
  %v1514 = vmul.f32 %v1448, %v1480
  %v1515 = vmul.f32 %v1449, %v1480
  %v1516 = vmul.f32 %v1450, %v1480
  %v1517 = vmul.f32 %v1451, %v1480
  %v1518 = vmul.f32 %v1452, %v1480
  %v1519 = vmul.f32 %v1453, %v1480
  %v1520 = vmul.f32 %v1454, %v1480
  %v1521 = vmul.f32 %v1455, %v1480
  %v1522 = vmul.f32 %v1456, %v1480
  %v1523 = vmul.f32 %v1457, %v1480
  %v1524 = vmul.f32 %v1458, %v1480
  %v1525 = vmul.f32 %v1459, %v1480
  %v1526 = vmul.f32 %v1460, %v1480
  %v1527 = vmul.f32 %v1461, %v1480
  %v1528 = vmul.f32 %v1462, %v1480
  %v1529 = vmul.f32 %v1463, %v1480
  %v1530 = vmul.f32 %v1464, %v1480
  %v1531 = vmul.f32 %v1465, %v1480
  %v1532 = vmul.f32 %v1466, %v1480
  %v1533 = vmul.f32 %v1467, %v1480
  %v1534 = vmul.f32 %v1468, %v1480
  %v1535 = vmul.f32 %v1469, %v1480
  %v1536 = vmul.f32 %v1470, %v1480
  %v1537 = vmul.f32 %v1471, %v1480
  %v1538 = vmul.f32 %v1472, %v1480
  %v1539 = vmul.f32 %v1473, %v1480
  %v1540 = vmul.f32 %v1474, %v1480
  %v1541 = vmul.f32 %v1475, %v1480
  %v1542 = vmul.f32 %v1476, %v1480
  %v1543 = vmul.f32 %v1477, %v1480
  %v1544 = vmul.f32 %v1478, %v1480
  %v1545 = vadd.f32 %v1350, %v1481
  %v1546 = vadd.f32 %v1351, %v1482
  %v1547 = vadd.f32 %v1352, %v1483
  %v1548 = vadd.f32 %v1353, %v1484
  %v1549 = vadd.f32 %v1354, %v1485
  %v1550 = vadd.f32 %v1355, %v1486
  %v1551 = vadd.f32 %v1356, %v1487
  %v1552 = vadd.f32 %v1357, %v1488
  %v1553 = vadd.f32 %v1358, %v1489
  %v1554 = vadd.f32 %v1359, %v1490
  %v1555 = vadd.f32 %v1360, %v1491
  %v1556 = vadd.f32 %v1361, %v1492
  %v1557 = vadd.f32 %v1362, %v1493
  %v1558 = vadd.f32 %v1363, %v1494
  %v1559 = vadd.f32 %v1364, %v1495
  %v1560 = vadd.f32 %v1365, %v1496
  %v1561 = vadd.f32 %v1366, %v1497
  %v1562 = vadd.f32 %v1367, %v1498
  %v1563 = vadd.f32 %v1368, %v1499
  %v1564 = vadd.f32 %v1369, %v1500
  %v1565 = vadd.f32 %v1370, %v1501
  %v1566 = vadd.f32 %v1371, %v1502
  %v1567 = vadd.f32 %v1372, %v1503
  %v1568 = vadd.f32 %v1373, %v1504
  %v1569 = vadd.f32 %v1374, %v1505
  %v1570 = vadd.f32 %v1375, %v1506
  %v1571 = vadd.f32 %v1376, %v1507
  %v1572 = vadd.f32 %v1377, %v1508
  %v1573 = vadd.f32 %v1378, %v1509
  %v1574 = vadd.f32 %v1379, %v1510
  %v1575 = vadd.f32 %v1380, %v1511
  %v1576 = vadd.f32 %v1381, %v1512
  %v1577 = vadd.f32 %v1382, %v1513
  %v1578 = vadd.f32 %v1383, %v1514
  %v1579 = vadd.f32 %v1384, %v1515
  %v1580 = vadd.f32 %v1385, %v1516
  %v1581 = vadd.f32 %v1386, %v1517
  %v1582 = vadd.f32 %v1387, %v1518
  %v1583 = vadd.f32 %v1388, %v1519
  %v1584 = vadd.f32 %v1389, %v1520
  %v1585 = vadd.f32 %v1390, %v1521
  %v1586 = vadd.f32 %v1391, %v1522
  %v1587 = vadd.f32 %v1392, %v1523
  %v1588 = vadd.f32 %v1393, %v1524
  %v1589 = vadd.f32 %v1394, %v1525
  %v1590 = vadd.f32 %v1395, %v1526
  %v1591 = vadd.f32 %v1396, %v1527
  %v1592 = vadd.f32 %v1397, %v1528
  %v1593 = vadd.f32 %v1398, %v1529
  %v1594 = vadd.f32 %v1399, %v1530
  %v1595 = vadd.f32 %v1400, %v1531
  %v1596 = vadd.f32 %v1401, %v1532
  %v1597 = vadd.f32 %v1402, %v1533
  %v1598 = vadd.f32 %v1403, %v1534
  %v1599 = vadd.f32 %v1404, %v1535
  %v1600 = vadd.f32 %v1405, %v1536
  %v1601 = vadd.f32 %v1406, %v1537
  %v1602 = vadd.f32 %v1407, %v1538
  %v1603 = vadd.f32 %v1408, %v1539
  %v1604 = vadd.f32 %v1409, %v1540
  %v1605 = vadd.f32 %v1410, %v1541
  %v1606 = vadd.f32 %v1411, %v1542
  %v1607 = vadd.f32 %v1412, %v1543
  %v1608 = vadd.f32 %v1413, %v1544
  %v1609 = vld [vmem:[%s1414 + $0x1] sm:$0xff]
  %v1610 = vld [vmem:[%s1414 + $0x9] sm:$0xff]
  %v1611 = vld [vmem:[%s1414 + $0x19] sm:$0xff]
  %v1612 = vld [vmem:[%s1414 + $0x21] sm:$0xff]
  %v1613 = vld [vmem:[%s1414 + $0x31] sm:$0xff]
  %v1614 = vld [vmem:[%s1414 + $0x39] sm:$0xff]
  %v1615 = vld [vmem:[%s1414 + $0x49] sm:$0xff]
  %v1616 = vld [vmem:[%s1414 + $0x51] sm:$0xff]
  %v1617 = vld [vmem:[%s1414 + $0x61] sm:$0xff]
  %v1618 = vld [vmem:[%s1414 + $0x69] sm:$0xff]
  %v1619 = vld [vmem:[%s1414 + $0x79] sm:$0xff]
  %v1620 = vld [vmem:[%s1414 + $0x81] sm:$0xff]
  %v1621 = vld [vmem:[%s1414 + $0x91] sm:$0xff]
  %v1622 = vld [vmem:[%s1414 + $0x99] sm:$0xff]
  %v1623 = vld [vmem:[%s1414 + $0xa9] sm:$0xff]
  %v1624 = vld [vmem:[%s1414 + $0xb1] sm:$0xff]
  %v1625 = vld [vmem:[%s1414 + $0xc1] sm:$0xff]
  %v1626 = vld [vmem:[%s1414 + $0xc9] sm:$0xff]
  %v1627 = vld [vmem:[%s1414 + $0xd9] sm:$0xff]
  %v1628 = vld [vmem:[%s1414 + $0xe1] sm:$0xff]
  %v1629 = vld [vmem:[%s1414 + $0xf1] sm:$0xff]
  %v1630 = vld [vmem:[%s1414 + $0xf9] sm:$0xff]
  %v1631 = vld [vmem:[%s1414 + $0x109] sm:$0xff]
  %v1632 = vld [vmem:[%s1414 + $0x111] sm:$0xff]
  %v1633 = vld [vmem:[%s1414 + $0x121] sm:$0xff]
  %v1634 = vld [vmem:[%s1414 + $0x129] sm:$0xff]
  %v1635 = vld [vmem:[%s1414 + $0x139] sm:$0xff]
  %v1636 = vld [vmem:[%s1414 + $0x141] sm:$0xff]
  %v1637 = vld [vmem:[%s1414 + $0x151] sm:$0xff]
  %v1638 = vld [vmem:[%s1414 + $0x159] sm:$0xff]
  %v1639 = vld [vmem:[%s1414 + $0x169] sm:$0xff]
  %v1640 = vld [vmem:[%s1414 + $0x171] sm:$0xff]
  %v1641 = vld [vmem:[%s1414 + $0x1b1] sm:$0xff]
  %v1642 = vld [vmem:[%s1414 + $0x1b9] sm:$0xff]
  %v1643 = vld [vmem:[%s1414 + $0x1c9] sm:$0xff]
  %v1644 = vld [vmem:[%s1414 + $0x1d1] sm:$0xff]
  %v1645 = vld [vmem:[%s1414 + $0x1e1] sm:$0xff]
  %v1646 = vld [vmem:[%s1414 + $0x1e9] sm:$0xff]
  %v1647 = vld [vmem:[%s1414 + $0x1f9] sm:$0xff]
  %v1648 = vld [vmem:[%s1414 + $0x201] sm:$0xff]
  %v1649 = vld [vmem:[%s1414 + $0x211] sm:$0xff]
  %v1650 = vld [vmem:[%s1414 + $0x219] sm:$0xff]
  %v1651 = vld [vmem:[%s1414 + $0x229] sm:$0xff]
  %v1652 = vld [vmem:[%s1414 + $0x231] sm:$0xff]
  %v1653 = vld [vmem:[%s1414 + $0x241] sm:$0xff]
  %v1654 = vld [vmem:[%s1414 + $0x249] sm:$0xff]
  %v1655 = vld [vmem:[%s1414 + $0x259] sm:$0xff]
  %v1656 = vld [vmem:[%s1414 + $0x261] sm:$0xff]
  %v1657 = vld [vmem:[%s1414 + $0x271] sm:$0xff]
  %v1658 = vld [vmem:[%s1414 + $0x279] sm:$0xff]
  %v1659 = vld [vmem:[%s1414 + $0x289] sm:$0xff]
  %v1660 = vld [vmem:[%s1414 + $0x291] sm:$0xff]
  %v1661 = vld [vmem:[%s1414 + $0x2a1] sm:$0xff]
  %v1662 = vld [vmem:[%s1414 + $0x2a9] sm:$0xff]
  %v1663 = vld [vmem:[%s1414 + $0x2b9] sm:$0xff]
  %v1664 = vld [vmem:[%s1414 + $0x2c1] sm:$0xff]
  %v1665 = vld [vmem:[%s1414 + $0x2d1] sm:$0xff]
  %v1666 = vld [vmem:[%s1414 + $0x2d9] sm:$0xff]
  %v1667 = vld [vmem:[%s1414 + $0x2e9] sm:$0xff]
  %v1668 = vld [vmem:[%s1414 + $0x2f1] sm:$0xff]
  %v1669 = vld [vmem:[%s1414 + $0x301] sm:$0xff]
  %v1670 = vld [vmem:[%s1414 + $0x309] sm:$0xff]
  %v1671 = vld [vmem:[%s1414 + $0x319] sm:$0xff]
  %v1672 = vld [vmem:[%s1414 + $0x321] sm:$0xff]
  %v1673 = vld [vmem:[%s1 + $0x7] sm:$0x1]
  %v1674 = vperm.slane %v1673, 0
  %v1675 = vmul.f32 %v1609, %v1674
  %v1676 = vmul.f32 %v1610, %v1674
  %v1677 = vmul.f32 %v1611, %v1674
  %v1678 = vmul.f32 %v1612, %v1674
  %v1679 = vmul.f32 %v1613, %v1674
  %v1680 = vmul.f32 %v1614, %v1674
  %v1681 = vmul.f32 %v1615, %v1674
  %v1682 = vmul.f32 %v1616, %v1674
  %v1683 = vmul.f32 %v1617, %v1674
  %v1684 = vmul.f32 %v1618, %v1674
  %v1685 = vmul.f32 %v1619, %v1674
  %v1686 = vmul.f32 %v1620, %v1674
  %v1687 = vmul.f32 %v1621, %v1674
  %v1688 = vmul.f32 %v1622, %v1674
  %v1689 = vmul.f32 %v1623, %v1674
  %v1690 = vmul.f32 %v1624, %v1674
  %v1691 = vmul.f32 %v1625, %v1674
  %v1692 = vmul.f32 %v1626, %v1674
  %v1693 = vmul.f32 %v1627, %v1674
  %v1694 = vmul.f32 %v1628, %v1674
  %v1695 = vmul.f32 %v1629, %v1674
  %v1696 = vmul.f32 %v1630, %v1674
  %v1697 = vmul.f32 %v1631, %v1674
  %v1698 = vmul.f32 %v1632, %v1674
  %v1699 = vmul.f32 %v1633, %v1674
  %v1700 = vmul.f32 %v1634, %v1674
  %v1701 = vmul.f32 %v1635, %v1674
  %v1702 = vmul.f32 %v1636, %v1674
  %v1703 = vmul.f32 %v1637, %v1674
  %v1704 = vmul.f32 %v1638, %v1674
  %v1705 = vmul.f32 %v1639, %v1674
  %v1706 = vmul.f32 %v1640, %v1674
  %v1707 = vmul.f32 %v1641, %v1674
  %v1708 = vmul.f32 %v1642, %v1674
  %v1709 = vmul.f32 %v1643, %v1674
  %v1710 = vmul.f32 %v1644, %v1674
  %v1711 = vmul.f32 %v1645, %v1674
  %v1712 = vmul.f32 %v1646, %v1674
  %v1713 = vmul.f32 %v1647, %v1674
  %v1714 = vmul.f32 %v1648, %v1674
  %v1715 = vmul.f32 %v1649, %v1674
  %v1716 = vmul.f32 %v1650, %v1674
  %v1717 = vmul.f32 %v1651, %v1674
  %v1718 = vmul.f32 %v1652, %v1674
  %v1719 = vmul.f32 %v1653, %v1674
  %v1720 = vmul.f32 %v1654, %v1674
  %v1721 = vmul.f32 %v1655, %v1674
  %v1722 = vmul.f32 %v1656, %v1674
  %v1723 = vmul.f32 %v1657, %v1674
  %v1724 = vmul.f32 %v1658, %v1674
  %v1725 = vmul.f32 %v1659, %v1674
  %v1726 = vmul.f32 %v1660, %v1674
  %v1727 = vmul.f32 %v1661, %v1674
  %v1728 = vmul.f32 %v1662, %v1674
  %v1729 = vmul.f32 %v1663, %v1674
  %v1730 = vmul.f32 %v1664, %v1674
  %v1731 = vmul.f32 %v1665, %v1674
  %v1732 = vmul.f32 %v1666, %v1674
  %v1733 = vmul.f32 %v1667, %v1674
  %v1734 = vmul.f32 %v1668, %v1674
  %v1735 = vmul.f32 %v1669, %v1674
  %v1736 = vmul.f32 %v1670, %v1674
  %v1737 = vmul.f32 %v1671, %v1674
  %v1738 = vmul.f32 %v1672, %v1674
  %v1739 = vadd.f32 %v1545, %v1675
  %v1740 = vadd.f32 %v1546, %v1676
  %v1741 = vadd.f32 %v1547, %v1677
  %v1742 = vadd.f32 %v1548, %v1678
  %v1743 = vadd.f32 %v1549, %v1679
  %v1744 = vadd.f32 %v1550, %v1680
  %v1745 = vadd.f32 %v1551, %v1681
  %v1746 = vadd.f32 %v1552, %v1682
  %v1747 = vadd.f32 %v1553, %v1683
  %v1748 = vadd.f32 %v1554, %v1684
  %v1749 = vadd.f32 %v1555, %v1685
  %v1750 = vadd.f32 %v1556, %v1686
  %v1751 = vadd.f32 %v1557, %v1687
  %v1752 = vadd.f32 %v1558, %v1688
  %v1753 = vadd.f32 %v1559, %v1689
  %v1754 = vadd.f32 %v1560, %v1690
  %v1755 = vadd.f32 %v1561, %v1691
  %v1756 = vadd.f32 %v1562, %v1692
  %v1757 = vadd.f32 %v1563, %v1693
  %v1758 = vadd.f32 %v1564, %v1694
  %v1759 = vadd.f32 %v1565, %v1695
  %v1760 = vadd.f32 %v1566, %v1696
  %v1761 = vadd.f32 %v1567, %v1697
  %v1762 = vadd.f32 %v1568, %v1698
  %v1763 = vadd.f32 %v1569, %v1699
  %v1764 = vadd.f32 %v1570, %v1700
  %v1765 = vadd.f32 %v1571, %v1701
  %v1766 = vadd.f32 %v1572, %v1702
  %v1767 = vadd.f32 %v1573, %v1703
  %v1768 = vadd.f32 %v1574, %v1704
  %v1769 = vadd.f32 %v1575, %v1705
  %v1770 = vadd.f32 %v1576, %v1706
  %v1771 = vadd.f32 %v1577, %v1707
  %v1772 = vadd.f32 %v1578, %v1708
  %v1773 = vadd.f32 %v1579, %v1709
  %v1774 = vadd.f32 %v1580, %v1710
  %v1775 = vadd.f32 %v1581, %v1711
  %v1776 = vadd.f32 %v1582, %v1712
  %v1777 = vadd.f32 %v1583, %v1713
  %v1778 = vadd.f32 %v1584, %v1714
  %v1779 = vadd.f32 %v1585, %v1715
  %v1780 = vadd.f32 %v1586, %v1716
  %v1781 = vadd.f32 %v1587, %v1717
  %v1782 = vadd.f32 %v1588, %v1718
  %v1783 = vadd.f32 %v1589, %v1719
  %v1784 = vadd.f32 %v1590, %v1720
  %v1785 = vadd.f32 %v1591, %v1721
  %v1786 = vadd.f32 %v1592, %v1722
  %v1787 = vadd.f32 %v1593, %v1723
  %v1788 = vadd.f32 %v1594, %v1724
  %v1789 = vadd.f32 %v1595, %v1725
  %v1790 = vadd.f32 %v1596, %v1726
  %v1791 = vadd.f32 %v1597, %v1727
  %v1792 = vadd.f32 %v1598, %v1728
  %v1793 = vadd.f32 %v1599, %v1729
  %v1794 = vadd.f32 %v1600, %v1730
  %v1795 = vadd.f32 %v1601, %v1731
  %v1796 = vadd.f32 %v1602, %v1732
  %v1797 = vadd.f32 %v1603, %v1733
  %v1798 = vadd.f32 %v1604, %v1734
  %v1799 = vadd.f32 %v1605, %v1735
  %v1800 = vadd.f32 %v1606, %v1736
  %v1801 = vadd.f32 %v1607, %v1737
  %v1802 = vadd.f32 %v1608, %v1738
  %v1803 = vld [vmem:[%s1414 + $0x2] sm:$0xff]
  %v1804 = vld [vmem:[%s1414 + $0xa] sm:$0xff]
  %v1805 = vld [vmem:[%s1414 + $0x1a] sm:$0xff]
  %v1806 = vld [vmem:[%s1414 + $0x22] sm:$0xff]
  %v1807 = vld [vmem:[%s1414 + $0x32] sm:$0xff]
  %v1808 = vld [vmem:[%s1414 + $0x3a] sm:$0xff]
  %v1809 = vld [vmem:[%s1414 + $0x4a] sm:$0xff]
  %v1810 = vld [vmem:[%s1414 + $0x52] sm:$0xff]
  %v1811 = vld [vmem:[%s1414 + $0x62] sm:$0xff]
  %v1812 = vld [vmem:[%s1414 + $0x6a] sm:$0xff]
  %v1813 = vld [vmem:[%s1414 + $0x7a] sm:$0xff]
  %v1814 = vld [vmem:[%s1414 + $0x82] sm:$0xff]
  %v1815 = vld [vmem:[%s1414 + $0x92] sm:$0xff]
  %v1816 = vld [vmem:[%s1414 + $0x9a] sm:$0xff]
  %v1817 = vld [vmem:[%s1414 + $0xaa] sm:$0xff]
  %v1818 = vld [vmem:[%s1414 + $0xb2] sm:$0xff]
  %v1819 = vld [vmem:[%s1414 + $0xc2] sm:$0xff]
  %v1820 = vld [vmem:[%s1414 + $0xca] sm:$0xff]
  %v1821 = vld [vmem:[%s1414 + $0xda] sm:$0xff]
  %v1822 = vld [vmem:[%s1414 + $0xe2] sm:$0xff]
  %v1823 = vld [vmem:[%s1414 + $0xf2] sm:$0xff]
  %v1824 = vld [vmem:[%s1414 + $0xfa] sm:$0xff]
  %v1825 = vld [vmem:[%s1414 + $0x10a] sm:$0xff]
  %v1826 = vld [vmem:[%s1414 + $0x112] sm:$0xff]
  %v1827 = vld [vmem:[%s1414 + $0x122] sm:$0xff]
  %v1828 = vld [vmem:[%s1414 + $0x12a] sm:$0xff]
  %v1829 = vld [vmem:[%s1414 + $0x13a] sm:$0xff]
  %v1830 = vld [vmem:[%s1414 + $0x142] sm:$0xff]
  %v1831 = vld [vmem:[%s1414 + $0x152] sm:$0xff]
  %v1832 = vld [vmem:[%s1414 + $0x15a] sm:$0xff]
  %v1833 = vld [vmem:[%s1414 + $0x16a] sm:$0xff]
  %v1834 = vld [vmem:[%s1414 + $0x172] sm:$0xff]
  %v1835 = vld [vmem:[%s1414 + $0x1b2] sm:$0xff]
  %v1836 = vld [vmem:[%s1414 + $0x1ba] sm:$0xff]
  %v1837 = vld [vmem:[%s1414 + $0x1ca] sm:$0xff]
  %v1838 = vld [vmem:[%s1414 + $0x1d2] sm:$0xff]
  %v1839 = vld [vmem:[%s1414 + $0x1e2] sm:$0xff]
  %v1840 = vld [vmem:[%s1414 + $0x1ea] sm:$0xff]
  %v1841 = vld [vmem:[%s1414 + $0x1fa] sm:$0xff]
  %v1842 = vld [vmem:[%s1414 + $0x202] sm:$0xff]
  %v1843 = vld [vmem:[%s1414 + $0x212] sm:$0xff]
  %v1844 = vld [vmem:[%s1414 + $0x21a] sm:$0xff]
  %v1845 = vld [vmem:[%s1414 + $0x22a] sm:$0xff]
  %v1846 = vld [vmem:[%s1414 + $0x232] sm:$0xff]
  %v1847 = vld [vmem:[%s1414 + $0x242] sm:$0xff]
  %v1848 = vld [vmem:[%s1414 + $0x24a] sm:$0xff]
  %v1849 = vld [vmem:[%s1414 + $0x25a] sm:$0xff]
  %v1850 = vld [vmem:[%s1414 + $0x262] sm:$0xff]
  %v1851 = vld [vmem:[%s1414 + $0x272] sm:$0xff]
  %v1852 = vld [vmem:[%s1414 + $0x27a] sm:$0xff]
  %v1853 = vld [vmem:[%s1414 + $0x28a] sm:$0xff]
  %v1854 = vld [vmem:[%s1414 + $0x292] sm:$0xff]
  %v1855 = vld [vmem:[%s1414 + $0x2a2] sm:$0xff]
  %v1856 = vld [vmem:[%s1414 + $0x2aa] sm:$0xff]
  %v1857 = vld [vmem:[%s1414 + $0x2ba] sm:$0xff]
  %v1858 = vld [vmem:[%s1414 + $0x2c2] sm:$0xff]
  %v1859 = vld [vmem:[%s1414 + $0x2d2] sm:$0xff]
  %v1860 = vld [vmem:[%s1414 + $0x2da] sm:$0xff]
  %v1861 = vld [vmem:[%s1414 + $0x2ea] sm:$0xff]
  %v1862 = vld [vmem:[%s1414 + $0x2f2] sm:$0xff]
  %v1863 = vld [vmem:[%s1414 + $0x302] sm:$0xff]
  %v1864 = vld [vmem:[%s1414 + $0x30a] sm:$0xff]
  %v1865 = vld [vmem:[%s1414 + $0x31a] sm:$0xff]
  %v1866 = vld [vmem:[%s1414 + $0x322] sm:$0xff]
  %v1867 = vld [vmem:[%s1 + $0x8] sm:$0x1]
  %v1868 = vperm.slane %v1867, 0
  %v1869 = vmul.f32 %v1803, %v1868
  %v1870 = vmul.f32 %v1804, %v1868
  %v1871 = vmul.f32 %v1805, %v1868
  %v1872 = vmul.f32 %v1806, %v1868
  %v1873 = vmul.f32 %v1807, %v1868
  %v1874 = vmul.f32 %v1808, %v1868
  %v1875 = vmul.f32 %v1809, %v1868
  %v1876 = vmul.f32 %v1810, %v1868
  %v1877 = vmul.f32 %v1811, %v1868
  %v1878 = vmul.f32 %v1812, %v1868
  %v1879 = vmul.f32 %v1813, %v1868
  %v1880 = vmul.f32 %v1814, %v1868
  %v1881 = vmul.f32 %v1815, %v1868
  %v1882 = vmul.f32 %v1816, %v1868
  %v1883 = vmul.f32 %v1817, %v1868
  %v1884 = vmul.f32 %v1818, %v1868
  %v1885 = vmul.f32 %v1819, %v1868
  %v1886 = vmul.f32 %v1820, %v1868
  %v1887 = vmul.f32 %v1821, %v1868
  %v1888 = vmul.f32 %v1822, %v1868
  %v1889 = vmul.f32 %v1823, %v1868
  %v1890 = vmul.f32 %v1824, %v1868
  %v1891 = vmul.f32 %v1825, %v1868
  %v1892 = vmul.f32 %v1826, %v1868
  %v1893 = vmul.f32 %v1827, %v1868
  %v1894 = vmul.f32 %v1828, %v1868
  %v1895 = vmul.f32 %v1829, %v1868
  %v1896 = vmul.f32 %v1830, %v1868
  %v1897 = vmul.f32 %v1831, %v1868
  %v1898 = vmul.f32 %v1832, %v1868
  %v1899 = vmul.f32 %v1833, %v1868
  %v1900 = vmul.f32 %v1834, %v1868
  %v1901 = vmul.f32 %v1835, %v1868
  %v1902 = vmul.f32 %v1836, %v1868
  %v1903 = vmul.f32 %v1837, %v1868
  %v1904 = vmul.f32 %v1838, %v1868
  %v1905 = vmul.f32 %v1839, %v1868
  %v1906 = vmul.f32 %v1840, %v1868
  %v1907 = vmul.f32 %v1841, %v1868
  %v1908 = vmul.f32 %v1842, %v1868
  %v1909 = vmul.f32 %v1843, %v1868
  %v1910 = vmul.f32 %v1844, %v1868
  %v1911 = vmul.f32 %v1845, %v1868
  %v1912 = vmul.f32 %v1846, %v1868
  %v1913 = vmul.f32 %v1847, %v1868
  %v1914 = vmul.f32 %v1848, %v1868
  %v1915 = vmul.f32 %v1849, %v1868
  %v1916 = vmul.f32 %v1850, %v1868
  %v1917 = vmul.f32 %v1851, %v1868
  %v1918 = vmul.f32 %v1852, %v1868
  %v1919 = vmul.f32 %v1853, %v1868
  %v1920 = vmul.f32 %v1854, %v1868
  %v1921 = vmul.f32 %v1855, %v1868
  %v1922 = vmul.f32 %v1856, %v1868
  %v1923 = vmul.f32 %v1857, %v1868
  %v1924 = vmul.f32 %v1858, %v1868
  %v1925 = vmul.f32 %v1859, %v1868
  %v1926 = vmul.f32 %v1860, %v1868
  %v1927 = vmul.f32 %v1861, %v1868
  %v1928 = vmul.f32 %v1862, %v1868
  %v1929 = vmul.f32 %v1863, %v1868
  %v1930 = vmul.f32 %v1864, %v1868
  %v1931 = vmul.f32 %v1865, %v1868
  %v1932 = vmul.f32 %v1866, %v1868
  %v1933 = vadd.f32 %v1739, %v1869
  %v1934 = vadd.f32 %v1740, %v1870
  %v1935 = vadd.f32 %v1741, %v1871
  %v1936 = vadd.f32 %v1742, %v1872
  %v1937 = vadd.f32 %v1743, %v1873
  %v1938 = vadd.f32 %v1744, %v1874
  %v1939 = vadd.f32 %v1745, %v1875
  %v1940 = vadd.f32 %v1746, %v1876
  %v1941 = vadd.f32 %v1747, %v1877
  %v1942 = vadd.f32 %v1748, %v1878
  %v1943 = vadd.f32 %v1749, %v1879
  %v1944 = vadd.f32 %v1750, %v1880
  %v1945 = vadd.f32 %v1751, %v1881
  %v1946 = vadd.f32 %v1752, %v1882
  %v1947 = vadd.f32 %v1753, %v1883
  %v1948 = vadd.f32 %v1754, %v1884
  %v1949 = vadd.f32 %v1755, %v1885
  %v1950 = vadd.f32 %v1756, %v1886
  %v1951 = vadd.f32 %v1757, %v1887
  %v1952 = vadd.f32 %v1758, %v1888
  %v1953 = vadd.f32 %v1759, %v1889
  %v1954 = vadd.f32 %v1760, %v1890
  %v1955 = vadd.f32 %v1761, %v1891
  %v1956 = vadd.f32 %v1762, %v1892
  %v1957 = vadd.f32 %v1763, %v1893
  %v1958 = vadd.f32 %v1764, %v1894
  %v1959 = vadd.f32 %v1765, %v1895
  %v1960 = vadd.f32 %v1766, %v1896
  %v1961 = vadd.f32 %v1767, %v1897
  %v1962 = vadd.f32 %v1768, %v1898
  %v1963 = vadd.f32 %v1769, %v1899
  %v1964 = vadd.f32 %v1770, %v1900
  %v1965 = vadd.f32 %v1771, %v1901
  %v1966 = vadd.f32 %v1772, %v1902
  %v1967 = vadd.f32 %v1773, %v1903
  %v1968 = vadd.f32 %v1774, %v1904
  %v1969 = vadd.f32 %v1775, %v1905
  %v1970 = vadd.f32 %v1776, %v1906
  %v1971 = vadd.f32 %v1777, %v1907
  %v1972 = vadd.f32 %v1778, %v1908
  %v1973 = vadd.f32 %v1779, %v1909
  %v1974 = vadd.f32 %v1780, %v1910
  %v1975 = vadd.f32 %v1781, %v1911
  %v1976 = vadd.f32 %v1782, %v1912
  %v1977 = vadd.f32 %v1783, %v1913
  %v1978 = vadd.f32 %v1784, %v1914
  %v1979 = vadd.f32 %v1785, %v1915
  %v1980 = vadd.f32 %v1786, %v1916
  %v1981 = vadd.f32 %v1787, %v1917
  %v1982 = vadd.f32 %v1788, %v1918
  %v1983 = vadd.f32 %v1789, %v1919
  %v1984 = vadd.f32 %v1790, %v1920
  %v1985 = vadd.f32 %v1791, %v1921
  %v1986 = vadd.f32 %v1792, %v1922
  %v1987 = vadd.f32 %v1793, %v1923
  %v1988 = vadd.f32 %v1794, %v1924
  %v1989 = vadd.f32 %v1795, %v1925
  %v1990 = vadd.f32 %v1796, %v1926
  %v1991 = vadd.f32 %v1797, %v1927
  %v1992 = vadd.f32 %v1798, %v1928
  %v1993 = vadd.f32 %v1799, %v1929
  %v1994 = vadd.f32 %v1800, %v1930
  %v1995 = vadd.f32 %v1801, %v1931
  %v1996 = vadd.f32 %v1802, %v1932
  %v1997 = vmul.f32 %v1933, %v1933
  %v1998 = vmul.f32 %v1934, %v1934
  %v1999 = vmul.f32 %v1935, %v1935
  %v2000 = vmul.f32 %v1936, %v1936
  %v2001 = vmul.f32 %v1937, %v1937
  %v2002 = vmul.f32 %v1938, %v1938
  %v2003 = vmul.f32 %v1939, %v1939
  %v2004 = vmul.f32 %v1940, %v1940
  %v2005 = vmul.f32 %v1941, %v1941
  %v2006 = vmul.f32 %v1942, %v1942
  %v2007 = vmul.f32 %v1943, %v1943
  %v2008 = vmul.f32 %v1944, %v1944
  %v2009 = vmul.f32 %v1945, %v1945
  %v2010 = vmul.f32 %v1946, %v1946
  %v2011 = vmul.f32 %v1947, %v1947
  %v2012 = vmul.f32 %v1948, %v1948
  %v2013 = vmul.f32 %v1949, %v1949
  %v2014 = vmul.f32 %v1950, %v1950
  %v2015 = vmul.f32 %v1951, %v1951
  %v2016 = vmul.f32 %v1952, %v1952
  %v2017 = vmul.f32 %v1953, %v1953
  %v2018 = vmul.f32 %v1954, %v1954
  %v2019 = vmul.f32 %v1955, %v1955
  %v2020 = vmul.f32 %v1956, %v1956
  %v2021 = vmul.f32 %v1957, %v1957
  %v2022 = vmul.f32 %v1958, %v1958
  %v2023 = vmul.f32 %v1959, %v1959
  %v2024 = vmul.f32 %v1960, %v1960
  %v2025 = vmul.f32 %v1961, %v1961
  %v2026 = vmul.f32 %v1962, %v1962
  %v2027 = vmul.f32 %v1963, %v1963
  %v2028 = vmul.f32 %v1964, %v1964
  %v2029 = vmul.f32 %v1965, %v1965
  %v2030 = vmul.f32 %v1966, %v1966
  %v2031 = vmul.f32 %v1967, %v1967
  %v2032 = vmul.f32 %v1968, %v1968
  %v2033 = vmul.f32 %v1969, %v1969
  %v2034 = vmul.f32 %v1970, %v1970
  %v2035 = vmul.f32 %v1971, %v1971
  %v2036 = vmul.f32 %v1972, %v1972
  %v2037 = vmul.f32 %v1973, %v1973
  %v2038 = vmul.f32 %v1974, %v1974
  %v2039 = vmul.f32 %v1975, %v1975
  %v2040 = vmul.f32 %v1976, %v1976
  %v2041 = vmul.f32 %v1977, %v1977
  %v2042 = vmul.f32 %v1978, %v1978
  %v2043 = vmul.f32 %v1979, %v1979
  %v2044 = vmul.f32 %v1980, %v1980
  %v2045 = vmul.f32 %v1981, %v1981
  %v2046 = vmul.f32 %v1982, %v1982
  %v2047 = vmul.f32 %v1983, %v1983
  %v2048 = vmul.f32 %v1984, %v1984
  %v2049 = vmul.f32 %v1985, %v1985
  %v2050 = vmul.f32 %v1986, %v1986
  %v2051 = vmul.f32 %v1987, %v1987
  %v2052 = vmul.f32 %v1988, %v1988
  %v2053 = vmul.f32 %v1989, %v1989
  %v2054 = vmul.f32 %v1990, %v1990
  %v2055 = vmul.f32 %v1991, %v1991
  %v2056 = vmul.f32 %v1992, %v1992
  %v2057 = vmul.f32 %v1993, %v1993
  %v2058 = vmul.f32 %v1994, %v1994
  %v2059 = vmul.f32 %v1995, %v1995
  %v2060 = vmul.f32 %v1996, %v1996
  %v2061 = vmul.f32 %v1997, %v1933
  %v2062 = vmul.f32 %v1998, %v1934
  %v2063 = vmul.f32 %v1999, %v1935
  %v2064 = vmul.f32 %v2000, %v1936
  %v2065 = vmul.f32 %v2001, %v1937
  %v2066 = vmul.f32 %v2002, %v1938
  %v2067 = vmul.f32 %v2003, %v1939
  %v2068 = vmul.f32 %v2004, %v1940
  %v2069 = vmul.f32 %v2005, %v1941
  %v2070 = vmul.f32 %v2006, %v1942
  %v2071 = vmul.f32 %v2007, %v1943
  %v2072 = vmul.f32 %v2008, %v1944
  %v2073 = vmul.f32 %v2009, %v1945
  %v2074 = vmul.f32 %v2010, %v1946
  %v2075 = vmul.f32 %v2011, %v1947
  %v2076 = vmul.f32 %v2012, %v1948
  %v2077 = vmul.f32 %v2013, %v1949
  %v2078 = vmul.f32 %v2014, %v1950
  %v2079 = vmul.f32 %v2015, %v1951
  %v2080 = vmul.f32 %v2016, %v1952
  %v2081 = vmul.f32 %v2017, %v1953
  %v2082 = vmul.f32 %v2018, %v1954
  %v2083 = vmul.f32 %v2019, %v1955
  %v2084 = vmul.f32 %v2020, %v1956
  %v2085 = vmul.f32 %v2021, %v1957
  %v2086 = vmul.f32 %v2022, %v1958
  %v2087 = vmul.f32 %v2023, %v1959
  %v2088 = vmul.f32 %v2024, %v1960
  %v2089 = vmul.f32 %v2025, %v1961
  %v2090 = vmul.f32 %v2026, %v1962
  %v2091 = vmul.f32 %v2027, %v1963
  %v2092 = vmul.f32 %v2028, %v1964
  %v2093 = vmul.f32 %v2029, %v1965
  %v2094 = vmul.f32 %v2030, %v1966
  %v2095 = vmul.f32 %v2031, %v1967
  %v2096 = vmul.f32 %v2032, %v1968
  %v2097 = vmul.f32 %v2033, %v1969
  %v2098 = vmul.f32 %v2034, %v1970
  %v2099 = vmul.f32 %v2035, %v1971
  %v2100 = vmul.f32 %v2036, %v1972
  %v2101 = vmul.f32 %v2037, %v1973
  %v2102 = vmul.f32 %v2038, %v1974
  %v2103 = vmul.f32 %v2039, %v1975
  %v2104 = vmul.f32 %v2040, %v1976
  %v2105 = vmul.f32 %v2041, %v1977
  %v2106 = vmul.f32 %v2042, %v1978
  %v2107 = vmul.f32 %v2043, %v1979
  %v2108 = vmul.f32 %v2044, %v1980
  %v2109 = vmul.f32 %v2045, %v1981
  %v2110 = vmul.f32 %v2046, %v1982
  %v2111 = vmul.f32 %v2047, %v1983
  %v2112 = vmul.f32 %v2048, %v1984
  %v2113 = vmul.f32 %v2049, %v1985
  %v2114 = vmul.f32 %v2050, %v1986
  %v2115 = vmul.f32 %v2051, %v1987
  %v2116 = vmul.f32 %v2052, %v1988
  %v2117 = vmul.f32 %v2053, %v1989
  %v2118 = vmul.f32 %v2054, %v1990
  %v2119 = vmul.f32 %v2055, %v1991
  %v2120 = vmul.f32 %v2056, %v1992
  %v2121 = vmul.f32 %v2057, %v1993
  %v2122 = vmul.f32 %v2058, %v1994
  %v2123 = vmul.f32 %v2059, %v1995
  %v2124 = vmul.f32 %v2060, %v1996
  %v2125 = vmul.f32 %v1933, 0.5
  %v2126 = vmul.f32 %v1934, 0.5
  %v2127 = vmul.f32 %v1935, 0.5
  %v2128 = vmul.f32 %v1936, 0.5
  %v2129 = vmul.f32 %v1937, 0.5
  %v2130 = vmul.f32 %v1938, 0.5
  %v2131 = vmul.f32 %v1939, 0.5
  %v2132 = vmul.f32 %v1940, 0.5
  %v2133 = vmul.f32 %v1941, 0.5
  %v2134 = vmul.f32 %v1942, 0.5
  %v2135 = vmul.f32 %v1943, 0.5
  %v2136 = vmul.f32 %v1944, 0.5
  %v2137 = vmul.f32 %v1945, 0.5
  %v2138 = vmul.f32 %v1946, 0.5
  %v2139 = vmul.f32 %v1947, 0.5
  %v2140 = vmul.f32 %v1948, 0.5
  %v2141 = vmul.f32 %v1949, 0.5
  %v2142 = vmul.f32 %v1950, 0.5
  %v2143 = vmul.f32 %v1951, 0.5
  %v2144 = vmul.f32 %v1952, 0.5
  %v2145 = vmul.f32 %v1953, 0.5
  %v2146 = vmul.f32 %v1954, 0.5
  %v2147 = vmul.f32 %v1955, 0.5
  %v2148 = vmul.f32 %v1956, 0.5
  %v2149 = vmul.f32 %v1957, 0.5
  %v2150 = vmul.f32 %v1958, 0.5
  %v2151 = vmul.f32 %v1959, 0.5
  %v2152 = vmul.f32 %v1960, 0.5
  %v2153 = vmul.f32 %v1961, 0.5
  %v2154 = vmul.f32 %v1962, 0.5
  %v2155 = vmul.f32 %v1963, 0.5
  %v2156 = vmul.f32 %v1964, 0.5
  %v2157 = vmul.f32 %v1965, 0.5
  %v2158 = vmul.f32 %v1966, 0.5
  %v2159 = vmul.f32 %v1967, 0.5
  %v2160 = vmul.f32 %v1968, 0.5
  %v2161 = vmul.f32 %v1969, 0.5
  %v2162 = vmul.f32 %v1970, 0.5
  %v2163 = vmul.f32 %v1971, 0.5
  %v2164 = vmul.f32 %v1972, 0.5
  %v2165 = vmul.f32 %v1973, 0.5
  %v2166 = vmul.f32 %v1974, 0.5
  %v2167 = vmul.f32 %v1975, 0.5
  %v2168 = vmul.f32 %v1976, 0.5
  %v2169 = vmul.f32 %v1977, 0.5
  %v2170 = vmul.f32 %v1978, 0.5
  %v2171 = vmul.f32 %v1979, 0.5
  %v2172 = vmul.f32 %v1980, 0.5
  %v2173 = vmul.f32 %v1981, 0.5
  %v2174 = vmul.f32 %v1982, 0.5
  %v2175 = vmul.f32 %v1983, 0.5
  %v2176 = vmul.f32 %v1984, 0.5
  %v2177 = vmul.f32 %v1985, 0.5
  %v2178 = vmul.f32 %v1986, 0.5
  %v2179 = vmul.f32 %v1987, 0.5
  %v2180 = vmul.f32 %v1988, 0.5
  %v2181 = vmul.f32 %v1989, 0.5
  %v2182 = vmul.f32 %v1990, 0.5
  %v2183 = vmul.f32 %v1991, 0.5
  %v2184 = vmul.f32 %v1992, 0.5
  %v2185 = vmul.f32 %v1993, 0.5
  %v2186 = vmul.f32 %v1994, 0.5
  %v2187 = vmul.f32 %v1995, 0.5
  %v2188 = vmul.f32 %v1996, 0.5
  %v2189 = vmul.f32 %v2061, 0.044715
  %v2190 = vmul.f32 %v2062, 0.044715
  %v2191 = vmul.f32 %v2063, 0.044715
  %v2192 = vmul.f32 %v2064, 0.044715
  %v2193 = vmul.f32 %v2065, 0.044715
  %v2194 = vmul.f32 %v2066, 0.044715
  %v2195 = vmul.f32 %v2067, 0.044715
  %v2196 = vmul.f32 %v2068, 0.044715
  %v2197 = vmul.f32 %v2069, 0.044715
  %v2198 = vmul.f32 %v2070, 0.044715
  %v2199 = vmul.f32 %v2071, 0.044715
  %v2200 = vmul.f32 %v2072, 0.044715
  %v2201 = vmul.f32 %v2073, 0.044715
  %v2202 = vmul.f32 %v2074, 0.044715
  %v2203 = vmul.f32 %v2075, 0.044715
  %v2204 = vmul.f32 %v2076, 0.044715
  %v2205 = vmul.f32 %v2077, 0.044715
  %v2206 = vmul.f32 %v2078, 0.044715
  %v2207 = vmul.f32 %v2079, 0.044715
  %v2208 = vmul.f32 %v2080, 0.044715
  %v2209 = vmul.f32 %v2081, 0.044715
  %v2210 = vmul.f32 %v2082, 0.044715
  %v2211 = vmul.f32 %v2083, 0.044715
  %v2212 = vmul.f32 %v2084, 0.044715
  %v2213 = vmul.f32 %v2085, 0.044715
  %v2214 = vmul.f32 %v2086, 0.044715
  %v2215 = vmul.f32 %v2087, 0.044715
  %v2216 = vmul.f32 %v2088, 0.044715
  %v2217 = vmul.f32 %v2089, 0.044715
  %v2218 = vmul.f32 %v2090, 0.044715
  %v2219 = vmul.f32 %v2091, 0.044715
  %v2220 = vmul.f32 %v2092, 0.044715
  %v2221 = vmul.f32 %v2093, 0.044715
  %v2222 = vmul.f32 %v2094, 0.044715
  %v2223 = vmul.f32 %v2095, 0.044715
  %v2224 = vmul.f32 %v2096, 0.044715
  %v2225 = vmul.f32 %v2097, 0.044715
  %v2226 = vmul.f32 %v2098, 0.044715
  %v2227 = vmul.f32 %v2099, 0.044715
  %v2228 = vmul.f32 %v2100, 0.044715
  %v2229 = vmul.f32 %v2101, 0.044715
  %v2230 = vmul.f32 %v2102, 0.044715
  %v2231 = vmul.f32 %v2103, 0.044715
  %v2232 = vmul.f32 %v2104, 0.044715
  %v2233 = vmul.f32 %v2105, 0.044715
  %v2234 = vmul.f32 %v2106, 0.044715
  %v2235 = vmul.f32 %v2107, 0.044715
  %v2236 = vmul.f32 %v2108, 0.044715
  %v2237 = vmul.f32 %v2109, 0.044715
  %v2238 = vmul.f32 %v2110, 0.044715
  %v2239 = vmul.f32 %v2111, 0.044715
  %v2240 = vmul.f32 %v2112, 0.044715
  %v2241 = vmul.f32 %v2113, 0.044715
  %v2242 = vmul.f32 %v2114, 0.044715
  %v2243 = vmul.f32 %v2115, 0.044715
  %v2244 = vmul.f32 %v2116, 0.044715
  %v2245 = vmul.f32 %v2117, 0.044715
  %v2246 = vmul.f32 %v2118, 0.044715
  %v2247 = vmul.f32 %v2119, 0.044715
  %v2248 = vmul.f32 %v2120, 0.044715
  %v2249 = vmul.f32 %v2121, 0.044715
  %v2250 = vmul.f32 %v2122, 0.044715
  %v2251 = vmul.f32 %v2123, 0.044715
  %v2252 = vmul.f32 %v2124, 0.044715
  %v2253 = vadd.f32 %v1933, %v2189
  %v2254 = vadd.f32 %v1934, %v2190
  %v2255 = vadd.f32 %v1935, %v2191
  %v2256 = vadd.f32 %v1936, %v2192
  %v2257 = vadd.f32 %v1937, %v2193
  %v2258 = vadd.f32 %v1938, %v2194
  %v2259 = vadd.f32 %v1939, %v2195
  %v2260 = vadd.f32 %v1940, %v2196
  %v2261 = vadd.f32 %v1941, %v2197
  %v2262 = vadd.f32 %v1942, %v2198
  %v2263 = vadd.f32 %v1943, %v2199
  %v2264 = vadd.f32 %v1944, %v2200
  %v2265 = vadd.f32 %v1945, %v2201
  %v2266 = vadd.f32 %v1946, %v2202
  %v2267 = vadd.f32 %v1947, %v2203
  %v2268 = vadd.f32 %v1948, %v2204
  %v2269 = vadd.f32 %v1949, %v2205
  %v2270 = vadd.f32 %v1950, %v2206
  %v2271 = vadd.f32 %v1951, %v2207
  %v2272 = vadd.f32 %v1952, %v2208
  %v2273 = vadd.f32 %v1953, %v2209
  %v2274 = vadd.f32 %v1954, %v2210
  %v2275 = vadd.f32 %v1955, %v2211
  %v2276 = vadd.f32 %v1956, %v2212
  %v2277 = vadd.f32 %v1957, %v2213
  %v2278 = vadd.f32 %v1958, %v2214
  %v2279 = vadd.f32 %v1959, %v2215
  %v2280 = vadd.f32 %v1960, %v2216
  %v2281 = vadd.f32 %v1961, %v2217
  %v2282 = vadd.f32 %v1962, %v2218
  %v2283 = vadd.f32 %v1963, %v2219
  %v2284 = vadd.f32 %v1964, %v2220
  %v2285 = vadd.f32 %v1965, %v2221
  %v2286 = vadd.f32 %v1966, %v2222
  %v2287 = vadd.f32 %v1967, %v2223
  %v2288 = vadd.f32 %v1968, %v2224
  %v2289 = vadd.f32 %v1969, %v2225
  %v2290 = vadd.f32 %v1970, %v2226
  %v2291 = vadd.f32 %v1971, %v2227
  %v2292 = vadd.f32 %v1972, %v2228
  %v2293 = vadd.f32 %v1973, %v2229
  %v2294 = vadd.f32 %v1974, %v2230
  %v2295 = vadd.f32 %v1975, %v2231
  %v2296 = vadd.f32 %v1976, %v2232
  %v2297 = vadd.f32 %v1977, %v2233
  %v2298 = vadd.f32 %v1978, %v2234
  %v2299 = vadd.f32 %v1979, %v2235
  %v2300 = vadd.f32 %v1980, %v2236
  %v2301 = vadd.f32 %v1981, %v2237
  %v2302 = vadd.f32 %v1982, %v2238
  %v2303 = vadd.f32 %v1983, %v2239
  %v2304 = vadd.f32 %v1984, %v2240
  %v2305 = vadd.f32 %v1985, %v2241
  %v2306 = vadd.f32 %v1986, %v2242
  %v2307 = vadd.f32 %v1987, %v2243
  %v2308 = vadd.f32 %v1988, %v2244
  %v2309 = vadd.f32 %v1989, %v2245
  %v2310 = vadd.f32 %v1990, %v2246
  %v2311 = vadd.f32 %v1991, %v2247
  %v2312 = vadd.f32 %v1992, %v2248
  %v2313 = vadd.f32 %v1993, %v2249
  %v2314 = vadd.f32 %v1994, %v2250
  %v2315 = vadd.f32 %v1995, %v2251
  %v2316 = vadd.f32 %v1996, %v2252
  %v2317 = vmul.f32 %v2253, 0.7978846
  %v2318 = vmul.f32 %v2254, 0.7978846
  %v2319 = vmul.f32 %v2255, 0.7978846
  %v2320 = vmul.f32 %v2256, 0.7978846
  %v2321 = vmul.f32 %v2257, 0.7978846
  %v2322 = vmul.f32 %v2258, 0.7978846
  %v2323 = vmul.f32 %v2259, 0.7978846
  %v2324 = vmul.f32 %v2260, 0.7978846
  %v2325 = vmul.f32 %v2261, 0.7978846
  %v2326 = vmul.f32 %v2262, 0.7978846
  %v2327 = vmul.f32 %v2263, 0.7978846
  %v2328 = vmul.f32 %v2264, 0.7978846
  %v2329 = vmul.f32 %v2265, 0.7978846
  %v2330 = vmul.f32 %v2266, 0.7978846
  %v2331 = vmul.f32 %v2267, 0.7978846
  %v2332 = vmul.f32 %v2268, 0.7978846
  %v2333 = vmul.f32 %v2269, 0.7978846
  %v2334 = vmul.f32 %v2270, 0.7978846
  %v2335 = vmul.f32 %v2271, 0.7978846
  %v2336 = vmul.f32 %v2272, 0.7978846
  %v2337 = vmul.f32 %v2273, 0.7978846
  %v2338 = vmul.f32 %v2274, 0.7978846
  %v2339 = vmul.f32 %v2275, 0.7978846
  %v2340 = vmul.f32 %v2276, 0.7978846
  %v2341 = vmul.f32 %v2277, 0.7978846
  %v2342 = vmul.f32 %v2278, 0.7978846
  %v2343 = vmul.f32 %v2279, 0.7978846
  %v2344 = vmul.f32 %v2280, 0.7978846
  %v2345 = vmul.f32 %v2281, 0.7978846
  %v2346 = vmul.f32 %v2282, 0.7978846
  %v2347 = vmul.f32 %v2283, 0.7978846
  %v2348 = vmul.f32 %v2284, 0.7978846
  %v2349 = vmul.f32 %v2285, 0.7978846
  %v2350 = vmul.f32 %v2286, 0.7978846
  %v2351 = vmul.f32 %v2287, 0.7978846
  %v2352 = vmul.f32 %v2288, 0.7978846
  %v2353 = vmul.f32 %v2289, 0.7978846
  %v2354 = vmul.f32 %v2290, 0.7978846
  %v2355 = vmul.f32 %v2291, 0.7978846
  %v2356 = vmul.f32 %v2292, 0.7978846
  %v2357 = vmul.f32 %v2293, 0.7978846
  %v2358 = vmul.f32 %v2294, 0.7978846
  %v2359 = vmul.f32 %v2295, 0.7978846
  %v2360 = vmul.f32 %v2296, 0.7978846
  %v2361 = vmul.f32 %v2297, 0.7978846
  %v2362 = vmul.f32 %v2298, 0.7978846
  %v2363 = vmul.f32 %v2299, 0.7978846
  %v2364 = vmul.f32 %v2300, 0.7978846
  %v2365 = vmul.f32 %v2301, 0.7978846
  %v2366 = vmul.f32 %v2302, 0.7978846
  %v2367 = vmul.f32 %v2303, 0.7978846
  %v2368 = vmul.f32 %v2304, 0.7978846
  %v2369 = vmul.f32 %v2305, 0.7978846
  %v2370 = vmul.f32 %v2306, 0.7978846
  %v2371 = vmul.f32 %v2307, 0.7978846
  %v2372 = vmul.f32 %v2308, 0.7978846
  %v2373 = vmul.f32 %v2309, 0.7978846
  %v2374 = vmul.f32 %v2310, 0.7978846
  %v2375 = vmul.f32 %v2311, 0.7978846
  %v2376 = vmul.f32 %v2312, 0.7978846
  %v2377 = vmul.f32 %v2313, 0.7978846
  %v2378 = vmul.f32 %v2314, 0.7978846
  %v2379 = vmul.f32 %v2315, 0.7978846
  %v2380 = vmul.f32 %v2316, 0.7978846
  %v2381 = vtanh.pop %v2317
  %v2382 = vtanh.pop %v2318
  %v2383 = vtanh.pop %v2319
  %v2384 = vtanh.pop %v2320
  %v2385 = vtanh.pop %v2321
  %v2386 = vtanh.pop %v2322
  %v2387 = vtanh.pop %v2323
  %v2388 = vtanh.pop %v2324
  %v2389 = vtanh.pop %v2325
  %v2390 = vtanh.pop %v2326
  %v2391 = vtanh.pop %v2327
  %v2392 = vtanh.pop %v2328
  %v2393 = vtanh.pop %v2329
  %v2394 = vtanh.pop %v2330
  %v2395 = vtanh.pop %v2331
  %v2396 = vtanh.pop %v2332
  %v2397 = vtanh.pop %v2333
  %v2398 = vtanh.pop %v2334
  %v2399 = vtanh.pop %v2335
  %v2400 = vtanh.pop %v2336
  %v2401 = vtanh.pop %v2337
  %v2402 = vtanh.pop %v2338
  %v2403 = vtanh.pop %v2339
  %v2404 = vtanh.pop %v2340
  %v2405 = vtanh.pop %v2341
  %v2406 = vtanh.pop %v2342
  %v2407 = vtanh.pop %v2343
  %v2408 = vtanh.pop %v2344
  %v2409 = vtanh.pop %v2345
  %v2410 = vtanh.pop %v2346
  %v2411 = vtanh.pop %v2347
  %v2412 = vtanh.pop %v2348
  %v2413 = vtanh.pop %v2349
  %v2414 = vtanh.pop %v2350
  %v2415 = vtanh.pop %v2351
  %v2416 = vtanh.pop %v2352
  %v2417 = vtanh.pop %v2353
  %v2418 = vtanh.pop %v2354
  %v2419 = vtanh.pop %v2355
  %v2420 = vtanh.pop %v2356
  %v2421 = vtanh.pop %v2357
  %v2422 = vtanh.pop %v2358
  %v2423 = vtanh.pop %v2359
  %v2424 = vtanh.pop %v2360
  %v2425 = vtanh.pop %v2361
  %v2426 = vtanh.pop %v2362
  %v2427 = vtanh.pop %v2363
  %v2428 = vtanh.pop %v2364
  %v2429 = vtanh.pop %v2365
  %v2430 = vtanh.pop %v2366
  %v2431 = vtanh.pop %v2367
  %v2432 = vtanh.pop %v2368
  %v2433 = vtanh.pop %v2369
  %v2434 = vtanh.pop %v2370
  %v2435 = vtanh.pop %v2371
  %v2436 = vtanh.pop %v2372
  %v2437 = vtanh.pop %v2373
  %v2438 = vtanh.pop %v2374
  %v2439 = vtanh.pop %v2375
  %v2440 = vtanh.pop %v2376
  %v2441 = vtanh.pop %v2377
  %v2442 = vtanh.pop %v2378
  %v2443 = vtanh.pop %v2379
  %v2444 = vtanh.pop %v2380
  %v2445 = vadd.f32 %v2381, 1.0
  %v2446 = vadd.f32 %v2382, 1.0
  %v2447 = vadd.f32 %v2383, 1.0
  %v2448 = vadd.f32 %v2384, 1.0
  %v2449 = vadd.f32 %v2385, 1.0
  %v2450 = vadd.f32 %v2386, 1.0
  %v2451 = vadd.f32 %v2387, 1.0
  %v2452 = vadd.f32 %v2388, 1.0
  %v2453 = vadd.f32 %v2389, 1.0
  %v2454 = vadd.f32 %v2390, 1.0
  %v2455 = vadd.f32 %v2391, 1.0
  %v2456 = vadd.f32 %v2392, 1.0
  %v2457 = vadd.f32 %v2393, 1.0
  %v2458 = vadd.f32 %v2394, 1.0
  %v2459 = vadd.f32 %v2395, 1.0
  %v2460 = vadd.f32 %v2396, 1.0
  %v2461 = vadd.f32 %v2397, 1.0
  %v2462 = vadd.f32 %v2398, 1.0
  %v2463 = vadd.f32 %v2399, 1.0
  %v2464 = vadd.f32 %v2400, 1.0
  %v2465 = vadd.f32 %v2401, 1.0
  %v2466 = vadd.f32 %v2402, 1.0
  %v2467 = vadd.f32 %v2403, 1.0
  %v2468 = vadd.f32 %v2404, 1.0
  %v2469 = vadd.f32 %v2405, 1.0
  %v2470 = vadd.f32 %v2406, 1.0
  %v2471 = vadd.f32 %v2407, 1.0
  %v2472 = vadd.f32 %v2408, 1.0
  %v2473 = vadd.f32 %v2409, 1.0
  %v2474 = vadd.f32 %v2410, 1.0
  %v2475 = vadd.f32 %v2411, 1.0
  %v2476 = vadd.f32 %v2412, 1.0
  %v2477 = vadd.f32 %v2413, 1.0
  %v2478 = vadd.f32 %v2414, 1.0
  %v2479 = vadd.f32 %v2415, 1.0
  %v2480 = vadd.f32 %v2416, 1.0
  %v2481 = vadd.f32 %v2417, 1.0
  %v2482 = vadd.f32 %v2418, 1.0
  %v2483 = vadd.f32 %v2419, 1.0
  %v2484 = vadd.f32 %v2420, 1.0
  %v2485 = vadd.f32 %v2421, 1.0
  %v2486 = vadd.f32 %v2422, 1.0
  %v2487 = vadd.f32 %v2423, 1.0
  %v2488 = vadd.f32 %v2424, 1.0
  %v2489 = vadd.f32 %v2425, 1.0
  %v2490 = vadd.f32 %v2426, 1.0
  %v2491 = vadd.f32 %v2427, 1.0
  %v2492 = vadd.f32 %v2428, 1.0
  %v2493 = vadd.f32 %v2429, 1.0
  %v2494 = vadd.f32 %v2430, 1.0
  %v2495 = vadd.f32 %v2431, 1.0
  %v2496 = vadd.f32 %v2432, 1.0
  %v2497 = vadd.f32 %v2433, 1.0
  %v2498 = vadd.f32 %v2434, 1.0
  %v2499 = vadd.f32 %v2435, 1.0
  %v2500 = vadd.f32 %v2436, 1.0
  %v2501 = vadd.f32 %v2437, 1.0
  %v2502 = vadd.f32 %v2438, 1.0
  %v2503 = vadd.f32 %v2439, 1.0
  %v2504 = vadd.f32 %v2440, 1.0
  %v2505 = vadd.f32 %v2441, 1.0
  %v2506 = vadd.f32 %v2442, 1.0
  %v2507 = vadd.f32 %v2443, 1.0
  %v2508 = vadd.f32 %v2444, 1.0
  %v2509 = vmul.f32 %v2125, %v2445
  %v2510 = vmul.f32 %v2126, %v2446
  %v2511 = vmul.f32 %v2127, %v2447
  %v2512 = vmul.f32 %v2128, %v2448
  %v2513 = vmul.f32 %v2129, %v2449
  %v2514 = vmul.f32 %v2130, %v2450
  %v2515 = vmul.f32 %v2131, %v2451
  %v2516 = vmul.f32 %v2132, %v2452
  %v2517 = vmul.f32 %v2133, %v2453
  %v2518 = vmul.f32 %v2134, %v2454
  %v2519 = vmul.f32 %v2135, %v2455
  %v2520 = vmul.f32 %v2136, %v2456
  %v2521 = vmul.f32 %v2137, %v2457
  %v2522 = vmul.f32 %v2138, %v2458
  %v2523 = vmul.f32 %v2139, %v2459
  %v2524 = vmul.f32 %v2140, %v2460
  %v2525 = vmul.f32 %v2141, %v2461
  %v2526 = vmul.f32 %v2142, %v2462
  %v2527 = vmul.f32 %v2143, %v2463
  %v2528 = vmul.f32 %v2144, %v2464
  %v2529 = vmul.f32 %v2145, %v2465
  %v2530 = vmul.f32 %v2146, %v2466
  %v2531 = vmul.f32 %v2147, %v2467
  %v2532 = vmul.f32 %v2148, %v2468
  %v2533 = vmul.f32 %v2149, %v2469
  %v2534 = vmul.f32 %v2150, %v2470
  %v2535 = vmul.f32 %v2151, %v2471
  %v2536 = vmul.f32 %v2152, %v2472
  %v2537 = vmul.f32 %v2153, %v2473
  %v2538 = vmul.f32 %v2154, %v2474
  %v2539 = vmul.f32 %v2155, %v2475
  %v2540 = vmul.f32 %v2156, %v2476
  %v2541 = vmul.f32 %v2157, %v2477
  %v2542 = vmul.f32 %v2158, %v2478
  %v2543 = vmul.f32 %v2159, %v2479
  %v2544 = vmul.f32 %v2160, %v2480
  %v2545 = vmul.f32 %v2161, %v2481
  %v2546 = vmul.f32 %v2162, %v2482
  %v2547 = vmul.f32 %v2163, %v2483
  %v2548 = vmul.f32 %v2164, %v2484
  %v2549 = vmul.f32 %v2165, %v2485
  %v2550 = vmul.f32 %v2166, %v2486
  %v2551 = vmul.f32 %v2167, %v2487
  %v2552 = vmul.f32 %v2168, %v2488
  %v2553 = vmul.f32 %v2169, %v2489
  %v2554 = vmul.f32 %v2170, %v2490
  %v2555 = vmul.f32 %v2171, %v2491
  %v2556 = vmul.f32 %v2172, %v2492
  %v2557 = vmul.f32 %v2173, %v2493
  %v2558 = vmul.f32 %v2174, %v2494
  %v2559 = vmul.f32 %v2175, %v2495
  %v2560 = vmul.f32 %v2176, %v2496
  %v2561 = vmul.f32 %v2177, %v2497
  %v2562 = vmul.f32 %v2178, %v2498
  %v2563 = vmul.f32 %v2179, %v2499
  %v2564 = vmul.f32 %v2180, %v2500
  %v2565 = vmul.f32 %v2181, %v2501
  %v2566 = vmul.f32 %v2182, %v2502
  %v2567 = vmul.f32 %v2183, %v2503
  %v2568 = vmul.f32 %v2184, %v2504
  %v2569 = vmul.f32 %v2185, %v2505
  %v2570 = vmul.f32 %v2186, %v2506
  %v2571 = vmul.f32 %v2187, %v2507
  %v2572 = vmul.f32 %v2188, %v2508
  %2573 = vst.msk [vmem:[%s2] sm:$0xff] %vm11, %v2509
  %2574 = vst.msk [vmem:[%s2 + $0x8] sm:$0xff] %vm11, %v2510
  %2575 = vst.msk [vmem:[%s2 + $0x10] sm:$0xff] %vm11, %v2511
  %2576 = vst.msk [vmem:[%s2 + $0x18] sm:$0xff] %vm11, %v2512
  %2577 = vst.msk [vmem:[%s2 + $0x20] sm:$0xff] %vm11, %v2513
  %2578 = vst.msk [vmem:[%s2 + $0x28] sm:$0xff] %vm11, %v2514
  %2579 = vst.msk [vmem:[%s2 + $0x30] sm:$0xff] %vm11, %v2515
  %2580 = vst.msk [vmem:[%s2 + $0x38] sm:$0xff] %vm11, %v2516
  %2581 = vst.msk [vmem:[%s2 + $0x40] sm:$0xff] %vm11, %v2517
  %2582 = vst.msk [vmem:[%s2 + $0x48] sm:$0xff] %vm11, %v2518
  %2583 = vst.msk [vmem:[%s2 + $0x50] sm:$0xff] %vm11, %v2519
  %2584 = vst.msk [vmem:[%s2 + $0x58] sm:$0xff] %vm11, %v2520
  %2585 = vst.msk [vmem:[%s2 + $0x60] sm:$0xff] %vm11, %v2521
  %2586 = vst.msk [vmem:[%s2 + $0x68] sm:$0xff] %vm11, %v2522
  %2587 = vst.msk [vmem:[%s2 + $0x70] sm:$0xff] %vm11, %v2523
  %2588 = vst.msk [vmem:[%s2 + $0x78] sm:$0xff] %vm11, %v2524
  %2589 = vst.msk [vmem:[%s2 + $0x80] sm:$0xff] %vm11, %v2525
  %2590 = vst.msk [vmem:[%s2 + $0x88] sm:$0xff] %vm11, %v2526
  %2591 = vst.msk [vmem:[%s2 + $0x90] sm:$0xff] %vm11, %v2527
  %2592 = vst.msk [vmem:[%s2 + $0x98] sm:$0xff] %vm11, %v2528
  %2593 = vst.msk [vmem:[%s2 + $0xa0] sm:$0xff] %vm11, %v2529
  %2594 = vst.msk [vmem:[%s2 + $0xa8] sm:$0xff] %vm11, %v2530
  %2595 = vst.msk [vmem:[%s2 + $0xb0] sm:$0xff] %vm11, %v2531
  %2596 = vst.msk [vmem:[%s2 + $0xb8] sm:$0xff] %vm11, %v2532
  %2597 = vst.msk [vmem:[%s2 + $0xc0] sm:$0xff] %vm11, %v2533
  %2598 = vst.msk [vmem:[%s2 + $0xc8] sm:$0xff] %vm11, %v2534
  %2599 = vst.msk [vmem:[%s2 + $0xd0] sm:$0xff] %vm11, %v2535
  %2600 = vst.msk [vmem:[%s2 + $0xd8] sm:$0xff] %vm11, %v2536
  %2601 = vst.msk [vmem:[%s2 + $0xe0] sm:$0xff] %vm11, %v2537
  %2602 = vst.msk [vmem:[%s2 + $0xe8] sm:$0xff] %vm11, %v2538
  %2603 = vst.msk [vmem:[%s2 + $0xf0] sm:$0xff] %vm11, %v2539
  %2604 = vst.msk [vmem:[%s2 + $0xf8] sm:$0xff] %vm11, %v2540
  %2605 = vst.msk [vmem:[%s2 + $0x100] sm:$0xff] %vm11, %v2541
  %2606 = vst.msk [vmem:[%s2 + $0x108] sm:$0xff] %vm11, %v2542
  %2607 = vst.msk [vmem:[%s2 + $0x110] sm:$0xff] %vm11, %v2543
  %2608 = vst.msk [vmem:[%s2 + $0x118] sm:$0xff] %vm11, %v2544
  %2609 = vst.msk [vmem:[%s2 + $0x120] sm:$0xff] %vm11, %v2545
  %2610 = vst.msk [vmem:[%s2 + $0x128] sm:$0xff] %vm11, %v2546
  %2611 = vst.msk [vmem:[%s2 + $0x130] sm:$0xff] %vm11, %v2547
  %2612 = vst.msk [vmem:[%s2 + $0x138] sm:$0xff] %vm11, %v2548
  %2613 = vst.msk [vmem:[%s2 + $0x140] sm:$0xff] %vm11, %v2549
  %2614 = vst.msk [vmem:[%s2 + $0x148] sm:$0xff] %vm11, %v2550
  %2615 = vst.msk [vmem:[%s2 + $0x150] sm:$0xff] %vm11, %v2551
  %2616 = vst.msk [vmem:[%s2 + $0x158] sm:$0xff] %vm11, %v2552
  %2617 = vst.msk [vmem:[%s2 + $0x160] sm:$0xff] %vm11, %v2553
  %2618 = vst.msk [vmem:[%s2 + $0x168] sm:$0xff] %vm11, %v2554
  %2619 = vst.msk [vmem:[%s2 + $0x170] sm:$0xff] %vm11, %v2555
  %2620 = vst.msk [vmem:[%s2 + $0x178] sm:$0xff] %vm11, %v2556
  %2621 = vst.msk [vmem:[%s2 + $0x180] sm:$0xff] %vm11, %v2557
  %2622 = vst.msk [vmem:[%s2 + $0x188] sm:$0xff] %vm11, %v2558
  %2623 = vst.msk [vmem:[%s2 + $0x190] sm:$0xff] %vm11, %v2559
  %2624 = vst.msk [vmem:[%s2 + $0x198] sm:$0xff] %vm11, %v2560
  %2625 = vst.msk [vmem:[%s2 + $0x1a0] sm:$0xff] %vm11, %v2561
  %2626 = vst.msk [vmem:[%s2 + $0x1a8] sm:$0xff] %vm11, %v2562
  %2627 = vst.msk [vmem:[%s2 + $0x1b0] sm:$0xff] %vm11, %v2563
  %2628 = vst.msk [vmem:[%s2 + $0x1b8] sm:$0xff] %vm11, %v2564
  %2629 = vst.msk [vmem:[%s2 + $0x1c0] sm:$0xff] %vm11, %v2565
  %2630 = vst.msk [vmem:[%s2 + $0x1c8] sm:$0xff] %vm11, %v2566
  %2631 = vst.msk [vmem:[%s2 + $0x1d0] sm:$0xff] %vm11, %v2567
  %2632 = vst.msk [vmem:[%s2 + $0x1d8] sm:$0xff] %vm11, %v2568
  %2633 = vst.msk [vmem:[%s2 + $0x1e0] sm:$0xff] %vm11, %v2569
  %2634 = vst.msk [vmem:[%s2 + $0x1e8] sm:$0xff] %vm11, %v2570
  %2635 = vst.msk [vmem:[%s2 + $0x1f0] sm:$0xff] %vm11, %v2571
  %2636 = vst.msk [vmem:[%s2 + $0x1f8] sm:$0xff] %vm11, %v2572
  // Predicated region
  $region10: #{lmsa_forward.8} parent=0 // pred_check
    _
  $region11: #{lmsa_forward.8} parent=0 // pred_check_branch
    %2638 = sbr.rel (0) target = $region13
  $region12: #{lmsa_forward.8} parent=0 // pred_region
    _
  $region13: #{lmsa_forward.8} parent=0 // pred_fallthru
    _
  // Predicated region
  $region14: #{lmsa_forward.8} parent=0 // pred_check
    _
  $region15: #{lmsa_forward.8} parent=0 // pred_check_branch
    %2640 = sbr.rel (0) target = $region17
  $region16: #{lmsa_forward.8} parent=0 // pred_region
    _
  $region17: #{lmsa_forward.8} parent=0 // pred_fallthru
    _

// kernel: lmsa_forward.11
$region0: #{lmsa_forward.11}
  #allocation0 [shape = 'u32[]', space=smem, size = 0x4, offset = 0x4, fixed_abs, tag = 'smem constant byte address 0x4 - core index']
  #allocation1 [shape = 'u32[72,128]{1,0:T(1,128)}', space=vmem, size = 0x9000, scoped, tag = 'internal scratch']
  #allocation2 [shape = 'f32[2,9,9,4]{3,2,1,0:T(8,128)}', space=vmem, size = 0x24000, scoped, tag = 'scratch operand']
  %s0 = inlined_call_operand.vmem [shape: f32[2,9,9,4], index: 0, kind: input, shape index: {}]
  %s1 = inlined_call_operand.vmem [shape: f32[1,4], index: 1, kind: input, shape index: {}]
  %s2 = inlined_call_operand.vmem [shape: f32[9,4], index: 2, kind: input, shape index: {}]
  %s3 = inlined_call_operand.vmem [shape: f32[2,7,7,4], index: 3, kind: output, shape index: {}]
  %s4 = sld [smem:[#allocation0]]
  $region22: #{lmsa_forward.11} parent=0
    _
  %s6 = ssub.s32 1, %s4
  %s7 = scalar_select 0, %s6, %s4
  // Predicated region
  $region2: #{lmsa_forward.11} parent=0 // pred_check
    _
  $region3: #{lmsa_forward.11} parent=0 // pred_check_branch
    %9 = sbr.rel (0) target = $region5
  $region4: #{lmsa_forward.11} parent=0 // pred_region
    _
  $region5: #{lmsa_forward.11} parent=0 // pred_fallthru
    _
  // Predicated region
  $region6: #{lmsa_forward.11} parent=0 // pred_check
    _
  $region7: #{lmsa_forward.11} parent=0 // pred_check_branch
    %11 = sbr.rel (0) target = $region9
  $region8: #{lmsa_forward.11} parent=0 // pred_region
    _
  $region9: #{lmsa_forward.11} parent=0 // pred_fallthru
    _
  // Predicated region
  $region10: #{lmsa_forward.11} parent=0 // pred_check
    _
  $region11: #{lmsa_forward.11} parent=0 // pred_check_branch
    %13 = sbr.rel (0) target = $region13
  $region12: #{lmsa_forward.11} parent=0 // pred_region
    _
  $region13: #{lmsa_forward.11} parent=0 // pred_fallthru
    _
  %v14 = vld [vmem:[%s0] sm:$0xff]
  %v15 = vld [vmem:[%s0 + $0x8] sm:$0x1]
  %v16 = vld [vmem:[%s0 + $0x10] sm:$0xff]
  %v17 = vld [vmem:[%s0 + $0x18] sm:$0x1]
  %v18 = vld [vmem:[%s0 + $0x20] sm:$0xff]
  %v19 = vld [vmem:[%s0 + $0x28] sm:$0x1]
  %v20 = vld [vmem:[%s0 + $0x30] sm:$0xff]
  %v21 = vld [vmem:[%s0 + $0x38] sm:$0x1]
  %v22 = vld [vmem:[%s0 + $0x40] sm:$0xff]
  %v23 = vld [vmem:[%s0 + $0x48] sm:$0x1]
  %v24 = vld [vmem:[%s0 + $0x50] sm:$0xff]
  %v25 = vld [vmem:[%s0 + $0x58] sm:$0x1]
  %v26 = vld [vmem:[%s0 + $0x60] sm:$0xff]
  %v27 = vld [vmem:[%s0 + $0x68] sm:$0x1]
  %v28 = vld [vmem:[%s0 + $0x70] sm:$0xff]
  %v29 = vld [vmem:[%s0 + $0x78] sm:$0x1]
  %v30 = vld [vmem:[%s0 + $0x80] sm:$0xff]
  %v31 = vld [vmem:[%s0 + $0x88] sm:$0x1]
  %v32 = vld [vmem:[%s0 + $0x90] sm:$0xff]
  %v33 = vld [vmem:[%s0 + $0x98] sm:$0x1]
  %v34 = vld [vmem:[%s0 + $0xa0] sm:$0xff]
  %v35 = vld [vmem:[%s0 + $0xa8] sm:$0x1]
  %v36 = vld [vmem:[%s0 + $0xb0] sm:$0xff]
  %v37 = vld [vmem:[%s0 + $0xb8] sm:$0x1]
  %v38 = vld [vmem:[%s0 + $0xc0] sm:$0xff]
  %v39 = vld [vmem:[%s0 + $0xc8] sm:$0x1]
  %v40 = vld [vmem:[%s0 + $0xd0] sm:$0xff]
  %v41 = vld [vmem:[%s0 + $0xd8] sm:$0x1]
  %v42 = vld [vmem:[%s0 + $0xe0] sm:$0xff]
  %v43 = vld [vmem:[%s0 + $0xe8] sm:$0x1]
  %v44 = vld [vmem:[%s0 + $0xf0] sm:$0xff]
  %v45 = vld [vmem:[%s0 + $0xf8] sm:$0x1]
  %v46 = vld [vmem:[%s0 + $0x100] sm:$0xff]
  %v47 = vld [vmem:[%s0 + $0x108] sm:$0x1]
  %v48 = vld [vmem:[%s0 + $0x110] sm:$0xff]
  %v49 = vld [vmem:[%s0 + $0x118] sm:$0x1]
  %v50 = vld [vmem:[%s1] sm:$0x1]
  %v52 = vperm.slane %v50, 0
  %v54 = vadd.f32 %v14, %v52
  %v55 = vadd.f32 %v15, %v52
  %v56 = vadd.f32 %v16, %v52
  %v57 = vadd.f32 %v17, %v52
  %v58 = vadd.f32 %v18, %v52
  %v59 = vadd.f32 %v19, %v52
  %v60 = vadd.f32 %v20, %v52
  %v61 = vadd.f32 %v21, %v52
  %v62 = vadd.f32 %v22, %v52
  %v63 = vadd.f32 %v23, %v52
  %v64 = vadd.f32 %v24, %v52
  %v65 = vadd.f32 %v25, %v52
  %v66 = vadd.f32 %v26, %v52
  %v67 = vadd.f32 %v27, %v52
  %v68 = vadd.f32 %v28, %v52
  %v69 = vadd.f32 %v29, %v52
  %v70 = vadd.f32 %v30, %v52
  %v71 = vadd.f32 %v31, %v52
  %v72 = vadd.f32 %v32, %v52
  %v73 = vadd.f32 %v33, %v52
  %v74 = vadd.f32 %v34, %v52
  %v75 = vadd.f32 %v35, %v52
  %v76 = vadd.f32 %v36, %v52
  %v77 = vadd.f32 %v37, %v52
  %v78 = vadd.f32 %v38, %v52
  %v79 = vadd.f32 %v39, %v52
  %v80 = vadd.f32 %v40, %v52
  %v81 = vadd.f32 %v41, %v52
  %v82 = vadd.f32 %v42, %v52
  %v83 = vadd.f32 %v43, %v52
  %v84 = vadd.f32 %v44, %v52
  %v85 = vadd.f32 %v45, %v52
  %v86 = vadd.f32 %v46, %v52
  %v87 = vadd.f32 %v47, %v52
  %v88 = vadd.f32 %v48, %v52
  %v89 = vadd.f32 %v49, %v52
  %v90 = vmul.f32 %v54, %v54
  %v91 = vmul.f32 %v55, %v55
  %v92 = vmul.f32 %v56, %v56
  %v93 = vmul.f32 %v57, %v57
  %v94 = vmul.f32 %v58, %v58
  %v95 = vmul.f32 %v59, %v59
  %v96 = vmul.f32 %v60, %v60
  %v97 = vmul.f32 %v61, %v61
  %v98 = vmul.f32 %v62, %v62
  %v99 = vmul.f32 %v63, %v63
  %v100 = vmul.f32 %v64, %v64
  %v101 = vmul.f32 %v65, %v65
  %v102 = vmul.f32 %v66, %v66
  %v103 = vmul.f32 %v67, %v67
  %v104 = vmul.f32 %v68, %v68
  %v105 = vmul.f32 %v69, %v69
  %v106 = vmul.f32 %v70, %v70
  %v107 = vmul.f32 %v71, %v71
  %v108 = vmul.f32 %v72, %v72
  %v109 = vmul.f32 %v73, %v73
  %v110 = vmul.f32 %v74, %v74
  %v111 = vmul.f32 %v75, %v75
  %v112 = vmul.f32 %v76, %v76
  %v113 = vmul.f32 %v77, %v77
  %v114 = vmul.f32 %v78, %v78
  %v115 = vmul.f32 %v79, %v79
  %v116 = vmul.f32 %v80, %v80
  %v117 = vmul.f32 %v81, %v81
  %v118 = vmul.f32 %v82, %v82
  %v119 = vmul.f32 %v83, %v83
  %v120 = vmul.f32 %v84, %v84
  %v121 = vmul.f32 %v85, %v85
  %v122 = vmul.f32 %v86, %v86
  %v123 = vmul.f32 %v87, %v87
  %v124 = vmul.f32 %v88, %v88
  %v125 = vmul.f32 %v89, %v89
  %v126 = vmul.f32 %v90, %v54
  %v127 = vmul.f32 %v91, %v55
  %v128 = vmul.f32 %v92, %v56
  %v129 = vmul.f32 %v93, %v57
  %v130 = vmul.f32 %v94, %v58
  %v131 = vmul.f32 %v95, %v59
  %v132 = vmul.f32 %v96, %v60
  %v133 = vmul.f32 %v97, %v61
  %v134 = vmul.f32 %v98, %v62
  %v135 = vmul.f32 %v99, %v63
  %v136 = vmul.f32 %v100, %v64
  %v137 = vmul.f32 %v101, %v65
  %v138 = vmul.f32 %v102, %v66
  %v139 = vmul.f32 %v103, %v67
  %v140 = vmul.f32 %v104, %v68
  %v141 = vmul.f32 %v105, %v69
  %v142 = vmul.f32 %v106, %v70
  %v143 = vmul.f32 %v107, %v71
  %v144 = vmul.f32 %v108, %v72
  %v145 = vmul.f32 %v109, %v73
  %v146 = vmul.f32 %v110, %v74
  %v147 = vmul.f32 %v111, %v75
  %v148 = vmul.f32 %v112, %v76
  %v149 = vmul.f32 %v113, %v77
  %v150 = vmul.f32 %v114, %v78
  %v151 = vmul.f32 %v115, %v79
  %v152 = vmul.f32 %v116, %v80
  %v153 = vmul.f32 %v117, %v81
  %v154 = vmul.f32 %v118, %v82
  %v155 = vmul.f32 %v119, %v83
  %v156 = vmul.f32 %v120, %v84
  %v157 = vmul.f32 %v121, %v85
  %v158 = vmul.f32 %v122, %v86
  %v159 = vmul.f32 %v123, %v87
  %v160 = vmul.f32 %v124, %v88
  %v161 = vmul.f32 %v125, %v89
  %v162 = vmul.f32 %v54, 0.5
  %v163 = vmul.f32 %v55, 0.5
  %v164 = vmul.f32 %v56, 0.5
  %v165 = vmul.f32 %v57, 0.5
  %v166 = vmul.f32 %v58, 0.5
  %v167 = vmul.f32 %v59, 0.5
  %v168 = vmul.f32 %v60, 0.5
  %v169 = vmul.f32 %v61, 0.5
  %v170 = vmul.f32 %v62, 0.5
  %v171 = vmul.f32 %v63, 0.5
  %v172 = vmul.f32 %v64, 0.5
  %v173 = vmul.f32 %v65, 0.5
  %v174 = vmul.f32 %v66, 0.5
  %v175 = vmul.f32 %v67, 0.5
  %v176 = vmul.f32 %v68, 0.5
  %v177 = vmul.f32 %v69, 0.5
  %v178 = vmul.f32 %v70, 0.5
  %v179 = vmul.f32 %v71, 0.5
  %v180 = vmul.f32 %v72, 0.5
  %v181 = vmul.f32 %v73, 0.5
  %v182 = vmul.f32 %v74, 0.5
  %v183 = vmul.f32 %v75, 0.5
  %v184 = vmul.f32 %v76, 0.5
  %v185 = vmul.f32 %v77, 0.5
  %v186 = vmul.f32 %v78, 0.5
  %v187 = vmul.f32 %v79, 0.5
  %v188 = vmul.f32 %v80, 0.5
  %v189 = vmul.f32 %v81, 0.5
  %v190 = vmul.f32 %v82, 0.5
  %v191 = vmul.f32 %v83, 0.5
  %v192 = vmul.f32 %v84, 0.5
  %v193 = vmul.f32 %v85, 0.5
  %v194 = vmul.f32 %v86, 0.5
  %v195 = vmul.f32 %v87, 0.5
  %v196 = vmul.f32 %v88, 0.5
  %v197 = vmul.f32 %v89, 0.5
  %v198 = vmul.f32 %v126, 0.044715
  %v199 = vmul.f32 %v127, 0.044715
  %v200 = vmul.f32 %v128, 0.044715
  %v201 = vmul.f32 %v129, 0.044715
  %v202 = vmul.f32 %v130, 0.044715
  %v203 = vmul.f32 %v131, 0.044715
  %v204 = vmul.f32 %v132, 0.044715
  %v205 = vmul.f32 %v133, 0.044715
  %v206 = vmul.f32 %v134, 0.044715
  %v207 = vmul.f32 %v135, 0.044715
  %v208 = vmul.f32 %v136, 0.044715
  %v209 = vmul.f32 %v137, 0.044715
  %v210 = vmul.f32 %v138, 0.044715
  %v211 = vmul.f32 %v139, 0.044715
  %v212 = vmul.f32 %v140, 0.044715
  %v213 = vmul.f32 %v141, 0.044715
  %v214 = vmul.f32 %v142, 0.044715
  %v215 = vmul.f32 %v143, 0.044715
  %v216 = vmul.f32 %v144, 0.044715
  %v217 = vmul.f32 %v145, 0.044715
  %v218 = vmul.f32 %v146, 0.044715
  %v219 = vmul.f32 %v147, 0.044715
  %v220 = vmul.f32 %v148, 0.044715
  %v221 = vmul.f32 %v149, 0.044715
  %v222 = vmul.f32 %v150, 0.044715
  %v223 = vmul.f32 %v151, 0.044715
  %v224 = vmul.f32 %v152, 0.044715
  %v225 = vmul.f32 %v153, 0.044715
  %v226 = vmul.f32 %v154, 0.044715
  %v227 = vmul.f32 %v155, 0.044715
  %v228 = vmul.f32 %v156, 0.044715
  %v229 = vmul.f32 %v157, 0.044715
  %v230 = vmul.f32 %v158, 0.044715
  %v231 = vmul.f32 %v159, 0.044715
  %v232 = vmul.f32 %v160, 0.044715
  %v233 = vmul.f32 %v161, 0.044715
  %v234 = vadd.f32 %v54, %v198
  %v235 = vadd.f32 %v55, %v199
  %v236 = vadd.f32 %v56, %v200
  %v237 = vadd.f32 %v57, %v201
  %v238 = vadd.f32 %v58, %v202
  %v239 = vadd.f32 %v59, %v203
  %v240 = vadd.f32 %v60, %v204
  %v241 = vadd.f32 %v61, %v205
  %v242 = vadd.f32 %v62, %v206
  %v243 = vadd.f32 %v63, %v207
  %v244 = vadd.f32 %v64, %v208
  %v245 = vadd.f32 %v65, %v209
  %v246 = vadd.f32 %v66, %v210
  %v247 = vadd.f32 %v67, %v211
  %v248 = vadd.f32 %v68, %v212
  %v249 = vadd.f32 %v69, %v213
  %v250 = vadd.f32 %v70, %v214
  %v251 = vadd.f32 %v71, %v215
  %v252 = vadd.f32 %v72, %v216
  %v253 = vadd.f32 %v73, %v217
  %v254 = vadd.f32 %v74, %v218
  %v255 = vadd.f32 %v75, %v219
  %v256 = vadd.f32 %v76, %v220
  %v257 = vadd.f32 %v77, %v221
  %v258 = vadd.f32 %v78, %v222
  %v259 = vadd.f32 %v79, %v223
  %v260 = vadd.f32 %v80, %v224
  %v261 = vadd.f32 %v81, %v225
  %v262 = vadd.f32 %v82, %v226
  %v263 = vadd.f32 %v83, %v227
  %v264 = vadd.f32 %v84, %v228
  %v265 = vadd.f32 %v85, %v229
  %v266 = vadd.f32 %v86, %v230
  %v267 = vadd.f32 %v87, %v231
  %v268 = vadd.f32 %v88, %v232
  %v269 = vadd.f32 %v89, %v233
  %v270 = vmul.f32 %v234, 0.7978846
  %v271 = vmul.f32 %v235, 0.7978846
  %v272 = vmul.f32 %v236, 0.7978846
  %v273 = vmul.f32 %v237, 0.7978846
  %v274 = vmul.f32 %v238, 0.7978846
  %v275 = vmul.f32 %v239, 0.7978846
  %v276 = vmul.f32 %v240, 0.7978846
  %v277 = vmul.f32 %v241, 0.7978846
  %v278 = vmul.f32 %v242, 0.7978846
  %v279 = vmul.f32 %v243, 0.7978846
  %v280 = vmul.f32 %v244, 0.7978846
  %v281 = vmul.f32 %v245, 0.7978846
  %v282 = vmul.f32 %v246, 0.7978846
  %v283 = vmul.f32 %v247, 0.7978846
  %v284 = vmul.f32 %v248, 0.7978846
  %v285 = vmul.f32 %v249, 0.7978846
  %v286 = vmul.f32 %v250, 0.7978846
  %v287 = vmul.f32 %v251, 0.7978846
  %v288 = vmul.f32 %v252, 0.7978846
  %v289 = vmul.f32 %v253, 0.7978846
  %v290 = vmul.f32 %v254, 0.7978846
  %v291 = vmul.f32 %v255, 0.7978846
  %v292 = vmul.f32 %v256, 0.7978846
  %v293 = vmul.f32 %v257, 0.7978846
  %v294 = vmul.f32 %v258, 0.7978846
  %v295 = vmul.f32 %v259, 0.7978846
  %v296 = vmul.f32 %v260, 0.7978846
  %v297 = vmul.f32 %v261, 0.7978846
  %v298 = vmul.f32 %v262, 0.7978846
  %v299 = vmul.f32 %v263, 0.7978846
  %v300 = vmul.f32 %v264, 0.7978846
  %v301 = vmul.f32 %v265, 0.7978846
  %v302 = vmul.f32 %v266, 0.7978846
  %v303 = vmul.f32 %v267, 0.7978846
  %v304 = vmul.f32 %v268, 0.7978846
  %v305 = vmul.f32 %v269, 0.7978846
  %v306 = vtanh.pop %v270
  %v307 = vtanh.pop %v271
  %v308 = vtanh.pop %v272
  %v309 = vtanh.pop %v273
  %v310 = vtanh.pop %v274
  %v311 = vtanh.pop %v275
  %v312 = vtanh.pop %v276
  %v313 = vtanh.pop %v277
  %v314 = vtanh.pop %v278
  %v315 = vtanh.pop %v279
  %v316 = vtanh.pop %v280
  %v317 = vtanh.pop %v281
  %v318 = vtanh.pop %v282
  %v319 = vtanh.pop %v283
  %v320 = vtanh.pop %v284
  %v321 = vtanh.pop %v285
  %v322 = vtanh.pop %v286
  %v323 = vtanh.pop %v287
  %v324 = vtanh.pop %v288
  %v325 = vtanh.pop %v289
  %v326 = vtanh.pop %v290
  %v327 = vtanh.pop %v291
  %v328 = vtanh.pop %v292
  %v329 = vtanh.pop %v293
  %v330 = vtanh.pop %v294
  %v331 = vtanh.pop %v295
  %v332 = vtanh.pop %v296
  %v333 = vtanh.pop %v297
  %v334 = vtanh.pop %v298
  %v335 = vtanh.pop %v299
  %v336 = vtanh.pop %v300
  %v337 = vtanh.pop %v301
  %v338 = vtanh.pop %v302
  %v339 = vtanh.pop %v303
  %v340 = vtanh.pop %v304
  %v341 = vtanh.pop %v305
  %v342 = vadd.f32 %v306, 1.0
  %v343 = vadd.f32 %v307, 1.0
  %v344 = vadd.f32 %v308, 1.0
  %v345 = vadd.f32 %v309, 1.0
  %v346 = vadd.f32 %v310, 1.0
  %v347 = vadd.f32 %v311, 1.0
  %v348 = vadd.f32 %v312, 1.0
  %v349 = vadd.f32 %v313, 1.0
  %v350 = vadd.f32 %v314, 1.0
  %v351 = vadd.f32 %v315, 1.0
  %v352 = vadd.f32 %v316, 1.0
  %v353 = vadd.f32 %v317, 1.0
  %v354 = vadd.f32 %v318, 1.0
  %v355 = vadd.f32 %v319, 1.0
  %v356 = vadd.f32 %v320, 1.0
  %v357 = vadd.f32 %v321, 1.0
  %v358 = vadd.f32 %v322, 1.0
  %v359 = vadd.f32 %v323, 1.0
  %v360 = vadd.f32 %v324, 1.0
  %v361 = vadd.f32 %v325, 1.0
  %v362 = vadd.f32 %v326, 1.0
  %v363 = vadd.f32 %v327, 1.0
  %v364 = vadd.f32 %v328, 1.0
  %v365 = vadd.f32 %v329, 1.0
  %v366 = vadd.f32 %v330, 1.0
  %v367 = vadd.f32 %v331, 1.0
  %v368 = vadd.f32 %v332, 1.0
  %v369 = vadd.f32 %v333, 1.0
  %v370 = vadd.f32 %v334, 1.0
  %v371 = vadd.f32 %v335, 1.0
  %v372 = vadd.f32 %v336, 1.0
  %v373 = vadd.f32 %v337, 1.0
  %v374 = vadd.f32 %v338, 1.0
  %v375 = vadd.f32 %v339, 1.0
  %v376 = vadd.f32 %v340, 1.0
  %v377 = vadd.f32 %v341, 1.0
  %v378 = vmul.f32 %v162, %v342
  %v379 = vmul.f32 %v163, %v343
  %v380 = vmul.f32 %v164, %v344
  %v381 = vmul.f32 %v165, %v345
  %v382 = vmul.f32 %v166, %v346
  %v383 = vmul.f32 %v167, %v347
  %v384 = vmul.f32 %v168, %v348
  %v385 = vmul.f32 %v169, %v349
  %v386 = vmul.f32 %v170, %v350
  %v387 = vmul.f32 %v171, %v351
  %v388 = vmul.f32 %v172, %v352
  %v389 = vmul.f32 %v173, %v353
  %v390 = vmul.f32 %v174, %v354
  %v391 = vmul.f32 %v175, %v355
  %v392 = vmul.f32 %v176, %v356
  %v393 = vmul.f32 %v177, %v357
  %v394 = vmul.f32 %v178, %v358
  %v395 = vmul.f32 %v179, %v359
  %v396 = vmul.f32 %v180, %v360
  %v397 = vmul.f32 %v181, %v361
  %v398 = vmul.f32 %v182, %v362
  %v399 = vmul.f32 %v183, %v363
  %v400 = vmul.f32 %v184, %v364
  %v401 = vmul.f32 %v185, %v365
  %v402 = vmul.f32 %v186, %v366
  %v403 = vmul.f32 %v187, %v367
  %v404 = vmul.f32 %v188, %v368
  %v405 = vmul.f32 %v189, %v369
  %v406 = vmul.f32 %v190, %v370
  %v407 = vmul.f32 %v191, %v371
  %v408 = vmul.f32 %v192, %v372
  %v409 = vmul.f32 %v193, %v373
  %v410 = vmul.f32 %v194, %v374
  %v411 = vmul.f32 %v195, %v375
  %v412 = vmul.f32 %v196, %v376
  %v413 = vmul.f32 %v197, %v377
  %vm414 = vcmask 31744
  %415 = vst.msk [vmem:[#allocation2] sm:$0xff] %vm414, %v378
  %vm416 = vcmask 24576
  %417 = vst.msk [vmem:[#allocation2 + $0x8] sm:$0x1] %vm416, %v379
  %418 = vst.msk [vmem:[#allocation2 + $0x10] sm:$0xff] %vm414, %v380
  %419 = vst.msk [vmem:[#allocation2 + $0x18] sm:$0x1] %vm416, %v381
  %420 = vst.msk [vmem:[#allocation2 + $0x20] sm:$0xff] %vm414, %v382
  %421 = vst.msk [vmem:[#allocation2 + $0x28] sm:$0x1] %vm416, %v383
  %422 = vst.msk [vmem:[#allocation2 + $0x30] sm:$0xff] %vm414, %v384
  %423 = vst.msk [vmem:[#allocation2 + $0x38] sm:$0x1] %vm416, %v385
  %424 = vst.msk [vmem:[#allocation2 + $0x40] sm:$0xff] %vm414, %v386
  %425 = vst.msk [vmem:[#allocation2 + $0x48] sm:$0x1] %vm416, %v387
  %426 = vst.msk [vmem:[#allocation2 + $0x50] sm:$0xff] %vm414, %v388
  %427 = vst.msk [vmem:[#allocation2 + $0x58] sm:$0x1] %vm416, %v389
  %428 = vst.msk [vmem:[#allocation2 + $0x60] sm:$0xff] %vm414, %v390
  %429 = vst.msk [vmem:[#allocation2 + $0x68] sm:$0x1] %vm416, %v391
  %430 = vst.msk [vmem:[#allocation2 + $0x70] sm:$0xff] %vm414, %v392
  %431 = vst.msk [vmem:[#allocation2 + $0x78] sm:$0x1] %vm416, %v393
  %432 = vst.msk [vmem:[#allocation2 + $0x80] sm:$0xff] %vm414, %v394
  %433 = vst.msk [vmem:[#allocation2 + $0x88] sm:$0x1] %vm416, %v395
  %434 = vst.msk [vmem:[#allocation2 + $0x90] sm:$0xff] %vm414, %v396
  %435 = vst.msk [vmem:[#allocation2 + $0x98] sm:$0x1] %vm416, %v397
  %436 = vst.msk [vmem:[#allocation2 + $0xa0] sm:$0xff] %vm414, %v398
  %437 = vst.msk [vmem:[#allocation2 + $0xa8] sm:$0x1] %vm416, %v399
  %438 = vst.msk [vmem:[#allocation2 + $0xb0] sm:$0xff] %vm414, %v400
  %439 = vst.msk [vmem:[#allocation2 + $0xb8] sm:$0x1] %vm416, %v401
  %440 = vst.msk [vmem:[#allocation2 + $0xc0] sm:$0xff] %vm414, %v402
  %441 = vst.msk [vmem:[#allocation2 + $0xc8] sm:$0x1] %vm416, %v403
  %442 = vst.msk [vmem:[#allocation2 + $0xd0] sm:$0xff] %vm414, %v404
  %443 = vst.msk [vmem:[#allocation2 + $0xd8] sm:$0x1] %vm416, %v405
  %444 = vst.msk [vmem:[#allocation2 + $0xe0] sm:$0xff] %vm414, %v406
  %445 = vst.msk [vmem:[#allocation2 + $0xe8] sm:$0x1] %vm416, %v407
  %446 = vst.msk [vmem:[#allocation2 + $0xf0] sm:$0xff] %vm414, %v408
  %447 = vst.msk [vmem:[#allocation2 + $0xf8] sm:$0x1] %vm416, %v409
  %448 = vst.msk [vmem:[#allocation2 + $0x100] sm:$0xff] %vm414, %v410
  %449 = vst.msk [vmem:[#allocation2 + $0x108] sm:$0x1] %vm416, %v411
  %450 = vst.msk [vmem:[#allocation2 + $0x110] sm:$0xff] %vm414, %v412
  %451 = vst.msk [vmem:[#allocation2 + $0x118] sm:$0x1] %vm416, %v413
  %v452 = vld [vmem:[#allocation2] sm:$0x7f]
  %v453 = vld [vmem:[#allocation2 + $0x10] sm:$0x7f]
  %v454 = vld [vmem:[#allocation2 + $0x20] sm:$0x7f]
  %v455 = vld [vmem:[#allocation2 + $0x30] sm:$0x7f]
  %v456 = vld [vmem:[#allocation2 + $0x40] sm:$0x7f]
  %v457 = vld [vmem:[#allocation2 + $0x50] sm:$0x7f]
  %v458 = vld [vmem:[#allocation2 + $0x60] sm:$0x7f]
  %v459 = vld [vmem:[#allocation2 + $0x90] sm:$0x7f]
  %v460 = vld [vmem:[#allocation2 + $0xa0] sm:$0x7f]
  %v461 = vld [vmem:[#allocation2 + $0xb0] sm:$0x7f]
  %v462 = vld [vmem:[#allocation2 + $0xc0] sm:$0x7f]
  %v463 = vld [vmem:[#allocation2 + $0xd0] sm:$0x7f]
  %v464 = vld [vmem:[#allocation2 + $0xe0] sm:$0x7f]
  %v465 = vld [vmem:[#allocation2 + $0xf0] sm:$0x7f]
  %v466 = vld [vmem:[%s2] sm:$0x1]
  %v467 = vperm.slane %v466, 0
  %v468 = vmul.f32 %v452, %v467
  %v469 = vmul.f32 %v453, %v467
  %v470 = vmul.f32 %v454, %v467
  %v471 = vmul.f32 %v455, %v467
  %v472 = vmul.f32 %v456, %v467
  %v473 = vmul.f32 %v457, %v467
  %v474 = vmul.f32 %v458, %v467
  %v475 = vmul.f32 %v459, %v467
  %v476 = vmul.f32 %v460, %v467
  %v477 = vmul.f32 %v461, %v467
  %v478 = vmul.f32 %v462, %v467
  %v479 = vmul.f32 %v463, %v467
  %v480 = vmul.f32 %v464, %v467
  %v481 = vmul.f32 %v465, %v467
  %v482 = vadd.f32 %v468, 0.0
  %v483 = vadd.f32 %v469, 0.0
  %v484 = vadd.f32 %v470, 0.0
  %v485 = vadd.f32 %v471, 0.0
  %v486 = vadd.f32 %v472, 0.0
  %v487 = vadd.f32 %v473, 0.0
  %v488 = vadd.f32 %v474, 0.0
  %v489 = vadd.f32 %v475, 0.0
  %v490 = vadd.f32 %v476, 0.0
  %v491 = vadd.f32 %v477, 0.0
  %v492 = vadd.f32 %v478, 0.0
  %v493 = vadd.f32 %v479, 0.0
  %v494 = vadd.f32 %v480, 0.0
  %v495 = vadd.f32 %v481, 0.0
  %v496 = vld [vmem:[#allocation2 + $0x1] sm:$0x7f]
  %v497 = vld [vmem:[#allocation2 + $0x11] sm:$0x7f]
  %v498 = vld [vmem:[#allocation2 + $0x21] sm:$0x7f]
  %v499 = vld [vmem:[#allocation2 + $0x31] sm:$0x7f]
  %v500 = vld [vmem:[#allocation2 + $0x41] sm:$0x7f]
  %v501 = vld [vmem:[#allocation2 + $0x51] sm:$0x7f]
  %v502 = vld [vmem:[#allocation2 + $0x61] sm:$0x7f]
  %v503 = vld [vmem:[#allocation2 + $0x91] sm:$0x7f]
  %v504 = vld [vmem:[#allocation2 + $0xa1] sm:$0x7f]
  %v505 = vld [vmem:[#allocation2 + $0xb1] sm:$0x7f]
  %v506 = vld [vmem:[#allocation2 + $0xc1] sm:$0x7f]
  %v507 = vld [vmem:[#allocation2 + $0xd1] sm:$0x7f]
  %v508 = vld [vmem:[#allocation2 + $0xe1] sm:$0x7f]
  %v509 = vld [vmem:[#allocation2 + $0xf1] sm:$0x7f]
  %v510 = vld [vmem:[%s2 + $0x1] sm:$0x1]
  %v511 = vperm.slane %v510, 0
  %v512 = vmul.f32 %v496, %v511
  %v513 = vmul.f32 %v497, %v511
  %v514 = vmul.f32 %v498, %v511
  %v515 = vmul.f32 %v499, %v511
  %v516 = vmul.f32 %v500, %v511
  %v517 = vmul.f32 %v501, %v511
  %v518 = vmul.f32 %v502, %v511
  %v519 = vmul.f32 %v503, %v511
  %v520 = vmul.f32 %v504, %v511
  %v521 = vmul.f32 %v505, %v511
  %v522 = vmul.f32 %v506, %v511
  %v523 = vmul.f32 %v507, %v511
  %v524 = vmul.f32 %v508, %v511
  %v525 = vmul.f32 %v509, %v511
  %v526 = vadd.f32 %v482, %v512
  %v527 = vadd.f32 %v483, %v513
  %v528 = vadd.f32 %v484, %v514
  %v529 = vadd.f32 %v485, %v515
  %v530 = vadd.f32 %v486, %v516
  %v531 = vadd.f32 %v487, %v517
  %v532 = vadd.f32 %v488, %v518
  %v533 = vadd.f32 %v489, %v519
  %v534 = vadd.f32 %v490, %v520
  %v535 = vadd.f32 %v491, %v521
  %v536 = vadd.f32 %v492, %v522
  %v537 = vadd.f32 %v493, %v523
  %v538 = vadd.f32 %v494, %v524
  %v539 = vadd.f32 %v495, %v525
  %v540 = vld [vmem:[#allocation2 + $0x2] sm:$0x7f]
  %v541 = vld [vmem:[#allocation2 + $0x12] sm:$0x7f]
  %v542 = vld [vmem:[#allocation2 + $0x22] sm:$0x7f]
  %v543 = vld [vmem:[#allocation2 + $0x32] sm:$0x7f]
  %v544 = vld [vmem:[#allocation2 + $0x42] sm:$0x7f]
  %v545 = vld [vmem:[#allocation2 + $0x52] sm:$0x7f]
  %v546 = vld [vmem:[#allocation2 + $0x62] sm:$0x7f]
  %v547 = vld [vmem:[#allocation2 + $0x92] sm:$0x7f]
  %v548 = vld [vmem:[#allocation2 + $0xa2] sm:$0x7f]
  %v549 = vld [vmem:[#allocation2 + $0xb2] sm:$0x7f]
  %v550 = vld [vmem:[#allocation2 + $0xc2] sm:$0x7f]
  %v551 = vld [vmem:[#allocation2 + $0xd2] sm:$0x7f]
  %v552 = vld [vmem:[#allocation2 + $0xe2] sm:$0x7f]
  %v553 = vld [vmem:[#allocation2 + $0xf2] sm:$0x7f]
  %v554 = vld [vmem:[%s2 + $0x2] sm:$0x1]
  %v555 = vperm.slane %v554, 0
  %v556 = vmul.f32 %v540, %v555
  %v557 = vmul.f32 %v541, %v555
  %v558 = vmul.f32 %v542, %v555
  %v559 = vmul.f32 %v543, %v555
  %v560 = vmul.f32 %v544, %v555
  %v561 = vmul.f32 %v545, %v555
  %v562 = vmul.f32 %v546, %v555
  %v563 = vmul.f32 %v547, %v555
  %v564 = vmul.f32 %v548, %v555
  %v565 = vmul.f32 %v549, %v555
  %v566 = vmul.f32 %v550, %v555
  %v567 = vmul.f32 %v551, %v555
  %v568 = vmul.f32 %v552, %v555
  %v569 = vmul.f32 %v553, %v555
  %v570 = vadd.f32 %v526, %v556
  %v571 = vadd.f32 %v527, %v557
  %v572 = vadd.f32 %v528, %v558
  %v573 = vadd.f32 %v529, %v559
  %v574 = vadd.f32 %v530, %v560
  %v575 = vadd.f32 %v531, %v561
  %v576 = vadd.f32 %v532, %v562
  %v577 = vadd.f32 %v533, %v563
  %v578 = vadd.f32 %v534, %v564
  %v579 = vadd.f32 %v535, %v565
  %v580 = vadd.f32 %v536, %v566
  %v581 = vadd.f32 %v537, %v567
  %v582 = vadd.f32 %v538, %v568
  %v583 = vadd.f32 %v539, %v569
  %s584 = scalar_lea.vmem [#allocation2], 16
  %v585 = vld [vmem:[%s584] sm:$0x7f]
  %v586 = vld [vmem:[%s584 + $0x10] sm:$0x7f]
  %v587 = vld [vmem:[%s584 + $0x20] sm:$0x7f]
  %v588 = vld [vmem:[%s584 + $0x30] sm:$0x7f]
  %v589 = vld [vmem:[%s584 + $0x40] sm:$0x7f]
  %v590 = vld [vmem:[%s584 + $0x50] sm:$0x7f]
  %v591 = vld [vmem:[%s584 + $0x60] sm:$0x7f]
  %v592 = vld [vmem:[%s584 + $0x90] sm:$0x7f]
  %v593 = vld [vmem:[%s584 + $0xa0] sm:$0x7f]
  %v594 = vld [vmem:[%s584 + $0xb0] sm:$0x7f]
  %v595 = vld [vmem:[%s584 + $0xc0] sm:$0x7f]
  %v596 = vld [vmem:[%s584 + $0xd0] sm:$0x7f]
  %v597 = vld [vmem:[%s584 + $0xe0] sm:$0x7f]
  %v598 = vld [vmem:[%s584 + $0xf0] sm:$0x7f]
  %v599 = vld [vmem:[%s2 + $0x3] sm:$0x1]
  %v600 = vperm.slane %v599, 0
  %v601 = vmul.f32 %v585, %v600
  %v602 = vmul.f32 %v586, %v600
  %v603 = vmul.f32 %v587, %v600
  %v604 = vmul.f32 %v588, %v600
  %v605 = vmul.f32 %v589, %v600
  %v606 = vmul.f32 %v590, %v600
  %v607 = vmul.f32 %v591, %v600
  %v608 = vmul.f32 %v592, %v600
  %v609 = vmul.f32 %v593, %v600
  %v610 = vmul.f32 %v594, %v600
  %v611 = vmul.f32 %v595, %v600
  %v612 = vmul.f32 %v596, %v600
  %v613 = vmul.f32 %v597, %v600
  %v614 = vmul.f32 %v598, %v600
  %v615 = vadd.f32 %v570, %v601
  %v616 = vadd.f32 %v571, %v602
  %v617 = vadd.f32 %v572, %v603
  %v618 = vadd.f32 %v573, %v604
  %v619 = vadd.f32 %v574, %v605
  %v620 = vadd.f32 %v575, %v606
  %v621 = vadd.f32 %v576, %v607
  %v622 = vadd.f32 %v577, %v608
  %v623 = vadd.f32 %v578, %v609
  %v624 = vadd.f32 %v579, %v610
  %v625 = vadd.f32 %v580, %v611
  %v626 = vadd.f32 %v581, %v612
  %v627 = vadd.f32 %v582, %v613
  %v628 = vadd.f32 %v583, %v614
  %v629 = vld [vmem:[%s584 + $0x1] sm:$0x7f]
  %v630 = vld [vmem:[%s584 + $0x11] sm:$0x7f]
  %v631 = vld [vmem:[%s584 + $0x21] sm:$0x7f]
  %v632 = vld [vmem:[%s584 + $0x31] sm:$0x7f]
  %v633 = vld [vmem:[%s584 + $0x41] sm:$0x7f]
  %v634 = vld [vmem:[%s584 + $0x51] sm:$0x7f]
  %v635 = vld [vmem:[%s584 + $0x61] sm:$0x7f]
  %v636 = vld [vmem:[%s584 + $0x91] sm:$0x7f]
  %v637 = vld [vmem:[%s584 + $0xa1] sm:$0x7f]
  %v638 = vld [vmem:[%s584 + $0xb1] sm:$0x7f]
  %v639 = vld [vmem:[%s584 + $0xc1] sm:$0x7f]
  %v640 = vld [vmem:[%s584 + $0xd1] sm:$0x7f]
  %v641 = vld [vmem:[%s584 + $0xe1] sm:$0x7f]
  %v642 = vld [vmem:[%s584 + $0xf1] sm:$0x7f]
  %v643 = vld [vmem:[%s2 + $0x4] sm:$0x1]
  %v644 = vperm.slane %v643, 0
  %v645 = vmul.f32 %v629, %v644
  %v646 = vmul.f32 %v630, %v644
  %v647 = vmul.f32 %v631, %v644
  %v648 = vmul.f32 %v632, %v644
  %v649 = vmul.f32 %v633, %v644
  %v650 = vmul.f32 %v634, %v644
  %v651 = vmul.f32 %v635, %v644
  %v652 = vmul.f32 %v636, %v644
  %v653 = vmul.f32 %v637, %v644
  %v654 = vmul.f32 %v638, %v644
  %v655 = vmul.f32 %v639, %v644
  %v656 = vmul.f32 %v640, %v644
  %v657 = vmul.f32 %v641, %v644
  %v658 = vmul.f32 %v642, %v644
  %v659 = vadd.f32 %v615, %v645
  %v660 = vadd.f32 %v616, %v646
  %v661 = vadd.f32 %v617, %v647
  %v662 = vadd.f32 %v618, %v648
  %v663 = vadd.f32 %v619, %v649
  %v664 = vadd.f32 %v620, %v650
  %v665 = vadd.f32 %v621, %v651
  %v666 = vadd.f32 %v622, %v652
  %v667 = vadd.f32 %v623, %v653
  %v668 = vadd.f32 %v624, %v654
  %v669 = vadd.f32 %v625, %v655
  %v670 = vadd.f32 %v626, %v656
  %v671 = vadd.f32 %v627, %v657
  %v672 = vadd.f32 %v628, %v658
  %v673 = vld [vmem:[%s584 + $0x2] sm:$0x7f]
  %v674 = vld [vmem:[%s584 + $0x12] sm:$0x7f]
  %v675 = vld [vmem:[%s584 + $0x22] sm:$0x7f]
  %v676 = vld [vmem:[%s584 + $0x32] sm:$0x7f]
  %v677 = vld [vmem:[%s584 + $0x42] sm:$0x7f]
  %v678 = vld [vmem:[%s584 + $0x52] sm:$0x7f]
  %v679 = vld [vmem:[%s584 + $0x62] sm:$0x7f]
  %v680 = vld [vmem:[%s584 + $0x92] sm:$0x7f]
  %v681 = vld [vmem:[%s584 + $0xa2] sm:$0x7f]
  %v682 = vld [vmem:[%s584 + $0xb2] sm:$0x7f]
  %v683 = vld [vmem:[%s584 + $0xc2] sm:$0x7f]
  %v684 = vld [vmem:[%s584 + $0xd2] sm:$0x7f]
  %v685 = vld [vmem:[%s584 + $0xe2] sm:$0x7f]
  %v686 = vld [vmem:[%s584 + $0xf2] sm:$0x7f]
  %v687 = vld [vmem:[%s2 + $0x5] sm:$0x1]
  %v688 = vperm.slane %v687, 0
  %v689 = vmul.f32 %v673, %v688
  %v690 = vmul.f32 %v674, %v688
  %v691 = vmul.f32 %v675, %v688
  %v692 = vmul.f32 %v676, %v688
  %v693 = vmul.f32 %v677, %v688
  %v694 = vmul.f32 %v678, %v688
  %v695 = vmul.f32 %v679, %v688
  %v696 = vmul.f32 %v680, %v688
  %v697 = vmul.f32 %v681, %v688
  %v698 = vmul.f32 %v682, %v688
  %v699 = vmul.f32 %v683, %v688
  %v700 = vmul.f32 %v684, %v688
  %v701 = vmul.f32 %v685, %v688
  %v702 = vmul.f32 %v686, %v688
  %v703 = vadd.f32 %v659, %v689
  %v704 = vadd.f32 %v660, %v690
  %v705 = vadd.f32 %v661, %v691
  %v706 = vadd.f32 %v662, %v692
  %v707 = vadd.f32 %v663, %v693
  %v708 = vadd.f32 %v664, %v694
  %v709 = vadd.f32 %v665, %v695
  %v710 = vadd.f32 %v666, %v696
  %v711 = vadd.f32 %v667, %v697
  %v712 = vadd.f32 %v668, %v698
  %v713 = vadd.f32 %v669, %v699
  %v714 = vadd.f32 %v670, %v700
  %v715 = vadd.f32 %v671, %v701
  %v716 = vadd.f32 %v672, %v702
  %s717 = scalar_lea.vmem [#allocation2], 32
  %v718 = vld [vmem:[%s717] sm:$0x7f]
  %v719 = vld [vmem:[%s717 + $0x10] sm:$0x7f]
  %v720 = vld [vmem:[%s717 + $0x20] sm:$0x7f]
  %v721 = vld [vmem:[%s717 + $0x30] sm:$0x7f]
  %v722 = vld [vmem:[%s717 + $0x40] sm:$0x7f]
  %v723 = vld [vmem:[%s717 + $0x50] sm:$0x7f]
  %v724 = vld [vmem:[%s717 + $0x60] sm:$0x7f]
  %v725 = vld [vmem:[%s717 + $0x90] sm:$0x7f]
  %v726 = vld [vmem:[%s717 + $0xa0] sm:$0x7f]
  %v727 = vld [vmem:[%s717 + $0xb0] sm:$0x7f]
  %v728 = vld [vmem:[%s717 + $0xc0] sm:$0x7f]
  %v729 = vld [vmem:[%s717 + $0xd0] sm:$0x7f]
  %v730 = vld [vmem:[%s717 + $0xe0] sm:$0x7f]
  %v731 = vld [vmem:[%s717 + $0xf0] sm:$0x7f]
  %v732 = vld [vmem:[%s2 + $0x6] sm:$0x1]
  %v733 = vperm.slane %v732, 0
  %v734 = vmul.f32 %v718, %v733
  %v735 = vmul.f32 %v719, %v733
  %v736 = vmul.f32 %v720, %v733
  %v737 = vmul.f32 %v721, %v733
  %v738 = vmul.f32 %v722, %v733
  %v739 = vmul.f32 %v723, %v733
  %v740 = vmul.f32 %v724, %v733
  %v741 = vmul.f32 %v725, %v733
  %v742 = vmul.f32 %v726, %v733
  %v743 = vmul.f32 %v727, %v733
  %v744 = vmul.f32 %v728, %v733
  %v745 = vmul.f32 %v729, %v733
  %v746 = vmul.f32 %v730, %v733
  %v747 = vmul.f32 %v731, %v733
  %v748 = vadd.f32 %v703, %v734
  %v749 = vadd.f32 %v704, %v735
  %v750 = vadd.f32 %v705, %v736
  %v751 = vadd.f32 %v706, %v737
  %v752 = vadd.f32 %v707, %v738
  %v753 = vadd.f32 %v708, %v739
  %v754 = vadd.f32 %v709, %v740
  %v755 = vadd.f32 %v710, %v741
  %v756 = vadd.f32 %v711, %v742
  %v757 = vadd.f32 %v712, %v743
  %v758 = vadd.f32 %v713, %v744
  %v759 = vadd.f32 %v714, %v745
  %v760 = vadd.f32 %v715, %v746
  %v761 = vadd.f32 %v716, %v747
  %v762 = vld [vmem:[%s717 + $0x1] sm:$0x7f]
  %v763 = vld [vmem:[%s717 + $0x11] sm:$0x7f]
  %v764 = vld [vmem:[%s717 + $0x21] sm:$0x7f]
  %v765 = vld [vmem:[%s717 + $0x31] sm:$0x7f]
  %v766 = vld [vmem:[%s717 + $0x41] sm:$0x7f]
  %v767 = vld [vmem:[%s717 + $0x51] sm:$0x7f]
  %v768 = vld [vmem:[%s717 + $0x61] sm:$0x7f]
  %v769 = vld [vmem:[%s717 + $0x91] sm:$0x7f]
  %v770 = vld [vmem:[%s717 + $0xa1] sm:$0x7f]
  %v771 = vld [vmem:[%s717 + $0xb1] sm:$0x7f]
  %v772 = vld [vmem:[%s717 + $0xc1] sm:$0x7f]
  %v773 = vld [vmem:[%s717 + $0xd1] sm:$0x7f]
  %v774 = vld [vmem:[%s717 + $0xe1] sm:$0x7f]
  %v775 = vld [vmem:[%s717 + $0xf1] sm:$0x7f]
  %v776 = vld [vmem:[%s2 + $0x7] sm:$0x1]
  %v777 = vperm.slane %v776, 0
  %v778 = vmul.f32 %v762, %v777
  %v779 = vmul.f32 %v763, %v777
  %v780 = vmul.f32 %v764, %v777
  %v781 = vmul.f32 %v765, %v777
  %v782 = vmul.f32 %v766, %v777
  %v783 = vmul.f32 %v767, %v777
  %v784 = vmul.f32 %v768, %v777
  %v785 = vmul.f32 %v769, %v777
  %v786 = vmul.f32 %v770, %v777
  %v787 = vmul.f32 %v771, %v777
  %v788 = vmul.f32 %v772, %v777
  %v789 = vmul.f32 %v773, %v777
  %v790 = vmul.f32 %v774, %v777
  %v791 = vmul.f32 %v775, %v777
  %v792 = vadd.f32 %v748, %v778
  %v793 = vadd.f32 %v749, %v779
  %v794 = vadd.f32 %v750, %v780
  %v795 = vadd.f32 %v751, %v781
  %v796 = vadd.f32 %v752, %v782
  %v797 = vadd.f32 %v753, %v783
  %v798 = vadd.f32 %v754, %v784
  %v799 = vadd.f32 %v755, %v785
  %v800 = vadd.f32 %v756, %v786
  %v801 = vadd.f32 %v757, %v787
  %v802 = vadd.f32 %v758, %v788
  %v803 = vadd.f32 %v759, %v789
  %v804 = vadd.f32 %v760, %v790
  %v805 = vadd.f32 %v761, %v791
  %v806 = vld [vmem:[%s717 + $0x2] sm:$0x7f]
  %v807 = vld [vmem:[%s717 + $0x12] sm:$0x7f]
  %v808 = vld [vmem:[%s717 + $0x22] sm:$0x7f]
  %v809 = vld [vmem:[%s717 + $0x32] sm:$0x7f]
  %v810 = vld [vmem:[%s717 + $0x42] sm:$0x7f]
  %v811 = vld [vmem:[%s717 + $0x52] sm:$0x7f]
  %v812 = vld [vmem:[%s717 + $0x62] sm:$0x7f]
  %v813 = vld [vmem:[%s717 + $0x92] sm:$0x7f]
  %v814 = vld [vmem:[%s717 + $0xa2] sm:$0x7f]
  %v815 = vld [vmem:[%s717 + $0xb2] sm:$0x7f]
  %v816 = vld [vmem:[%s717 + $0xc2] sm:$0x7f]
  %v817 = vld [vmem:[%s717 + $0xd2] sm:$0x7f]
  %v818 = vld [vmem:[%s717 + $0xe2] sm:$0x7f]
  %v819 = vld [vmem:[%s717 + $0xf2] sm:$0x7f]
  %v820 = vld [vmem:[%s2 + $0x8] sm:$0x1]
  %v821 = vperm.slane %v820, 0
  %v822 = vmul.f32 %v806, %v821
  %v823 = vmul.f32 %v807, %v821
  %v824 = vmul.f32 %v808, %v821
  %v825 = vmul.f32 %v809, %v821
  %v826 = vmul.f32 %v810, %v821
  %v827 = vmul.f32 %v811, %v821
  %v828 = vmul.f32 %v812, %v821
  %v829 = vmul.f32 %v813, %v821
  %v830 = vmul.f32 %v814, %v821
  %v831 = vmul.f32 %v815, %v821
  %v832 = vmul.f32 %v816, %v821
  %v833 = vmul.f32 %v817, %v821
  %v834 = vmul.f32 %v818, %v821
  %v835 = vmul.f32 %v819, %v821
  %v836 = vadd.f32 %v792, %v822
  %v837 = vadd.f32 %v793, %v823
  %v838 = vadd.f32 %v794, %v824
  %v839 = vadd.f32 %v795, %v825
  %v840 = vadd.f32 %v796, %v826
  %v841 = vadd.f32 %v797, %v827
  %v842 = vadd.f32 %v798, %v828
  %v843 = vadd.f32 %v799, %v829
  %v844 = vadd.f32 %v800, %v830
  %v845 = vadd.f32 %v801, %v831
  %v846 = vadd.f32 %v802, %v832
  %v847 = vadd.f32 %v803, %v833
  %v848 = vadd.f32 %v804, %v834
  %v849 = vadd.f32 %v805, %v835
  %v850 = vmul.f32 %v836, %v836
  %v851 = vmul.f32 %v837, %v837
  %v852 = vmul.f32 %v838, %v838
  %v853 = vmul.f32 %v839, %v839
  %v854 = vmul.f32 %v840, %v840
  %v855 = vmul.f32 %v841, %v841
  %v856 = vmul.f32 %v842, %v842
  %v857 = vmul.f32 %v843, %v843
  %v858 = vmul.f32 %v844, %v844
  %v859 = vmul.f32 %v845, %v845
  %v860 = vmul.f32 %v846, %v846
  %v861 = vmul.f32 %v847, %v847
  %v862 = vmul.f32 %v848, %v848
  %v863 = vmul.f32 %v849, %v849
  %v864 = vmul.f32 %v850, %v836
  %v865 = vmul.f32 %v851, %v837
  %v866 = vmul.f32 %v852, %v838
  %v867 = vmul.f32 %v853, %v839
  %v868 = vmul.f32 %v854, %v840
  %v869 = vmul.f32 %v855, %v841
  %v870 = vmul.f32 %v856, %v842
  %v871 = vmul.f32 %v857, %v843
  %v872 = vmul.f32 %v858, %v844
  %v873 = vmul.f32 %v859, %v845
  %v874 = vmul.f32 %v860, %v846
  %v875 = vmul.f32 %v861, %v847
  %v876 = vmul.f32 %v862, %v848
  %v877 = vmul.f32 %v863, %v849
  %v878 = vmul.f32 %v836, 0.5
  %v879 = vmul.f32 %v837, 0.5
  %v880 = vmul.f32 %v838, 0.5
  %v881 = vmul.f32 %v839, 0.5
  %v882 = vmul.f32 %v840, 0.5
  %v883 = vmul.f32 %v841, 0.5
  %v884 = vmul.f32 %v842, 0.5
  %v885 = vmul.f32 %v843, 0.5
  %v886 = vmul.f32 %v844, 0.5
  %v887 = vmul.f32 %v845, 0.5
  %v888 = vmul.f32 %v846, 0.5
  %v889 = vmul.f32 %v847, 0.5
  %v890 = vmul.f32 %v848, 0.5
  %v891 = vmul.f32 %v849, 0.5
  %v892 = vmul.f32 %v864, 0.044715
  %v893 = vmul.f32 %v865, 0.044715
  %v894 = vmul.f32 %v866, 0.044715
  %v895 = vmul.f32 %v867, 0.044715
  %v896 = vmul.f32 %v868, 0.044715
  %v897 = vmul.f32 %v869, 0.044715
  %v898 = vmul.f32 %v870, 0.044715
  %v899 = vmul.f32 %v871, 0.044715
  %v900 = vmul.f32 %v872, 0.044715
  %v901 = vmul.f32 %v873, 0.044715
  %v902 = vmul.f32 %v874, 0.044715
  %v903 = vmul.f32 %v875, 0.044715
  %v904 = vmul.f32 %v876, 0.044715
  %v905 = vmul.f32 %v877, 0.044715
  %v906 = vadd.f32 %v836, %v892
  %v907 = vadd.f32 %v837, %v893
  %v908 = vadd.f32 %v838, %v894
  %v909 = vadd.f32 %v839, %v895
  %v910 = vadd.f32 %v840, %v896
  %v911 = vadd.f32 %v841, %v897
  %v912 = vadd.f32 %v842, %v898
  %v913 = vadd.f32 %v843, %v899
  %v914 = vadd.f32 %v844, %v900
  %v915 = vadd.f32 %v845, %v901
  %v916 = vadd.f32 %v846, %v902
  %v917 = vadd.f32 %v847, %v903
  %v918 = vadd.f32 %v848, %v904
  %v919 = vadd.f32 %v849, %v905
  %v920 = vmul.f32 %v906, 0.7978846
  %v921 = vmul.f32 %v907, 0.7978846
  %v922 = vmul.f32 %v908, 0.7978846
  %v923 = vmul.f32 %v909, 0.7978846
  %v924 = vmul.f32 %v910, 0.7978846
  %v925 = vmul.f32 %v911, 0.7978846
  %v926 = vmul.f32 %v912, 0.7978846
  %v927 = vmul.f32 %v913, 0.7978846
  %v928 = vmul.f32 %v914, 0.7978846
  %v929 = vmul.f32 %v915, 0.7978846
  %v930 = vmul.f32 %v916, 0.7978846
  %v931 = vmul.f32 %v917, 0.7978846
  %v932 = vmul.f32 %v918, 0.7978846
  %v933 = vmul.f32 %v919, 0.7978846
  %v934 = vtanh.pop %v920
  %v935 = vtanh.pop %v921
  %v936 = vtanh.pop %v922
  %v937 = vtanh.pop %v923
  %v938 = vtanh.pop %v924
  %v939 = vtanh.pop %v925
  %v940 = vtanh.pop %v926
  %v941 = vtanh.pop %v927
  %v942 = vtanh.pop %v928
  %v943 = vtanh.pop %v929
  %v944 = vtanh.pop %v930
  %v945 = vtanh.pop %v931
  %v946 = vtanh.pop %v932
  %v947 = vtanh.pop %v933
  %v948 = vadd.f32 %v934, 1.0
  %v949 = vadd.f32 %v935, 1.0
  %v950 = vadd.f32 %v936, 1.0
  %v951 = vadd.f32 %v937, 1.0
  %v952 = vadd.f32 %v938, 1.0
  %v953 = vadd.f32 %v939, 1.0
  %v954 = vadd.f32 %v940, 1.0
  %v955 = vadd.f32 %v941, 1.0
  %v956 = vadd.f32 %v942, 1.0
  %v957 = vadd.f32 %v943, 1.0
  %v958 = vadd.f32 %v944, 1.0
  %v959 = vadd.f32 %v945, 1.0
  %v960 = vadd.f32 %v946, 1.0
  %v961 = vadd.f32 %v947, 1.0
  %v962 = vmul.f32 %v878, %v948
  %v963 = vmul.f32 %v879, %v949
  %v964 = vmul.f32 %v880, %v950
  %v965 = vmul.f32 %v881, %v951
  %v966 = vmul.f32 %v882, %v952
  %v967 = vmul.f32 %v883, %v953
  %v968 = vmul.f32 %v884, %v954
  %v969 = vmul.f32 %v885, %v955
  %v970 = vmul.f32 %v886, %v956
  %v971 = vmul.f32 %v887, %v957
  %v972 = vmul.f32 %v888, %v958
  %v973 = vmul.f32 %v889, %v959
  %v974 = vmul.f32 %v890, %v960
  %v975 = vmul.f32 %v891, %v961
  %vm976 = vcmask 30720
  %977 = vst.msk [vmem:[%s3] sm:$0x7f] %vm976, %v962
  %978 = vst.msk [vmem:[%s3 + $0x8] sm:$0x7f] %vm976, %v963
  %979 = vst.msk [vmem:[%s3 + $0x10] sm:$0x7f] %vm976, %v964
  %980 = vst.msk [vmem:[%s3 + $0x18] sm:$0x7f] %vm976, %v965
  %981 = vst.msk [vmem:[%s3 + $0x20] sm:$0x7f] %vm976, %v966
  %982 = vst.msk [vmem:[%s3 + $0x28] sm:$0x7f] %vm976, %v967
  %983 = vst.msk [vmem:[%s3 + $0x30] sm:$0x7f] %vm976, %v968
  %984 = vst.msk [vmem:[%s3 + $0x38] sm:$0x7f] %vm976, %v969
  %985 = vst.msk [vmem:[%s3 + $0x40] sm:$0x7f] %vm976, %v970
  %986 = vst.msk [vmem:[%s3 + $0x48] sm:$0x7f] %vm976, %v971
  %987 = vst.msk [vmem:[%s3 + $0x50] sm:$0x7f] %vm976, %v972
  %988 = vst.msk [vmem:[%s3 + $0x58] sm:$0x7f] %vm976, %v973
  %989 = vst.msk [vmem:[%s3 + $0x60] sm:$0x7f] %vm976, %v974
  %990 = vst.msk [vmem:[%s3 + $0x68] sm:$0x7f] %vm976, %v975
  // Predicated region
  $region14: #{lmsa_forward.11} parent=0 // pred_check
    _
  $region15: #{lmsa_forward.11} parent=0 // pred_check_branch
    %992 = sbr.rel (0) target = $region17
  $region16: #{lmsa_forward.11} parent=0 // pred_region
    _
  $region17: #{lmsa_forward.11} parent=0 // pred_fallthru
    _
  // Predicated region
  $region18: #{lmsa_forward.11} parent=0 // pred_check
    _
  $region19: #{lmsa_forward.11} parent=0 // pred_check_branch
    %994 = sbr.rel (0) target = $region21
  $region20: #{lmsa_forward.11} parent=0 // pred_region
    _
  $region21: #{lmsa_forward.11} parent=0 // pred_fallthru
    _

// kernel: lmsa_forward.13
$region0: #{lmsa_forward.13}
  #allocation0 [shape = 'u32[]', space=smem, size = 0x4, offset = 0x4, fixed_abs, tag = 'smem constant byte address 0x4 - core index']
  #allocation1 [shape = 'u32[72,128]{1,0:T(1,128)}', space=vmem, size = 0x9000, scoped, tag = 'internal scratch']
  %s0 = inlined_call_operand.vmem [shape: f32[512,32], index: 0, kind: input, shape index: {}]
  %s1 = inlined_call_operand.vmem [shape: f32[32,16], index: 1, kind: input, shape index: {}]
  %s2 = inlined_call_operand.vmem [shape: f32[1,16], index: 2, kind: input, shape index: {}]
  %s3 = inlined_call_operand.vmem [shape: f32[16,32], index: 3, kind: input, shape index: {}]
  %s4 = inlined_call_operand.vmem [shape: f32[1,32], index: 4, kind: input, shape index: {}]
  %s5 = inlined_call_operand.vmem [shape: f32[512,32], index: 5, kind: input, shape index: {}]
  %s6 = inlined_call_operand.hbm [shape: f32[512,32], index: 6, kind: output, shape index: {}]
  %s7 = sld [smem:[#allocation0]]
  $region57: #{lmsa_forward.13} parent=0
    _
  %s9 = ssub.s32 1, %s7
  %s10 = scalar_select 0, %s9, %s7
  $region1: #{lmsa_forward.13} parent=0
    #allocation2 [shape = 'u8[262144]{0}', space=vmem, size = 0x40000, scoped, tag = 'output window, operand 0']
    #allocation3 [shape = 's32[2]{0}', space=sflag, size = 0x8, scoped, tag = 'scoped memory for lmsa_forward.13']
    %11 = vsyncpa [#allocation3], 0
    %s12 = scalar_lea.sflag [#allocation3], 1
    %13 = vsyncpa %s12, 0
    loop: start=0, step=1, limit=4
    $region2: #{lmsa_forward.13} parent=1 // loop_pre_header
      _
    $region3: #{lmsa_forward.13} parent=1 // loop_header
      %s15 = sphi 0, %s19
      %p16 = scmp.ge.s32.totalorder %s15, 4
      %s25 = sphi 0, %s27
      %s28 = sphi 0, %s25
      %s29 = sphi 0, %s28
      %s45 = sphi 0, %s29
      %s49 = sphi 0, %s49
      %s51 = sphi 0, %s49
      %s52 = sphi 0, %s51
      %s66 = sphi 0, %s52
      %s70 = sphi 0, %s70
      %s72 = sphi 0, %s70
      %s73 = sphi 0, %s72
      %s87 = sphi 0, %s73
      %s91 = sphi 0, %s91
      %s93 = sphi 0, %s91
      %s94 = sphi 0, %s93
      %s108 = sphi 0, %s94
      %s112 = sphi 0, %s112
      %s114 = sphi 0, %s112
      %s115 = sphi 0, %s114
      %s129 = sphi 0, %s115
      %s135 = sphi 0, %s137
      %s138 = sphi 0, %s135
      %s139 = sphi 0, %s138
      %s155 = sphi 0, %s139
      %s161 = sphi 0, %s163
      %s164 = sphi 0, %s161
      %s165 = sphi 0, %s164
      %s181 = sphi 0, %s165
    $region4: #{lmsa_forward.13} parent=1 // loop_header_branch
      %18 = sbr.rel (%p16) target = $region8
    $region5: #{lmsa_forward.13} parent=1 // loop_body
      %s20 = ssub.s32 %s15, 1
      %s21 = ssub.s32 %s15, 2
      %s22 = sadd.s32 %s15, 1
      %s23 = ssub.s32 %s15, %s22
      %p24 = scmp.eq.s32.totalorder %s23, 0
      %s26 = sadd.s32 %s25, 1
      %s27 = scalar_select %p24, %s25, %s26
      %p30 = pneg %p24
      %p31 = scmp.eq.s32.totalorder %s15, 1
      %p32 = por %p30, %p31
      %p33 = scmp.ne.s32.totalorder %s25, %s28
      %p34 = scmp.eq.s32.totalorder %s15, 0
      %p35 = por %p33, %p34
      %p36 = scmp.ne.s32.totalorder %s25, %s28
      %p37 = scmp.eq.s32.totalorder %s20, 1
      %p38 = por %p36, %p37
      %p39 = scmp.ne.s32.totalorder %s28, %s29
      %p40 = scmp.eq.s32.totalorder %s20, 0
      %p41 = por %p39, %p40
      %p42 = scmp.ne.s32.totalorder %s28, %s29
      %p43 = scmp.eq.s32.totalorder %s21, 1
      %p44 = por %p42, %p43
      %p46 = scmp.ne.s32.totalorder %s29, %s45
      %p47 = scmp.eq.s32.totalorder %s21, 0
      %p48 = por %p46, %p47
      %s50 = sadd.s32 %s49, 1
      %p53 = scmp.eq.s32.totalorder %s15, 1
      %p54 = scmp.ne.s32.totalorder %s49, %s51
      %p55 = scmp.eq.s32.totalorder %s15, 0
      %p56 = por %p54, %p55
      %p57 = scmp.ne.s32.totalorder %s49, %s51
      %p58 = scmp.eq.s32.totalorder %s20, 1
      %p59 = por %p57, %p58
      %p60 = scmp.ne.s32.totalorder %s51, %s52
      %p61 = scmp.eq.s32.totalorder %s20, 0
      %p62 = por %p60, %p61
      %p63 = scmp.ne.s32.totalorder %s51, %s52
      %p64 = scmp.eq.s32.totalorder %s21, 1
      %p65 = por %p63, %p64
      %p67 = scmp.ne.s32.totalorder %s52, %s66
      %p68 = scmp.eq.s32.totalorder %s21, 0
      %p69 = por %p67, %p68
      %s71 = sadd.s32 %s70, 1
      %p74 = scmp.eq.s32.totalorder %s15, 1
      %p75 = scmp.ne.s32.totalorder %s70, %s72
      %p76 = scmp.eq.s32.totalorder %s15, 0
      %p77 = por %p75, %p76
      %p78 = scmp.ne.s32.totalorder %s70, %s72
      %p79 = scmp.eq.s32.totalorder %s20, 1
      %p80 = por %p78, %p79
      %p81 = scmp.ne.s32.totalorder %s72, %s73
      %p82 = scmp.eq.s32.totalorder %s20, 0
      %p83 = por %p81, %p82
      %p84 = scmp.ne.s32.totalorder %s72, %s73
      %p85 = scmp.eq.s32.totalorder %s21, 1
      %p86 = por %p84, %p85
      %p88 = scmp.ne.s32.totalorder %s73, %s87
      %p89 = scmp.eq.s32.totalorder %s21, 0
      %p90 = por %p88, %p89
      %s92 = sadd.s32 %s91, 1
      %p95 = scmp.eq.s32.totalorder %s15, 1
      %p96 = scmp.ne.s32.totalorder %s91, %s93
      %p97 = scmp.eq.s32.totalorder %s15, 0
      %p98 = por %p96, %p97
      %p99 = scmp.ne.s32.totalorder %s91, %s93
      %p100 = scmp.eq.s32.totalorder %s20, 1
      %p101 = por %p99, %p100
      %p102 = scmp.ne.s32.totalorder %s93, %s94
      %p103 = scmp.eq.s32.totalorder %s20, 0
      %p104 = por %p102, %p103
      %p105 = scmp.ne.s32.totalorder %s93, %s94
      %p106 = scmp.eq.s32.totalorder %s21, 1
      %p107 = por %p105, %p106
      %p109 = scmp.ne.s32.totalorder %s94, %s108
      %p110 = scmp.eq.s32.totalorder %s21, 0
      %p111 = por %p109, %p110
      %s113 = sadd.s32 %s112, 1
      %p116 = scmp.eq.s32.totalorder %s15, 1
      %p117 = scmp.ne.s32.totalorder %s112, %s114
      %p118 = scmp.eq.s32.totalorder %s15, 0
      %p119 = por %p117, %p118
      %p120 = scmp.ne.s32.totalorder %s112, %s114
      %p121 = scmp.eq.s32.totalorder %s20, 1
      %p122 = por %p120, %p121
      %p123 = scmp.ne.s32.totalorder %s114, %s115
      %p124 = scmp.eq.s32.totalorder %s20, 0
      %p125 = por %p123, %p124
      %p126 = scmp.ne.s32.totalorder %s114, %s115
      %p127 = scmp.eq.s32.totalorder %s21, 1
      %p128 = por %p126, %p127
      %p130 = scmp.ne.s32.totalorder %s115, %s129
      %p131 = scmp.eq.s32.totalorder %s21, 0
      %p132 = por %p130, %p131
      %s133 = ssub.s32 %s15, %s22
      %p134 = scmp.eq.s32.totalorder %s133, 0
      %s136 = sadd.s32 %s135, 1
      %s137 = scalar_select %p134, %s135, %s136
      %p140 = pneg %p134
      %p141 = scmp.eq.s32.totalorder %s15, 1
      %p142 = por %p140, %p141
      %p143 = scmp.ne.s32.totalorder %s135, %s138
      %p144 = scmp.eq.s32.totalorder %s15, 0
      %p145 = por %p143, %p144
      %p146 = scmp.ne.s32.totalorder %s135, %s138
      %p147 = scmp.eq.s32.totalorder %s20, 1
      %p148 = por %p146, %p147
      %p149 = scmp.ne.s32.totalorder %s138, %s139
      %p150 = scmp.eq.s32.totalorder %s20, 0
      %p151 = por %p149, %p150
      %p152 = scmp.ne.s32.totalorder %s138, %s139
      %p153 = scmp.eq.s32.totalorder %s21, 1
      %p154 = por %p152, %p153
      %p156 = scmp.ne.s32.totalorder %s139, %s155
      %p157 = scmp.eq.s32.totalorder %s21, 0
      %p158 = por %p156, %p157
      %s159 = ssub.s32 %s15, %s22
      %p160 = scmp.eq.s32.totalorder %s159, 0
      %s162 = sadd.s32 %s161, 1
      %s163 = scalar_select %p160, %s161, %s162
      %p166 = pneg %p160
      %p167 = scmp.eq.s32.totalorder %s15, 1
      %p168 = por %p166, %p167
      %p169 = scmp.ne.s32.totalorder %s161, %s164
      %p170 = scmp.eq.s32.totalorder %s15, 0
      %p171 = por %p169, %p170
      %p172 = scmp.ne.s32.totalorder %s161, %s164
      %p173 = scmp.eq.s32.totalorder %s20, 1
      %p174 = por %p172, %p173
      %p175 = scmp.ne.s32.totalorder %s164, %s165
      %p176 = scmp.eq.s32.totalorder %s20, 0
      %p177 = por %p175, %p176
      %p178 = scmp.ne.s32.totalorder %s164, %s165
      %p179 = scmp.eq.s32.totalorder %s21, 1
      %p180 = por %p178, %p179
      %p182 = scmp.ne.s32.totalorder %s165, %s181
      %p183 = scmp.eq.s32.totalorder %s21, 0
      %p184 = por %p182, %p183
      %p185 = scmp.le.s32.totalorder 1, %s15
      %p186 = scmp.lt.s32.totalorder %s15, 3
      %p187 = pnand %p185, %p186
      %p188 = pneg %p187
      // Predicated region
      $region9: #{lmsa_forward.13} parent=5 // pred_check
        _
      $region10: #{lmsa_forward.13} parent=5 // pred_check_branch
        %190 = sbr.rel (%p187) target = $region12
      $region11: #{lmsa_forward.13} parent=5 // pred_region
        %s191 = ssub.s32 %s15, 1
        // Predicated region
        $region13: #{lmsa_forward.13} parent=11 // pred_check
          %p192 = pneg %p62
        $region14: #{lmsa_forward.13} parent=11 // pred_check_branch
          %194 = sbr.rel (%p192) target = $region16
        $region15: #{lmsa_forward.13} parent=11 // pred_region
          _
        $region16: #{lmsa_forward.13} parent=11 // pred_fallthru
          _
        // Predicated region
        $region17: #{lmsa_forward.13} parent=11 // pred_check
          %p195 = pneg %p83
        $region18: #{lmsa_forward.13} parent=11 // pred_check_branch
          %197 = sbr.rel (%p195) target = $region20
        $region19: #{lmsa_forward.13} parent=11 // pred_region
          _
        $region20: #{lmsa_forward.13} parent=11 // pred_fallthru
          _
        // Predicated region
        $region21: #{lmsa_forward.13} parent=11 // pred_check
          %p198 = pneg %p104
        $region22: #{lmsa_forward.13} parent=11 // pred_check_branch
          %200 = sbr.rel (%p198) target = $region24
        $region23: #{lmsa_forward.13} parent=11 // pred_region
          _
        $region24: #{lmsa_forward.13} parent=11 // pred_fallthru
          _
        // Predicated region
        $region25: #{lmsa_forward.13} parent=11 // pred_check
          %p201 = pneg %p125
        $region26: #{lmsa_forward.13} parent=11 // pred_check_branch
          %203 = sbr.rel (%p201) target = $region28
        $region27: #{lmsa_forward.13} parent=11 // pred_region
          _
        $region28: #{lmsa_forward.13} parent=11 // pred_fallthru
          _
      $region12: #{lmsa_forward.13} parent=5 // pred_fallthru
        _
      %p204 = scmp.lt.s32.totalorder %s15, 2
      // Predicated region
      $region29: #{lmsa_forward.13} parent=5 // pred_check
        %p205 = pneg %p204
      $region30: #{lmsa_forward.13} parent=5 // pred_check_branch
        %207 = sbr.rel (%p205) target = $region32
      $region31: #{lmsa_forward.13} parent=5 // pred_region
        // Predicated region
        $region33: #{lmsa_forward.13} parent=31 // pred_check
          %p208 = pneg %p35
        $region34: #{lmsa_forward.13} parent=31 // pred_check_branch
          %210 = sbr.rel (%p208) target = $region36
        $region35: #{lmsa_forward.13} parent=31 // pred_region
          %s211 = smul.u32 32, %s15
          %p212 = scmp.lt.s32.totalorder %s211, 63
          %s213 = scalar_select %p212, %s211, 63
          %s214 = smul.addr %s213, 8
          %s215 = scalar_lea.vmem %s0, %s214
          %s216 = smul.u32 32, %s15
        $region36: #{lmsa_forward.13} parent=31 // pred_fallthru
          _
        // Predicated region
        $region37: #{lmsa_forward.13} parent=31 // pred_check
          %p217 = pneg %p145
        $region38: #{lmsa_forward.13} parent=31 // pred_check_branch
          %219 = sbr.rel (%p217) target = $region40
        $region39: #{lmsa_forward.13} parent=31 // pred_region
          %s220 = smul.u32 32, %s15
          %p221 = scmp.lt.s32.totalorder %s220, 63
          %s222 = scalar_select %p221, %s220, 63
          %s223 = smul.addr %s222, 8
          %s224 = scalar_lea.vmem %s5, %s223
          %s225 = smul.u32 32, %s15
        $region40: #{lmsa_forward.13} parent=31 // pred_fallthru
          _
      $region32: #{lmsa_forward.13} parent=5 // pred_fallthru
        _
      %p226 = scmp.le.s32.totalorder 1, %s15
      %p227 = scmp.lt.s32.totalorder %s15, 3
      %p228 = pnand %p226, %p227
      %p229 = pneg %p228
      // Predicated region
      $region41: #{lmsa_forward.13} parent=5 // pred_check
        _
      $region42: #{lmsa_forward.13} parent=5 // pred_check_branch
        %231 = sbr.rel (%p228) target = $region44
      $region43: #{lmsa_forward.13} parent=5 // pred_region
        %s232 = ssub.s32 %s15, 1
        %s233 = smul.u32 32, %s20
        %p234 = scmp.lt.s32.totalorder %s233, 63
        %s235 = scalar_select %p234, %s233, 63
        %s236 = smul.addr %s235, 8
        %s237 = scalar_lea.vmem %s0, %s236
        %p238 = pneg %p41
        %p239 = pneg %p38
        %p240 = pneg %p62
        %p241 = pneg %p59
        %p242 = pneg %p83
        %p243 = pneg %p80
        %p244 = pneg %p104
        %p245 = pneg %p101
        %p246 = pneg %p125
        %p247 = pneg %p122
        %s248 = smul.u32 32, %s20
        %p249 = scmp.lt.s32.totalorder %s248, 63
        %s250 = scalar_select %p249, %s248, 63
        %s251 = smul.addr %s250, 8
        %s252 = scalar_lea.vmem %s5, %s251
        %p253 = pneg %p151
        %p254 = pneg %p148
        %p255 = pneg %p177
        %p256 = pneg %p174
        %s257 = sand.u32 %s164, 1
        %s258 = scalar_lea.sflag [#allocation3], %s257
        %s259 = sand.u32 %s164, 1
        %s260 = smul.addr %s259, 256
        %s261 = scalar_lea.vmem [#allocation2], %s260
        %s262 = smul.u32 32, %s20
        %p263 = scmp.lt.s32.totalorder %s262, 63
        %s264 = scalar_select %p263, %s262, 63
        %s265 = smul.addr %s264, 8
        %s266 = scalar_lea.vmem %s0, %s265
        %s267 = smul.u32 32, %s20
        %s268 = smul.u32 32, %s20
        %p269 = scmp.lt.s32.totalorder %s268, 63
        %s270 = scalar_select %p269, %s268, 63
        %s271 = smul.addr %s270, 8
        %s272 = scalar_lea.vmem %s5, %s271
        %s273 = smul.u32 32, %s20
        %s274 = smul.u32 32, %s20
        %v275 = vld [vmem:[%s266] sm:$0xff]
        %v276 = vld [vmem:[%s266 + $0x8] sm:$0xff]
        %v277 = vld [vmem:[%s266 + $0x10] sm:$0xff]
        %v278 = vld [vmem:[%s266 + $0x18] sm:$0xff]
        %v279 = vld [vmem:[%s266 + $0x20] sm:$0xff]
        %v280 = vld [vmem:[%s266 + $0x28] sm:$0xff]
        %v281 = vld [vmem:[%s266 + $0x30] sm:$0xff]
        %v282 = vld [vmem:[%s266 + $0x38] sm:$0xff]
        %v283 = vld [vmem:[%s266 + $0x40] sm:$0xff]
        %v284 = vld [vmem:[%s266 + $0x48] sm:$0xff]
        %v285 = vld [vmem:[%s266 + $0x50] sm:$0xff]
        %v286 = vld [vmem:[%s266 + $0x58] sm:$0xff]
        %v287 = vld [vmem:[%s266 + $0x60] sm:$0xff]
        %v288 = vld [vmem:[%s266 + $0x68] sm:$0xff]
        %v289 = vld [vmem:[%s266 + $0x70] sm:$0xff]
        %v290 = vld [vmem:[%s266 + $0x78] sm:$0xff]
        %v291 = vld [vmem:[%s266 + $0x80] sm:$0xff]
        %v292 = vld [vmem:[%s266 + $0x88] sm:$0xff]
        %v293 = vld [vmem:[%s266 + $0x90] sm:$0xff]
        %v294 = vld [vmem:[%s266 + $0x98] sm:$0xff]
        %v295 = vld [vmem:[%s266 + $0xa0] sm:$0xff]
        %v296 = vld [vmem:[%s266 + $0xa8] sm:$0xff]
        %v297 = vld [vmem:[%s266 + $0xb0] sm:$0xff]
        %v298 = vld [vmem:[%s266 + $0xb8] sm:$0xff]
        %v299 = vld [vmem:[%s266 + $0xc0] sm:$0xff]
        %v300 = vld [vmem:[%s266 + $0xc8] sm:$0xff]
        %v301 = vld [vmem:[%s266 + $0xd0] sm:$0xff]
        %v302 = vld [vmem:[%s266 + $0xd8] sm:$0xff]
        %v303 = vld [vmem:[%s266 + $0xe0] sm:$0xff]
        %v304 = vld [vmem:[%s266 + $0xe8] sm:$0xff]
        %v305 = vld [vmem:[%s266 + $0xf0] sm:$0xff]
        %v306 = vld [vmem:[%s266 + $0xf8] sm:$0xff]
        %v307 = vld [vmem:[%s1] sm:$0xff]
        %v308 = vld [vmem:[%s1 + $0x8] sm:$0xff]
        %v309 = vld [vmem:[%s1 + $0x10] sm:$0xff]
        %v310 = vld [vmem:[%s1 + $0x18] sm:$0xff]
        %v311 = vld [vmem:[%s2] sm:$0x1]
        %v313 = vperm.slane %v311, 0
        %vm315 = vcmask 261120
        %v317 = vsel %vm315, %v275, 0
        %v320 = vsel %vm315, %v276, 0
        %v323 = vsel %vm315, %v277, 0
        %v326 = vsel %vm315, %v278, 0
        %v329 = vsel %vm315, %v279, 0
        %v332 = vsel %vm315, %v280, 0
        %v335 = vsel %vm315, %v281, 0
        %v338 = vsel %vm315, %v282, 0
        %v341 = vsel %vm315, %v283, 0
        %v344 = vsel %vm315, %v284, 0
        %v347 = vsel %vm315, %v285, 0
        %v350 = vsel %vm315, %v286, 0
        %v353 = vsel %vm315, %v287, 0
        %v356 = vsel %vm315, %v288, 0
        %v359 = vsel %vm315, %v289, 0
        %v362 = vsel %vm315, %v290, 0
        %v365 = vsel %vm315, %v291, 0
        %v368 = vsel %vm315, %v292, 0
        %v371 = vsel %vm315, %v293, 0
        %v374 = vsel %vm315, %v294, 0
        %v377 = vsel %vm315, %v295, 0
        %v380 = vsel %vm315, %v296, 0
        %v383 = vsel %vm315, %v297, 0
        %v386 = vsel %vm315, %v298, 0
        %v389 = vsel %vm315, %v299, 0
        %v392 = vsel %vm315, %v300, 0
        %v395 = vsel %vm315, %v301, 0
        %v398 = vsel %vm315, %v302, 0
        %v401 = vsel %vm315, %v303, 0
        %v404 = vsel %vm315, %v304, 0
        %v407 = vsel %vm315, %v305, 0
        %v410 = vsel %vm315, %v306, 0
        %412 = vmatpush.msra.mxu0 0.0
        %413 = vmatpush.msra.mxu0 0.0
        %414 = vmatpush.msra.mxu0 0.0
        %415 = vmatpush.msra.mxu0 0.0
        %416 = vmatpush.msra.mxu0 0.0
        %417 = vmatpush.msra.mxu0 0.0
        %418 = vmatpush.msra.mxu0 0.0
        %419 = vmatpush.msra.mxu0 0.0
        %420 = vmatpush.msra.mxu0 0.0
        %421 = vmatpush.msra.mxu0 0.0
        %422 = vmatpush.msra.mxu0 0.0
        %423 = vmatpush.msra.mxu0 0.0
        %424 = vmatpush.msra.mxu0 %v310
        %425 = vmatpush.msra.mxu0 %v309
        %426 = vmatpush.msra.mxu0 %v308
        %427 = vmatpush.msra.mxu0 %v307
        %428 = vmatmul.f32.gmra.mxu0 %v317
        %v429 = vpop.f32.mrf.mxu0
        %v430 = vadd.f32 %v313, %v429
        %431 = vmatmul.f32.gmra.mxu0 %v320
        %v432 = vpop.f32.mrf.mxu0
        %v433 = vadd.f32 %v313, %v432
        %434 = vmatmul.f32.gmra.mxu0 %v323
        %v435 = vpop.f32.mrf.mxu0
        %v436 = vadd.f32 %v313, %v435
        %437 = vmatmul.f32.gmra.mxu0 %v326
        %v438 = vpop.f32.mrf.mxu0
        %v439 = vadd.f32 %v313, %v438
        %440 = vmatmul.f32.gmra.mxu0 %v329
        %v441 = vpop.f32.mrf.mxu0
        %v442 = vadd.f32 %v313, %v441
        %443 = vmatmul.f32.gmra.mxu0 %v332
        %v444 = vpop.f32.mrf.mxu0
        %v445 = vadd.f32 %v313, %v444
        %446 = vmatmul.f32.gmra.mxu0 %v335
        %v447 = vpop.f32.mrf.mxu0
        %v448 = vadd.f32 %v313, %v447
        %449 = vmatmul.f32.gmra.mxu0 %v338
        %v450 = vpop.f32.mrf.mxu0
        %v451 = vadd.f32 %v313, %v450
        %452 = vmatmul.f32.gmra.mxu0 %v341
        %v453 = vpop.f32.mrf.mxu0
        %v454 = vadd.f32 %v313, %v453
        %455 = vmatmul.f32.gmra.mxu0 %v344
        %v456 = vpop.f32.mrf.mxu0
        %v457 = vadd.f32 %v313, %v456
        %458 = vmatmul.f32.gmra.mxu0 %v347
        %v459 = vpop.f32.mrf.mxu0
        %v460 = vadd.f32 %v313, %v459
        %461 = vmatmul.f32.gmra.mxu0 %v350
        %v462 = vpop.f32.mrf.mxu0
        %v463 = vadd.f32 %v313, %v462
        %464 = vmatmul.f32.gmra.mxu0 %v353
        %v465 = vpop.f32.mrf.mxu0
        %v466 = vadd.f32 %v313, %v465
        %467 = vmatmul.f32.gmra.mxu0 %v356
        %v468 = vpop.f32.mrf.mxu0
        %v469 = vadd.f32 %v313, %v468
        %470 = vmatmul.f32.gmra.mxu0 %v359
        %v471 = vpop.f32.mrf.mxu0
        %v472 = vadd.f32 %v313, %v471
        %473 = vmatmul.f32.gmra.mxu0 %v362
        %v474 = vpop.f32.mrf.mxu0
        %v475 = vadd.f32 %v313, %v474
        %476 = vmatmul.f32.gmra.mxu0 %v365
        %v477 = vpop.f32.mrf.mxu0
        %v478 = vadd.f32 %v313, %v477
        %479 = vmatmul.f32.gmra.mxu0 %v368
        %v480 = vpop.f32.mrf.mxu0
        %v481 = vadd.f32 %v313, %v480
        %482 = vmatmul.f32.gmra.mxu0 %v371
        %v483 = vpop.f32.mrf.mxu0
        %v484 = vadd.f32 %v313, %v483
        %485 = vmatmul.f32.gmra.mxu0 %v374
        %v486 = vpop.f32.mrf.mxu0
        %v487 = vadd.f32 %v313, %v486
        %488 = vmatmul.f32.gmra.mxu0 %v377
        %v489 = vpop.f32.mrf.mxu0
        %v490 = vadd.f32 %v313, %v489
        %491 = vmatmul.f32.gmra.mxu0 %v380
        %v492 = vpop.f32.mrf.mxu0
        %v493 = vadd.f32 %v313, %v492
        %494 = vmatmul.f32.gmra.mxu0 %v383
        %v495 = vpop.f32.mrf.mxu0
        %v496 = vadd.f32 %v313, %v495
        %497 = vmatmul.f32.gmra.mxu0 %v386
        %v498 = vpop.f32.mrf.mxu0
        %v499 = vadd.f32 %v313, %v498
        %500 = vmatmul.f32.gmra.mxu0 %v389
        %v501 = vpop.f32.mrf.mxu0
        %v502 = vadd.f32 %v313, %v501
        %503 = vmatmul.f32.gmra.mxu0 %v392
        %v504 = vpop.f32.mrf.mxu0
        %v505 = vadd.f32 %v313, %v504
        %506 = vmatmul.f32.gmra.mxu0 %v395
        %v507 = vpop.f32.mrf.mxu0
        %v508 = vadd.f32 %v313, %v507
        %509 = vmatmul.f32.gmra.mxu0 %v398
        %v510 = vpop.f32.mrf.mxu0
        %v511 = vadd.f32 %v313, %v510
        %512 = vmatmul.f32.gmra.mxu0 %v401
        %v513 = vpop.f32.mrf.mxu0
        %v514 = vadd.f32 %v313, %v513
        %515 = vmatmul.f32.gmra.mxu0 %v404
        %v516 = vpop.f32.mrf.mxu0
        %v517 = vadd.f32 %v313, %v516
        %518 = vmatmul.f32.gmra.mxu0 %v407
        %v519 = vpop.f32.mrf.mxu0
        %v520 = vadd.f32 %v313, %v519
        %521 = vmatmul.f32.gmra.mxu0 %v410
        %v522 = vpop.f32.mrf.mxu0
        %v523 = vadd.f32 %v313, %v522
        %524 = vdwg.mxu0
        %v525 = vmul.f32 %v430, %v430
        %v526 = vmul.f32 %v433, %v433
        %v527 = vmul.f32 %v436, %v436
        %v528 = vmul.f32 %v439, %v439
        %v529 = vmul.f32 %v442, %v442
        %v530 = vmul.f32 %v445, %v445
        %v531 = vmul.f32 %v448, %v448
        %v532 = vmul.f32 %v451, %v451
        %v533 = vmul.f32 %v454, %v454
        %v534 = vmul.f32 %v457, %v457
        %v535 = vmul.f32 %v460, %v460
        %v536 = vmul.f32 %v463, %v463
        %v537 = vmul.f32 %v466, %v466
        %v538 = vmul.f32 %v469, %v469
        %v539 = vmul.f32 %v472, %v472
        %v540 = vmul.f32 %v475, %v475
        %v541 = vmul.f32 %v478, %v478
        %v542 = vmul.f32 %v481, %v481
        %v543 = vmul.f32 %v484, %v484
        %v544 = vmul.f32 %v487, %v487
        %v545 = vmul.f32 %v490, %v490
        %v546 = vmul.f32 %v493, %v493
        %v547 = vmul.f32 %v496, %v496
        %v548 = vmul.f32 %v499, %v499
        %v549 = vmul.f32 %v502, %v502
        %v550 = vmul.f32 %v505, %v505
        %v551 = vmul.f32 %v508, %v508
        %v552 = vmul.f32 %v511, %v511
        %v553 = vmul.f32 %v514, %v514
        %v554 = vmul.f32 %v517, %v517
        %v555 = vmul.f32 %v520, %v520
        %v556 = vmul.f32 %v523, %v523
        %v557 = vmul.f32 %v525, %v430
        %v558 = vmul.f32 %v526, %v433
        %v559 = vmul.f32 %v527, %v436
        %v560 = vmul.f32 %v528, %v439
        %v561 = vmul.f32 %v529, %v442
        %v562 = vmul.f32 %v530, %v445
        %v563 = vmul.f32 %v531, %v448
        %v564 = vmul.f32 %v532, %v451
        %v565 = vmul.f32 %v533, %v454
        %v566 = vmul.f32 %v534, %v457
        %v567 = vmul.f32 %v535, %v460
        %v568 = vmul.f32 %v536, %v463
        %v569 = vmul.f32 %v537, %v466
        %v570 = vmul.f32 %v538, %v469
        %v571 = vmul.f32 %v539, %v472
        %v572 = vmul.f32 %v540, %v475
        %v573 = vmul.f32 %v541, %v478
        %v574 = vmul.f32 %v542, %v481
        %v575 = vmul.f32 %v543, %v484
        %v576 = vmul.f32 %v544, %v487
        %v577 = vmul.f32 %v545, %v490
        %v578 = vmul.f32 %v546, %v493
        %v579 = vmul.f32 %v547, %v496
        %v580 = vmul.f32 %v548, %v499
        %v581 = vmul.f32 %v549, %v502
        %v582 = vmul.f32 %v550, %v505
        %v583 = vmul.f32 %v551, %v508
        %v584 = vmul.f32 %v552, %v511
        %v585 = vmul.f32 %v553, %v514
        %v586 = vmul.f32 %v554, %v517
        %v587 = vmul.f32 %v555, %v520
        %v588 = vmul.f32 %v556, %v523
        %v589 = vmul.f32 %v430, 0.5
        %v590 = vmul.f32 %v433, 0.5
        %v591 = vmul.f32 %v436, 0.5
        %v592 = vmul.f32 %v439, 0.5
        %v593 = vmul.f32 %v442, 0.5
        %v594 = vmul.f32 %v445, 0.5
        %v595 = vmul.f32 %v448, 0.5
        %v596 = vmul.f32 %v451, 0.5
        %v597 = vmul.f32 %v454, 0.5
        %v598 = vmul.f32 %v457, 0.5
        %v599 = vmul.f32 %v460, 0.5
        %v600 = vmul.f32 %v463, 0.5
        %v601 = vmul.f32 %v466, 0.5
        %v602 = vmul.f32 %v469, 0.5
        %v603 = vmul.f32 %v472, 0.5
        %v604 = vmul.f32 %v475, 0.5
        %v605 = vmul.f32 %v478, 0.5
        %v606 = vmul.f32 %v481, 0.5
        %v607 = vmul.f32 %v484, 0.5
        %v608 = vmul.f32 %v487, 0.5
        %v609 = vmul.f32 %v490, 0.5
        %v610 = vmul.f32 %v493, 0.5
        %v611 = vmul.f32 %v496, 0.5
        %v612 = vmul.f32 %v499, 0.5
        %v613 = vmul.f32 %v502, 0.5
        %v614 = vmul.f32 %v505, 0.5
        %v615 = vmul.f32 %v508, 0.5
        %v616 = vmul.f32 %v511, 0.5
        %v617 = vmul.f32 %v514, 0.5
        %v618 = vmul.f32 %v517, 0.5
        %v619 = vmul.f32 %v520, 0.5
        %v620 = vmul.f32 %v523, 0.5
        %v621 = vmul.f32 %v557, 0.044715
        %v622 = vmul.f32 %v558, 0.044715
        %v623 = vmul.f32 %v559, 0.044715
        %v624 = vmul.f32 %v560, 0.044715
        %v625 = vmul.f32 %v561, 0.044715
        %v626 = vmul.f32 %v562, 0.044715
        %v627 = vmul.f32 %v563, 0.044715
        %v628 = vmul.f32 %v564, 0.044715
        %v629 = vmul.f32 %v565, 0.044715
        %v630 = vmul.f32 %v566, 0.044715
        %v631 = vmul.f32 %v567, 0.044715
        %v632 = vmul.f32 %v568, 0.044715
        %v633 = vmul.f32 %v569, 0.044715
        %v634 = vmul.f32 %v570, 0.044715
        %v635 = vmul.f32 %v571, 0.044715
        %v636 = vmul.f32 %v572, 0.044715
        %v637 = vmul.f32 %v573, 0.044715
        %v638 = vmul.f32 %v574, 0.044715
        %v639 = vmul.f32 %v575, 0.044715
        %v640 = vmul.f32 %v576, 0.044715
        %v641 = vmul.f32 %v577, 0.044715
        %v642 = vmul.f32 %v578, 0.044715
        %v643 = vmul.f32 %v579, 0.044715
        %v644 = vmul.f32 %v580, 0.044715
        %v645 = vmul.f32 %v581, 0.044715
        %v646 = vmul.f32 %v582, 0.044715
        %v647 = vmul.f32 %v583, 0.044715
        %v648 = vmul.f32 %v584, 0.044715
        %v649 = vmul.f32 %v585, 0.044715
        %v650 = vmul.f32 %v586, 0.044715
        %v651 = vmul.f32 %v587, 0.044715
        %v652 = vmul.f32 %v588, 0.044715
        %v653 = vadd.f32 %v430, %v621
        %v654 = vadd.f32 %v433, %v622
        %v655 = vadd.f32 %v436, %v623
        %v656 = vadd.f32 %v439, %v624
        %v657 = vadd.f32 %v442, %v625
        %v658 = vadd.f32 %v445, %v626
        %v659 = vadd.f32 %v448, %v627
        %v660 = vadd.f32 %v451, %v628
        %v661 = vadd.f32 %v454, %v629
        %v662 = vadd.f32 %v457, %v630
        %v663 = vadd.f32 %v460, %v631
        %v664 = vadd.f32 %v463, %v632
        %v665 = vadd.f32 %v466, %v633
        %v666 = vadd.f32 %v469, %v634
        %v667 = vadd.f32 %v472, %v635
        %v668 = vadd.f32 %v475, %v636
        %v669 = vadd.f32 %v478, %v637
        %v670 = vadd.f32 %v481, %v638
        %v671 = vadd.f32 %v484, %v639
        %v672 = vadd.f32 %v487, %v640
        %v673 = vadd.f32 %v490, %v641
        %v674 = vadd.f32 %v493, %v642
        %v675 = vadd.f32 %v496, %v643
        %v676 = vadd.f32 %v499, %v644
        %v677 = vadd.f32 %v502, %v645
        %v678 = vadd.f32 %v505, %v646
        %v679 = vadd.f32 %v508, %v647
        %v680 = vadd.f32 %v511, %v648
        %v681 = vadd.f32 %v514, %v649
        %v682 = vadd.f32 %v517, %v650
        %v683 = vadd.f32 %v520, %v651
        %v684 = vadd.f32 %v523, %v652
        %v685 = vmul.f32 %v653, 0.7978846
        %v686 = vmul.f32 %v654, 0.7978846
        %v687 = vmul.f32 %v655, 0.7978846
        %v688 = vmul.f32 %v656, 0.7978846
        %v689 = vmul.f32 %v657, 0.7978846
        %v690 = vmul.f32 %v658, 0.7978846
        %v691 = vmul.f32 %v659, 0.7978846
        %v692 = vmul.f32 %v660, 0.7978846
        %v693 = vmul.f32 %v661, 0.7978846
        %v694 = vmul.f32 %v662, 0.7978846
        %v695 = vmul.f32 %v663, 0.7978846
        %v696 = vmul.f32 %v664, 0.7978846
        %v697 = vmul.f32 %v665, 0.7978846
        %v698 = vmul.f32 %v666, 0.7978846
        %v699 = vmul.f32 %v667, 0.7978846
        %v700 = vmul.f32 %v668, 0.7978846
        %v701 = vmul.f32 %v669, 0.7978846
        %v702 = vmul.f32 %v670, 0.7978846
        %v703 = vmul.f32 %v671, 0.7978846
        %v704 = vmul.f32 %v672, 0.7978846
        %v705 = vmul.f32 %v673, 0.7978846
        %v706 = vmul.f32 %v674, 0.7978846
        %v707 = vmul.f32 %v675, 0.7978846
        %v708 = vmul.f32 %v676, 0.7978846
        %v709 = vmul.f32 %v677, 0.7978846
        %v710 = vmul.f32 %v678, 0.7978846
        %v711 = vmul.f32 %v679, 0.7978846
        %v712 = vmul.f32 %v680, 0.7978846
        %v713 = vmul.f32 %v681, 0.7978846
        %v714 = vmul.f32 %v682, 0.7978846
        %v715 = vmul.f32 %v683, 0.7978846
        %v716 = vmul.f32 %v684, 0.7978846
        %v717 = vtanh.pop %v685
        %v718 = vtanh.pop %v686
        %v719 = vtanh.pop %v687
        %v720 = vtanh.pop %v688
        %v721 = vtanh.pop %v689
        %v722 = vtanh.pop %v690
        %v723 = vtanh.pop %v691
        %v724 = vtanh.pop %v692
        %v725 = vtanh.pop %v693
        %v726 = vtanh.pop %v694
        %v727 = vtanh.pop %v695
        %v728 = vtanh.pop %v696
        %v729 = vtanh.pop %v697
        %v730 = vtanh.pop %v698
        %v731 = vtanh.pop %v699
        %v732 = vtanh.pop %v700
        %v733 = vtanh.pop %v701
        %v734 = vtanh.pop %v702
        %v735 = vtanh.pop %v703
        %v736 = vtanh.pop %v704
        %v737 = vtanh.pop %v705
        %v738 = vtanh.pop %v706
        %v739 = vtanh.pop %v707
        %v740 = vtanh.pop %v708
        %v741 = vtanh.pop %v709
        %v742 = vtanh.pop %v710
        %v743 = vtanh.pop %v711
        %v744 = vtanh.pop %v712
        %v745 = vtanh.pop %v713
        %v746 = vtanh.pop %v714
        %v747 = vtanh.pop %v715
        %v748 = vtanh.pop %v716
        %v749 = vadd.f32 %v717, 1.0
        %v750 = vadd.f32 %v718, 1.0
        %v751 = vadd.f32 %v719, 1.0
        %v752 = vadd.f32 %v720, 1.0
        %v753 = vadd.f32 %v721, 1.0
        %v754 = vadd.f32 %v722, 1.0
        %v755 = vadd.f32 %v723, 1.0
        %v756 = vadd.f32 %v724, 1.0
        %v757 = vadd.f32 %v725, 1.0
        %v758 = vadd.f32 %v726, 1.0
        %v759 = vadd.f32 %v727, 1.0
        %v760 = vadd.f32 %v728, 1.0
        %v761 = vadd.f32 %v729, 1.0
        %v762 = vadd.f32 %v730, 1.0
        %v763 = vadd.f32 %v731, 1.0
        %v764 = vadd.f32 %v732, 1.0
        %v765 = vadd.f32 %v733, 1.0
        %v766 = vadd.f32 %v734, 1.0
        %v767 = vadd.f32 %v735, 1.0
        %v768 = vadd.f32 %v736, 1.0
        %v769 = vadd.f32 %v737, 1.0
        %v770 = vadd.f32 %v738, 1.0
        %v771 = vadd.f32 %v739, 1.0
        %v772 = vadd.f32 %v740, 1.0
        %v773 = vadd.f32 %v741, 1.0
        %v774 = vadd.f32 %v742, 1.0
        %v775 = vadd.f32 %v743, 1.0
        %v776 = vadd.f32 %v744, 1.0
        %v777 = vadd.f32 %v745, 1.0
        %v778 = vadd.f32 %v746, 1.0
        %v779 = vadd.f32 %v747, 1.0
        %v780 = vadd.f32 %v748, 1.0
        %v781 = vmul.f32 %v589, %v749
        %v782 = vmul.f32 %v590, %v750
        %v783 = vmul.f32 %v591, %v751
        %v784 = vmul.f32 %v592, %v752
        %v785 = vmul.f32 %v593, %v753
        %v786 = vmul.f32 %v594, %v754
        %v787 = vmul.f32 %v595, %v755
        %v788 = vmul.f32 %v596, %v756
        %v789 = vmul.f32 %v597, %v757
        %v790 = vmul.f32 %v598, %v758
        %v791 = vmul.f32 %v599, %v759
        %v792 = vmul.f32 %v600, %v760
        %v793 = vmul.f32 %v601, %v761
        %v794 = vmul.f32 %v602, %v762
        %v795 = vmul.f32 %v603, %v763
        %v796 = vmul.f32 %v604, %v764
        %v797 = vmul.f32 %v605, %v765
        %v798 = vmul.f32 %v606, %v766
        %v799 = vmul.f32 %v607, %v767
        %v800 = vmul.f32 %v608, %v768
        %v801 = vmul.f32 %v609, %v769
        %v802 = vmul.f32 %v610, %v770
        %v803 = vmul.f32 %v611, %v771
        %v804 = vmul.f32 %v612, %v772
        %v805 = vmul.f32 %v613, %v773
        %v806 = vmul.f32 %v614, %v774
        %v807 = vmul.f32 %v615, %v775
        %v808 = vmul.f32 %v616, %v776
        %v809 = vmul.f32 %v617, %v777
        %v810 = vmul.f32 %v618, %v778
        %v811 = vmul.f32 %v619, %v779
        %v812 = vmul.f32 %v620, %v780
        %v813 = vld [vmem:[%s3] sm:$0xff]
        %v814 = vld [vmem:[%s3 + $0x8] sm:$0xff]
        %v815 = vld [vmem:[%s4] sm:$0x1]
        %v817 = vperm.slane %v815, 0
        %vm819 = vcmask 130048
        %v821 = vsel %vm819, %v781, 0
        %v824 = vsel %vm819, %v782, 0
        %v827 = vsel %vm819, %v783, 0
        %v830 = vsel %vm819, %v784, 0
        %v833 = vsel %vm819, %v785, 0
        %v836 = vsel %vm819, %v786, 0
        %v839 = vsel %vm819, %v787, 0
        %v842 = vsel %vm819, %v788, 0
        %v845 = vsel %vm819, %v789, 0
        %v848 = vsel %vm819, %v790, 0
        %v851 = vsel %vm819, %v791, 0
        %v854 = vsel %vm819, %v792, 0
        %v857 = vsel %vm819, %v793, 0
        %v860 = vsel %vm819, %v794, 0
        %v863 = vsel %vm819, %v795, 0
        %v866 = vsel %vm819, %v796, 0
        %v869 = vsel %vm819, %v797, 0
        %v872 = vsel %vm819, %v798, 0
        %v875 = vsel %vm819, %v799, 0
        %v878 = vsel %vm819, %v800, 0
        %v881 = vsel %vm819, %v801, 0
        %v884 = vsel %vm819, %v802, 0
        %v887 = vsel %vm819, %v803, 0
        %v890 = vsel %vm819, %v804, 0
        %v893 = vsel %vm819, %v805, 0
        %v896 = vsel %vm819, %v806, 0
        %v899 = vsel %vm819, %v807, 0
        %v902 = vsel %vm819, %v808, 0
        %v905 = vsel %vm819, %v809, 0
        %v908 = vsel %vm819, %v810, 0
        %v911 = vsel %vm819, %v811, 0
        %v914 = vsel %vm819, %v812, 0
        %916 = vmatpush.msra.mxu0 0.0
        %917 = vmatpush.msra.mxu0 0.0
        %918 = vmatpush.msra.mxu0 0.0
        %919 = vmatpush.msra.mxu0 0.0
        %920 = vmatpush.msra.mxu0 0.0
        %921 = vmatpush.msra.mxu0 0.0
        %922 = vmatpush.msra.mxu0 0.0
        %923 = vmatpush.msra.mxu0 0.0
        %924 = vmatpush.msra.mxu0 0.0
        %925 = vmatpush.msra.mxu0 0.0
        %926 = vmatpush.msra.mxu0 0.0
        %927 = vmatpush.msra.mxu0 0.0
        %928 = vmatpush.msra.mxu0 0.0
        %929 = vmatpush.msra.mxu0 0.0
        %930 = vmatpush.msra.mxu0 %v814
        %931 = vmatpush.msra.mxu0 %v813
        %932 = vmatmul.f32.gmra.mxu0 %v821
        %v933 = vpop.f32.mrf.mxu0
        %v934 = vadd.f32 %v817, %v933
        %935 = vmatmul.f32.gmra.mxu0 %v824
        %v936 = vpop.f32.mrf.mxu0
        %v937 = vadd.f32 %v817, %v936
        %938 = vmatmul.f32.gmra.mxu0 %v827
        %v939 = vpop.f32.mrf.mxu0
        %v940 = vadd.f32 %v817, %v939
        %941 = vmatmul.f32.gmra.mxu0 %v830
        %v942 = vpop.f32.mrf.mxu0
        %v943 = vadd.f32 %v817, %v942
        %944 = vmatmul.f32.gmra.mxu0 %v833
        %v945 = vpop.f32.mrf.mxu0
        %v946 = vadd.f32 %v817, %v945
        %947 = vmatmul.f32.gmra.mxu0 %v836
        %v948 = vpop.f32.mrf.mxu0
        %v949 = vadd.f32 %v817, %v948
        %950 = vmatmul.f32.gmra.mxu0 %v839
        %v951 = vpop.f32.mrf.mxu0
        %v952 = vadd.f32 %v817, %v951
        %953 = vmatmul.f32.gmra.mxu0 %v842
        %v954 = vpop.f32.mrf.mxu0
        %v955 = vadd.f32 %v817, %v954
        %956 = vmatmul.f32.gmra.mxu0 %v845
        %v957 = vpop.f32.mrf.mxu0
        %v958 = vadd.f32 %v817, %v957
        %959 = vmatmul.f32.gmra.mxu0 %v848
        %v960 = vpop.f32.mrf.mxu0
        %v961 = vadd.f32 %v817, %v960
        %962 = vmatmul.f32.gmra.mxu0 %v851
        %v963 = vpop.f32.mrf.mxu0
        %v964 = vadd.f32 %v817, %v963
        %965 = vmatmul.f32.gmra.mxu0 %v854
        %v966 = vpop.f32.mrf.mxu0
        %v967 = vadd.f32 %v817, %v966
        %968 = vmatmul.f32.gmra.mxu0 %v857
        %v969 = vpop.f32.mrf.mxu0
        %v970 = vadd.f32 %v817, %v969
        %971 = vmatmul.f32.gmra.mxu0 %v860
        %v972 = vpop.f32.mrf.mxu0
        %v973 = vadd.f32 %v817, %v972
        %974 = vmatmul.f32.gmra.mxu0 %v863
        %v975 = vpop.f32.mrf.mxu0
        %v976 = vadd.f32 %v817, %v975
        %977 = vmatmul.f32.gmra.mxu0 %v866
        %v978 = vpop.f32.mrf.mxu0
        %v979 = vadd.f32 %v817, %v978
        %980 = vmatmul.f32.gmra.mxu0 %v869
        %v981 = vpop.f32.mrf.mxu0
        %v982 = vadd.f32 %v817, %v981
        %983 = vmatmul.f32.gmra.mxu0 %v872
        %v984 = vpop.f32.mrf.mxu0
        %v985 = vadd.f32 %v817, %v984
        %986 = vmatmul.f32.gmra.mxu0 %v875
        %v987 = vpop.f32.mrf.mxu0
        %v988 = vadd.f32 %v817, %v987
        %989 = vmatmul.f32.gmra.mxu0 %v878
        %v990 = vpop.f32.mrf.mxu0
        %v991 = vadd.f32 %v817, %v990
        %992 = vmatmul.f32.gmra.mxu0 %v881
        %v993 = vpop.f32.mrf.mxu0
        %v994 = vadd.f32 %v817, %v993
        %995 = vmatmul.f32.gmra.mxu0 %v884
        %v996 = vpop.f32.mrf.mxu0
        %v997 = vadd.f32 %v817, %v996
        %998 = vmatmul.f32.gmra.mxu0 %v887
        %v999 = vpop.f32.mrf.mxu0
        %v1000 = vadd.f32 %v817, %v999
        %1001 = vmatmul.f32.gmra.mxu0 %v890
        %v1002 = vpop.f32.mrf.mxu0
        %v1003 = vadd.f32 %v817, %v1002
        %1004 = vmatmul.f32.gmra.mxu0 %v893
        %v1005 = vpop.f32.mrf.mxu0
        %v1006 = vadd.f32 %v817, %v1005
        %1007 = vmatmul.f32.gmra.mxu0 %v896
        %v1008 = vpop.f32.mrf.mxu0
        %v1009 = vadd.f32 %v817, %v1008
        %1010 = vmatmul.f32.gmra.mxu0 %v899
        %v1011 = vpop.f32.mrf.mxu0
        %v1012 = vadd.f32 %v817, %v1011
        %1013 = vmatmul.f32.gmra.mxu0 %v902
        %v1014 = vpop.f32.mrf.mxu0
        %v1015 = vadd.f32 %v817, %v1014
        %1016 = vmatmul.f32.gmra.mxu0 %v905
        %v1017 = vpop.f32.mrf.mxu0
        %v1018 = vadd.f32 %v817, %v1017
        %1019 = vmatmul.f32.gmra.mxu0 %v908
        %v1020 = vpop.f32.mrf.mxu0
        %v1021 = vadd.f32 %v817, %v1020
        %1022 = vmatmul.f32.gmra.mxu0 %v911
        %v1023 = vpop.f32.mrf.mxu0
        %v1024 = vadd.f32 %v817, %v1023
        %1025 = vmatmul.f32.gmra.mxu0 %v914
        %v1026 = vpop.f32.mrf.mxu0
        %v1027 = vadd.f32 %v817, %v1026
        %1028 = vdwg.mxu0
        %v1029 = vld [vmem:[%s272] sm:$0xff]
        %v1030 = vld [vmem:[%s272 + $0x8] sm:$0xff]
        %v1031 = vld [vmem:[%s272 + $0x10] sm:$0xff]
        %v1032 = vld [vmem:[%s272 + $0x18] sm:$0xff]
        %v1033 = vld [vmem:[%s272 + $0x20] sm:$0xff]
        %v1034 = vld [vmem:[%s272 + $0x28] sm:$0xff]
        %v1035 = vld [vmem:[%s272 + $0x30] sm:$0xff]
        %v1036 = vld [vmem:[%s272 + $0x38] sm:$0xff]
        %v1037 = vld [vmem:[%s272 + $0x40] sm:$0xff]
        %v1038 = vld [vmem:[%s272 + $0x48] sm:$0xff]
        %v1039 = vld [vmem:[%s272 + $0x50] sm:$0xff]
        %v1040 = vld [vmem:[%s272 + $0x58] sm:$0xff]
        %v1041 = vld [vmem:[%s272 + $0x60] sm:$0xff]
        %v1042 = vld [vmem:[%s272 + $0x68] sm:$0xff]
        %v1043 = vld [vmem:[%s272 + $0x70] sm:$0xff]
        %v1044 = vld [vmem:[%s272 + $0x78] sm:$0xff]
        %v1045 = vld [vmem:[%s272 + $0x80] sm:$0xff]
        %v1046 = vld [vmem:[%s272 + $0x88] sm:$0xff]
        %v1047 = vld [vmem:[%s272 + $0x90] sm:$0xff]
        %v1048 = vld [vmem:[%s272 + $0x98] sm:$0xff]
        %v1049 = vld [vmem:[%s272 + $0xa0] sm:$0xff]
        %v1050 = vld [vmem:[%s272 + $0xa8] sm:$0xff]
        %v1051 = vld [vmem:[%s272 + $0xb0] sm:$0xff]
        %v1052 = vld [vmem:[%s272 + $0xb8] sm:$0xff]
        %v1053 = vld [vmem:[%s272 + $0xc0] sm:$0xff]
        %v1054 = vld [vmem:[%s272 + $0xc8] sm:$0xff]
        %v1055 = vld [vmem:[%s272 + $0xd0] sm:$0xff]
        %v1056 = vld [vmem:[%s272 + $0xd8] sm:$0xff]
        %v1057 = vld [vmem:[%s272 + $0xe0] sm:$0xff]
        %v1058 = vld [vmem:[%s272 + $0xe8] sm:$0xff]
        %v1059 = vld [vmem:[%s272 + $0xf0] sm:$0xff]
        %v1060 = vld [vmem:[%s272 + $0xf8] sm:$0xff]
        %v1061 = vadd.f32 %v1029, %v934
        %v1062 = vadd.f32 %v1030, %v937
        %v1063 = vadd.f32 %v1031, %v940
        %v1064 = vadd.f32 %v1032, %v943
        %v1065 = vadd.f32 %v1033, %v946
        %v1066 = vadd.f32 %v1034, %v949
        %v1067 = vadd.f32 %v1035, %v952
        %v1068 = vadd.f32 %v1036, %v955
        %v1069 = vadd.f32 %v1037, %v958
        %v1070 = vadd.f32 %v1038, %v961
        %v1071 = vadd.f32 %v1039, %v964
        %v1072 = vadd.f32 %v1040, %v967
        %v1073 = vadd.f32 %v1041, %v970
        %v1074 = vadd.f32 %v1042, %v973
        %v1075 = vadd.f32 %v1043, %v976
        %v1076 = vadd.f32 %v1044, %v979
        %v1077 = vadd.f32 %v1045, %v982
        %v1078 = vadd.f32 %v1046, %v985
        %v1079 = vadd.f32 %v1047, %v988
        %v1080 = vadd.f32 %v1048, %v991
        %v1081 = vadd.f32 %v1049, %v994
        %v1082 = vadd.f32 %v1050, %v997
        %v1083 = vadd.f32 %v1051, %v1000
        %v1084 = vadd.f32 %v1052, %v1003
        %v1085 = vadd.f32 %v1053, %v1006
        %v1086 = vadd.f32 %v1054, %v1009
        %v1087 = vadd.f32 %v1055, %v1012
        %v1088 = vadd.f32 %v1056, %v1015
        %v1089 = vadd.f32 %v1057, %v1018
        %v1090 = vadd.f32 %v1058, %v1021
        %v1091 = vadd.f32 %v1059, %v1024
        %v1092 = vadd.f32 %v1060, %v1027
        %1093 = vst.msk [vmem:[%s261] sm:$0xff] %vm315, %v1061
        %1094 = vst.msk [vmem:[%s261 + $0x8] sm:$0xff] %vm315, %v1062
        %1095 = vst.msk [vmem:[%s261 + $0x10] sm:$0xff] %vm315, %v1063
        %1096 = vst.msk [vmem:[%s261 + $0x18] sm:$0xff] %vm315, %v1064
        %1097 = vst.msk [vmem:[%s261 + $0x20] sm:$0xff] %vm315, %v1065
        %1098 = vst.msk [vmem:[%s261 + $0x28] sm:$0xff] %vm315, %v1066
        %1099 = vst.msk [vmem:[%s261 + $0x30] sm:$0xff] %vm315, %v1067
        %1100 = vst.msk [vmem:[%s261 + $0x38] sm:$0xff] %vm315, %v1068
        %1101 = vst.msk [vmem:[%s261 + $0x40] sm:$0xff] %vm315, %v1069
        %1102 = vst.msk [vmem:[%s261 + $0x48] sm:$0xff] %vm315, %v1070
        %1103 = vst.msk [vmem:[%s261 + $0x50] sm:$0xff] %vm315, %v1071
        %1104 = vst.msk [vmem:[%s261 + $0x58] sm:$0xff] %vm315, %v1072
        %1105 = vst.msk [vmem:[%s261 + $0x60] sm:$0xff] %vm315, %v1073
        %1106 = vst.msk [vmem:[%s261 + $0x68] sm:$0xff] %vm315, %v1074
        %1107 = vst.msk [vmem:[%s261 + $0x70] sm:$0xff] %vm315, %v1075
        %1108 = vst.msk [vmem:[%s261 + $0x78] sm:$0xff] %vm315, %v1076
        %1109 = vst.msk [vmem:[%s261 + $0x80] sm:$0xff] %vm315, %v1077
        %1110 = vst.msk [vmem:[%s261 + $0x88] sm:$0xff] %vm315, %v1078
        %1111 = vst.msk [vmem:[%s261 + $0x90] sm:$0xff] %vm315, %v1079
        %1112 = vst.msk [vmem:[%s261 + $0x98] sm:$0xff] %vm315, %v1080
        %1113 = vst.msk [vmem:[%s261 + $0xa0] sm:$0xff] %vm315, %v1081
        %1114 = vst.msk [vmem:[%s261 + $0xa8] sm:$0xff] %vm315, %v1082
        %1115 = vst.msk [vmem:[%s261 + $0xb0] sm:$0xff] %vm315, %v1083
        %1116 = vst.msk [vmem:[%s261 + $0xb8] sm:$0xff] %vm315, %v1084
        %1117 = vst.msk [vmem:[%s261 + $0xc0] sm:$0xff] %vm315, %v1085
        %1118 = vst.msk [vmem:[%s261 + $0xc8] sm:$0xff] %vm315, %v1086
        %1119 = vst.msk [vmem:[%s261 + $0xd0] sm:$0xff] %vm315, %v1087
        %1120 = vst.msk [vmem:[%s261 + $0xd8] sm:$0xff] %vm315, %v1088
        %1121 = vst.msk [vmem:[%s261 + $0xe0] sm:$0xff] %vm315, %v1089
        %1122 = vst.msk [vmem:[%s261 + $0xe8] sm:$0xff] %vm315, %v1090
        %1123 = vst.msk [vmem:[%s261 + $0xf0] sm:$0xff] %vm315, %v1091
        %1124 = vst.msk [vmem:[%s261 + $0xf8] sm:$0xff] %vm315, %v1092
        %s1125 = sand.u32 %s164, 1
        %s1126 = scalar_lea.sflag [#allocation3], %s1125
        %s1127 = sand.u32 %s164, 1
        %s1128 = smul.addr %s1127, 256
        %s1129 = scalar_lea.vmem [#allocation2], %s1128
        // Predicated region
        $region45: #{lmsa_forward.13} parent=43 // pred_check
          %p1130 = pneg %p174
        $region46: #{lmsa_forward.13} parent=43 // pred_check_branch
          %1132 = sbr.rel (%p1130) target = $region48
        $region47: #{lmsa_forward.13} parent=43 // pred_region
          %s1133 = smul.u32 32, %s20
          %1135 = vsyncadd %s1126, 0
          %s1136 = smul.addr %s1133, 8
          %s1137 = scalar_lea.hbm %s6, %s1136
          %s1138 = sshll.u32 %s1129, 4
          %s1139 = int_to_ptr.vmem [resolvable:$true] %s1138
          %s1140 = sshll.u32 %s1137, 4
          %s1141 = int_to_ptr.hbm [resolvable:$true] %s1140
          %1146 = dma.vmem_to_hbm [thread:$0]  %s1139, 4096, %s1141, %s1126, 128, 128, 8
        $region48: #{lmsa_forward.13} parent=43 // pred_fallthru
          _
      $region44: #{lmsa_forward.13} parent=5 // pred_fallthru
        _
      %p1147 = scmp.le.s32.totalorder 2, %s15
      // Predicated region
      $region49: #{lmsa_forward.13} parent=5 // pred_check
        %p1148 = pneg %p1147
      $region50: #{lmsa_forward.13} parent=5 // pred_check_branch
        %1150 = sbr.rel (%p1148) target = $region52
      $region51: #{lmsa_forward.13} parent=5 // pred_region
        %s1151 = ssub.s32 %s15, 2
        // Predicated region
        $region53: #{lmsa_forward.13} parent=51 // pred_check
          %p1152 = pneg %p180
        $region54: #{lmsa_forward.13} parent=51 // pred_check_branch
          %1154 = sbr.rel (%p1152) target = $region56
        $region55: #{lmsa_forward.13} parent=51 // pred_region
          %s1155 = sand.u32 %s165, 1
          %s1156 = scalar_lea.sflag [#allocation3], %s1155
          %s1157 = sand.u32 %s165, 1
          %s1158 = smul.addr %s1157, 256
          %s1159 = scalar_lea.vmem [#allocation2], %s1158
          %1161 = dma.done %s1156, 4096
        $region56: #{lmsa_forward.13} parent=51 // pred_fallthru
          _
      $region52: #{lmsa_forward.13} parent=5 // pred_fallthru
        _
    $region6: #{lmsa_forward.13} parent=1 // loop_footer
      %s19 = sadd.s32 1, %s15
    $region7: #{lmsa_forward.13} parent=1 // loop_footer_branch
      %14 = sbr.rel target = $region3
    $region8: #{lmsa_forward.13} parent=1 // loop_exit
      _
    %1162 = vsyncpa [#allocation3], 1
    %s1163 = scalar_lea.sflag [#allocation3], 1
    %1164 = vsyncpa %s1163, 1

// kernel: lmsa_forward.12
$region0: #{lmsa_forward.12}
  #allocation0 [shape = 'u32[]', space=smem, size = 0x4, offset = 0x4, fixed_abs, tag = 'smem constant byte address 0x4 - core index']
  #allocation1 [shape = 'u32[72,128]{1,0:T(1,128)}', space=vmem, size = 0x9000, scoped, tag = 'internal scratch']
  #allocation2 [shape = 'f32[2,12,12,4]{3,2,1,0:T(8,128)}', space=vmem, size = 0x30000, scoped, tag = 'scratch operand']
  %s0 = inlined_call_operand.vmem [shape: f32[2,12,12,4], index: 0, kind: input, shape index: {}]
  %s1 = inlined_call_operand.vmem [shape: f32[1,4], index: 1, kind: input, shape index: {}]
  %s2 = inlined_call_operand.vmem [shape: f32[9,4], index: 2, kind: input, shape index: {}]
  %s3 = inlined_call_operand.vmem [shape: f32[2,10,10,4], index: 3, kind: output, shape index: {}]
  %s4 = sld [smem:[#allocation0]]
  $region22: #{lmsa_forward.12} parent=0
    _
  %s6 = ssub.s32 1, %s4
  %s7 = scalar_select 0, %s6, %s4
  // Predicated region
  $region2: #{lmsa_forward.12} parent=0 // pred_check
    _
  $region3: #{lmsa_forward.12} parent=0 // pred_check_branch
    %9 = sbr.rel (0) target = $region5
  $region4: #{lmsa_forward.12} parent=0 // pred_region
    _
  $region5: #{lmsa_forward.12} parent=0 // pred_fallthru
    _
  // Predicated region
  $region6: #{lmsa_forward.12} parent=0 // pred_check
    _
  $region7: #{lmsa_forward.12} parent=0 // pred_check_branch
    %11 = sbr.rel (0) target = $region9
  $region8: #{lmsa_forward.12} parent=0 // pred_region
    _
  $region9: #{lmsa_forward.12} parent=0 // pred_fallthru
    _
  // Predicated region
  $region10: #{lmsa_forward.12} parent=0 // pred_check
    _
  $region11: #{lmsa_forward.12} parent=0 // pred_check_branch
    %13 = sbr.rel (0) target = $region13
  $region12: #{lmsa_forward.12} parent=0 // pred_region
    _
  $region13: #{lmsa_forward.12} parent=0 // pred_fallthru
    _
  %v14 = vld [vmem:[%s0] sm:$0xff]
  %v15 = vld [vmem:[%s0 + $0x8] sm:$0xf]
  %v16 = vld [vmem:[%s0 + $0x10] sm:$0xff]
  %v17 = vld [vmem:[%s0 + $0x18] sm:$0xf]
  %v18 = vld [vmem:[%s0 + $0x20] sm:$0xff]
  %v19 = vld [vmem:[%s0 + $0x28] sm:$0xf]
  %v20 = vld [vmem:[%s0 + $0x30] sm:$0xff]
  %v21 = vld [vmem:[%s0 + $0x38] sm:$0xf]
  %v22 = vld [vmem:[%s0 + $0x40] sm:$0xff]
  %v23 = vld [vmem:[%s0 + $0x48] sm:$0xf]
  %v24 = vld [vmem:[%s0 + $0x50] sm:$0xff]
  %v25 = vld [vmem:[%s0 + $0x58] sm:$0xf]
  %v26 = vld [vmem:[%s0 + $0x60] sm:$0xff]
  %v27 = vld [vmem:[%s0 + $0x68] sm:$0xf]
  %v28 = vld [vmem:[%s0 + $0x70] sm:$0xff]
  %v29 = vld [vmem:[%s0 + $0x78] sm:$0xf]
  %v30 = vld [vmem:[%s0 + $0x80] sm:$0xff]
  %v31 = vld [vmem:[%s0 + $0x88] sm:$0xf]
  %v32 = vld [vmem:[%s0 + $0x90] sm:$0xff]
  %v33 = vld [vmem:[%s0 + $0x98] sm:$0xf]
  %v34 = vld [vmem:[%s0 + $0xa0] sm:$0xff]
  %v35 = vld [vmem:[%s0 + $0xa8] sm:$0xf]
  %v36 = vld [vmem:[%s0 + $0xb0] sm:$0xff]
  %v37 = vld [vmem:[%s0 + $0xb8] sm:$0xf]
  %v38 = vld [vmem:[%s0 + $0xc0] sm:$0xff]
  %v39 = vld [vmem:[%s0 + $0xc8] sm:$0xf]
  %v40 = vld [vmem:[%s0 + $0xd0] sm:$0xff]
  %v41 = vld [vmem:[%s0 + $0xd8] sm:$0xf]
  %v42 = vld [vmem:[%s0 + $0xe0] sm:$0xff]
  %v43 = vld [vmem:[%s0 + $0xe8] sm:$0xf]
  %v44 = vld [vmem:[%s0 + $0xf0] sm:$0xff]
  %v45 = vld [vmem:[%s0 + $0xf8] sm:$0xf]
  %v46 = vld [vmem:[%s0 + $0x100] sm:$0xff]
  %v47 = vld [vmem:[%s0 + $0x108] sm:$0xf]
  %v48 = vld [vmem:[%s0 + $0x110] sm:$0xff]
  %v49 = vld [vmem:[%s0 + $0x118] sm:$0xf]
  %v50 = vld [vmem:[%s0 + $0x120] sm:$0xff]
  %v51 = vld [vmem:[%s0 + $0x128] sm:$0xf]
  %v52 = vld [vmem:[%s0 + $0x130] sm:$0xff]
  %v53 = vld [vmem:[%s0 + $0x138] sm:$0xf]
  %v54 = vld [vmem:[%s0 + $0x140] sm:$0xff]
  %v55 = vld [vmem:[%s0 + $0x148] sm:$0xf]
  %v56 = vld [vmem:[%s0 + $0x150] sm:$0xff]
  %v57 = vld [vmem:[%s0 + $0x158] sm:$0xf]
  %v58 = vld [vmem:[%s0 + $0x160] sm:$0xff]
  %v59 = vld [vmem:[%s0 + $0x168] sm:$0xf]
  %v60 = vld [vmem:[%s0 + $0x170] sm:$0xff]
  %v61 = vld [vmem:[%s0 + $0x178] sm:$0xf]
  %v62 = vld [vmem:[%s1] sm:$0x1]
  %v64 = vperm.slane %v62, 0
  %v66 = vadd.f32 %v14, %v64
  %v67 = vadd.f32 %v15, %v64
  %v68 = vadd.f32 %v16, %v64
  %v69 = vadd.f32 %v17, %v64
  %v70 = vadd.f32 %v18, %v64
  %v71 = vadd.f32 %v19, %v64
  %v72 = vadd.f32 %v20, %v64
  %v73 = vadd.f32 %v21, %v64
  %v74 = vadd.f32 %v22, %v64
  %v75 = vadd.f32 %v23, %v64
  %v76 = vadd.f32 %v24, %v64
  %v77 = vadd.f32 %v25, %v64
  %v78 = vadd.f32 %v26, %v64
  %v79 = vadd.f32 %v27, %v64
  %v80 = vadd.f32 %v28, %v64
  %v81 = vadd.f32 %v29, %v64
  %v82 = vadd.f32 %v30, %v64
  %v83 = vadd.f32 %v31, %v64
  %v84 = vadd.f32 %v32, %v64
  %v85 = vadd.f32 %v33, %v64
  %v86 = vadd.f32 %v34, %v64
  %v87 = vadd.f32 %v35, %v64
  %v88 = vadd.f32 %v36, %v64
  %v89 = vadd.f32 %v37, %v64
  %v90 = vadd.f32 %v38, %v64
  %v91 = vadd.f32 %v39, %v64
  %v92 = vadd.f32 %v40, %v64
  %v93 = vadd.f32 %v41, %v64
  %v94 = vadd.f32 %v42, %v64
  %v95 = vadd.f32 %v43, %v64
  %v96 = vadd.f32 %v44, %v64
  %v97 = vadd.f32 %v45, %v64
  %v98 = vadd.f32 %v46, %v64
  %v99 = vadd.f32 %v47, %v64
  %v100 = vadd.f32 %v48, %v64
  %v101 = vadd.f32 %v49, %v64
  %v102 = vadd.f32 %v50, %v64
  %v103 = vadd.f32 %v51, %v64
  %v104 = vadd.f32 %v52, %v64
  %v105 = vadd.f32 %v53, %v64
  %v106 = vadd.f32 %v54, %v64
  %v107 = vadd.f32 %v55, %v64
  %v108 = vadd.f32 %v56, %v64
  %v109 = vadd.f32 %v57, %v64
  %v110 = vadd.f32 %v58, %v64
  %v111 = vadd.f32 %v59, %v64
  %v112 = vadd.f32 %v60, %v64
  %v113 = vadd.f32 %v61, %v64
  %v114 = vmul.f32 %v66, %v66
  %v115 = vmul.f32 %v67, %v67
  %v116 = vmul.f32 %v68, %v68
  %v117 = vmul.f32 %v69, %v69
  %v118 = vmul.f32 %v70, %v70
  %v119 = vmul.f32 %v71, %v71
  %v120 = vmul.f32 %v72, %v72
  %v121 = vmul.f32 %v73, %v73
  %v122 = vmul.f32 %v74, %v74
  %v123 = vmul.f32 %v75, %v75
  %v124 = vmul.f32 %v76, %v76
  %v125 = vmul.f32 %v77, %v77
  %v126 = vmul.f32 %v78, %v78
  %v127 = vmul.f32 %v79, %v79
  %v128 = vmul.f32 %v80, %v80
  %v129 = vmul.f32 %v81, %v81
  %v130 = vmul.f32 %v82, %v82
  %v131 = vmul.f32 %v83, %v83
  %v132 = vmul.f32 %v84, %v84
  %v133 = vmul.f32 %v85, %v85
  %v134 = vmul.f32 %v86, %v86
  %v135 = vmul.f32 %v87, %v87
  %v136 = vmul.f32 %v88, %v88
  %v137 = vmul.f32 %v89, %v89
  %v138 = vmul.f32 %v90, %v90
  %v139 = vmul.f32 %v91, %v91
  %v140 = vmul.f32 %v92, %v92
  %v141 = vmul.f32 %v93, %v93
  %v142 = vmul.f32 %v94, %v94
  %v143 = vmul.f32 %v95, %v95
  %v144 = vmul.f32 %v96, %v96
  %v145 = vmul.f32 %v97, %v97
  %v146 = vmul.f32 %v98, %v98
  %v147 = vmul.f32 %v99, %v99
  %v148 = vmul.f32 %v100, %v100
  %v149 = vmul.f32 %v101, %v101
  %v150 = vmul.f32 %v102, %v102
  %v151 = vmul.f32 %v103, %v103
  %v152 = vmul.f32 %v104, %v104
  %v153 = vmul.f32 %v105, %v105
  %v154 = vmul.f32 %v106, %v106
  %v155 = vmul.f32 %v107, %v107
  %v156 = vmul.f32 %v108, %v108
  %v157 = vmul.f32 %v109, %v109
  %v158 = vmul.f32 %v110, %v110
  %v159 = vmul.f32 %v111, %v111
  %v160 = vmul.f32 %v112, %v112
  %v161 = vmul.f32 %v113, %v113
  %v162 = vmul.f32 %v114, %v66
  %v163 = vmul.f32 %v115, %v67
  %v164 = vmul.f32 %v116, %v68
  %v165 = vmul.f32 %v117, %v69
  %v166 = vmul.f32 %v118, %v70
  %v167 = vmul.f32 %v119, %v71
  %v168 = vmul.f32 %v120, %v72
  %v169 = vmul.f32 %v121, %v73
  %v170 = vmul.f32 %v122, %v74
  %v171 = vmul.f32 %v123, %v75
  %v172 = vmul.f32 %v124, %v76
  %v173 = vmul.f32 %v125, %v77
  %v174 = vmul.f32 %v126, %v78
  %v175 = vmul.f32 %v127, %v79
  %v176 = vmul.f32 %v128, %v80
  %v177 = vmul.f32 %v129, %v81
  %v178 = vmul.f32 %v130, %v82
  %v179 = vmul.f32 %v131, %v83
  %v180 = vmul.f32 %v132, %v84
  %v181 = vmul.f32 %v133, %v85
  %v182 = vmul.f32 %v134, %v86
  %v183 = vmul.f32 %v135, %v87
  %v184 = vmul.f32 %v136, %v88
  %v185 = vmul.f32 %v137, %v89
  %v186 = vmul.f32 %v138, %v90
  %v187 = vmul.f32 %v139, %v91
  %v188 = vmul.f32 %v140, %v92
  %v189 = vmul.f32 %v141, %v93
  %v190 = vmul.f32 %v142, %v94
  %v191 = vmul.f32 %v143, %v95
  %v192 = vmul.f32 %v144, %v96
  %v193 = vmul.f32 %v145, %v97
  %v194 = vmul.f32 %v146, %v98
  %v195 = vmul.f32 %v147, %v99
  %v196 = vmul.f32 %v148, %v100
  %v197 = vmul.f32 %v149, %v101
  %v198 = vmul.f32 %v150, %v102
  %v199 = vmul.f32 %v151, %v103
  %v200 = vmul.f32 %v152, %v104
  %v201 = vmul.f32 %v153, %v105
  %v202 = vmul.f32 %v154, %v106
  %v203 = vmul.f32 %v155, %v107
  %v204 = vmul.f32 %v156, %v108
  %v205 = vmul.f32 %v157, %v109
  %v206 = vmul.f32 %v158, %v110
  %v207 = vmul.f32 %v159, %v111
  %v208 = vmul.f32 %v160, %v112
  %v209 = vmul.f32 %v161, %v113
  %v210 = vmul.f32 %v66, 0.5
  %v211 = vmul.f32 %v67, 0.5
  %v212 = vmul.f32 %v68, 0.5
  %v213 = vmul.f32 %v69, 0.5
  %v214 = vmul.f32 %v70, 0.5
  %v215 = vmul.f32 %v71, 0.5
  %v216 = vmul.f32 %v72, 0.5
  %v217 = vmul.f32 %v73, 0.5
  %v218 = vmul.f32 %v74, 0.5
  %v219 = vmul.f32 %v75, 0.5
  %v220 = vmul.f32 %v76, 0.5
  %v221 = vmul.f32 %v77, 0.5
  %v222 = vmul.f32 %v78, 0.5
  %v223 = vmul.f32 %v79, 0.5
  %v224 = vmul.f32 %v80, 0.5
  %v225 = vmul.f32 %v81, 0.5
  %v226 = vmul.f32 %v82, 0.5
  %v227 = vmul.f32 %v83, 0.5
  %v228 = vmul.f32 %v84, 0.5
  %v229 = vmul.f32 %v85, 0.5
  %v230 = vmul.f32 %v86, 0.5
  %v231 = vmul.f32 %v87, 0.5
  %v232 = vmul.f32 %v88, 0.5
  %v233 = vmul.f32 %v89, 0.5
  %v234 = vmul.f32 %v90, 0.5
  %v235 = vmul.f32 %v91, 0.5
  %v236 = vmul.f32 %v92, 0.5
  %v237 = vmul.f32 %v93, 0.5
  %v238 = vmul.f32 %v94, 0.5
  %v239 = vmul.f32 %v95, 0.5
  %v240 = vmul.f32 %v96, 0.5
  %v241 = vmul.f32 %v97, 0.5
  %v242 = vmul.f32 %v98, 0.5
  %v243 = vmul.f32 %v99, 0.5
  %v244 = vmul.f32 %v100, 0.5
  %v245 = vmul.f32 %v101, 0.5
  %v246 = vmul.f32 %v102, 0.5
  %v247 = vmul.f32 %v103, 0.5
  %v248 = vmul.f32 %v104, 0.5
  %v249 = vmul.f32 %v105, 0.5
  %v250 = vmul.f32 %v106, 0.5
  %v251 = vmul.f32 %v107, 0.5
  %v252 = vmul.f32 %v108, 0.5
  %v253 = vmul.f32 %v109, 0.5
  %v254 = vmul.f32 %v110, 0.5
  %v255 = vmul.f32 %v111, 0.5
  %v256 = vmul.f32 %v112, 0.5
  %v257 = vmul.f32 %v113, 0.5
  %v258 = vmul.f32 %v162, 0.044715
  %v259 = vmul.f32 %v163, 0.044715
  %v260 = vmul.f32 %v164, 0.044715
  %v261 = vmul.f32 %v165, 0.044715
  %v262 = vmul.f32 %v166, 0.044715
  %v263 = vmul.f32 %v167, 0.044715
  %v264 = vmul.f32 %v168, 0.044715
  %v265 = vmul.f32 %v169, 0.044715
  %v266 = vmul.f32 %v170, 0.044715
  %v267 = vmul.f32 %v171, 0.044715
  %v268 = vmul.f32 %v172, 0.044715
  %v269 = vmul.f32 %v173, 0.044715
  %v270 = vmul.f32 %v174, 0.044715
  %v271 = vmul.f32 %v175, 0.044715
  %v272 = vmul.f32 %v176, 0.044715
  %v273 = vmul.f32 %v177, 0.044715
  %v274 = vmul.f32 %v178, 0.044715
  %v275 = vmul.f32 %v179, 0.044715
  %v276 = vmul.f32 %v180, 0.044715
  %v277 = vmul.f32 %v181, 0.044715
  %v278 = vmul.f32 %v182, 0.044715
  %v279 = vmul.f32 %v183, 0.044715
  %v280 = vmul.f32 %v184, 0.044715
  %v281 = vmul.f32 %v185, 0.044715
  %v282 = vmul.f32 %v186, 0.044715
  %v283 = vmul.f32 %v187, 0.044715
  %v284 = vmul.f32 %v188, 0.044715
  %v285 = vmul.f32 %v189, 0.044715
  %v286 = vmul.f32 %v190, 0.044715
  %v287 = vmul.f32 %v191, 0.044715
  %v288 = vmul.f32 %v192, 0.044715
  %v289 = vmul.f32 %v193, 0.044715
  %v290 = vmul.f32 %v194, 0.044715
  %v291 = vmul.f32 %v195, 0.044715
  %v292 = vmul.f32 %v196, 0.044715
  %v293 = vmul.f32 %v197, 0.044715
  %v294 = vmul.f32 %v198, 0.044715
  %v295 = vmul.f32 %v199, 0.044715
  %v296 = vmul.f32 %v200, 0.044715
  %v297 = vmul.f32 %v201, 0.044715
  %v298 = vmul.f32 %v202, 0.044715
  %v299 = vmul.f32 %v203, 0.044715
  %v300 = vmul.f32 %v204, 0.044715
  %v301 = vmul.f32 %v205, 0.044715
  %v302 = vmul.f32 %v206, 0.044715
  %v303 = vmul.f32 %v207, 0.044715
  %v304 = vmul.f32 %v208, 0.044715
  %v305 = vmul.f32 %v209, 0.044715
  %v306 = vadd.f32 %v66, %v258
  %v307 = vadd.f32 %v67, %v259
  %v308 = vadd.f32 %v68, %v260
  %v309 = vadd.f32 %v69, %v261
  %v310 = vadd.f32 %v70, %v262
  %v311 = vadd.f32 %v71, %v263
  %v312 = vadd.f32 %v72, %v264
  %v313 = vadd.f32 %v73, %v265
  %v314 = vadd.f32 %v74, %v266
  %v315 = vadd.f32 %v75, %v267
  %v316 = vadd.f32 %v76, %v268
  %v317 = vadd.f32 %v77, %v269
  %v318 = vadd.f32 %v78, %v270
  %v319 = vadd.f32 %v79, %v271
  %v320 = vadd.f32 %v80, %v272
  %v321 = vadd.f32 %v81, %v273
  %v322 = vadd.f32 %v82, %v274
  %v323 = vadd.f32 %v83, %v275
  %v324 = vadd.f32 %v84, %v276
  %v325 = vadd.f32 %v85, %v277
  %v326 = vadd.f32 %v86, %v278
  %v327 = vadd.f32 %v87, %v279
  %v328 = vadd.f32 %v88, %v280
  %v329 = vadd.f32 %v89, %v281
  %v330 = vadd.f32 %v90, %v282
  %v331 = vadd.f32 %v91, %v283
  %v332 = vadd.f32 %v92, %v284
  %v333 = vadd.f32 %v93, %v285
  %v334 = vadd.f32 %v94, %v286
  %v335 = vadd.f32 %v95, %v287
  %v336 = vadd.f32 %v96, %v288
  %v337 = vadd.f32 %v97, %v289
  %v338 = vadd.f32 %v98, %v290
  %v339 = vadd.f32 %v99, %v291
  %v340 = vadd.f32 %v100, %v292
  %v341 = vadd.f32 %v101, %v293
  %v342 = vadd.f32 %v102, %v294
  %v343 = vadd.f32 %v103, %v295
  %v344 = vadd.f32 %v104, %v296
  %v345 = vadd.f32 %v105, %v297
  %v346 = vadd.f32 %v106, %v298
  %v347 = vadd.f32 %v107, %v299
  %v348 = vadd.f32 %v108, %v300
  %v349 = vadd.f32 %v109, %v301
  %v350 = vadd.f32 %v110, %v302
  %v351 = vadd.f32 %v111, %v303
  %v352 = vadd.f32 %v112, %v304
  %v353 = vadd.f32 %v113, %v305
  %v354 = vmul.f32 %v306, 0.7978846
  %v355 = vmul.f32 %v307, 0.7978846
  %v356 = vmul.f32 %v308, 0.7978846
  %v357 = vmul.f32 %v309, 0.7978846
  %v358 = vmul.f32 %v310, 0.7978846
  %v359 = vmul.f32 %v311, 0.7978846
  %v360 = vmul.f32 %v312, 0.7978846
  %v361 = vmul.f32 %v313, 0.7978846
  %v362 = vmul.f32 %v314, 0.7978846
  %v363 = vmul.f32 %v315, 0.7978846
  %v364 = vmul.f32 %v316, 0.7978846
  %v365 = vmul.f32 %v317, 0.7978846
  %v366 = vmul.f32 %v318, 0.7978846
  %v367 = vmul.f32 %v319, 0.7978846
  %v368 = vmul.f32 %v320, 0.7978846
  %v369 = vmul.f32 %v321, 0.7978846
  %v370 = vmul.f32 %v322, 0.7978846
  %v371 = vmul.f32 %v323, 0.7978846
  %v372 = vmul.f32 %v324, 0.7978846
  %v373 = vmul.f32 %v325, 0.7978846
  %v374 = vmul.f32 %v326, 0.7978846
  %v375 = vmul.f32 %v327, 0.7978846
  %v376 = vmul.f32 %v328, 0.7978846
  %v377 = vmul.f32 %v329, 0.7978846
  %v378 = vmul.f32 %v330, 0.7978846
  %v379 = vmul.f32 %v331, 0.7978846
  %v380 = vmul.f32 %v332, 0.7978846
  %v381 = vmul.f32 %v333, 0.7978846
  %v382 = vmul.f32 %v334, 0.7978846
  %v383 = vmul.f32 %v335, 0.7978846
  %v384 = vmul.f32 %v336, 0.7978846
  %v385 = vmul.f32 %v337, 0.7978846
  %v386 = vmul.f32 %v338, 0.7978846
  %v387 = vmul.f32 %v339, 0.7978846
  %v388 = vmul.f32 %v340, 0.7978846
  %v389 = vmul.f32 %v341, 0.7978846
  %v390 = vmul.f32 %v342, 0.7978846
  %v391 = vmul.f32 %v343, 0.7978846
  %v392 = vmul.f32 %v344, 0.7978846
  %v393 = vmul.f32 %v345, 0.7978846
  %v394 = vmul.f32 %v346, 0.7978846
  %v395 = vmul.f32 %v347, 0.7978846
  %v396 = vmul.f32 %v348, 0.7978846
  %v397 = vmul.f32 %v349, 0.7978846
  %v398 = vmul.f32 %v350, 0.7978846
  %v399 = vmul.f32 %v351, 0.7978846
  %v400 = vmul.f32 %v352, 0.7978846
  %v401 = vmul.f32 %v353, 0.7978846
  %v402 = vtanh.pop %v354
  %v403 = vtanh.pop %v355
  %v404 = vtanh.pop %v356
  %v405 = vtanh.pop %v357
  %v406 = vtanh.pop %v358
  %v407 = vtanh.pop %v359
  %v408 = vtanh.pop %v360
  %v409 = vtanh.pop %v361
  %v410 = vtanh.pop %v362
  %v411 = vtanh.pop %v363
  %v412 = vtanh.pop %v364
  %v413 = vtanh.pop %v365
  %v414 = vtanh.pop %v366
  %v415 = vtanh.pop %v367
  %v416 = vtanh.pop %v368
  %v417 = vtanh.pop %v369
  %v418 = vtanh.pop %v370
  %v419 = vtanh.pop %v371
  %v420 = vtanh.pop %v372
  %v421 = vtanh.pop %v373
  %v422 = vtanh.pop %v374
  %v423 = vtanh.pop %v375
  %v424 = vtanh.pop %v376
  %v425 = vtanh.pop %v377
  %v426 = vtanh.pop %v378
  %v427 = vtanh.pop %v379
  %v428 = vtanh.pop %v380
  %v429 = vtanh.pop %v381
  %v430 = vtanh.pop %v382
  %v431 = vtanh.pop %v383
  %v432 = vtanh.pop %v384
  %v433 = vtanh.pop %v385
  %v434 = vtanh.pop %v386
  %v435 = vtanh.pop %v387
  %v436 = vtanh.pop %v388
  %v437 = vtanh.pop %v389
  %v438 = vtanh.pop %v390
  %v439 = vtanh.pop %v391
  %v440 = vtanh.pop %v392
  %v441 = vtanh.pop %v393
  %v442 = vtanh.pop %v394
  %v443 = vtanh.pop %v395
  %v444 = vtanh.pop %v396
  %v445 = vtanh.pop %v397
  %v446 = vtanh.pop %v398
  %v447 = vtanh.pop %v399
  %v448 = vtanh.pop %v400
  %v449 = vtanh.pop %v401
  %v450 = vadd.f32 %v402, 1.0
  %v451 = vadd.f32 %v403, 1.0
  %v452 = vadd.f32 %v404, 1.0
  %v453 = vadd.f32 %v405, 1.0
  %v454 = vadd.f32 %v406, 1.0
  %v455 = vadd.f32 %v407, 1.0
  %v456 = vadd.f32 %v408, 1.0
  %v457 = vadd.f32 %v409, 1.0
  %v458 = vadd.f32 %v410, 1.0
  %v459 = vadd.f32 %v411, 1.0
  %v460 = vadd.f32 %v412, 1.0
  %v461 = vadd.f32 %v413, 1.0
  %v462 = vadd.f32 %v414, 1.0
  %v463 = vadd.f32 %v415, 1.0
  %v464 = vadd.f32 %v416, 1.0
  %v465 = vadd.f32 %v417, 1.0
  %v466 = vadd.f32 %v418, 1.0
  %v467 = vadd.f32 %v419, 1.0
  %v468 = vadd.f32 %v420, 1.0
  %v469 = vadd.f32 %v421, 1.0
  %v470 = vadd.f32 %v422, 1.0
  %v471 = vadd.f32 %v423, 1.0
  %v472 = vadd.f32 %v424, 1.0
  %v473 = vadd.f32 %v425, 1.0
  %v474 = vadd.f32 %v426, 1.0
  %v475 = vadd.f32 %v427, 1.0
  %v476 = vadd.f32 %v428, 1.0
  %v477 = vadd.f32 %v429, 1.0
  %v478 = vadd.f32 %v430, 1.0
  %v479 = vadd.f32 %v431, 1.0
  %v480 = vadd.f32 %v432, 1.0
  %v481 = vadd.f32 %v433, 1.0
  %v482 = vadd.f32 %v434, 1.0
  %v483 = vadd.f32 %v435, 1.0
  %v484 = vadd.f32 %v436, 1.0
  %v485 = vadd.f32 %v437, 1.0
  %v486 = vadd.f32 %v438, 1.0
  %v487 = vadd.f32 %v439, 1.0
  %v488 = vadd.f32 %v440, 1.0
  %v489 = vadd.f32 %v441, 1.0
  %v490 = vadd.f32 %v442, 1.0
  %v491 = vadd.f32 %v443, 1.0
  %v492 = vadd.f32 %v444, 1.0
  %v493 = vadd.f32 %v445, 1.0
  %v494 = vadd.f32 %v446, 1.0
  %v495 = vadd.f32 %v447, 1.0
  %v496 = vadd.f32 %v448, 1.0
  %v497 = vadd.f32 %v449, 1.0
  %v498 = vmul.f32 %v210, %v450
  %v499 = vmul.f32 %v211, %v451
  %v500 = vmul.f32 %v212, %v452
  %v501 = vmul.f32 %v213, %v453
  %v502 = vmul.f32 %v214, %v454
  %v503 = vmul.f32 %v215, %v455
  %v504 = vmul.f32 %v216, %v456
  %v505 = vmul.f32 %v217, %v457
  %v506 = vmul.f32 %v218, %v458
  %v507 = vmul.f32 %v219, %v459
  %v508 = vmul.f32 %v220, %v460
  %v509 = vmul.f32 %v221, %v461
  %v510 = vmul.f32 %v222, %v462
  %v511 = vmul.f32 %v223, %v463
  %v512 = vmul.f32 %v224, %v464
  %v513 = vmul.f32 %v225, %v465
  %v514 = vmul.f32 %v226, %v466
  %v515 = vmul.f32 %v227, %v467
  %v516 = vmul.f32 %v228, %v468
  %v517 = vmul.f32 %v229, %v469
  %v518 = vmul.f32 %v230, %v470
  %v519 = vmul.f32 %v231, %v471
  %v520 = vmul.f32 %v232, %v472
  %v521 = vmul.f32 %v233, %v473
  %v522 = vmul.f32 %v234, %v474
  %v523 = vmul.f32 %v235, %v475
  %v524 = vmul.f32 %v236, %v476
  %v525 = vmul.f32 %v237, %v477
  %v526 = vmul.f32 %v238, %v478
  %v527 = vmul.f32 %v239, %v479
  %v528 = vmul.f32 %v240, %v480
  %v529 = vmul.f32 %v241, %v481
  %v530 = vmul.f32 %v242, %v482
  %v531 = vmul.f32 %v243, %v483
  %v532 = vmul.f32 %v244, %v484
  %v533 = vmul.f32 %v245, %v485
  %v534 = vmul.f32 %v246, %v486
  %v535 = vmul.f32 %v247, %v487
  %v536 = vmul.f32 %v248, %v488
  %v537 = vmul.f32 %v249, %v489
  %v538 = vmul.f32 %v250, %v490
  %v539 = vmul.f32 %v251, %v491
  %v540 = vmul.f32 %v252, %v492
  %v541 = vmul.f32 %v253, %v493
  %v542 = vmul.f32 %v254, %v494
  %v543 = vmul.f32 %v255, %v495
  %v544 = vmul.f32 %v256, %v496
  %v545 = vmul.f32 %v257, %v497
  %vm546 = vcmask 31744
  %547 = vst.msk [vmem:[#allocation2] sm:$0xff] %vm546, %v498
  %vm548 = vcmask 27648
  %549 = vst.msk [vmem:[#allocation2 + $0x8] sm:$0xf] %vm548, %v499
  %550 = vst.msk [vmem:[#allocation2 + $0x10] sm:$0xff] %vm546, %v500
  %551 = vst.msk [vmem:[#allocation2 + $0x18] sm:$0xf] %vm548, %v501
  %552 = vst.msk [vmem:[#allocation2 + $0x20] sm:$0xff] %vm546, %v502
  %553 = vst.msk [vmem:[#allocation2 + $0x28] sm:$0xf] %vm548, %v503
  %554 = vst.msk [vmem:[#allocation2 + $0x30] sm:$0xff] %vm546, %v504
  %555 = vst.msk [vmem:[#allocation2 + $0x38] sm:$0xf] %vm548, %v505
  %556 = vst.msk [vmem:[#allocation2 + $0x40] sm:$0xff] %vm546, %v506
  %557 = vst.msk [vmem:[#allocation2 + $0x48] sm:$0xf] %vm548, %v507
  %558 = vst.msk [vmem:[#allocation2 + $0x50] sm:$0xff] %vm546, %v508
  %559 = vst.msk [vmem:[#allocation2 + $0x58] sm:$0xf] %vm548, %v509
  %560 = vst.msk [vmem:[#allocation2 + $0x60] sm:$0xff] %vm546, %v510
  %561 = vst.msk [vmem:[#allocation2 + $0x68] sm:$0xf] %vm548, %v511
  %562 = vst.msk [vmem:[#allocation2 + $0x70] sm:$0xff] %vm546, %v512
  %563 = vst.msk [vmem:[#allocation2 + $0x78] sm:$0xf] %vm548, %v513
  %564 = vst.msk [vmem:[#allocation2 + $0x80] sm:$0xff] %vm546, %v514
  %565 = vst.msk [vmem:[#allocation2 + $0x88] sm:$0xf] %vm548, %v515
  %566 = vst.msk [vmem:[#allocation2 + $0x90] sm:$0xff] %vm546, %v516
  %567 = vst.msk [vmem:[#allocation2 + $0x98] sm:$0xf] %vm548, %v517
  %568 = vst.msk [vmem:[#allocation2 + $0xa0] sm:$0xff] %vm546, %v518
  %569 = vst.msk [vmem:[#allocation2 + $0xa8] sm:$0xf] %vm548, %v519
  %570 = vst.msk [vmem:[#allocation2 + $0xb0] sm:$0xff] %vm546, %v520
  %571 = vst.msk [vmem:[#allocation2 + $0xb8] sm:$0xf] %vm548, %v521
  %572 = vst.msk [vmem:[#allocation2 + $0xc0] sm:$0xff] %vm546, %v522
  %573 = vst.msk [vmem:[#allocation2 + $0xc8] sm:$0xf] %vm548, %v523
  %574 = vst.msk [vmem:[#allocation2 + $0xd0] sm:$0xff] %vm546, %v524
  %575 = vst.msk [vmem:[#allocation2 + $0xd8] sm:$0xf] %vm548, %v525
  %576 = vst.msk [vmem:[#allocation2 + $0xe0] sm:$0xff] %vm546, %v526
  %577 = vst.msk [vmem:[#allocation2 + $0xe8] sm:$0xf] %vm548, %v527
  %578 = vst.msk [vmem:[#allocation2 + $0xf0] sm:$0xff] %vm546, %v528
  %579 = vst.msk [vmem:[#allocation2 + $0xf8] sm:$0xf] %vm548, %v529
  %580 = vst.msk [vmem:[#allocation2 + $0x100] sm:$0xff] %vm546, %v530
  %581 = vst.msk [vmem:[#allocation2 + $0x108] sm:$0xf] %vm548, %v531
  %582 = vst.msk [vmem:[#allocation2 + $0x110] sm:$0xff] %vm546, %v532
  %583 = vst.msk [vmem:[#allocation2 + $0x118] sm:$0xf] %vm548, %v533
  %584 = vst.msk [vmem:[#allocation2 + $0x120] sm:$0xff] %vm546, %v534
  %585 = vst.msk [vmem:[#allocation2 + $0x128] sm:$0xf] %vm548, %v535
  %586 = vst.msk [vmem:[#allocation2 + $0x130] sm:$0xff] %vm546, %v536
  %587 = vst.msk [vmem:[#allocation2 + $0x138] sm:$0xf] %vm548, %v537
  %588 = vst.msk [vmem:[#allocation2 + $0x140] sm:$0xff] %vm546, %v538
  %589 = vst.msk [vmem:[#allocation2 + $0x148] sm:$0xf] %vm548, %v539
  %590 = vst.msk [vmem:[#allocation2 + $0x150] sm:$0xff] %vm546, %v540
  %591 = vst.msk [vmem:[#allocation2 + $0x158] sm:$0xf] %vm548, %v541
  %592 = vst.msk [vmem:[#allocation2 + $0x160] sm:$0xff] %vm546, %v542
  %593 = vst.msk [vmem:[#allocation2 + $0x168] sm:$0xf] %vm548, %v543
  %594 = vst.msk [vmem:[#allocation2 + $0x170] sm:$0xff] %vm546, %v544
  %595 = vst.msk [vmem:[#allocation2 + $0x178] sm:$0xf] %vm548, %v545
  %v596 = vld [vmem:[#allocation2] sm:$0xff]
  %v597 = vld [vmem:[#allocation2 + $0x8] sm:$0x3]
  %v598 = vld [vmem:[#allocation2 + $0x10] sm:$0xff]
  %v599 = vld [vmem:[#allocation2 + $0x18] sm:$0x3]
  %v600 = vld [vmem:[#allocation2 + $0x20] sm:$0xff]
  %v601 = vld [vmem:[#allocation2 + $0x28] sm:$0x3]
  %v602 = vld [vmem:[#allocation2 + $0x30] sm:$0xff]
  %v603 = vld [vmem:[#allocation2 + $0x38] sm:$0x3]
  %v604 = vld [vmem:[#allocation2 + $0x40] sm:$0xff]
  %v605 = vld [vmem:[#allocation2 + $0x48] sm:$0x3]
  %v606 = vld [vmem:[#allocation2 + $0x50] sm:$0xff]
  %v607 = vld [vmem:[#allocation2 + $0x58] sm:$0x3]
  %v608 = vld [vmem:[#allocation2 + $0x60] sm:$0xff]
  %v609 = vld [vmem:[#allocation2 + $0x68] sm:$0x3]
  %v610 = vld [vmem:[#allocation2 + $0x70] sm:$0xff]
  %v611 = vld [vmem:[#allocation2 + $0x78] sm:$0x3]
  %v612 = vld [vmem:[#allocation2 + $0x80] sm:$0xff]
  %v613 = vld [vmem:[#allocation2 + $0x88] sm:$0x3]
  %v614 = vld [vmem:[#allocation2 + $0x90] sm:$0xff]
  %v615 = vld [vmem:[#allocation2 + $0x98] sm:$0x3]
  %v616 = vld [vmem:[#allocation2 + $0xc0] sm:$0xff]
  %v617 = vld [vmem:[#allocation2 + $0xc8] sm:$0x3]
  %v618 = vld [vmem:[#allocation2 + $0xd0] sm:$0xff]
  %v619 = vld [vmem:[#allocation2 + $0xd8] sm:$0x3]
  %v620 = vld [vmem:[#allocation2 + $0xe0] sm:$0xff]
  %v621 = vld [vmem:[#allocation2 + $0xe8] sm:$0x3]
  %v622 = vld [vmem:[#allocation2 + $0xf0] sm:$0xff]
  %v623 = vld [vmem:[#allocation2 + $0xf8] sm:$0x3]
  %v624 = vld [vmem:[#allocation2 + $0x100] sm:$0xff]
  %v625 = vld [vmem:[#allocation2 + $0x108] sm:$0x3]
  %v626 = vld [vmem:[#allocation2 + $0x110] sm:$0xff]
  %v627 = vld [vmem:[#allocation2 + $0x118] sm:$0x3]
  %v628 = vld [vmem:[#allocation2 + $0x120] sm:$0xff]
  %v629 = vld [vmem:[#allocation2 + $0x128] sm:$0x3]
  %v630 = vld [vmem:[#allocation2 + $0x130] sm:$0xff]
  %v631 = vld [vmem:[#allocation2 + $0x138] sm:$0x3]
  %v632 = vld [vmem:[#allocation2 + $0x140] sm:$0xff]
  %v633 = vld [vmem:[#allocation2 + $0x148] sm:$0x3]
  %v634 = vld [vmem:[#allocation2 + $0x150] sm:$0xff]
  %v635 = vld [vmem:[#allocation2 + $0x158] sm:$0x3]
  %v636 = vld [vmem:[%s2] sm:$0x1]
  %v637 = vperm.slane %v636, 0
  %v638 = vmul.f32 %v596, %v637
  %v639 = vmul.f32 %v597, %v637
  %v640 = vmul.f32 %v598, %v637
  %v641 = vmul.f32 %v599, %v637
  %v642 = vmul.f32 %v600, %v637
  %v643 = vmul.f32 %v601, %v637
  %v644 = vmul.f32 %v602, %v637
  %v645 = vmul.f32 %v603, %v637
  %v646 = vmul.f32 %v604, %v637
  %v647 = vmul.f32 %v605, %v637
  %v648 = vmul.f32 %v606, %v637
  %v649 = vmul.f32 %v607, %v637
  %v650 = vmul.f32 %v608, %v637
  %v651 = vmul.f32 %v609, %v637
  %v652 = vmul.f32 %v610, %v637
  %v653 = vmul.f32 %v611, %v637
  %v654 = vmul.f32 %v612, %v637
  %v655 = vmul.f32 %v613, %v637
  %v656 = vmul.f32 %v614, %v637
  %v657 = vmul.f32 %v615, %v637
  %v658 = vmul.f32 %v616, %v637
  %v659 = vmul.f32 %v617, %v637
  %v660 = vmul.f32 %v618, %v637
  %v661 = vmul.f32 %v619, %v637
  %v662 = vmul.f32 %v620, %v637
  %v663 = vmul.f32 %v621, %v637
  %v664 = vmul.f32 %v622, %v637
  %v665 = vmul.f32 %v623, %v637
  %v666 = vmul.f32 %v624, %v637
  %v667 = vmul.f32 %v625, %v637
  %v668 = vmul.f32 %v626, %v637
  %v669 = vmul.f32 %v627, %v637
  %v670 = vmul.f32 %v628, %v637
  %v671 = vmul.f32 %v629, %v637
  %v672 = vmul.f32 %v630, %v637
  %v673 = vmul.f32 %v631, %v637
  %v674 = vmul.f32 %v632, %v637
  %v675 = vmul.f32 %v633, %v637
  %v676 = vmul.f32 %v634, %v637
  %v677 = vmul.f32 %v635, %v637
  %v678 = vadd.f32 %v638, 0.0
  %v679 = vadd.f32 %v639, 0.0
  %v680 = vadd.f32 %v640, 0.0
  %v681 = vadd.f32 %v641, 0.0
  %v682 = vadd.f32 %v642, 0.0
  %v683 = vadd.f32 %v643, 0.0
  %v684 = vadd.f32 %v644, 0.0
  %v685 = vadd.f32 %v645, 0.0
  %v686 = vadd.f32 %v646, 0.0
  %v687 = vadd.f32 %v647, 0.0
  %v688 = vadd.f32 %v648, 0.0
  %v689 = vadd.f32 %v649, 0.0
  %v690 = vadd.f32 %v650, 0.0
  %v691 = vadd.f32 %v651, 0.0
  %v692 = vadd.f32 %v652, 0.0
  %v693 = vadd.f32 %v653, 0.0
  %v694 = vadd.f32 %v654, 0.0
  %v695 = vadd.f32 %v655, 0.0
  %v696 = vadd.f32 %v656, 0.0
  %v697 = vadd.f32 %v657, 0.0
  %v698 = vadd.f32 %v658, 0.0
  %v699 = vadd.f32 %v659, 0.0
  %v700 = vadd.f32 %v660, 0.0
  %v701 = vadd.f32 %v661, 0.0
  %v702 = vadd.f32 %v662, 0.0
  %v703 = vadd.f32 %v663, 0.0
  %v704 = vadd.f32 %v664, 0.0
  %v705 = vadd.f32 %v665, 0.0
  %v706 = vadd.f32 %v666, 0.0
  %v707 = vadd.f32 %v667, 0.0
  %v708 = vadd.f32 %v668, 0.0
  %v709 = vadd.f32 %v669, 0.0
  %v710 = vadd.f32 %v670, 0.0
  %v711 = vadd.f32 %v671, 0.0
  %v712 = vadd.f32 %v672, 0.0
  %v713 = vadd.f32 %v673, 0.0
  %v714 = vadd.f32 %v674, 0.0
  %v715 = vadd.f32 %v675, 0.0
  %v716 = vadd.f32 %v676, 0.0
  %v717 = vadd.f32 %v677, 0.0
  %v718 = vld [vmem:[#allocation2 + $0x1] sm:$0xff]
  %v719 = vld [vmem:[#allocation2 + $0x9] sm:$0x3]
  %v720 = vld [vmem:[#allocation2 + $0x11] sm:$0xff]
  %v721 = vld [vmem:[#allocation2 + $0x19] sm:$0x3]
  %v722 = vld [vmem:[#allocation2 + $0x21] sm:$0xff]
  %v723 = vld [vmem:[#allocation2 + $0x29] sm:$0x3]
  %v724 = vld [vmem:[#allocation2 + $0x31] sm:$0xff]
  %v725 = vld [vmem:[#allocation2 + $0x39] sm:$0x3]
  %v726 = vld [vmem:[#allocation2 + $0x41] sm:$0xff]
  %v727 = vld [vmem:[#allocation2 + $0x49] sm:$0x3]
  %v728 = vld [vmem:[#allocation2 + $0x51] sm:$0xff]
  %v729 = vld [vmem:[#allocation2 + $0x59] sm:$0x3]
  %v730 = vld [vmem:[#allocation2 + $0x61] sm:$0xff]
  %v731 = vld [vmem:[#allocation2 + $0x69] sm:$0x3]
  %v732 = vld [vmem:[#allocation2 + $0x71] sm:$0xff]
  %v733 = vld [vmem:[#allocation2 + $0x79] sm:$0x3]
  %v734 = vld [vmem:[#allocation2 + $0x81] sm:$0xff]
  %v735 = vld [vmem:[#allocation2 + $0x89] sm:$0x3]
  %v736 = vld [vmem:[#allocation2 + $0x91] sm:$0xff]
  %v737 = vld [vmem:[#allocation2 + $0x99] sm:$0x3]
  %v738 = vld [vmem:[#allocation2 + $0xc1] sm:$0xff]
  %v739 = vld [vmem:[#allocation2 + $0xc9] sm:$0x3]
  %v740 = vld [vmem:[#allocation2 + $0xd1] sm:$0xff]
  %v741 = vld [vmem:[#allocation2 + $0xd9] sm:$0x3]
  %v742 = vld [vmem:[#allocation2 + $0xe1] sm:$0xff]
  %v743 = vld [vmem:[#allocation2 + $0xe9] sm:$0x3]
  %v744 = vld [vmem:[#allocation2 + $0xf1] sm:$0xff]
  %v745 = vld [vmem:[#allocation2 + $0xf9] sm:$0x3]
  %v746 = vld [vmem:[#allocation2 + $0x101] sm:$0xff]
  %v747 = vld [vmem:[#allocation2 + $0x109] sm:$0x3]
  %v748 = vld [vmem:[#allocation2 + $0x111] sm:$0xff]
  %v749 = vld [vmem:[#allocation2 + $0x119] sm:$0x3]
  %v750 = vld [vmem:[#allocation2 + $0x121] sm:$0xff]
  %v751 = vld [vmem:[#allocation2 + $0x129] sm:$0x3]
  %v752 = vld [vmem:[#allocation2 + $0x131] sm:$0xff]
  %v753 = vld [vmem:[#allocation2 + $0x139] sm:$0x3]
  %v754 = vld [vmem:[#allocation2 + $0x141] sm:$0xff]
  %v755 = vld [vmem:[#allocation2 + $0x149] sm:$0x3]
  %v756 = vld [vmem:[#allocation2 + $0x151] sm:$0xff]
  %v757 = vld [vmem:[#allocation2 + $0x159] sm:$0x3]
  %v758 = vld [vmem:[%s2 + $0x1] sm:$0x1]
  %v759 = vperm.slane %v758, 0
  %v760 = vmul.f32 %v718, %v759
  %v761 = vmul.f32 %v719, %v759
  %v762 = vmul.f32 %v720, %v759
  %v763 = vmul.f32 %v721, %v759
  %v764 = vmul.f32 %v722, %v759
  %v765 = vmul.f32 %v723, %v759
  %v766 = vmul.f32 %v724, %v759
  %v767 = vmul.f32 %v725, %v759
  %v768 = vmul.f32 %v726, %v759
  %v769 = vmul.f32 %v727, %v759
  %v770 = vmul.f32 %v728, %v759
  %v771 = vmul.f32 %v729, %v759
  %v772 = vmul.f32 %v730, %v759
  %v773 = vmul.f32 %v731, %v759
  %v774 = vmul.f32 %v732, %v759
  %v775 = vmul.f32 %v733, %v759
  %v776 = vmul.f32 %v734, %v759
  %v777 = vmul.f32 %v735, %v759
  %v778 = vmul.f32 %v736, %v759
  %v779 = vmul.f32 %v737, %v759
  %v780 = vmul.f32 %v738, %v759
  %v781 = vmul.f32 %v739, %v759
  %v782 = vmul.f32 %v740, %v759
  %v783 = vmul.f32 %v741, %v759
  %v784 = vmul.f32 %v742, %v759
  %v785 = vmul.f32 %v743, %v759
  %v786 = vmul.f32 %v744, %v759
  %v787 = vmul.f32 %v745, %v759
  %v788 = vmul.f32 %v746, %v759
  %v789 = vmul.f32 %v747, %v759
  %v790 = vmul.f32 %v748, %v759
  %v791 = vmul.f32 %v749, %v759
  %v792 = vmul.f32 %v750, %v759
  %v793 = vmul.f32 %v751, %v759
  %v794 = vmul.f32 %v752, %v759
  %v795 = vmul.f32 %v753, %v759
  %v796 = vmul.f32 %v754, %v759
  %v797 = vmul.f32 %v755, %v759
  %v798 = vmul.f32 %v756, %v759
  %v799 = vmul.f32 %v757, %v759
  %v800 = vadd.f32 %v678, %v760
  %v801 = vadd.f32 %v679, %v761
  %v802 = vadd.f32 %v680, %v762
  %v803 = vadd.f32 %v681, %v763
  %v804 = vadd.f32 %v682, %v764
  %v805 = vadd.f32 %v683, %v765
  %v806 = vadd.f32 %v684, %v766
  %v807 = vadd.f32 %v685, %v767
  %v808 = vadd.f32 %v686, %v768
  %v809 = vadd.f32 %v687, %v769
  %v810 = vadd.f32 %v688, %v770
  %v811 = vadd.f32 %v689, %v771
  %v812 = vadd.f32 %v690, %v772
  %v813 = vadd.f32 %v691, %v773
  %v814 = vadd.f32 %v692, %v774
  %v815 = vadd.f32 %v693, %v775
  %v816 = vadd.f32 %v694, %v776
  %v817 = vadd.f32 %v695, %v777
  %v818 = vadd.f32 %v696, %v778
  %v819 = vadd.f32 %v697, %v779
  %v820 = vadd.f32 %v698, %v780
  %v821 = vadd.f32 %v699, %v781
  %v822 = vadd.f32 %v700, %v782
  %v823 = vadd.f32 %v701, %v783
  %v824 = vadd.f32 %v702, %v784
  %v825 = vadd.f32 %v703, %v785
  %v826 = vadd.f32 %v704, %v786
  %v827 = vadd.f32 %v705, %v787
  %v828 = vadd.f32 %v706, %v788
  %v829 = vadd.f32 %v707, %v789
  %v830 = vadd.f32 %v708, %v790
  %v831 = vadd.f32 %v709, %v791
  %v832 = vadd.f32 %v710, %v792
  %v833 = vadd.f32 %v711, %v793
  %v834 = vadd.f32 %v712, %v794
  %v835 = vadd.f32 %v713, %v795
  %v836 = vadd.f32 %v714, %v796
  %v837 = vadd.f32 %v715, %v797
  %v838 = vadd.f32 %v716, %v798
  %v839 = vadd.f32 %v717, %v799
  %v840 = vld [vmem:[#allocation2 + $0x2] sm:$0xff]
  %v841 = vld [vmem:[#allocation2 + $0xa] sm:$0x3]
  %v842 = vld [vmem:[#allocation2 + $0x12] sm:$0xff]
  %v843 = vld [vmem:[#allocation2 + $0x1a] sm:$0x3]
  %v844 = vld [vmem:[#allocation2 + $0x22] sm:$0xff]
  %v845 = vld [vmem:[#allocation2 + $0x2a] sm:$0x3]
  %v846 = vld [vmem:[#allocation2 + $0x32] sm:$0xff]
  %v847 = vld [vmem:[#allocation2 + $0x3a] sm:$0x3]
  %v848 = vld [vmem:[#allocation2 + $0x42] sm:$0xff]
  %v849 = vld [vmem:[#allocation2 + $0x4a] sm:$0x3]
  %v850 = vld [vmem:[#allocation2 + $0x52] sm:$0xff]
  %v851 = vld [vmem:[#allocation2 + $0x5a] sm:$0x3]
  %v852 = vld [vmem:[#allocation2 + $0x62] sm:$0xff]
  %v853 = vld [vmem:[#allocation2 + $0x6a] sm:$0x3]
  %v854 = vld [vmem:[#allocation2 + $0x72] sm:$0xff]
  %v855 = vld [vmem:[#allocation2 + $0x7a] sm:$0x3]
  %v856 = vld [vmem:[#allocation2 + $0x82] sm:$0xff]
  %v857 = vld [vmem:[#allocation2 + $0x8a] sm:$0x3]
  %v858 = vld [vmem:[#allocation2 + $0x92] sm:$0xff]
  %v859 = vld [vmem:[#allocation2 + $0x9a] sm:$0x3]
  %v860 = vld [vmem:[#allocation2 + $0xc2] sm:$0xff]
  %v861 = vld [vmem:[#allocation2 + $0xca] sm:$0x3]
  %v862 = vld [vmem:[#allocation2 + $0xd2] sm:$0xff]
  %v863 = vld [vmem:[#allocation2 + $0xda] sm:$0x3]
  %v864 = vld [vmem:[#allocation2 + $0xe2] sm:$0xff]
  %v865 = vld [vmem:[#allocation2 + $0xea] sm:$0x3]
  %v866 = vld [vmem:[#allocation2 + $0xf2] sm:$0xff]
  %v867 = vld [vmem:[#allocation2 + $0xfa] sm:$0x3]
  %v868 = vld [vmem:[#allocation2 + $0x102] sm:$0xff]
  %v869 = vld [vmem:[#allocation2 + $0x10a] sm:$0x3]
  %v870 = vld [vmem:[#allocation2 + $0x112] sm:$0xff]
  %v871 = vld [vmem:[#allocation2 + $0x11a] sm:$0x3]
  %v872 = vld [vmem:[#allocation2 + $0x122] sm:$0xff]
  %v873 = vld [vmem:[#allocation2 + $0x12a] sm:$0x3]
  %v874 = vld [vmem:[#allocation2 + $0x132] sm:$0xff]
  %v875 = vld [vmem:[#allocation2 + $0x13a] sm:$0x3]
  %v876 = vld [vmem:[#allocation2 + $0x142] sm:$0xff]
  %v877 = vld [vmem:[#allocation2 + $0x14a] sm:$0x3]
  %v878 = vld [vmem:[#allocation2 + $0x152] sm:$0xff]
  %v879 = vld [vmem:[#allocation2 + $0x15a] sm:$0x3]
  %v880 = vld [vmem:[%s2 + $0x2] sm:$0x1]
  %v881 = vperm.slane %v880, 0
  %v882 = vmul.f32 %v840, %v881
  %v883 = vmul.f32 %v841, %v881
  %v884 = vmul.f32 %v842, %v881
  %v885 = vmul.f32 %v843, %v881
  %v886 = vmul.f32 %v844, %v881
  %v887 = vmul.f32 %v845, %v881
  %v888 = vmul.f32 %v846, %v881
  %v889 = vmul.f32 %v847, %v881
  %v890 = vmul.f32 %v848, %v881
  %v891 = vmul.f32 %v849, %v881
  %v892 = vmul.f32 %v850, %v881
  %v893 = vmul.f32 %v851, %v881
  %v894 = vmul.f32 %v852, %v881
  %v895 = vmul.f32 %v853, %v881
  %v896 = vmul.f32 %v854, %v881
  %v897 = vmul.f32 %v855, %v881
  %v898 = vmul.f32 %v856, %v881
  %v899 = vmul.f32 %v857, %v881
  %v900 = vmul.f32 %v858, %v881
  %v901 = vmul.f32 %v859, %v881
  %v902 = vmul.f32 %v860, %v881
  %v903 = vmul.f32 %v861, %v881
  %v904 = vmul.f32 %v862, %v881
  %v905 = vmul.f32 %v863, %v881
  %v906 = vmul.f32 %v864, %v881
  %v907 = vmul.f32 %v865, %v881
  %v908 = vmul.f32 %v866, %v881
  %v909 = vmul.f32 %v867, %v881
  %v910 = vmul.f32 %v868, %v881
  %v911 = vmul.f32 %v869, %v881
  %v912 = vmul.f32 %v870, %v881
  %v913 = vmul.f32 %v871, %v881
  %v914 = vmul.f32 %v872, %v881
  %v915 = vmul.f32 %v873, %v881
  %v916 = vmul.f32 %v874, %v881
  %v917 = vmul.f32 %v875, %v881
  %v918 = vmul.f32 %v876, %v881
  %v919 = vmul.f32 %v877, %v881
  %v920 = vmul.f32 %v878, %v881
  %v921 = vmul.f32 %v879, %v881
  %v922 = vadd.f32 %v800, %v882
  %v923 = vadd.f32 %v801, %v883
  %v924 = vadd.f32 %v802, %v884
  %v925 = vadd.f32 %v803, %v885
  %v926 = vadd.f32 %v804, %v886
  %v927 = vadd.f32 %v805, %v887
  %v928 = vadd.f32 %v806, %v888
  %v929 = vadd.f32 %v807, %v889
  %v930 = vadd.f32 %v808, %v890
  %v931 = vadd.f32 %v809, %v891
  %v932 = vadd.f32 %v810, %v892
  %v933 = vadd.f32 %v811, %v893
  %v934 = vadd.f32 %v812, %v894
  %v935 = vadd.f32 %v813, %v895
  %v936 = vadd.f32 %v814, %v896
  %v937 = vadd.f32 %v815, %v897
  %v938 = vadd.f32 %v816, %v898
  %v939 = vadd.f32 %v817, %v899
  %v940 = vadd.f32 %v818, %v900
  %v941 = vadd.f32 %v819, %v901
  %v942 = vadd.f32 %v820, %v902
  %v943 = vadd.f32 %v821, %v903
  %v944 = vadd.f32 %v822, %v904
  %v945 = vadd.f32 %v823, %v905
  %v946 = vadd.f32 %v824, %v906
  %v947 = vadd.f32 %v825, %v907
  %v948 = vadd.f32 %v826, %v908
  %v949 = vadd.f32 %v827, %v909
  %v950 = vadd.f32 %v828, %v910
  %v951 = vadd.f32 %v829, %v911
  %v952 = vadd.f32 %v830, %v912
  %v953 = vadd.f32 %v831, %v913
  %v954 = vadd.f32 %v832, %v914
  %v955 = vadd.f32 %v833, %v915
  %v956 = vadd.f32 %v834, %v916
  %v957 = vadd.f32 %v835, %v917
  %v958 = vadd.f32 %v836, %v918
  %v959 = vadd.f32 %v837, %v919
  %v960 = vadd.f32 %v838, %v920
  %v961 = vadd.f32 %v839, %v921
  %s962 = scalar_lea.vmem [#allocation2], 16
  %v963 = vld [vmem:[%s962] sm:$0xff]
  %v964 = vld [vmem:[%s962 + $0x8] sm:$0x3]
  %v965 = vld [vmem:[%s962 + $0x10] sm:$0xff]
  %v966 = vld [vmem:[%s962 + $0x18] sm:$0x3]
  %v967 = vld [vmem:[%s962 + $0x20] sm:$0xff]
  %v968 = vld [vmem:[%s962 + $0x28] sm:$0x3]
  %v969 = vld [vmem:[%s962 + $0x30] sm:$0xff]
  %v970 = vld [vmem:[%s962 + $0x38] sm:$0x3]
  %v971 = vld [vmem:[%s962 + $0x40] sm:$0xff]
  %v972 = vld [vmem:[%s962 + $0x48] sm:$0x3]
  %v973 = vld [vmem:[%s962 + $0x50] sm:$0xff]
  %v974 = vld [vmem:[%s962 + $0x58] sm:$0x3]
  %v975 = vld [vmem:[%s962 + $0x60] sm:$0xff]
  %v976 = vld [vmem:[%s962 + $0x68] sm:$0x3]
  %v977 = vld [vmem:[%s962 + $0x70] sm:$0xff]
  %v978 = vld [vmem:[%s962 + $0x78] sm:$0x3]
  %v979 = vld [vmem:[%s962 + $0x80] sm:$0xff]
  %v980 = vld [vmem:[%s962 + $0x88] sm:$0x3]
  %v981 = vld [vmem:[%s962 + $0x90] sm:$0xff]
  %v982 = vld [vmem:[%s962 + $0x98] sm:$0x3]
  %v983 = vld [vmem:[%s962 + $0xc0] sm:$0xff]
  %v984 = vld [vmem:[%s962 + $0xc8] sm:$0x3]
  %v985 = vld [vmem:[%s962 + $0xd0] sm:$0xff]
  %v986 = vld [vmem:[%s962 + $0xd8] sm:$0x3]
  %v987 = vld [vmem:[%s962 + $0xe0] sm:$0xff]
  %v988 = vld [vmem:[%s962 + $0xe8] sm:$0x3]
  %v989 = vld [vmem:[%s962 + $0xf0] sm:$0xff]
  %v990 = vld [vmem:[%s962 + $0xf8] sm:$0x3]
  %v991 = vld [vmem:[%s962 + $0x100] sm:$0xff]
  %v992 = vld [vmem:[%s962 + $0x108] sm:$0x3]
  %v993 = vld [vmem:[%s962 + $0x110] sm:$0xff]
  %v994 = vld [vmem:[%s962 + $0x118] sm:$0x3]
  %v995 = vld [vmem:[%s962 + $0x120] sm:$0xff]
  %v996 = vld [vmem:[%s962 + $0x128] sm:$0x3]
  %v997 = vld [vmem:[%s962 + $0x130] sm:$0xff]
  %v998 = vld [vmem:[%s962 + $0x138] sm:$0x3]
  %v999 = vld [vmem:[%s962 + $0x140] sm:$0xff]
  %v1000 = vld [vmem:[%s962 + $0x148] sm:$0x3]
  %v1001 = vld [vmem:[%s962 + $0x150] sm:$0xff]
  %v1002 = vld [vmem:[%s962 + $0x158] sm:$0x3]
  %v1003 = vld [vmem:[%s2 + $0x3] sm:$0x1]
  %v1004 = vperm.slane %v1003, 0
  %v1005 = vmul.f32 %v963, %v1004
  %v1006 = vmul.f32 %v964, %v1004
  %v1007 = vmul.f32 %v965, %v1004
  %v1008 = vmul.f32 %v966, %v1004
  %v1009 = vmul.f32 %v967, %v1004
  %v1010 = vmul.f32 %v968, %v1004
  %v1011 = vmul.f32 %v969, %v1004
  %v1012 = vmul.f32 %v970, %v1004
  %v1013 = vmul.f32 %v971, %v1004
  %v1014 = vmul.f32 %v972, %v1004
  %v1015 = vmul.f32 %v973, %v1004
  %v1016 = vmul.f32 %v974, %v1004
  %v1017 = vmul.f32 %v975, %v1004
  %v1018 = vmul.f32 %v976, %v1004
  %v1019 = vmul.f32 %v977, %v1004
  %v1020 = vmul.f32 %v978, %v1004
  %v1021 = vmul.f32 %v979, %v1004
  %v1022 = vmul.f32 %v980, %v1004
  %v1023 = vmul.f32 %v981, %v1004
  %v1024 = vmul.f32 %v982, %v1004
  %v1025 = vmul.f32 %v983, %v1004
  %v1026 = vmul.f32 %v984, %v1004
  %v1027 = vmul.f32 %v985, %v1004
  %v1028 = vmul.f32 %v986, %v1004
  %v1029 = vmul.f32 %v987, %v1004
  %v1030 = vmul.f32 %v988, %v1004
  %v1031 = vmul.f32 %v989, %v1004
  %v1032 = vmul.f32 %v990, %v1004
  %v1033 = vmul.f32 %v991, %v1004
  %v1034 = vmul.f32 %v992, %v1004
  %v1035 = vmul.f32 %v993, %v1004
  %v1036 = vmul.f32 %v994, %v1004
  %v1037 = vmul.f32 %v995, %v1004
  %v1038 = vmul.f32 %v996, %v1004
  %v1039 = vmul.f32 %v997, %v1004
  %v1040 = vmul.f32 %v998, %v1004
  %v1041 = vmul.f32 %v999, %v1004
  %v1042 = vmul.f32 %v1000, %v1004
  %v1043 = vmul.f32 %v1001, %v1004
  %v1044 = vmul.f32 %v1002, %v1004
  %v1045 = vadd.f32 %v922, %v1005
  %v1046 = vadd.f32 %v923, %v1006
  %v1047 = vadd.f32 %v924, %v1007
  %v1048 = vadd.f32 %v925, %v1008
  %v1049 = vadd.f32 %v926, %v1009
  %v1050 = vadd.f32 %v927, %v1010
  %v1051 = vadd.f32 %v928, %v1011
  %v1052 = vadd.f32 %v929, %v1012
  %v1053 = vadd.f32 %v930, %v1013
  %v1054 = vadd.f32 %v931, %v1014
  %v1055 = vadd.f32 %v932, %v1015
  %v1056 = vadd.f32 %v933, %v1016
  %v1057 = vadd.f32 %v934, %v1017
  %v1058 = vadd.f32 %v935, %v1018
  %v1059 = vadd.f32 %v936, %v1019
  %v1060 = vadd.f32 %v937, %v1020
  %v1061 = vadd.f32 %v938, %v1021
  %v1062 = vadd.f32 %v939, %v1022
  %v1063 = vadd.f32 %v940, %v1023
  %v1064 = vadd.f32 %v941, %v1024
  %v1065 = vadd.f32 %v942, %v1025
  %v1066 = vadd.f32 %v943, %v1026
  %v1067 = vadd.f32 %v944, %v1027
  %v1068 = vadd.f32 %v945, %v1028
  %v1069 = vadd.f32 %v946, %v1029
  %v1070 = vadd.f32 %v947, %v1030
  %v1071 = vadd.f32 %v948, %v1031
  %v1072 = vadd.f32 %v949, %v1032
  %v1073 = vadd.f32 %v950, %v1033
  %v1074 = vadd.f32 %v951, %v1034
  %v1075 = vadd.f32 %v952, %v1035
  %v1076 = vadd.f32 %v953, %v1036
  %v1077 = vadd.f32 %v954, %v1037
  %v1078 = vadd.f32 %v955, %v1038
  %v1079 = vadd.f32 %v956, %v1039
  %v1080 = vadd.f32 %v957, %v1040
  %v1081 = vadd.f32 %v958, %v1041
  %v1082 = vadd.f32 %v959, %v1042
  %v1083 = vadd.f32 %v960, %v1043
  %v1084 = vadd.f32 %v961, %v1044
  %v1085 = vld [vmem:[%s962 + $0x1] sm:$0xff]
  %v1086 = vld [vmem:[%s962 + $0x9] sm:$0x3]
  %v1087 = vld [vmem:[%s962 + $0x11] sm:$0xff]
  %v1088 = vld [vmem:[%s962 + $0x19] sm:$0x3]
  %v1089 = vld [vmem:[%s962 + $0x21] sm:$0xff]
  %v1090 = vld [vmem:[%s962 + $0x29] sm:$0x3]
  %v1091 = vld [vmem:[%s962 + $0x31] sm:$0xff]
  %v1092 = vld [vmem:[%s962 + $0x39] sm:$0x3]
  %v1093 = vld [vmem:[%s962 + $0x41] sm:$0xff]
  %v1094 = vld [vmem:[%s962 + $0x49] sm:$0x3]
  %v1095 = vld [vmem:[%s962 + $0x51] sm:$0xff]
  %v1096 = vld [vmem:[%s962 + $0x59] sm:$0x3]
  %v1097 = vld [vmem:[%s962 + $0x61] sm:$0xff]
  %v1098 = vld [vmem:[%s962 + $0x69] sm:$0x3]
  %v1099 = vld [vmem:[%s962 + $0x71] sm:$0xff]
  %v1100 = vld [vmem:[%s962 + $0x79] sm:$0x3]
  %v1101 = vld [vmem:[%s962 + $0x81] sm:$0xff]
  %v1102 = vld [vmem:[%s962 + $0x89] sm:$0x3]
  %v1103 = vld [vmem:[%s962 + $0x91] sm:$0xff]
  %v1104 = vld [vmem:[%s962 + $0x99] sm:$0x3]
  %v1105 = vld [vmem:[%s962 + $0xc1] sm:$0xff]
  %v1106 = vld [vmem:[%s962 + $0xc9] sm:$0x3]
  %v1107 = vld [vmem:[%s962 + $0xd1] sm:$0xff]
  %v1108 = vld [vmem:[%s962 + $0xd9] sm:$0x3]
  %v1109 = vld [vmem:[%s962 + $0xe1] sm:$0xff]
  %v1110 = vld [vmem:[%s962 + $0xe9] sm:$0x3]
  %v1111 = vld [vmem:[%s962 + $0xf1] sm:$0xff]
  %v1112 = vld [vmem:[%s962 + $0xf9] sm:$0x3]
  %v1113 = vld [vmem:[%s962 + $0x101] sm:$0xff]
  %v1114 = vld [vmem:[%s962 + $0x109] sm:$0x3]
  %v1115 = vld [vmem:[%s962 + $0x111] sm:$0xff]
  %v1116 = vld [vmem:[%s962 + $0x119] sm:$0x3]
  %v1117 = vld [vmem:[%s962 + $0x121] sm:$0xff]
  %v1118 = vld [vmem:[%s962 + $0x129] sm:$0x3]
  %v1119 = vld [vmem:[%s962 + $0x131] sm:$0xff]
  %v1120 = vld [vmem:[%s962 + $0x139] sm:$0x3]
  %v1121 = vld [vmem:[%s962 + $0x141] sm:$0xff]
  %v1122 = vld [vmem:[%s962 + $0x149] sm:$0x3]
  %v1123 = vld [vmem:[%s962 + $0x151] sm:$0xff]
  %v1124 = vld [vmem:[%s962 + $0x159] sm:$0x3]
  %v1125 = vld [vmem:[%s2 + $0x4] sm:$0x1]
  %v1126 = vperm.slane %v1125, 0
  %v1127 = vmul.f32 %v1085, %v1126
  %v1128 = vmul.f32 %v1086, %v1126
  %v1129 = vmul.f32 %v1087, %v1126
  %v1130 = vmul.f32 %v1088, %v1126
  %v1131 = vmul.f32 %v1089, %v1126
  %v1132 = vmul.f32 %v1090, %v1126
  %v1133 = vmul.f32 %v1091, %v1126
  %v1134 = vmul.f32 %v1092, %v1126
  %v1135 = vmul.f32 %v1093, %v1126
  %v1136 = vmul.f32 %v1094, %v1126
  %v1137 = vmul.f32 %v1095, %v1126
  %v1138 = vmul.f32 %v1096, %v1126
  %v1139 = vmul.f32 %v1097, %v1126
  %v1140 = vmul.f32 %v1098, %v1126
  %v1141 = vmul.f32 %v1099, %v1126
  %v1142 = vmul.f32 %v1100, %v1126
  %v1143 = vmul.f32 %v1101, %v1126
  %v1144 = vmul.f32 %v1102, %v1126
  %v1145 = vmul.f32 %v1103, %v1126
  %v1146 = vmul.f32 %v1104, %v1126
  %v1147 = vmul.f32 %v1105, %v1126
  %v1148 = vmul.f32 %v1106, %v1126
  %v1149 = vmul.f32 %v1107, %v1126
  %v1150 = vmul.f32 %v1108, %v1126
  %v1151 = vmul.f32 %v1109, %v1126
  %v1152 = vmul.f32 %v1110, %v1126
  %v1153 = vmul.f32 %v1111, %v1126
  %v1154 = vmul.f32 %v1112, %v1126
  %v1155 = vmul.f32 %v1113, %v1126
  %v1156 = vmul.f32 %v1114, %v1126
  %v1157 = vmul.f32 %v1115, %v1126
  %v1158 = vmul.f32 %v1116, %v1126
  %v1159 = vmul.f32 %v1117, %v1126
  %v1160 = vmul.f32 %v1118, %v1126
  %v1161 = vmul.f32 %v1119, %v1126
  %v1162 = vmul.f32 %v1120, %v1126
  %v1163 = vmul.f32 %v1121, %v1126
  %v1164 = vmul.f32 %v1122, %v1126
  %v1165 = vmul.f32 %v1123, %v1126
  %v1166 = vmul.f32 %v1124, %v1126
  %v1167 = vadd.f32 %v1045, %v1127
  %v1168 = vadd.f32 %v1046, %v1128
  %v1169 = vadd.f32 %v1047, %v1129
  %v1170 = vadd.f32 %v1048, %v1130
  %v1171 = vadd.f32 %v1049, %v1131
  %v1172 = vadd.f32 %v1050, %v1132
  %v1173 = vadd.f32 %v1051, %v1133
  %v1174 = vadd.f32 %v1052, %v1134
  %v1175 = vadd.f32 %v1053, %v1135
  %v1176 = vadd.f32 %v1054, %v1136
  %v1177 = vadd.f32 %v1055, %v1137
  %v1178 = vadd.f32 %v1056, %v1138
  %v1179 = vadd.f32 %v1057, %v1139
  %v1180 = vadd.f32 %v1058, %v1140
  %v1181 = vadd.f32 %v1059, %v1141
  %v1182 = vadd.f32 %v1060, %v1142
  %v1183 = vadd.f32 %v1061, %v1143
  %v1184 = vadd.f32 %v1062, %v1144
  %v1185 = vadd.f32 %v1063, %v1145
  %v1186 = vadd.f32 %v1064, %v1146
  %v1187 = vadd.f32 %v1065, %v1147
  %v1188 = vadd.f32 %v1066, %v1148
  %v1189 = vadd.f32 %v1067, %v1149
  %v1190 = vadd.f32 %v1068, %v1150
  %v1191 = vadd.f32 %v1069, %v1151
  %v1192 = vadd.f32 %v1070, %v1152
  %v1193 = vadd.f32 %v1071, %v1153
  %v1194 = vadd.f32 %v1072, %v1154
  %v1195 = vadd.f32 %v1073, %v1155
  %v1196 = vadd.f32 %v1074, %v1156
  %v1197 = vadd.f32 %v1075, %v1157
  %v1198 = vadd.f32 %v1076, %v1158
  %v1199 = vadd.f32 %v1077, %v1159
  %v1200 = vadd.f32 %v1078, %v1160
  %v1201 = vadd.f32 %v1079, %v1161
  %v1202 = vadd.f32 %v1080, %v1162
  %v1203 = vadd.f32 %v1081, %v1163
  %v1204 = vadd.f32 %v1082, %v1164
  %v1205 = vadd.f32 %v1083, %v1165
  %v1206 = vadd.f32 %v1084, %v1166
  %v1207 = vld [vmem:[%s962 + $0x2] sm:$0xff]
  %v1208 = vld [vmem:[%s962 + $0xa] sm:$0x3]
  %v1209 = vld [vmem:[%s962 + $0x12] sm:$0xff]
  %v1210 = vld [vmem:[%s962 + $0x1a] sm:$0x3]
  %v1211 = vld [vmem:[%s962 + $0x22] sm:$0xff]
  %v1212 = vld [vmem:[%s962 + $0x2a] sm:$0x3]
  %v1213 = vld [vmem:[%s962 + $0x32] sm:$0xff]
  %v1214 = vld [vmem:[%s962 + $0x3a] sm:$0x3]
  %v1215 = vld [vmem:[%s962 + $0x42] sm:$0xff]
  %v1216 = vld [vmem:[%s962 + $0x4a] sm:$0x3]
  %v1217 = vld [vmem:[%s962 + $0x52] sm:$0xff]
  %v1218 = vld [vmem:[%s962 + $0x5a] sm:$0x3]
  %v1219 = vld [vmem:[%s962 + $0x62] sm:$0xff]
  %v1220 = vld [vmem:[%s962 + $0x6a] sm:$0x3]
  %v1221 = vld [vmem:[%s962 + $0x72] sm:$0xff]
  %v1222 = vld [vmem:[%s962 + $0x7a] sm:$0x3]
  %v1223 = vld [vmem:[%s962 + $0x82] sm:$0xff]
  %v1224 = vld [vmem:[%s962 + $0x8a] sm:$0x3]
  %v1225 = vld [vmem:[%s962 + $0x92] sm:$0xff]
  %v1226 = vld [vmem:[%s962 + $0x9a] sm:$0x3]
  %v1227 = vld [vmem:[%s962 + $0xc2] sm:$0xff]
  %v1228 = vld [vmem:[%s962 + $0xca] sm:$0x3]
  %v1229 = vld [vmem:[%s962 + $0xd2] sm:$0xff]
  %v1230 = vld [vmem:[%s962 + $0xda] sm:$0x3]
  %v1231 = vld [vmem:[%s962 + $0xe2] sm:$0xff]
  %v1232 = vld [vmem:[%s962 + $0xea] sm:$0x3]
  %v1233 = vld [vmem:[%s962 + $0xf2] sm:$0xff]
  %v1234 = vld [vmem:[%s962 + $0xfa] sm:$0x3]
  %v1235 = vld [vmem:[%s962 + $0x102] sm:$0xff]
  %v1236 = vld [vmem:[%s962 + $0x10a] sm:$0x3]
  %v1237 = vld [vmem:[%s962 + $0x112] sm:$0xff]
  %v1238 = vld [vmem:[%s962 + $0x11a] sm:$0x3]
  %v1239 = vld [vmem:[%s962 + $0x122] sm:$0xff]
  %v1240 = vld [vmem:[%s962 + $0x12a] sm:$0x3]
  %v1241 = vld [vmem:[%s962 + $0x132] sm:$0xff]
  %v1242 = vld [vmem:[%s962 + $0x13a] sm:$0x3]
  %v1243 = vld [vmem:[%s962 + $0x142] sm:$0xff]
  %v1244 = vld [vmem:[%s962 + $0x14a] sm:$0x3]
  %v1245 = vld [vmem:[%s962 + $0x152] sm:$0xff]
  %v1246 = vld [vmem:[%s962 + $0x15a] sm:$0x3]
  %v1247 = vld [vmem:[%s2 + $0x5] sm:$0x1]
  %v1248 = vperm.slane %v1247, 0
  %v1249 = vmul.f32 %v1207, %v1248
  %v1250 = vmul.f32 %v1208, %v1248
  %v1251 = vmul.f32 %v1209, %v1248
  %v1252 = vmul.f32 %v1210, %v1248
  %v1253 = vmul.f32 %v1211, %v1248
  %v1254 = vmul.f32 %v1212, %v1248
  %v1255 = vmul.f32 %v1213, %v1248
  %v1256 = vmul.f32 %v1214, %v1248
  %v1257 = vmul.f32 %v1215, %v1248
  %v1258 = vmul.f32 %v1216, %v1248
  %v1259 = vmul.f32 %v1217, %v1248
  %v1260 = vmul.f32 %v1218, %v1248
  %v1261 = vmul.f32 %v1219, %v1248
  %v1262 = vmul.f32 %v1220, %v1248
  %v1263 = vmul.f32 %v1221, %v1248
  %v1264 = vmul.f32 %v1222, %v1248
  %v1265 = vmul.f32 %v1223, %v1248
  %v1266 = vmul.f32 %v1224, %v1248
  %v1267 = vmul.f32 %v1225, %v1248
  %v1268 = vmul.f32 %v1226, %v1248
  %v1269 = vmul.f32 %v1227, %v1248
  %v1270 = vmul.f32 %v1228, %v1248
  %v1271 = vmul.f32 %v1229, %v1248
  %v1272 = vmul.f32 %v1230, %v1248
  %v1273 = vmul.f32 %v1231, %v1248
  %v1274 = vmul.f32 %v1232, %v1248
  %v1275 = vmul.f32 %v1233, %v1248
  %v1276 = vmul.f32 %v1234, %v1248
  %v1277 = vmul.f32 %v1235, %v1248
  %v1278 = vmul.f32 %v1236, %v1248
  %v1279 = vmul.f32 %v1237, %v1248
  %v1280 = vmul.f32 %v1238, %v1248
  %v1281 = vmul.f32 %v1239, %v1248
  %v1282 = vmul.f32 %v1240, %v1248
  %v1283 = vmul.f32 %v1241, %v1248
  %v1284 = vmul.f32 %v1242, %v1248
  %v1285 = vmul.f32 %v1243, %v1248
  %v1286 = vmul.f32 %v1244, %v1248
  %v1287 = vmul.f32 %v1245, %v1248
  %v1288 = vmul.f32 %v1246, %v1248
  %v1289 = vadd.f32 %v1167, %v1249
  %v1290 = vadd.f32 %v1168, %v1250
  %v1291 = vadd.f32 %v1169, %v1251
  %v1292 = vadd.f32 %v1170, %v1252
  %v1293 = vadd.f32 %v1171, %v1253
  %v1294 = vadd.f32 %v1172, %v1254
  %v1295 = vadd.f32 %v1173, %v1255
  %v1296 = vadd.f32 %v1174, %v1256
  %v1297 = vadd.f32 %v1175, %v1257
  %v1298 = vadd.f32 %v1176, %v1258
  %v1299 = vadd.f32 %v1177, %v1259
  %v1300 = vadd.f32 %v1178, %v1260
  %v1301 = vadd.f32 %v1179, %v1261
  %v1302 = vadd.f32 %v1180, %v1262
  %v1303 = vadd.f32 %v1181, %v1263
  %v1304 = vadd.f32 %v1182, %v1264
  %v1305 = vadd.f32 %v1183, %v1265
  %v1306 = vadd.f32 %v1184, %v1266
  %v1307 = vadd.f32 %v1185, %v1267
  %v1308 = vadd.f32 %v1186, %v1268
  %v1309 = vadd.f32 %v1187, %v1269
  %v1310 = vadd.f32 %v1188, %v1270
  %v1311 = vadd.f32 %v1189, %v1271
  %v1312 = vadd.f32 %v1190, %v1272
  %v1313 = vadd.f32 %v1191, %v1273
  %v1314 = vadd.f32 %v1192, %v1274
  %v1315 = vadd.f32 %v1193, %v1275
  %v1316 = vadd.f32 %v1194, %v1276
  %v1317 = vadd.f32 %v1195, %v1277
  %v1318 = vadd.f32 %v1196, %v1278
  %v1319 = vadd.f32 %v1197, %v1279
  %v1320 = vadd.f32 %v1198, %v1280
  %v1321 = vadd.f32 %v1199, %v1281
  %v1322 = vadd.f32 %v1200, %v1282
  %v1323 = vadd.f32 %v1201, %v1283
  %v1324 = vadd.f32 %v1202, %v1284
  %v1325 = vadd.f32 %v1203, %v1285
  %v1326 = vadd.f32 %v1204, %v1286
  %v1327 = vadd.f32 %v1205, %v1287
  %v1328 = vadd.f32 %v1206, %v1288
  %s1329 = scalar_lea.vmem [#allocation2], 32
  %v1330 = vld [vmem:[%s1329] sm:$0xff]
  %v1331 = vld [vmem:[%s1329 + $0x8] sm:$0x3]
  %v1332 = vld [vmem:[%s1329 + $0x10] sm:$0xff]
  %v1333 = vld [vmem:[%s1329 + $0x18] sm:$0x3]
  %v1334 = vld [vmem:[%s1329 + $0x20] sm:$0xff]
  %v1335 = vld [vmem:[%s1329 + $0x28] sm:$0x3]
  %v1336 = vld [vmem:[%s1329 + $0x30] sm:$0xff]
  %v1337 = vld [vmem:[%s1329 + $0x38] sm:$0x3]
  %v1338 = vld [vmem:[%s1329 + $0x40] sm:$0xff]
  %v1339 = vld [vmem:[%s1329 + $0x48] sm:$0x3]
  %v1340 = vld [vmem:[%s1329 + $0x50] sm:$0xff]
  %v1341 = vld [vmem:[%s1329 + $0x58] sm:$0x3]
  %v1342 = vld [vmem:[%s1329 + $0x60] sm:$0xff]
  %v1343 = vld [vmem:[%s1329 + $0x68] sm:$0x3]
  %v1344 = vld [vmem:[%s1329 + $0x70] sm:$0xff]
  %v1345 = vld [vmem:[%s1329 + $0x78] sm:$0x3]
  %v1346 = vld [vmem:[%s1329 + $0x80] sm:$0xff]
  %v1347 = vld [vmem:[%s1329 + $0x88] sm:$0x3]
  %v1348 = vld [vmem:[%s1329 + $0x90] sm:$0xff]
  %v1349 = vld [vmem:[%s1329 + $0x98] sm:$0x3]
  %v1350 = vld [vmem:[%s1329 + $0xc0] sm:$0xff]
  %v1351 = vld [vmem:[%s1329 + $0xc8] sm:$0x3]
  %v1352 = vld [vmem:[%s1329 + $0xd0] sm:$0xff]
  %v1353 = vld [vmem:[%s1329 + $0xd8] sm:$0x3]
  %v1354 = vld [vmem:[%s1329 + $0xe0] sm:$0xff]
  %v1355 = vld [vmem:[%s1329 + $0xe8] sm:$0x3]
  %v1356 = vld [vmem:[%s1329 + $0xf0] sm:$0xff]
  %v1357 = vld [vmem:[%s1329 + $0xf8] sm:$0x3]
  %v1358 = vld [vmem:[%s1329 + $0x100] sm:$0xff]
  %v1359 = vld [vmem:[%s1329 + $0x108] sm:$0x3]
  %v1360 = vld [vmem:[%s1329 + $0x110] sm:$0xff]
  %v1361 = vld [vmem:[%s1329 + $0x118] sm:$0x3]
  %v1362 = vld [vmem:[%s1329 + $0x120] sm:$0xff]
  %v1363 = vld [vmem:[%s1329 + $0x128] sm:$0x3]
  %v1364 = vld [vmem:[%s1329 + $0x130] sm:$0xff]
  %v1365 = vld [vmem:[%s1329 + $0x138] sm:$0x3]
  %v1366 = vld [vmem:[%s1329 + $0x140] sm:$0xff]
  %v1367 = vld [vmem:[%s1329 + $0x148] sm:$0x3]
  %v1368 = vld [vmem:[%s1329 + $0x150] sm:$0xff]
  %v1369 = vld [vmem:[%s1329 + $0x158] sm:$0x3]
  %v1370 = vld [vmem:[%s2 + $0x6] sm:$0x1]
  %v1371 = vperm.slane %v1370, 0
  %v1372 = vmul.f32 %v1330, %v1371
  %v1373 = vmul.f32 %v1331, %v1371
  %v1374 = vmul.f32 %v1332, %v1371
  %v1375 = vmul.f32 %v1333, %v1371
  %v1376 = vmul.f32 %v1334, %v1371
  %v1377 = vmul.f32 %v1335, %v1371
  %v1378 = vmul.f32 %v1336, %v1371
  %v1379 = vmul.f32 %v1337, %v1371
  %v1380 = vmul.f32 %v1338, %v1371
  %v1381 = vmul.f32 %v1339, %v1371
  %v1382 = vmul.f32 %v1340, %v1371
  %v1383 = vmul.f32 %v1341, %v1371
  %v1384 = vmul.f32 %v1342, %v1371
  %v1385 = vmul.f32 %v1343, %v1371
  %v1386 = vmul.f32 %v1344, %v1371
  %v1387 = vmul.f32 %v1345, %v1371
  %v1388 = vmul.f32 %v1346, %v1371
  %v1389 = vmul.f32 %v1347, %v1371
  %v1390 = vmul.f32 %v1348, %v1371
  %v1391 = vmul.f32 %v1349, %v1371
  %v1392 = vmul.f32 %v1350, %v1371
  %v1393 = vmul.f32 %v1351, %v1371
  %v1394 = vmul.f32 %v1352, %v1371
  %v1395 = vmul.f32 %v1353, %v1371
  %v1396 = vmul.f32 %v1354, %v1371
  %v1397 = vmul.f32 %v1355, %v1371
  %v1398 = vmul.f32 %v1356, %v1371
  %v1399 = vmul.f32 %v1357, %v1371
  %v1400 = vmul.f32 %v1358, %v1371
  %v1401 = vmul.f32 %v1359, %v1371
  %v1402 = vmul.f32 %v1360, %v1371
  %v1403 = vmul.f32 %v1361, %v1371
  %v1404 = vmul.f32 %v1362, %v1371
  %v1405 = vmul.f32 %v1363, %v1371
  %v1406 = vmul.f32 %v1364, %v1371
  %v1407 = vmul.f32 %v1365, %v1371
  %v1408 = vmul.f32 %v1366, %v1371
  %v1409 = vmul.f32 %v1367, %v1371
  %v1410 = vmul.f32 %v1368, %v1371
  %v1411 = vmul.f32 %v1369, %v1371
  %v1412 = vadd.f32 %v1289, %v1372
  %v1413 = vadd.f32 %v1290, %v1373
  %v1414 = vadd.f32 %v1291, %v1374
  %v1415 = vadd.f32 %v1292, %v1375
  %v1416 = vadd.f32 %v1293, %v1376
  %v1417 = vadd.f32 %v1294, %v1377
  %v1418 = vadd.f32 %v1295, %v1378
  %v1419 = vadd.f32 %v1296, %v1379
  %v1420 = vadd.f32 %v1297, %v1380
  %v1421 = vadd.f32 %v1298, %v1381
  %v1422 = vadd.f32 %v1299, %v1382
  %v1423 = vadd.f32 %v1300, %v1383
  %v1424 = vadd.f32 %v1301, %v1384
  %v1425 = vadd.f32 %v1302, %v1385
  %v1426 = vadd.f32 %v1303, %v1386
  %v1427 = vadd.f32 %v1304, %v1387
  %v1428 = vadd.f32 %v1305, %v1388
  %v1429 = vadd.f32 %v1306, %v1389
  %v1430 = vadd.f32 %v1307, %v1390
  %v1431 = vadd.f32 %v1308, %v1391
  %v1432 = vadd.f32 %v1309, %v1392
  %v1433 = vadd.f32 %v1310, %v1393
  %v1434 = vadd.f32 %v1311, %v1394
  %v1435 = vadd.f32 %v1312, %v1395
  %v1436 = vadd.f32 %v1313, %v1396
  %v1437 = vadd.f32 %v1314, %v1397
  %v1438 = vadd.f32 %v1315, %v1398
  %v1439 = vadd.f32 %v1316, %v1399
  %v1440 = vadd.f32 %v1317, %v1400
  %v1441 = vadd.f32 %v1318, %v1401
  %v1442 = vadd.f32 %v1319, %v1402
  %v1443 = vadd.f32 %v1320, %v1403
  %v1444 = vadd.f32 %v1321, %v1404
  %v1445 = vadd.f32 %v1322, %v1405
  %v1446 = vadd.f32 %v1323, %v1406
  %v1447 = vadd.f32 %v1324, %v1407
  %v1448 = vadd.f32 %v1325, %v1408
  %v1449 = vadd.f32 %v1326, %v1409
  %v1450 = vadd.f32 %v1327, %v1410
  %v1451 = vadd.f32 %v1328, %v1411
  %v1452 = vld [vmem:[%s1329 + $0x1] sm:$0xff]
  %v1453 = vld [vmem:[%s1329 + $0x9] sm:$0x3]
  %v1454 = vld [vmem:[%s1329 + $0x11] sm:$0xff]
  %v1455 = vld [vmem:[%s1329 + $0x19] sm:$0x3]
  %v1456 = vld [vmem:[%s1329 + $0x21] sm:$0xff]
  %v1457 = vld [vmem:[%s1329 + $0x29] sm:$0x3]
  %v1458 = vld [vmem:[%s1329 + $0x31] sm:$0xff]
  %v1459 = vld [vmem:[%s1329 + $0x39] sm:$0x3]
  %v1460 = vld [vmem:[%s1329 + $0x41] sm:$0xff]
  %v1461 = vld [vmem:[%s1329 + $0x49] sm:$0x3]
  %v1462 = vld [vmem:[%s1329 + $0x51] sm:$0xff]
  %v1463 = vld [vmem:[%s1329 + $0x59] sm:$0x3]
  %v1464 = vld [vmem:[%s1329 + $0x61] sm:$0xff]
  %v1465 = vld [vmem:[%s1329 + $0x69] sm:$0x3]
  %v1466 = vld [vmem:[%s1329 + $0x71] sm:$0xff]
  %v1467 = vld [vmem:[%s1329 + $0x79] sm:$0x3]
  %v1468 = vld [vmem:[%s1329 + $0x81] sm:$0xff]
  %v1469 = vld [vmem:[%s1329 + $0x89] sm:$0x3]
  %v1470 = vld [vmem:[%s1329 + $0x91] sm:$0xff]
  %v1471 = vld [vmem:[%s1329 + $0x99] sm:$0x3]
  %v1472 = vld [vmem:[%s1329 + $0xc1] sm:$0xff]
  %v1473 = vld [vmem:[%s1329 + $0xc9] sm:$0x3]
  %v1474 = vld [vmem:[%s1329 + $0xd1] sm:$0xff]
  %v1475 = vld [vmem:[%s1329 + $0xd9] sm:$0x3]
  %v1476 = vld [vmem:[%s1329 + $0xe1] sm:$0xff]
  %v1477 = vld [vmem:[%s1329 + $0xe9] sm:$0x3]
  %v1478 = vld [vmem:[%s1329 + $0xf1] sm:$0xff]
  %v1479 = vld [vmem:[%s1329 + $0xf9] sm:$0x3]
  %v1480 = vld [vmem:[%s1329 + $0x101] sm:$0xff]
  %v1481 = vld [vmem:[%s1329 + $0x109] sm:$0x3]
  %v1482 = vld [vmem:[%s1329 + $0x111] sm:$0xff]
  %v1483 = vld [vmem:[%s1329 + $0x119] sm:$0x3]
  %v1484 = vld [vmem:[%s1329 + $0x121] sm:$0xff]
  %v1485 = vld [vmem:[%s1329 + $0x129] sm:$0x3]
  %v1486 = vld [vmem:[%s1329 + $0x131] sm:$0xff]
  %v1487 = vld [vmem:[%s1329 + $0x139] sm:$0x3]
  %v1488 = vld [vmem:[%s1329 + $0x141] sm:$0xff]
  %v1489 = vld [vmem:[%s1329 + $0x149] sm:$0x3]
  %v1490 = vld [vmem:[%s1329 + $0x151] sm:$0xff]
  %v1491 = vld [vmem:[%s1329 + $0x159] sm:$0x3]
  %v1492 = vld [vmem:[%s2 + $0x7] sm:$0x1]
  %v1493 = vperm.slane %v1492, 0
  %v1494 = vmul.f32 %v1452, %v1493
  %v1495 = vmul.f32 %v1453, %v1493
  %v1496 = vmul.f32 %v1454, %v1493
  %v1497 = vmul.f32 %v1455, %v1493
  %v1498 = vmul.f32 %v1456, %v1493
  %v1499 = vmul.f32 %v1457, %v1493
  %v1500 = vmul.f32 %v1458, %v1493
  %v1501 = vmul.f32 %v1459, %v1493
  %v1502 = vmul.f32 %v1460, %v1493
  %v1503 = vmul.f32 %v1461, %v1493
  %v1504 = vmul.f32 %v1462, %v1493
  %v1505 = vmul.f32 %v1463, %v1493
  %v1506 = vmul.f32 %v1464, %v1493
  %v1507 = vmul.f32 %v1465, %v1493
  %v1508 = vmul.f32 %v1466, %v1493
  %v1509 = vmul.f32 %v1467, %v1493
  %v1510 = vmul.f32 %v1468, %v1493
  %v1511 = vmul.f32 %v1469, %v1493
  %v1512 = vmul.f32 %v1470, %v1493
  %v1513 = vmul.f32 %v1471, %v1493
  %v1514 = vmul.f32 %v1472, %v1493
  %v1515 = vmul.f32 %v1473, %v1493
  %v1516 = vmul.f32 %v1474, %v1493
  %v1517 = vmul.f32 %v1475, %v1493
  %v1518 = vmul.f32 %v1476, %v1493
  %v1519 = vmul.f32 %v1477, %v1493
  %v1520 = vmul.f32 %v1478, %v1493
  %v1521 = vmul.f32 %v1479, %v1493
  %v1522 = vmul.f32 %v1480, %v1493
  %v1523 = vmul.f32 %v1481, %v1493
  %v1524 = vmul.f32 %v1482, %v1493
  %v1525 = vmul.f32 %v1483, %v1493
  %v1526 = vmul.f32 %v1484, %v1493
  %v1527 = vmul.f32 %v1485, %v1493
  %v1528 = vmul.f32 %v1486, %v1493
  %v1529 = vmul.f32 %v1487, %v1493
  %v1530 = vmul.f32 %v1488, %v1493
  %v1531 = vmul.f32 %v1489, %v1493
  %v1532 = vmul.f32 %v1490, %v1493
  %v1533 = vmul.f32 %v1491, %v1493
  %v1534 = vadd.f32 %v1412, %v1494
  %v1535 = vadd.f32 %v1413, %v1495
  %v1536 = vadd.f32 %v1414, %v1496
  %v1537 = vadd.f32 %v1415, %v1497
  %v1538 = vadd.f32 %v1416, %v1498
  %v1539 = vadd.f32 %v1417, %v1499
  %v1540 = vadd.f32 %v1418, %v1500
  %v1541 = vadd.f32 %v1419, %v1501
  %v1542 = vadd.f32 %v1420, %v1502
  %v1543 = vadd.f32 %v1421, %v1503
  %v1544 = vadd.f32 %v1422, %v1504
  %v1545 = vadd.f32 %v1423, %v1505
  %v1546 = vadd.f32 %v1424, %v1506
  %v1547 = vadd.f32 %v1425, %v1507
  %v1548 = vadd.f32 %v1426, %v1508
  %v1549 = vadd.f32 %v1427, %v1509
  %v1550 = vadd.f32 %v1428, %v1510
  %v1551 = vadd.f32 %v1429, %v1511
  %v1552 = vadd.f32 %v1430, %v1512
  %v1553 = vadd.f32 %v1431, %v1513
  %v1554 = vadd.f32 %v1432, %v1514
  %v1555 = vadd.f32 %v1433, %v1515
  %v1556 = vadd.f32 %v1434, %v1516
  %v1557 = vadd.f32 %v1435, %v1517
  %v1558 = vadd.f32 %v1436, %v1518
  %v1559 = vadd.f32 %v1437, %v1519
  %v1560 = vadd.f32 %v1438, %v1520
  %v1561 = vadd.f32 %v1439, %v1521
  %v1562 = vadd.f32 %v1440, %v1522
  %v1563 = vadd.f32 %v1441, %v1523
  %v1564 = vadd.f32 %v1442, %v1524
  %v1565 = vadd.f32 %v1443, %v1525
  %v1566 = vadd.f32 %v1444, %v1526
  %v1567 = vadd.f32 %v1445, %v1527
  %v1568 = vadd.f32 %v1446, %v1528
  %v1569 = vadd.f32 %v1447, %v1529
  %v1570 = vadd.f32 %v1448, %v1530
  %v1571 = vadd.f32 %v1449, %v1531
  %v1572 = vadd.f32 %v1450, %v1532
  %v1573 = vadd.f32 %v1451, %v1533
  %v1574 = vld [vmem:[%s1329 + $0x2] sm:$0xff]
  %v1575 = vld [vmem:[%s1329 + $0xa] sm:$0x3]
  %v1576 = vld [vmem:[%s1329 + $0x12] sm:$0xff]
  %v1577 = vld [vmem:[%s1329 + $0x1a] sm:$0x3]
  %v1578 = vld [vmem:[%s1329 + $0x22] sm:$0xff]
  %v1579 = vld [vmem:[%s1329 + $0x2a] sm:$0x3]
  %v1580 = vld [vmem:[%s1329 + $0x32] sm:$0xff]
  %v1581 = vld [vmem:[%s1329 + $0x3a] sm:$0x3]
  %v1582 = vld [vmem:[%s1329 + $0x42] sm:$0xff]
  %v1583 = vld [vmem:[%s1329 + $0x4a] sm:$0x3]
  %v1584 = vld [vmem:[%s1329 + $0x52] sm:$0xff]
  %v1585 = vld [vmem:[%s1329 + $0x5a] sm:$0x3]
  %v1586 = vld [vmem:[%s1329 + $0x62] sm:$0xff]
  %v1587 = vld [vmem:[%s1329 + $0x6a] sm:$0x3]
  %v1588 = vld [vmem:[%s1329 + $0x72] sm:$0xff]
  %v1589 = vld [vmem:[%s1329 + $0x7a] sm:$0x3]
  %v1590 = vld [vmem:[%s1329 + $0x82] sm:$0xff]
  %v1591 = vld [vmem:[%s1329 + $0x8a] sm:$0x3]
  %v1592 = vld [vmem:[%s1329 + $0x92] sm:$0xff]
  %v1593 = vld [vmem:[%s1329 + $0x9a] sm:$0x3]
  %v1594 = vld [vmem:[%s1329 + $0xc2] sm:$0xff]
  %v1595 = vld [vmem:[%s1329 + $0xca] sm:$0x3]
  %v1596 = vld [vmem:[%s1329 + $0xd2] sm:$0xff]
  %v1597 = vld [vmem:[%s1329 + $0xda] sm:$0x3]
  %v1598 = vld [vmem:[%s1329 + $0xe2] sm:$0xff]
  %v1599 = vld [vmem:[%s1329 + $0xea] sm:$0x3]
  %v1600 = vld [vmem:[%s1329 + $0xf2] sm:$0xff]
  %v1601 = vld [vmem:[%s1329 + $0xfa] sm:$0x3]
  %v1602 = vld [vmem:[%s1329 + $0x102] sm:$0xff]
  %v1603 = vld [vmem:[%s1329 + $0x10a] sm:$0x3]
  %v1604 = vld [vmem:[%s1329 + $0x112] sm:$0xff]
  %v1605 = vld [vmem:[%s1329 + $0x11a] sm:$0x3]
  %v1606 = vld [vmem:[%s1329 + $0x122] sm:$0xff]
  %v1607 = vld [vmem:[%s1329 + $0x12a] sm:$0x3]
  %v1608 = vld [vmem:[%s1329 + $0x132] sm:$0xff]
  %v1609 = vld [vmem:[%s1329 + $0x13a] sm:$0x3]
  %v1610 = vld [vmem:[%s1329 + $0x142] sm:$0xff]
  %v1611 = vld [vmem:[%s1329 + $0x14a] sm:$0x3]
  %v1612 = vld [vmem:[%s1329 + $0x152] sm:$0xff]
  %v1613 = vld [vmem:[%s1329 + $0x15a] sm:$0x3]
  %v1614 = vld [vmem:[%s2 + $0x8] sm:$0x1]
  %v1615 = vperm.slane %v1614, 0
  %v1616 = vmul.f32 %v1574, %v1615
  %v1617 = vmul.f32 %v1575, %v1615
  %v1618 = vmul.f32 %v1576, %v1615
  %v1619 = vmul.f32 %v1577, %v1615
  %v1620 = vmul.f32 %v1578, %v1615
  %v1621 = vmul.f32 %v1579, %v1615
  %v1622 = vmul.f32 %v1580, %v1615
  %v1623 = vmul.f32 %v1581, %v1615
  %v1624 = vmul.f32 %v1582, %v1615
  %v1625 = vmul.f32 %v1583, %v1615
  %v1626 = vmul.f32 %v1584, %v1615
  %v1627 = vmul.f32 %v1585, %v1615
  %v1628 = vmul.f32 %v1586, %v1615
  %v1629 = vmul.f32 %v1587, %v1615
  %v1630 = vmul.f32 %v1588, %v1615
  %v1631 = vmul.f32 %v1589, %v1615
  %v1632 = vmul.f32 %v1590, %v1615
  %v1633 = vmul.f32 %v1591, %v1615
  %v1634 = vmul.f32 %v1592, %v1615
  %v1635 = vmul.f32 %v1593, %v1615
  %v1636 = vmul.f32 %v1594, %v1615
  %v1637 = vmul.f32 %v1595, %v1615
  %v1638 = vmul.f32 %v1596, %v1615
  %v1639 = vmul.f32 %v1597, %v1615
  %v1640 = vmul.f32 %v1598, %v1615
  %v1641 = vmul.f32 %v1599, %v1615
  %v1642 = vmul.f32 %v1600, %v1615
  %v1643 = vmul.f32 %v1601, %v1615
  %v1644 = vmul.f32 %v1602, %v1615
  %v1645 = vmul.f32 %v1603, %v1615
  %v1646 = vmul.f32 %v1604, %v1615
  %v1647 = vmul.f32 %v1605, %v1615
  %v1648 = vmul.f32 %v1606, %v1615
  %v1649 = vmul.f32 %v1607, %v1615
  %v1650 = vmul.f32 %v1608, %v1615
  %v1651 = vmul.f32 %v1609, %v1615
  %v1652 = vmul.f32 %v1610, %v1615
  %v1653 = vmul.f32 %v1611, %v1615
  %v1654 = vmul.f32 %v1612, %v1615
  %v1655 = vmul.f32 %v1613, %v1615
  %v1656 = vadd.f32 %v1534, %v1616
  %v1657 = vadd.f32 %v1535, %v1617
  %v1658 = vadd.f32 %v1536, %v1618
  %v1659 = vadd.f32 %v1537, %v1619
  %v1660 = vadd.f32 %v1538, %v1620
  %v1661 = vadd.f32 %v1539, %v1621
  %v1662 = vadd.f32 %v1540, %v1622
  %v1663 = vadd.f32 %v1541, %v1623
  %v1664 = vadd.f32 %v1542, %v1624
  %v1665 = vadd.f32 %v1543, %v1625
  %v1666 = vadd.f32 %v1544, %v1626
  %v1667 = vadd.f32 %v1545, %v1627
  %v1668 = vadd.f32 %v1546, %v1628
  %v1669 = vadd.f32 %v1547, %v1629
  %v1670 = vadd.f32 %v1548, %v1630
  %v1671 = vadd.f32 %v1549, %v1631
  %v1672 = vadd.f32 %v1550, %v1632
  %v1673 = vadd.f32 %v1551, %v1633
  %v1674 = vadd.f32 %v1552, %v1634
  %v1675 = vadd.f32 %v1553, %v1635
  %v1676 = vadd.f32 %v1554, %v1636
  %v1677 = vadd.f32 %v1555, %v1637
  %v1678 = vadd.f32 %v1556, %v1638
  %v1679 = vadd.f32 %v1557, %v1639
  %v1680 = vadd.f32 %v1558, %v1640
  %v1681 = vadd.f32 %v1559, %v1641
  %v1682 = vadd.f32 %v1560, %v1642
  %v1683 = vadd.f32 %v1561, %v1643
  %v1684 = vadd.f32 %v1562, %v1644
  %v1685 = vadd.f32 %v1563, %v1645
  %v1686 = vadd.f32 %v1564, %v1646
  %v1687 = vadd.f32 %v1565, %v1647
  %v1688 = vadd.f32 %v1566, %v1648
  %v1689 = vadd.f32 %v1567, %v1649
  %v1690 = vadd.f32 %v1568, %v1650
  %v1691 = vadd.f32 %v1569, %v1651
  %v1692 = vadd.f32 %v1570, %v1652
  %v1693 = vadd.f32 %v1571, %v1653
  %v1694 = vadd.f32 %v1572, %v1654
  %v1695 = vadd.f32 %v1573, %v1655
  %v1696 = vmul.f32 %v1656, %v1656
  %v1697 = vmul.f32 %v1657, %v1657
  %v1698 = vmul.f32 %v1658, %v1658
  %v1699 = vmul.f32 %v1659, %v1659
  %v1700 = vmul.f32 %v1660, %v1660
  %v1701 = vmul.f32 %v1661, %v1661
  %v1702 = vmul.f32 %v1662, %v1662
  %v1703 = vmul.f32 %v1663, %v1663
  %v1704 = vmul.f32 %v1664, %v1664
  %v1705 = vmul.f32 %v1665, %v1665
  %v1706 = vmul.f32 %v1666, %v1666
  %v1707 = vmul.f32 %v1667, %v1667
  %v1708 = vmul.f32 %v1668, %v1668
  %v1709 = vmul.f32 %v1669, %v1669
  %v1710 = vmul.f32 %v1670, %v1670
  %v1711 = vmul.f32 %v1671, %v1671
  %v1712 = vmul.f32 %v1672, %v1672
  %v1713 = vmul.f32 %v1673, %v1673
  %v1714 = vmul.f32 %v1674, %v1674
  %v1715 = vmul.f32 %v1675, %v1675
  %v1716 = vmul.f32 %v1676, %v1676
  %v1717 = vmul.f32 %v1677, %v1677
  %v1718 = vmul.f32 %v1678, %v1678
  %v1719 = vmul.f32 %v1679, %v1679
  %v1720 = vmul.f32 %v1680, %v1680
  %v1721 = vmul.f32 %v1681, %v1681
  %v1722 = vmul.f32 %v1682, %v1682
  %v1723 = vmul.f32 %v1683, %v1683
  %v1724 = vmul.f32 %v1684, %v1684
  %v1725 = vmul.f32 %v1685, %v1685
  %v1726 = vmul.f32 %v1686, %v1686
  %v1727 = vmul.f32 %v1687, %v1687
  %v1728 = vmul.f32 %v1688, %v1688
  %v1729 = vmul.f32 %v1689, %v1689
  %v1730 = vmul.f32 %v1690, %v1690
  %v1731 = vmul.f32 %v1691, %v1691
  %v1732 = vmul.f32 %v1692, %v1692
  %v1733 = vmul.f32 %v1693, %v1693
  %v1734 = vmul.f32 %v1694, %v1694
  %v1735 = vmul.f32 %v1695, %v1695
  %v1736 = vmul.f32 %v1696, %v1656
  %v1737 = vmul.f32 %v1697, %v1657
  %v1738 = vmul.f32 %v1698, %v1658
  %v1739 = vmul.f32 %v1699, %v1659
  %v1740 = vmul.f32 %v1700, %v1660
  %v1741 = vmul.f32 %v1701, %v1661
  %v1742 = vmul.f32 %v1702, %v1662
  %v1743 = vmul.f32 %v1703, %v1663
  %v1744 = vmul.f32 %v1704, %v1664
  %v1745 = vmul.f32 %v1705, %v1665
  %v1746 = vmul.f32 %v1706, %v1666
  %v1747 = vmul.f32 %v1707, %v1667
  %v1748 = vmul.f32 %v1708, %v1668
  %v1749 = vmul.f32 %v1709, %v1669
  %v1750 = vmul.f32 %v1710, %v1670
  %v1751 = vmul.f32 %v1711, %v1671
  %v1752 = vmul.f32 %v1712, %v1672
  %v1753 = vmul.f32 %v1713, %v1673
  %v1754 = vmul.f32 %v1714, %v1674
  %v1755 = vmul.f32 %v1715, %v1675
  %v1756 = vmul.f32 %v1716, %v1676
  %v1757 = vmul.f32 %v1717, %v1677
  %v1758 = vmul.f32 %v1718, %v1678
  %v1759 = vmul.f32 %v1719, %v1679
  %v1760 = vmul.f32 %v1720, %v1680
  %v1761 = vmul.f32 %v1721, %v1681
  %v1762 = vmul.f32 %v1722, %v1682
  %v1763 = vmul.f32 %v1723, %v1683
  %v1764 = vmul.f32 %v1724, %v1684
  %v1765 = vmul.f32 %v1725, %v1685
  %v1766 = vmul.f32 %v1726, %v1686
  %v1767 = vmul.f32 %v1727, %v1687
  %v1768 = vmul.f32 %v1728, %v1688
  %v1769 = vmul.f32 %v1729, %v1689
  %v1770 = vmul.f32 %v1730, %v1690
  %v1771 = vmul.f32 %v1731, %v1691
  %v1772 = vmul.f32 %v1732, %v1692
  %v1773 = vmul.f32 %v1733, %v1693
  %v1774 = vmul.f32 %v1734, %v1694
  %v1775 = vmul.f32 %v1735, %v1695
  %v1776 = vmul.f32 %v1656, 0.5
  %v1777 = vmul.f32 %v1657, 0.5
  %v1778 = vmul.f32 %v1658, 0.5
  %v1779 = vmul.f32 %v1659, 0.5
  %v1780 = vmul.f32 %v1660, 0.5
  %v1781 = vmul.f32 %v1661, 0.5
  %v1782 = vmul.f32 %v1662, 0.5
  %v1783 = vmul.f32 %v1663, 0.5
  %v1784 = vmul.f32 %v1664, 0.5
  %v1785 = vmul.f32 %v1665, 0.5
  %v1786 = vmul.f32 %v1666, 0.5
  %v1787 = vmul.f32 %v1667, 0.5
  %v1788 = vmul.f32 %v1668, 0.5
  %v1789 = vmul.f32 %v1669, 0.5
  %v1790 = vmul.f32 %v1670, 0.5
  %v1791 = vmul.f32 %v1671, 0.5
  %v1792 = vmul.f32 %v1672, 0.5
  %v1793 = vmul.f32 %v1673, 0.5
  %v1794 = vmul.f32 %v1674, 0.5
  %v1795 = vmul.f32 %v1675, 0.5
  %v1796 = vmul.f32 %v1676, 0.5
  %v1797 = vmul.f32 %v1677, 0.5
  %v1798 = vmul.f32 %v1678, 0.5
  %v1799 = vmul.f32 %v1679, 0.5
  %v1800 = vmul.f32 %v1680, 0.5
  %v1801 = vmul.f32 %v1681, 0.5
  %v1802 = vmul.f32 %v1682, 0.5
  %v1803 = vmul.f32 %v1683, 0.5
  %v1804 = vmul.f32 %v1684, 0.5
  %v1805 = vmul.f32 %v1685, 0.5
  %v1806 = vmul.f32 %v1686, 0.5
  %v1807 = vmul.f32 %v1687, 0.5
  %v1808 = vmul.f32 %v1688, 0.5
  %v1809 = vmul.f32 %v1689, 0.5
  %v1810 = vmul.f32 %v1690, 0.5
  %v1811 = vmul.f32 %v1691, 0.5
  %v1812 = vmul.f32 %v1692, 0.5
  %v1813 = vmul.f32 %v1693, 0.5
  %v1814 = vmul.f32 %v1694, 0.5
  %v1815 = vmul.f32 %v1695, 0.5
  %v1816 = vmul.f32 %v1736, 0.044715
  %v1817 = vmul.f32 %v1737, 0.044715
  %v1818 = vmul.f32 %v1738, 0.044715
  %v1819 = vmul.f32 %v1739, 0.044715
  %v1820 = vmul.f32 %v1740, 0.044715
  %v1821 = vmul.f32 %v1741, 0.044715
  %v1822 = vmul.f32 %v1742, 0.044715
  %v1823 = vmul.f32 %v1743, 0.044715
  %v1824 = vmul.f32 %v1744, 0.044715
  %v1825 = vmul.f32 %v1745, 0.044715
  %v1826 = vmul.f32 %v1746, 0.044715
  %v1827 = vmul.f32 %v1747, 0.044715
  %v1828 = vmul.f32 %v1748, 0.044715
  %v1829 = vmul.f32 %v1749, 0.044715
  %v1830 = vmul.f32 %v1750, 0.044715
  %v1831 = vmul.f32 %v1751, 0.044715
  %v1832 = vmul.f32 %v1752, 0.044715
  %v1833 = vmul.f32 %v1753, 0.044715
  %v1834 = vmul.f32 %v1754, 0.044715
  %v1835 = vmul.f32 %v1755, 0.044715
  %v1836 = vmul.f32 %v1756, 0.044715
  %v1837 = vmul.f32 %v1757, 0.044715
  %v1838 = vmul.f32 %v1758, 0.044715
  %v1839 = vmul.f32 %v1759, 0.044715
  %v1840 = vmul.f32 %v1760, 0.044715
  %v1841 = vmul.f32 %v1761, 0.044715
  %v1842 = vmul.f32 %v1762, 0.044715
  %v1843 = vmul.f32 %v1763, 0.044715
  %v1844 = vmul.f32 %v1764, 0.044715
  %v1845 = vmul.f32 %v1765, 0.044715
  %v1846 = vmul.f32 %v1766, 0.044715
  %v1847 = vmul.f32 %v1767, 0.044715
  %v1848 = vmul.f32 %v1768, 0.044715
  %v1849 = vmul.f32 %v1769, 0.044715
  %v1850 = vmul.f32 %v1770, 0.044715
  %v1851 = vmul.f32 %v1771, 0.044715
  %v1852 = vmul.f32 %v1772, 0.044715
  %v1853 = vmul.f32 %v1773, 0.044715
  %v1854 = vmul.f32 %v1774, 0.044715
  %v1855 = vmul.f32 %v1775, 0.044715
  %v1856 = vadd.f32 %v1656, %v1816
  %v1857 = vadd.f32 %v1657, %v1817
  %v1858 = vadd.f32 %v1658, %v1818
  %v1859 = vadd.f32 %v1659, %v1819
  %v1860 = vadd.f32 %v1660, %v1820
  %v1861 = vadd.f32 %v1661, %v1821
  %v1862 = vadd.f32 %v1662, %v1822
  %v1863 = vadd.f32 %v1663, %v1823
  %v1864 = vadd.f32 %v1664, %v1824
  %v1865 = vadd.f32 %v1665, %v1825
  %v1866 = vadd.f32 %v1666, %v1826
  %v1867 = vadd.f32 %v1667, %v1827
  %v1868 = vadd.f32 %v1668, %v1828
  %v1869 = vadd.f32 %v1669, %v1829
  %v1870 = vadd.f32 %v1670, %v1830
  %v1871 = vadd.f32 %v1671, %v1831
  %v1872 = vadd.f32 %v1672, %v1832
  %v1873 = vadd.f32 %v1673, %v1833
  %v1874 = vadd.f32 %v1674, %v1834
  %v1875 = vadd.f32 %v1675, %v1835
  %v1876 = vadd.f32 %v1676, %v1836
  %v1877 = vadd.f32 %v1677, %v1837
  %v1878 = vadd.f32 %v1678, %v1838
  %v1879 = vadd.f32 %v1679, %v1839
  %v1880 = vadd.f32 %v1680, %v1840
  %v1881 = vadd.f32 %v1681, %v1841
  %v1882 = vadd.f32 %v1682, %v1842
  %v1883 = vadd.f32 %v1683, %v1843
  %v1884 = vadd.f32 %v1684, %v1844
  %v1885 = vadd.f32 %v1685, %v1845
  %v1886 = vadd.f32 %v1686, %v1846
  %v1887 = vadd.f32 %v1687, %v1847
  %v1888 = vadd.f32 %v1688, %v1848
  %v1889 = vadd.f32 %v1689, %v1849
  %v1890 = vadd.f32 %v1690, %v1850
  %v1891 = vadd.f32 %v1691, %v1851
  %v1892 = vadd.f32 %v1692, %v1852
  %v1893 = vadd.f32 %v1693, %v1853
  %v1894 = vadd.f32 %v1694, %v1854
  %v1895 = vadd.f32 %v1695, %v1855
  %v1896 = vmul.f32 %v1856, 0.7978846
  %v1897 = vmul.f32 %v1857, 0.7978846
  %v1898 = vmul.f32 %v1858, 0.7978846
  %v1899 = vmul.f32 %v1859, 0.7978846
  %v1900 = vmul.f32 %v1860, 0.7978846
  %v1901 = vmul.f32 %v1861, 0.7978846
  %v1902 = vmul.f32 %v1862, 0.7978846
  %v1903 = vmul.f32 %v1863, 0.7978846
  %v1904 = vmul.f32 %v1864, 0.7978846
  %v1905 = vmul.f32 %v1865, 0.7978846
  %v1906 = vmul.f32 %v1866, 0.7978846
  %v1907 = vmul.f32 %v1867, 0.7978846
  %v1908 = vmul.f32 %v1868, 0.7978846
  %v1909 = vmul.f32 %v1869, 0.7978846
  %v1910 = vmul.f32 %v1870, 0.7978846
  %v1911 = vmul.f32 %v1871, 0.7978846
  %v1912 = vmul.f32 %v1872, 0.7978846
  %v1913 = vmul.f32 %v1873, 0.7978846
  %v1914 = vmul.f32 %v1874, 0.7978846
  %v1915 = vmul.f32 %v1875, 0.7978846
  %v1916 = vmul.f32 %v1876, 0.7978846
  %v1917 = vmul.f32 %v1877, 0.7978846
  %v1918 = vmul.f32 %v1878, 0.7978846
  %v1919 = vmul.f32 %v1879, 0.7978846
  %v1920 = vmul.f32 %v1880, 0.7978846
  %v1921 = vmul.f32 %v1881, 0.7978846
  %v1922 = vmul.f32 %v1882, 0.7978846
  %v1923 = vmul.f32 %v1883, 0.7978846
  %v1924 = vmul.f32 %v1884, 0.7978846
  %v1925 = vmul.f32 %v1885, 0.7978846
  %v1926 = vmul.f32 %v1886, 0.7978846
  %v1927 = vmul.f32 %v1887, 0.7978846
  %v1928 = vmul.f32 %v1888, 0.7978846
  %v1929 = vmul.f32 %v1889, 0.7978846
  %v1930 = vmul.f32 %v1890, 0.7978846
  %v1931 = vmul.f32 %v1891, 0.7978846
  %v1932 = vmul.f32 %v1892, 0.7978846
  %v1933 = vmul.f32 %v1893, 0.7978846
  %v1934 = vmul.f32 %v1894, 0.7978846
  %v1935 = vmul.f32 %v1895, 0.7978846
  %v1936 = vtanh.pop %v1896
  %v1937 = vtanh.pop %v1897
  %v1938 = vtanh.pop %v1898
  %v1939 = vtanh.pop %v1899
  %v1940 = vtanh.pop %v1900
  %v1941 = vtanh.pop %v1901
  %v1942 = vtanh.pop %v1902
  %v1943 = vtanh.pop %v1903
  %v1944 = vtanh.pop %v1904
  %v1945 = vtanh.pop %v1905
  %v1946 = vtanh.pop %v1906
  %v1947 = vtanh.pop %v1907
  %v1948 = vtanh.pop %v1908
  %v1949 = vtanh.pop %v1909
  %v1950 = vtanh.pop %v1910
  %v1951 = vtanh.pop %v1911
  %v1952 = vtanh.pop %v1912
  %v1953 = vtanh.pop %v1913
  %v1954 = vtanh.pop %v1914
  %v1955 = vtanh.pop %v1915
  %v1956 = vtanh.pop %v1916
  %v1957 = vtanh.pop %v1917
  %v1958 = vtanh.pop %v1918
  %v1959 = vtanh.pop %v1919
  %v1960 = vtanh.pop %v1920
  %v1961 = vtanh.pop %v1921
  %v1962 = vtanh.pop %v1922
  %v1963 = vtanh.pop %v1923
  %v1964 = vtanh.pop %v1924
  %v1965 = vtanh.pop %v1925
  %v1966 = vtanh.pop %v1926
  %v1967 = vtanh.pop %v1927
  %v1968 = vtanh.pop %v1928
  %v1969 = vtanh.pop %v1929
  %v1970 = vtanh.pop %v1930
  %v1971 = vtanh.pop %v1931
  %v1972 = vtanh.pop %v1932
  %v1973 = vtanh.pop %v1933
  %v1974 = vtanh.pop %v1934
  %v1975 = vtanh.pop %v1935
  %v1976 = vadd.f32 %v1936, 1.0
  %v1977 = vadd.f32 %v1937, 1.0
  %v1978 = vadd.f32 %v1938, 1.0
  %v1979 = vadd.f32 %v1939, 1.0
  %v1980 = vadd.f32 %v1940, 1.0
  %v1981 = vadd.f32 %v1941, 1.0
  %v1982 = vadd.f32 %v1942, 1.0
  %v1983 = vadd.f32 %v1943, 1.0
  %v1984 = vadd.f32 %v1944, 1.0
  %v1985 = vadd.f32 %v1945, 1.0
  %v1986 = vadd.f32 %v1946, 1.0
  %v1987 = vadd.f32 %v1947, 1.0
  %v1988 = vadd.f32 %v1948, 1.0
  %v1989 = vadd.f32 %v1949, 1.0
  %v1990 = vadd.f32 %v1950, 1.0
  %v1991 = vadd.f32 %v1951, 1.0
  %v1992 = vadd.f32 %v1952, 1.0
  %v1993 = vadd.f32 %v1953, 1.0
  %v1994 = vadd.f32 %v1954, 1.0
  %v1995 = vadd.f32 %v1955, 1.0
  %v1996 = vadd.f32 %v1956, 1.0
  %v1997 = vadd.f32 %v1957, 1.0
  %v1998 = vadd.f32 %v1958, 1.0
  %v1999 = vadd.f32 %v1959, 1.0
  %v2000 = vadd.f32 %v1960, 1.0
  %v2001 = vadd.f32 %v1961, 1.0
  %v2002 = vadd.f32 %v1962, 1.0
  %v2003 = vadd.f32 %v1963, 1.0
  %v2004 = vadd.f32 %v1964, 1.0
  %v2005 = vadd.f32 %v1965, 1.0
  %v2006 = vadd.f32 %v1966, 1.0
  %v2007 = vadd.f32 %v1967, 1.0
  %v2008 = vadd.f32 %v1968, 1.0
  %v2009 = vadd.f32 %v1969, 1.0
  %v2010 = vadd.f32 %v1970, 1.0
  %v2011 = vadd.f32 %v1971, 1.0
  %v2012 = vadd.f32 %v1972, 1.0
  %v2013 = vadd.f32 %v1973, 1.0
  %v2014 = vadd.f32 %v1974, 1.0
  %v2015 = vadd.f32 %v1975, 1.0
  %v2016 = vmul.f32 %v1776, %v1976
  %v2017 = vmul.f32 %v1777, %v1977
  %v2018 = vmul.f32 %v1778, %v1978
  %v2019 = vmul.f32 %v1779, %v1979
  %v2020 = vmul.f32 %v1780, %v1980
  %v2021 = vmul.f32 %v1781, %v1981
  %v2022 = vmul.f32 %v1782, %v1982
  %v2023 = vmul.f32 %v1783, %v1983
  %v2024 = vmul.f32 %v1784, %v1984
  %v2025 = vmul.f32 %v1785, %v1985
  %v2026 = vmul.f32 %v1786, %v1986
  %v2027 = vmul.f32 %v1787, %v1987
  %v2028 = vmul.f32 %v1788, %v1988
  %v2029 = vmul.f32 %v1789, %v1989
  %v2030 = vmul.f32 %v1790, %v1990
  %v2031 = vmul.f32 %v1791, %v1991
  %v2032 = vmul.f32 %v1792, %v1992
  %v2033 = vmul.f32 %v1793, %v1993
  %v2034 = vmul.f32 %v1794, %v1994
  %v2035 = vmul.f32 %v1795, %v1995
  %v2036 = vmul.f32 %v1796, %v1996
  %v2037 = vmul.f32 %v1797, %v1997
  %v2038 = vmul.f32 %v1798, %v1998
  %v2039 = vmul.f32 %v1799, %v1999
  %v2040 = vmul.f32 %v1800, %v2000
  %v2041 = vmul.f32 %v1801, %v2001
  %v2042 = vmul.f32 %v1802, %v2002
  %v2043 = vmul.f32 %v1803, %v2003
  %v2044 = vmul.f32 %v1804, %v2004
  %v2045 = vmul.f32 %v1805, %v2005
  %v2046 = vmul.f32 %v1806, %v2006
  %v2047 = vmul.f32 %v1807, %v2007
  %v2048 = vmul.f32 %v1808, %v2008
  %v2049 = vmul.f32 %v1809, %v2009
  %v2050 = vmul.f32 %v1810, %v2010
  %v2051 = vmul.f32 %v1811, %v2011
  %v2052 = vmul.f32 %v1812, %v2012
  %v2053 = vmul.f32 %v1813, %v2013
  %v2054 = vmul.f32 %v1814, %v2014
  %v2055 = vmul.f32 %v1815, %v2015
  %2056 = vst.msk [vmem:[%s3] sm:$0xff] %vm546, %v2016
  %vm2057 = vcmask 25600
  %2058 = vst.msk [vmem:[%s3 + $0x8] sm:$0x3] %vm2057, %v2017
  %2059 = vst.msk [vmem:[%s3 + $0x10] sm:$0xff] %vm546, %v2018
  %2060 = vst.msk [vmem:[%s3 + $0x18] sm:$0x3] %vm2057, %v2019
  %2061 = vst.msk [vmem:[%s3 + $0x20] sm:$0xff] %vm546, %v2020
  %2062 = vst.msk [vmem:[%s3 + $0x28] sm:$0x3] %vm2057, %v2021
  %2063 = vst.msk [vmem:[%s3 + $0x30] sm:$0xff] %vm546, %v2022
  %2064 = vst.msk [vmem:[%s3 + $0x38] sm:$0x3] %vm2057, %v2023
  %2065 = vst.msk [vmem:[%s3 + $0x40] sm:$0xff] %vm546, %v2024
  %2066 = vst.msk [vmem:[%s3 + $0x48] sm:$0x3] %vm2057, %v2025
  %2067 = vst.msk [vmem:[%s3 + $0x50] sm:$0xff] %vm546, %v2026
  %2068 = vst.msk [vmem:[%s3 + $0x58] sm:$0x3] %vm2057, %v2027
  %2069 = vst.msk [vmem:[%s3 + $0x60] sm:$0xff] %vm546, %v2028
  %2070 = vst.msk [vmem:[%s3 + $0x68] sm:$0x3] %vm2057, %v2029
  %2071 = vst.msk [vmem:[%s3 + $0x70] sm:$0xff] %vm546, %v2030
  %2072 = vst.msk [vmem:[%s3 + $0x78] sm:$0x3] %vm2057, %v2031
  %2073 = vst.msk [vmem:[%s3 + $0x80] sm:$0xff] %vm546, %v2032
  %2074 = vst.msk [vmem:[%s3 + $0x88] sm:$0x3] %vm2057, %v2033
  %2075 = vst.msk [vmem:[%s3 + $0x90] sm:$0xff] %vm546, %v2034
  %2076 = vst.msk [vmem:[%s3 + $0x98] sm:$0x3] %vm2057, %v2035
  %2077 = vst.msk [vmem:[%s3 + $0xa0] sm:$0xff] %vm546, %v2036
  %2078 = vst.msk [vmem:[%s3 + $0xa8] sm:$0x3] %vm2057, %v2037
  %2079 = vst.msk [vmem:[%s3 + $0xb0] sm:$0xff] %vm546, %v2038
  %2080 = vst.msk [vmem:[%s3 + $0xb8] sm:$0x3] %vm2057, %v2039
  %2081 = vst.msk [vmem:[%s3 + $0xc0] sm:$0xff] %vm546, %v2040
  %2082 = vst.msk [vmem:[%s3 + $0xc8] sm:$0x3] %vm2057, %v2041
  %2083 = vst.msk [vmem:[%s3 + $0xd0] sm:$0xff] %vm546, %v2042
  %2084 = vst.msk [vmem:[%s3 + $0xd8] sm:$0x3] %vm2057, %v2043
  %2085 = vst.msk [vmem:[%s3 + $0xe0] sm:$0xff] %vm546, %v2044
  %2086 = vst.msk [vmem:[%s3 + $0xe8] sm:$0x3] %vm2057, %v2045
  %2087 = vst.msk [vmem:[%s3 + $0xf0] sm:$0xff] %vm546, %v2046
  %2088 = vst.msk [vmem:[%s3 + $0xf8] sm:$0x3] %vm2057, %v2047
  %2089 = vst.msk [vmem:[%s3 + $0x100] sm:$0xff] %vm546, %v2048
  %2090 = vst.msk [vmem:[%s3 + $0x108] sm:$0x3] %vm2057, %v2049
  %2091 = vst.msk [vmem:[%s3 + $0x110] sm:$0xff] %vm546, %v2050
  %2092 = vst.msk [vmem:[%s3 + $0x118] sm:$0x3] %vm2057, %v2051
  %2093 = vst.msk [vmem:[%s3 + $0x120] sm:$0xff] %vm546, %v2052
  %2094 = vst.msk [vmem:[%s3 + $0x128] sm:$0x3] %vm2057, %v2053
  %2095 = vst.msk [vmem:[%s3 + $0x130] sm:$0xff] %vm546, %v2054
  %2096 = vst.msk [vmem:[%s3 + $0x138] sm:$0x3] %vm2057, %v2055
  // Predicated region
  $region14: #{lmsa_forward.12} parent=0 // pred_check
    _
  $region15: #{lmsa_forward.12} parent=0 // pred_check_branch
    %2098 = sbr.rel (0) target = $region17
  $region16: #{lmsa_forward.12} parent=0 // pred_region
    _
  $region17: #{lmsa_forward.12} parent=0 // pred_fallthru
    _
  // Predicated region
  $region18: #{lmsa_forward.12} parent=0 // pred_check
    _
  $region19: #{lmsa_forward.12} parent=0 // pred_check_branch
    %2100 = sbr.rel (0) target = $region21
  $region20: #{lmsa_forward.12} parent=0 // pred_region
    _
  $region21: #{lmsa_forward.12} parent=0 // pred_fallthru
    _

</llo_original>
